<compile_context>
chip_gen: v7x
topology: tpu7x:2x2x1
jax: 0.10.0
libtpu: 0.0.40
codegen_flags: <defaults>
</compile_context>

<pallas_src>
import math

import jax
import jax.numpy as jnp
from jax.experimental import pallas as pl
from jax.experimental.pallas import tpu as pltpu

# ----------------------------------------------------------------------------------
# CombinedModel(n_cnn_l=2, n_rnn_l=2, min_val=-1.0, max_val=1.0)
# ----------------------------------------------------------------------------------
MIN_VAL, MAX_VAL = -1.0, 1.0
SR, N_FFT, HOP, WIN_LEN, N_MELS, N_MFCC = 8000, 2048, 512, 400, 128, 20
HIDDEN = 64
# __init__ dummy (1,1,20,79): conv1(valid 3x3)->(32,18,77)->pool->(32,9,38)
#                             conv2(pad=1 3x3)->(32,9,38) ->pool->(32,4,19)
RNN_INPUT_SIZE = 32 * 4 * 19       # 2432  (forward's x.view gives seq_len == 1)

LSTM_BB = 512                      # max batch tile for the LSTM / linear head


def _round_up(x, m):
    return ((x + m - 1) // m) * m


# ---------------------------------------------------------------------------------
# Fused conv stack: conv1+ReLU+pool -> padding=1 (in VMEM) -> conv2+ReLU+pool -> flatten
# ---------------------------------------------------------------------------------
def conv_stack_kernel(x_ref, w1_ref, b1_ref, w2_ref, b2_ref, se1_ref, se2_ref,
                      o_ref, xp_scr):
    """SB samples per grid step (w-major orientation: sublane = width, lane = channel-ish).
    x_ref : (SB, 77, 60) bf16   pre-shifted MFCC image, lane = kw*20 + input_row
    w1_ref: (9, 60, 64)  bf16   per-pooled-row conv1 weights -> [even|odd conv row]*32+co
    b1_ref: (1, 32) f32
    w2_ref: (512, 64)    bf16   conv2 weights, lane = rr*128 + kw*32 + ci -> [even|odd]*32+co
    b2_ref: (1, 32) f32
    se1_ref: (38, 76) bf16      even-row selection (conv1 2x2 width pooling)
    se2_ref: (19, 37) bf16      even-row selection (conv2 2x2 width pooling)
    o_ref : (SB, 19, 128) bf16  features, [w, h*32 + co]  (lane-dense)
    xp_scr: (38, 1408)   bf16   conv2 padded operand, lane = pad_row*128 + kw*32 + ci
    """
    b1 = b1_ref[...]
    b2 = b2_ref[...]
    se1 = se1_ref[...]
    se2 = se2_ref[...]

    # Zero once per grid step: padding rows r=0/10 and the 32 dead lanes of every row
    # block stay zero (conv2's padding=1); every other cell is rewritten per sample.
    xp_scr[...] = jnp.zeros(xp_scr.shape, xp_scr.dtype)

    zrow = jnp.zeros((1, 32), jnp.float32)
    sb = x_ref.shape[0]
    for s in range(sb):
        x = x_ref[s]                                                   # (77, 60) bf16

        # ---- conv1 + ReLU + 2x2 maxpool: ONE MXU matmul per pooled row ----
        for i in range(9):                                             # pooled H rows
            acc = jnp.dot(x, w1_ref[i],
                          preferred_element_type=jnp.float32)          # (77, 64)
            m = jnp.maximum(acc[:, 0:32], acc[:, 32:64])               # H-pair max (pre-bias)
            m = jnp.maximum(m + b1, 0.0)                               # bias + ReLU (monotone)
            m2 = jnp.maximum(m[0:76, :], m[1:77, :])                   # W-pair max
            pooled = jnp.dot(se1, m2.astype(jnp.bfloat16),
                             preferred_element_type=jnp.float32)       # (38, 32)
            # scatter into conv2 operand scratch at the 3 kw shifts (padded row i+1)
            base = (i + 1) * 128
            p_kw0 = jnp.concatenate([zrow, pooled[0:37, :]], axis=0)   # x_pad[r, w]
            p_kw2 = jnp.concatenate([pooled[1:38, :], zrow], axis=0)   # x_pad[r, w+2]
            xp_scr[:, base:base + 32] = p_kw0.astype(jnp.bfloat16)
            xp_scr[:, base + 32:base + 64] = pooled.astype(jnp.bfloat16)
            xp_scr[:, base + 64:base + 96] = p_kw2.astype(jnp.bfloat16)

        # ---- conv2 (pad=1 via zero lanes) + ReLU + 2x2 maxpool: ONE matmul per pooled row ----
        chunks = []
        for i in range(4):                                             # pooled H rows
            op = xp_scr[:, 256 * i:256 * i + 512]                      # (38, 512), 128-aligned
            acc = jnp.dot(op, w2_ref[...],
                          preferred_element_type=jnp.float32)          # (38, 64)
            m = jnp.maximum(acc[:, 0:32], acc[:, 32:64])
            m = jnp.maximum(m + b2, 0.0)
            m2 = jnp.maximum(m[0:37, :], m[1:38, :])
            chunks.append(jnp.dot(se2, m2.astype(jnp.bfloat16),
                                  preferred_element_type=jnp.float32))  # (19, 32)
        # single lane-dense store per sample: (19, 128), lane = h*32 + co
        o_ref[s] = jnp.concatenate(chunks, axis=1).astype(jnp.bfloat16)


def _sigmoid(v):
    return 1.0 / (1.0 + jnp.exp(-v))


def lstm_head_kernel(x_ref, wih0_ref, b0_ref, wih1_ref, b1_ref,
                     wl1_ref, bl1_ref, wl2_ref, bl2_ref, o_ref):
    """2-layer LSTM (seq_len==1, zero init state) + Linear(64,32)+ReLU+Linear(32,6).
    h0 = c0 = 0 and seq_len == 1, so W_hh@h and f*c_prev are exactly zero and omitted;
    gates are pre-packed in glue as [i | o | g] (192 lanes, f-gate dropped)."""
    x = x_ref[...]                                                     # (bb, 2432) bf16

    def lstm_step(g):                                                  # (bb, 192) f32
        sg = _sigmoid(g[:, 0:128])                                     # i | o
        tg = jnp.tanh(g[:, 128:192])                                   # g
        c = sg[:, 0:64] * tg                                           # i * g  (f*c_prev == 0)
        return sg[:, 64:128] * jnp.tanh(c)                             # o * tanh(c)

    g0 = jnp.dot(x, wih0_ref[...], preferred_element_type=jnp.float32) + b0_ref[...]
    h0 = lstm_step(g0)                                                 # (bb, 64)
    g1 = jnp.dot(h0.astype(jnp.bfloat16), wih1_ref[...],
                 preferred_element_type=jnp.float32) + b1_ref[...]
    h1 = lstm_step(g1)                                                 # (bb, 64)

    y = jnp.maximum(jnp.dot(h1, wl1_ref[...],
                            preferred_element_type=jnp.float32) + bl1_ref[...], 0.0)
    o_ref[...] = jnp.dot(y, wl2_ref[...],
                         preferred_element_type=jnp.float32) + bl2_ref[...]


# ---------------------------------------------------------------------------------
# pallas_call wrappers
# ---------------------------------------------------------------------------------
def conv_stack_pallas(xcat, w1big, b1, w2p, b2, se1, se2, sb):
    Bc = xcat.shape[0]
    full = lambda a: pl.BlockSpec(a.shape, lambda b: (0,) * a.ndim)
    return pl.pallas_call(
        conv_stack_kernel,
        out_shape=jax.ShapeDtypeStruct((Bc, 19, 128), jnp.bfloat16),
        grid=(Bc // sb,),
        in_specs=[pl.BlockSpec((sb, 77, 60), lambda b: (b, 0, 0)),
                  full(w1big), full(b1), full(w2p), full(b2), full(se1), full(se2)],
        out_specs=pl.BlockSpec((sb, 19, 128), lambda b: (b, 0, 0)),
        scratch_shapes=[pltpu.VMEM((38, 11 * 128), jnp.bfloat16)],
        compiler_params=pltpu.CompilerParams(dimension_semantics=("parallel",)),
    )(xcat, w1big, b1, w2p, b2, se1, se2)


def lstm_head_pallas(feat, n_valid, wih0, b0, wih1, b1, wl1, bl1, wl2, bl2):
    Bf, D = feat.shape
    # keep >=2 grid steps when possible (v7x megacore), tile <= LSTM_BB, multiple of 16
    bb = min(LSTM_BB, max(16, _round_up((Bf + 1) // 2, 16)))
    Bp = _round_up(Bf, bb)
    if Bp != Bf:
        feat = jnp.pad(feat, ((0, Bp - Bf), (0, 0)))
    full = lambda a: pl.BlockSpec(a.shape, lambda i: (0,) * a.ndim)
    out = pl.pallas_call(
        lstm_head_kernel,
        out_shape=jax.ShapeDtypeStruct((Bp, 6), jnp.float32),
        grid=(Bp // bb,),
        in_specs=[pl.BlockSpec((bb, D), lambda i: (i, 0)),
                  full(wih0), full(b0), full(wih1), full(b1),
                  full(wl1), full(bl1), full(wl2), full(bl2)],
        out_specs=pl.BlockSpec((bb, 6), lambda i: (i, 0)),
        compiler_params=pltpu.CompilerParams(dimension_semantics=("parallel",)),
    )(feat, wih0, b0, wih1, b1, wl1, bl1, wl2, bl2)
    return out[:n_valid]


# ---------------------------------------------------------------------------------
# MFCC (torchaudio.transforms.MFCC semantics) — plain JAX glue (uses XLA FFT).
# TODO(synk): MFCC/STFT front-end stays in plain JAX — no Pallas FFT primitive on TPU.
# ---------------------------------------------------------------------------------
def mfcc_jax(x):
    """x: (B, 1, T) float32 -> (B, n_frames, n_mfcc) == (B, 79, 20)  (w-major)."""
    B, C, T = x.shape
    xf = x.reshape(B * C, T)
    pad = N_FFT // 2
    xp = jnp.pad(xf, ((0, 0), (pad, pad)), mode="reflect")            # center=True
    n_frames = 1 + T // HOP
    idx = jnp.arange(n_frames)[:, None] * HOP + jnp.arange(N_FFT)[None, :]
    frames = xp[:, idx]                                               # (BC, F, n_fft)

    n = jnp.arange(WIN_LEN, dtype=jnp.float32)
    win = 0.5 * (1.0 - jnp.cos(2.0 * jnp.pi * n / WIN_LEN))           # periodic hann
    lpad = (N_FFT - WIN_LEN) // 2
    win = jnp.pad(win, (lpad, N_FFT - WIN_LEN - lpad))                # center-padded

    spec = jnp.abs(jnp.fft.rfft(frames * win, axis=-1)) ** 2          # power=2.0

    # mel filterbank: htk scale, norm=None, f_min=0, f_max=sr//2
    all_freqs = jnp.linspace(0.0, SR / 2.0, N_FFT // 2 + 1)
    hz2mel = lambda f: 2595.0 * jnp.log10(1.0 + f / 700.0)
    mel2hz = lambda m: 700.0 * (10.0 ** (m / 2595.0) - 1.0)
    m_pts = jnp.linspace(hz2mel(jnp.float32(0.0)), hz2mel(jnp.float32(SR / 2.0)),
                         N_MELS + 2)
    f_pts = mel2hz(m_pts)
    f_diff = f_pts[1:] - f_pts[:-1]
    slopes = f_pts[None, :] - all_freqs[:, None]
    down = -slopes[:, :-2] / f_diff[:-1]
    up = slopes[:, 2:] / f_diff[1:]
    fb = jnp.maximum(0.0, jnp.minimum(down, up))                      # (1025, 128)

    mel = jnp.einsum("btf,fm->btm", spec, fb)                         # (BC, F, 128)
    mel_db = 10.0 * jnp.log10(jnp.maximum(mel, 1e-10))                # AmplitudeToDB

    # DCT-II, ortho norm, keep n_mfcc coefficients
    nv = jnp.arange(N_MELS, dtype=jnp.float32)
    k = jnp.arange(N_MFCC, dtype=jnp.float32)[:, None]
    dct = jnp.cos(math.pi / N_MELS * (nv + 0.5) * k) * math.sqrt(2.0 / N_MELS)
    dct = dct.at[0].multiply(1.0 / math.sqrt(2.0))
    dct = dct.T                                                       # (128, 20)

    mfcc = jnp.einsum("btm,mk->btk", mel_db, dct)                     # (BC, F, 20)
    return mfcc.reshape(B, n_frames, N_MFCC)                          # C == 1


# ---------------------------------------------------------------------------------
# Parameters (deterministic synthetic init, PyTorch shapes) and forward pass
# ---------------------------------------------------------------------------------
def sel_even_rows(n_out, n_in):
    """(n_out, n_in) 0/1 matrix selecting even rows: out[j, :] = in[2j, :]."""
    j = jnp.arange(n_out)
    return jnp.zeros((n_out, n_in), jnp.float32).at[j, 2 * j].set(1.0)


def init_params(key):
    ks = jax.random.split(key, 16)
    nrm = lambda k, shape, s: (s * jax.random.normal(k, shape)).astype(jnp.float32)
    p = {}
    # conv layers (torch layout: (out, in, kh, kw))
    p["w1_t"] = nrm(ks[0], (32, 1, 3, 3), 0.3)
    p["b1_t"] = nrm(ks[1], (32,), 0.1)
    p["w2_t"] = nrm(ks[2], (32, 32, 3, 3), 0.06)
    p["b2_t"] = nrm(ks[3], (32,), 0.1)
    # LSTM (torch layout: W_ih (4H, in), W_hh (4H, H), biases (4H,))
    p["wih0"] = nrm(ks[4], (4 * HIDDEN, RNN_INPUT_SIZE), 0.02)
    p["whh0"] = nrm(ks[5], (4 * HIDDEN, HIDDEN), 0.1)   # unused: h0 == 0, seq_len == 1
    p["bih0"] = nrm(ks[6], (4 * HIDDEN,), 0.1)
    p["bhh0"] = nrm(ks[7], (4 * HIDDEN,), 0.1)
    p["wih1"] = nrm(ks[8], (4 * HIDDEN, HIDDEN), 0.1)
    p["whh1"] = nrm(ks[9], (4 * HIDDEN, HIDDEN), 0.1)   # unused for the same reason
    p["bih1"] = nrm(ks[10], (4 * HIDDEN,), 0.1)
    p["bhh1"] = nrm(ks[11], (4 * HIDDEN,), 0.1)
    # heads
    p["l1w"] = nrm(ks[12], (32, HIDDEN), 0.1)
    p["l1b"] = nrm(ks[13], (32,), 0.1)
    p["l2w"] = nrm(ks[14], (6, 32), 0.1)
    p["l2b"] = nrm(ks[15], (6,), 0.1)
    return p


def forward(x_audio, p):
    # (x - min) / (max - min + 1e-7)
    xn = (x_audio - MIN_VAL) / (MAX_VAL - MIN_VAL + 1e-7)
    mfT = mfcc_jax(xn).astype(jnp.bfloat16)             # (B, 79, 20), w-major
    B = mfT.shape[0]
    # fold conv1's kw taps into the lane dim in glue: lane = kw*20 + input_row
    xcat = jnp.concatenate([mfT[:, 0:77, :], mfT[:, 1:78, :], mfT[:, 2:79, :]],
                           axis=2)                      # (B, 77, 60)

    sb = 8 if B >= 16 else max(1, B // 2)
    Bc = _round_up(B, sb)
    if Bc != B:
        xcat = jnp.pad(xcat, ((0, Bc - B), (0, 0), (0, 0)))

    # conv1 weights: per-pooled-row (60, 64) blocks; col 0:32 = even conv row, 32:64 = odd
    w1k = jnp.transpose(p["w1_t"][:, 0], (1, 2, 0))     # (kh, kw, co)
    w1big = jnp.zeros((9, 3, 20, 64), jnp.float32)      # [pooled_row, kw, input_row, co_pair]
    for i in range(9):
        for kh in range(3):
            w1big = w1big.at[i, :, 2 * i + kh, 0:32].set(w1k[kh])
            w1big = w1big.at[i, :, 2 * i + 1 + kh, 32:64].set(w1k[kh])
    w1big = w1big.reshape(9, 60, 64).astype(jnp.bfloat16)
    b1 = p["b1_t"].reshape(1, 32)

    # conv2 weights: lane index rr*128 + kw*32 + ci  (rr = padded row offset 0..3)
    w2k = jnp.transpose(p["w2_t"], (2, 3, 1, 0))        # (kh, kw, ci, co)
    w2p = jnp.zeros((4, 4, 32, 64), jnp.float32)        # [rr, kw_slot(3=dead), ci, co_pair]
    w2p = w2p.at[0:3, 0:3, :, 0:32].set(w2k)            # even conv row: kh = rr
    w2p = w2p.at[1:4, 0:3, :, 32:64].set(w2k)           # odd  conv row: kh = rr - 1
    w2p = w2p.reshape(512, 64).astype(jnp.bfloat16)
    b2 = p["b2_t"].reshape(1, 32)

    se1 = sel_even_rows(38, 76).astype(jnp.bfloat16)
    se2 = sel_even_rows(19, 37).astype(jnp.bfloat16)

    # ---- fused conv1 -> pool -> pad -> conv2 -> pool -> flatten (single Pallas call) ----
    feat = conv_stack_pallas(xcat, w1big, b1, w2p, b2, se1, se2, sb)  # (Bc, 19, 128) bf16
    feat = feat.reshape(Bc, RNN_INPUT_SIZE)             # free bitcast, feature = w*128+h*32+c

    # ---- LSTM gate packing: torch rows [i,f,g,o] -> [i,o,g]; f dropped (c0 == 0) ----
    def pack_gates(w):
        return jnp.concatenate([w[0:64], w[192:256], w[128:192]], axis=0)

    # permute wih0 columns from torch flatten (c*76 + h*19 + w) to our (w*128 + h*32 + c)
    wih0 = p["wih0"].reshape(256, 32, 4, 19)            # [gate, c, h, w]
    wih0 = jnp.transpose(wih0, (0, 3, 2, 1)).reshape(256, RNN_INPUT_SIZE)
    wih0 = pack_gates(wih0).T.astype(jnp.bfloat16)      # (2432, 192)
    b0 = pack_gates((p["bih0"] + p["bhh0"]).reshape(256, 1)).reshape(1, 192)
    wih1 = pack_gates(p["wih1"]).T.astype(jnp.bfloat16)  # (64, 192)
    b1r = pack_gates((p["bih1"] + p["bhh1"]).reshape(256, 1)).reshape(1, 192)

    out = lstm_head_pallas(
        feat, B,
        wih0, b0, wih1, b1r,
        p["l1w"].T, p["l1b"].reshape(1, -1),
        p["l2w"].T, p["l2b"].reshape(1, -1))
    return out                                          # (B, 6) f32


if __name__ == "__main__":
    key = jax.random.PRNGKey(0)
    kx, kp = jax.random.split(key)
    # 5 s of 8 kHz audio -> 79 STFT frames, matching the module's baked-in
    # rnn_input_size (so x.view(B, -1, rnn_input_size) yields seq_len == 1).
    B, T = 2, 40000
    x = jax.random.uniform(kx, (B, 1, T), jnp.float32, minval=-1.0, maxval=1.0)
    params = init_params(kp)

    out = jax.jit(forward)(x, params)
    out = jax.block_until_ready(out)
    assert out.shape == (B, 6) and out.dtype == jnp.float32
    print("KERNEL_OK")
</pallas_src>

<mosaic_0001>
module attributes {stable_mosaic.version = 11 : i64} {
  func.func @conv_stack_kernel(%arg0: i32, %arg1: memref<1x77x60xbf16, #tpu.memory_space<vmem>>, %arg2: memref<9x60x64xbf16, #tpu.memory_space<vmem>>, %arg3: memref<1x32xf32, #tpu.memory_space<vmem>>, %arg4: memref<512x64xbf16, #tpu.memory_space<vmem>>, %arg5: memref<1x32xf32, #tpu.memory_space<vmem>>, %arg6: memref<38x76xbf16, #tpu.memory_space<vmem>>, %arg7: memref<19x37xbf16, #tpu.memory_space<vmem>>, %arg8: memref<1x19x128xbf16, #tpu.memory_space<vmem>>, %arg9: memref<38x1408xbf16, #tpu.memory_space<vmem>>) attributes {dimension_semantics = [#tpu.dimension_semantics<parallel>], iteration_bounds = array<i64: 2>, scalar_prefetch = 0 : i64, scratch_operands = 1 : i64, tpu.core_type = #tpu.core_type<tc>, window_params = [{transform_indices = @transform_0, window_bounds = array<i64: 1, 77, 60>}, {pipeline_mode = #tpu.pipeline_mode<synchronous>, transform_indices = @transform_1, window_bounds = array<i64: 9, 60, 64>}, {pipeline_mode = #tpu.pipeline_mode<synchronous>, transform_indices = @transform_2, window_bounds = array<i64: 1, 32>}, {pipeline_mode = #tpu.pipeline_mode<synchronous>, transform_indices = @transform_3, window_bounds = array<i64: 512, 64>}, {pipeline_mode = #tpu.pipeline_mode<synchronous>, transform_indices = @transform_4, window_bounds = array<i64: 1, 32>}, {pipeline_mode = #tpu.pipeline_mode<synchronous>, transform_indices = @transform_5, window_bounds = array<i64: 38, 76>}, {pipeline_mode = #tpu.pipeline_mode<synchronous>, transform_indices = @transform_6, window_bounds = array<i64: 19, 37>}, {transform_indices = @transform_7, window_bounds = array<i64: 1, 19, 128>}]} {
    %c0 = arith.constant 0 : index
    %c0_0 = arith.constant 0 : index
    %0 = vector.load %arg3[%c0, %c0_0] : memref<1x32xf32, #tpu.memory_space<vmem>>, vector<1x32xf32>
    %c0_1 = arith.constant 0 : index
    %c0_2 = arith.constant 0 : index
    %1 = vector.load %arg5[%c0_1, %c0_2] : memref<1x32xf32, #tpu.memory_space<vmem>>, vector<1x32xf32>
    %c0_3 = arith.constant 0 : index
    %c0_4 = arith.constant 0 : index
    %2 = vector.load %arg6[%c0_3, %c0_4] : memref<38x76xbf16, #tpu.memory_space<vmem>>, vector<38x76xbf16>
    %c0_5 = arith.constant 0 : index
    %c0_6 = arith.constant 0 : index
    %3 = vector.load %arg7[%c0_5, %c0_6] : memref<19x37xbf16, #tpu.memory_space<vmem>>, vector<19x37xbf16>
    %cst = arith.constant 0.000000e+00 : bf16
    %4 = vector.broadcast %cst : bf16 to vector<38x1408xbf16>
    %c0_7 = arith.constant 0 : index
    %c0_8 = arith.constant 0 : index
    %5 = vector.load %arg9[%c0_7, %c0_8] : memref<38x1408xbf16, #tpu.memory_space<vmem>>, vector<38x1408xbf16>
    tpu.vector_store %arg9[%c0_7, %c0_8], %4 {strides = array<i32>} : memref<38x1408xbf16, #tpu.memory_space<vmem>>, vector<38x1408xbf16>,
    %cst_9 = arith.constant 0.000000e+00 : f32
    %6 = vector.broadcast %cst_9 : f32 to vector<1x32xf32>
    %c0_10 = arith.constant 0 : index
    %c0_11 = arith.constant 0 : index
    %c0_12 = arith.constant 0 : index
    %7 = vector.load %arg1[%c0_10, %c0_11, %c0_12] : memref<1x77x60xbf16, #tpu.memory_space<vmem>>, vector<1x77x60xbf16>
    %8 = vector.shape_cast %7 : vector<1x77x60xbf16> to vector<77x60xbf16>
    %c0_13 = arith.constant 0 : index
    %c0_14 = arith.constant 0 : index
    %c0_15 = arith.constant 0 : index
    %9 = vector.load %arg2[%c0_13, %c0_14, %c0_15] : memref<9x60x64xbf16, #tpu.memory_space<vmem>>, vector<1x60x64xbf16>
    %10 = vector.shape_cast %9 : vector<1x60x64xbf16> to vector<60x64xbf16>
    %cst_16 = arith.constant dense<0.000000e+00> : vector<77x64xf32>
    %11 = tpu.matmul %8, %10, %cst_16 {dimension_numbers = #tpu.dot_dimension_numbers<[1], [0], [0], [1], [0, 0, 1, 1], [], []>} : vector<77x60xbf16>, vector<60x64xbf16>, vector<77x64xf32> -> vector<77x64xf32>
    %12 = vector.extract_strided_slice %11 {offsets = [0, 0], sizes = [77, 32], strides = [1, 1]} : vector<77x64xf32> to vector<77x32xf32>
    %13 = vector.extract_strided_slice %11 {offsets = [0, 32], sizes = [77, 32], strides = [1, 1]} : vector<77x64xf32> to vector<77x32xf32>
    %14 = arith.maximumf %12, %13 : vector<77x32xf32>
    %15 = vector.broadcast %0 : vector<1x32xf32> to vector<77x32xf32>
    %16 = arith.addf %14, %15 : vector<77x32xf32>
    %cst_17 = arith.constant 0.000000e+00 : f32
    %17 = vector.broadcast %cst_17 : f32 to vector<77x32xf32>
    %18 = arith.maximumf %16, %17 : vector<77x32xf32>
    %19 = vector.extract_strided_slice %18 {offsets = [0, 0], sizes = [76, 32], strides = [1, 1]} : vector<77x32xf32> to vector<76x32xf32>
    %20 = vector.extract_strided_slice %18 {offsets = [1, 0], sizes = [76, 32], strides = [1, 1]} : vector<77x32xf32> to vector<76x32xf32>
    %21 = arith.maximumf %19, %20 : vector<76x32xf32>
    %22 = arith.truncf %21 : vector<76x32xf32> to vector<76x32xbf16>
    %cst_18 = arith.constant dense<0.000000e+00> : vector<38x32xf32>
    %23 = tpu.matmul %2, %22, %cst_18 {dimension_numbers = #tpu.dot_dimension_numbers<[1], [0], [0], [1], [0, 0, 1, 1], [], []>} : vector<38x76xbf16>, vector<76x32xbf16>, vector<38x32xf32> -> vector<38x32xf32>
    %24 = vector.extract_strided_slice %23 {offsets = [0, 0], sizes = [37, 32], strides = [1, 1]} : vector<38x32xf32> to vector<37x32xf32>
    %25 = tpu.concatenate %6, %24 in 0 : vector<1x32xf32>, vector<37x32xf32> -> vector<38x32xf32>
    %26 = vector.extract_strided_slice %23 {offsets = [1, 0], sizes = [37, 32], strides = [1, 1]} : vector<38x32xf32> to vector<37x32xf32>
    %27 = tpu.concatenate %26, %6 in 0 : vector<37x32xf32>, vector<1x32xf32> -> vector<38x32xf32>
    %28 = arith.truncf %25 : vector<38x32xf32> to vector<38x32xbf16>
    %c0_19 = arith.constant 0 : index
    %c128 = arith.constant 128 : index
    %29 = vector.load %arg9[%c0_19, %c128] : memref<38x1408xbf16, #tpu.memory_space<vmem>>, vector<38x32xbf16>
    tpu.vector_store %arg9[%c0_19, %c128], %28 {strides = array<i32>} : memref<38x1408xbf16, #tpu.memory_space<vmem>>, vector<38x32xbf16>,
    %30 = arith.truncf %23 : vector<38x32xf32> to vector<38x32xbf16>
    %c0_20 = arith.constant 0 : index
    %c160 = arith.constant 160 : index
    %31 = vector.load %arg9[%c0_20, %c160] : memref<38x1408xbf16, #tpu.memory_space<vmem>>, vector<38x32xbf16>
    tpu.vector_store %arg9[%c0_20, %c160], %30 {strides = array<i32>} : memref<38x1408xbf16, #tpu.memory_space<vmem>>, vector<38x32xbf16>,
    %32 = arith.truncf %27 : vector<38x32xf32> to vector<38x32xbf16>
    %c0_21 = arith.constant 0 : index
    %c192 = arith.constant 192 : index
    %33 = vector.load %arg9[%c0_21, %c192] : memref<38x1408xbf16, #tpu.memory_space<vmem>>, vector<38x32xbf16>
    tpu.vector_store %arg9[%c0_21, %c192], %32 {strides = array<i32>} : memref<38x1408xbf16, #tpu.memory_space<vmem>>, vector<38x32xbf16>,
    %c1 = arith.constant 1 : index
    %c0_22 = arith.constant 0 : index
    %c0_23 = arith.constant 0 : index
    %34 = vector.load %arg2[%c1, %c0_22, %c0_23] : memref<9x60x64xbf16, #tpu.memory_space<vmem>>, vector<1x60x64xbf16>
    %35 = vector.shape_cast %34 : vector<1x60x64xbf16> to vector<60x64xbf16>
    %cst_24 = arith.constant dense<0.000000e+00> : vector<77x64xf32>
    %36 = tpu.matmul %8, %35, %cst_24 {dimension_numbers = #tpu.dot_dimension_numbers<[1], [0], [0], [1], [0, 0, 1, 1], [], []>} : vector<77x60xbf16>, vector<60x64xbf16>, vector<77x64xf32> -> vector<77x64xf32>
    %37 = vector.extract_strided_slice %36 {offsets = [0, 0], sizes = [77, 32], strides = [1, 1]} : vector<77x64xf32> to vector<77x32xf32>
    %38 = vector.extract_strided_slice %36 {offsets = [0, 32], sizes = [77, 32], strides = [1, 1]} : vector<77x64xf32> to vector<77x32xf32>
    %39 = arith.maximumf %37, %38 : vector<77x32xf32>
    %40 = vector.broadcast %0 : vector<1x32xf32> to vector<77x32xf32>
    %41 = arith.addf %39, %40 : vector<77x32xf32>
    %cst_25 = arith.constant 0.000000e+00 : f32
    %42 = vector.broadcast %cst_25 : f32 to vector<77x32xf32>
    %43 = arith.maximumf %41, %42 : vector<77x32xf32>
    %44 = vector.extract_strided_slice %43 {offsets = [0, 0], sizes = [76, 32], strides = [1, 1]} : vector<77x32xf32> to vector<76x32xf32>
    %45 = vector.extract_strided_slice %43 {offsets = [1, 0], sizes = [76, 32], strides = [1, 1]} : vector<77x32xf32> to vector<76x32xf32>
    %46 = arith.maximumf %44, %45 : vector<76x32xf32>
    %47 = arith.truncf %46 : vector<76x32xf32> to vector<76x32xbf16>
    %cst_26 = arith.constant dense<0.000000e+00> : vector<38x32xf32>
    %48 = tpu.matmul %2, %47, %cst_26 {dimension_numbers = #tpu.dot_dimension_numbers<[1], [0], [0], [1], [0, 0, 1, 1], [], []>} : vector<38x76xbf16>, vector<76x32xbf16>, vector<38x32xf32> -> vector<38x32xf32>
    %49 = vector.extract_strided_slice %48 {offsets = [0, 0], sizes = [37, 32], strides = [1, 1]} : vector<38x32xf32> to vector<37x32xf32>
    %50 = tpu.concatenate %6, %49 in 0 : vector<1x32xf32>, vector<37x32xf32> -> vector<38x32xf32>
    %51 = vector.extract_strided_slice %48 {offsets = [1, 0], sizes = [37, 32], strides = [1, 1]} : vector<38x32xf32> to vector<37x32xf32>
    %52 = tpu.concatenate %51, %6 in 0 : vector<37x32xf32>, vector<1x32xf32> -> vector<38x32xf32>
    %53 = arith.truncf %50 : vector<38x32xf32> to vector<38x32xbf16>
    %c0_27 = arith.constant 0 : index
    %c256 = arith.constant 256 : index
    %54 = vector.load %arg9[%c0_27, %c256] : memref<38x1408xbf16, #tpu.memory_space<vmem>>, vector<38x32xbf16>
    tpu.vector_store %arg9[%c0_27, %c256], %53 {strides = array<i32>} : memref<38x1408xbf16, #tpu.memory_space<vmem>>, vector<38x32xbf16>,
    %55 = arith.truncf %48 : vector<38x32xf32> to vector<38x32xbf16>
    %c0_28 = arith.constant 0 : index
    %c288 = arith.constant 288 : index
    %56 = vector.load %arg9[%c0_28, %c288] : memref<38x1408xbf16, #tpu.memory_space<vmem>>, vector<38x32xbf16>
    tpu.vector_store %arg9[%c0_28, %c288], %55 {strides = array<i32>} : memref<38x1408xbf16, #tpu.memory_space<vmem>>, vector<38x32xbf16>,
    %57 = arith.truncf %52 : vector<38x32xf32> to vector<38x32xbf16>
    %c0_29 = arith.constant 0 : index
    %c320 = arith.constant 320 : index
    %58 = vector.load %arg9[%c0_29, %c320] : memref<38x1408xbf16, #tpu.memory_space<vmem>>, vector<38x32xbf16>
    tpu.vector_store %arg9[%c0_29, %c320], %57 {strides = array<i32>} : memref<38x1408xbf16, #tpu.memory_space<vmem>>, vector<38x32xbf16>,
    %c2 = arith.constant 2 : index
    %c0_30 = arith.constant 0 : index
    %c0_31 = arith.constant 0 : index
    %59 = vector.load %arg2[%c2, %c0_30, %c0_31] : memref<9x60x64xbf16, #tpu.memory_space<vmem>>, vector<1x60x64xbf16>
    %60 = vector.shape_cast %59 : vector<1x60x64xbf16> to vector<60x64xbf16>
    %cst_32 = arith.constant dense<0.000000e+00> : vector<77x64xf32>
    %61 = tpu.matmul %8, %60, %cst_32 {dimension_numbers = #tpu.dot_dimension_numbers<[1], [0], [0], [1], [0, 0, 1, 1], [], []>} : vector<77x60xbf16>, vector<60x64xbf16>, vector<77x64xf32> -> vector<77x64xf32>
    %62 = vector.extract_strided_slice %61 {offsets = [0, 0], sizes = [77, 32], strides = [1, 1]} : vector<77x64xf32> to vector<77x32xf32>
    %63 = vector.extract_strided_slice %61 {offsets = [0, 32], sizes = [77, 32], strides = [1, 1]} : vector<77x64xf32> to vector<77x32xf32>
    %64 = arith.maximumf %62, %63 : vector<77x32xf32>
    %65 = vector.broadcast %0 : vector<1x32xf32> to vector<77x32xf32>
    %66 = arith.addf %64, %65 : vector<77x32xf32>
    %cst_33 = arith.constant 0.000000e+00 : f32
    %67 = vector.broadcast %cst_33 : f32 to vector<77x32xf32>
    %68 = arith.maximumf %66, %67 : vector<77x32xf32>
    %69 = vector.extract_strided_slice %68 {offsets = [0, 0], sizes = [76, 32], strides = [1, 1]} : vector<77x32xf32> to vector<76x32xf32>
    %70 = vector.extract_strided_slice %68 {offsets = [1, 0], sizes = [76, 32], strides = [1, 1]} : vector<77x32xf32> to vector<76x32xf32>
    %71 = arith.maximumf %69, %70 : vector<76x32xf32>
    %72 = arith.truncf %71 : vector<76x32xf32> to vector<76x32xbf16>
    %cst_34 = arith.constant dense<0.000000e+00> : vector<38x32xf32>
    %73 = tpu.matmul %2, %72, %cst_34 {dimension_numbers = #tpu.dot_dimension_numbers<[1], [0], [0], [1], [0, 0, 1, 1], [], []>} : vector<38x76xbf16>, vector<76x32xbf16>, vector<38x32xf32> -> vector<38x32xf32>
    %74 = vector.extract_strided_slice %73 {offsets = [0, 0], sizes = [37, 32], strides = [1, 1]} : vector<38x32xf32> to vector<37x32xf32>
    %75 = tpu.concatenate %6, %74 in 0 : vector<1x32xf32>, vector<37x32xf32> -> vector<38x32xf32>
    %76 = vector.extract_strided_slice %73 {offsets = [1, 0], sizes = [37, 32], strides = [1, 1]} : vector<38x32xf32> to vector<37x32xf32>
    %77 = tpu.concatenate %76, %6 in 0 : vector<37x32xf32>, vector<1x32xf32> -> vector<38x32xf32>
    %78 = arith.truncf %75 : vector<38x32xf32> to vector<38x32xbf16>
    %c0_35 = arith.constant 0 : index
    %c384 = arith.constant 384 : index
    %79 = vector.load %arg9[%c0_35, %c384] : memref<38x1408xbf16, #tpu.memory_space<vmem>>, vector<38x32xbf16>
    tpu.vector_store %arg9[%c0_35, %c384], %78 {strides = array<i32>} : memref<38x1408xbf16, #tpu.memory_space<vmem>>, vector<38x32xbf16>,
    %80 = arith.truncf %73 : vector<38x32xf32> to vector<38x32xbf16>
    %c0_36 = arith.constant 0 : index
    %c416 = arith.constant 416 : index
    %81 = vector.load %arg9[%c0_36, %c416] : memref<38x1408xbf16, #tpu.memory_space<vmem>>, vector<38x32xbf16>
    tpu.vector_store %arg9[%c0_36, %c416], %80 {strides = array<i32>} : memref<38x1408xbf16, #tpu.memory_space<vmem>>, vector<38x32xbf16>,
    %82 = arith.truncf %77 : vector<38x32xf32> to vector<38x32xbf16>
    %c0_37 = arith.constant 0 : index
    %c448 = arith.constant 448 : index
    %83 = vector.load %arg9[%c0_37, %c448] : memref<38x1408xbf16, #tpu.memory_space<vmem>>, vector<38x32xbf16>
    tpu.vector_store %arg9[%c0_37, %c448], %82 {strides = array<i32>} : memref<38x1408xbf16, #tpu.memory_space<vmem>>, vector<38x32xbf16>,
    %c3 = arith.constant 3 : index
    %c0_38 = arith.constant 0 : index
    %c0_39 = arith.constant 0 : index
    %84 = vector.load %arg2[%c3, %c0_38, %c0_39] : memref<9x60x64xbf16, #tpu.memory_space<vmem>>, vector<1x60x64xbf16>
    %85 = vector.shape_cast %84 : vector<1x60x64xbf16> to vector<60x64xbf16>
    %cst_40 = arith.constant dense<0.000000e+00> : vector<77x64xf32>
    %86 = tpu.matmul %8, %85, %cst_40 {dimension_numbers = #tpu.dot_dimension_numbers<[1], [0], [0], [1], [0, 0, 1, 1], [], []>} : vector<77x60xbf16>, vector<60x64xbf16>, vector<77x64xf32> -> vector<77x64xf32>
    %87 = vector.extract_strided_slice %86 {offsets = [0, 0], sizes = [77, 32], strides = [1, 1]} : vector<77x64xf32> to vector<77x32xf32>
    %88 = vector.extract_strided_slice %86 {offsets = [0, 32], sizes = [77, 32], strides = [1, 1]} : vector<77x64xf32> to vector<77x32xf32>
    %89 = arith.maximumf %87, %88 : vector<77x32xf32>
    %90 = vector.broadcast %0 : vector<1x32xf32> to vector<77x32xf32>
    %91 = arith.addf %89, %90 : vector<77x32xf32>
    %cst_41 = arith.constant 0.000000e+00 : f32
    %92 = vector.broadcast %cst_41 : f32 to vector<77x32xf32>
    %93 = arith.maximumf %91, %92 : vector<77x32xf32>
    %94 = vector.extract_strided_slice %93 {offsets = [0, 0], sizes = [76, 32], strides = [1, 1]} : vector<77x32xf32> to vector<76x32xf32>
    %95 = vector.extract_strided_slice %93 {offsets = [1, 0], sizes = [76, 32], strides = [1, 1]} : vector<77x32xf32> to vector<76x32xf32>
    %96 = arith.maximumf %94, %95 : vector<76x32xf32>
    %97 = arith.truncf %96 : vector<76x32xf32> to vector<76x32xbf16>
    %cst_42 = arith.constant dense<0.000000e+00> : vector<38x32xf32>
    %98 = tpu.matmul %2, %97, %cst_42 {dimension_numbers = #tpu.dot_dimension_numbers<[1], [0], [0], [1], [0, 0, 1, 1], [], []>} : vector<38x76xbf16>, vector<76x32xbf16>, vector<38x32xf32> -> vector<38x32xf32>
    %99 = vector.extract_strided_slice %98 {offsets = [0, 0], sizes = [37, 32], strides = [1, 1]} : vector<38x32xf32> to vector<37x32xf32>
    %100 = tpu.concatenate %6, %99 in 0 : vector<1x32xf32>, vector<37x32xf32> -> vector<38x32xf32>
    %101 = vector.extract_strided_slice %98 {offsets = [1, 0], sizes = [37, 32], strides = [1, 1]} : vector<38x32xf32> to vector<37x32xf32>
    %102 = tpu.concatenate %101, %6 in 0 : vector<37x32xf32>, vector<1x32xf32> -> vector<38x32xf32>
    %103 = arith.truncf %100 : vector<38x32xf32> to vector<38x32xbf16>
    %c0_43 = arith.constant 0 : index
    %c512 = arith.constant 512 : index
    %104 = vector.load %arg9[%c0_43, %c512] : memref<38x1408xbf16, #tpu.memory_space<vmem>>, vector<38x32xbf16>
    tpu.vector_store %arg9[%c0_43, %c512], %103 {strides = array<i32>} : memref<38x1408xbf16, #tpu.memory_space<vmem>>, vector<38x32xbf16>,
    %105 = arith.truncf %98 : vector<38x32xf32> to vector<38x32xbf16>
    %c0_44 = arith.constant 0 : index
    %c544 = arith.constant 544 : index
    %106 = vector.load %arg9[%c0_44, %c544] : memref<38x1408xbf16, #tpu.memory_space<vmem>>, vector<38x32xbf16>
    tpu.vector_store %arg9[%c0_44, %c544], %105 {strides = array<i32>} : memref<38x1408xbf16, #tpu.memory_space<vmem>>, vector<38x32xbf16>,
    %107 = arith.truncf %102 : vector<38x32xf32> to vector<38x32xbf16>
    %c0_45 = arith.constant 0 : index
    %c576 = arith.constant 576 : index
    %108 = vector.load %arg9[%c0_45, %c576] : memref<38x1408xbf16, #tpu.memory_space<vmem>>, vector<38x32xbf16>
    tpu.vector_store %arg9[%c0_45, %c576], %107 {strides = array<i32>} : memref<38x1408xbf16, #tpu.memory_space<vmem>>, vector<38x32xbf16>,
    %c4 = arith.constant 4 : index
    %c0_46 = arith.constant 0 : index
    %c0_47 = arith.constant 0 : index
    %109 = vector.load %arg2[%c4, %c0_46, %c0_47] : memref<9x60x64xbf16, #tpu.memory_space<vmem>>, vector<1x60x64xbf16>
    %110 = vector.shape_cast %109 : vector<1x60x64xbf16> to vector<60x64xbf16>
    %cst_48 = arith.constant dense<0.000000e+00> : vector<77x64xf32>
    %111 = tpu.matmul %8, %110, %cst_48 {dimension_numbers = #tpu.dot_dimension_numbers<[1], [0], [0], [1], [0, 0, 1, 1], [], []>} : vector<77x60xbf16>, vector<60x64xbf16>, vector<77x64xf32> -> vector<77x64xf32>
    %112 = vector.extract_strided_slice %111 {offsets = [0, 0], sizes = [77, 32], strides = [1, 1]} : vector<77x64xf32> to vector<77x32xf32>
    %113 = vector.extract_strided_slice %111 {offsets = [0, 32], sizes = [77, 32], strides = [1, 1]} : vector<77x64xf32> to vector<77x32xf32>
    %114 = arith.maximumf %112, %113 : vector<77x32xf32>
    %115 = vector.broadcast %0 : vector<1x32xf32> to vector<77x32xf32>
    %116 = arith.addf %114, %115 : vector<77x32xf32>
    %cst_49 = arith.constant 0.000000e+00 : f32
    %117 = vector.broadcast %cst_49 : f32 to vector<77x32xf32>
    %118 = arith.maximumf %116, %117 : vector<77x32xf32>
    %119 = vector.extract_strided_slice %118 {offsets = [0, 0], sizes = [76, 32], strides = [1, 1]} : vector<77x32xf32> to vector<76x32xf32>
    %120 = vector.extract_strided_slice %118 {offsets = [1, 0], sizes = [76, 32], strides = [1, 1]} : vector<77x32xf32> to vector<76x32xf32>
    %121 = arith.maximumf %119, %120 : vector<76x32xf32>
    %122 = arith.truncf %121 : vector<76x32xf32> to vector<76x32xbf16>
    %cst_50 = arith.constant dense<0.000000e+00> : vector<38x32xf32>
    %123 = tpu.matmul %2, %122, %cst_50 {dimension_numbers = #tpu.dot_dimension_numbers<[1], [0], [0], [1], [0, 0, 1, 1], [], []>} : vector<38x76xbf16>, vector<76x32xbf16>, vector<38x32xf32> -> vector<38x32xf32>
    %124 = vector.extract_strided_slice %123 {offsets = [0, 0], sizes = [37, 32], strides = [1, 1]} : vector<38x32xf32> to vector<37x32xf32>
    %125 = tpu.concatenate %6, %124 in 0 : vector<1x32xf32>, vector<37x32xf32> -> vector<38x32xf32>
    %126 = vector.extract_strided_slice %123 {offsets = [1, 0], sizes = [37, 32], strides = [1, 1]} : vector<38x32xf32> to vector<37x32xf32>
    %127 = tpu.concatenate %126, %6 in 0 : vector<37x32xf32>, vector<1x32xf32> -> vector<38x32xf32>
    %128 = arith.truncf %125 : vector<38x32xf32> to vector<38x32xbf16>
    %c0_51 = arith.constant 0 : index
    %c640 = arith.constant 640 : index
    %129 = vector.load %arg9[%c0_51, %c640] : memref<38x1408xbf16, #tpu.memory_space<vmem>>, vector<38x32xbf16>
    tpu.vector_store %arg9[%c0_51, %c640], %128 {strides = array<i32>} : memref<38x1408xbf16, #tpu.memory_space<vmem>>, vector<38x32xbf16>,
    %130 = arith.truncf %123 : vector<38x32xf32> to vector<38x32xbf16>
    %c0_52 = arith.constant 0 : index
    %c672 = arith.constant 672 : index
    %131 = vector.load %arg9[%c0_52, %c672] : memref<38x1408xbf16, #tpu.memory_space<vmem>>, vector<38x32xbf16>
    tpu.vector_store %arg9[%c0_52, %c672], %130 {strides = array<i32>} : memref<38x1408xbf16, #tpu.memory_space<vmem>>, vector<38x32xbf16>,
    %132 = arith.truncf %127 : vector<38x32xf32> to vector<38x32xbf16>
    %c0_53 = arith.constant 0 : index
    %c704 = arith.constant 704 : index
    %133 = vector.load %arg9[%c0_53, %c704] : memref<38x1408xbf16, #tpu.memory_space<vmem>>, vector<38x32xbf16>
    tpu.vector_store %arg9[%c0_53, %c704], %132 {strides = array<i32>} : memref<38x1408xbf16, #tpu.memory_space<vmem>>, vector<38x32xbf16>,
    %c5 = arith.constant 5 : index
    %c0_54 = arith.constant 0 : index
    %c0_55 = arith.constant 0 : index
    %134 = vector.load %arg2[%c5, %c0_54, %c0_55] : memref<9x60x64xbf16, #tpu.memory_space<vmem>>, vector<1x60x64xbf16>
    %135 = vector.shape_cast %134 : vector<1x60x64xbf16> to vector<60x64xbf16>
    %cst_56 = arith.constant dense<0.000000e+00> : vector<77x64xf32>
    %136 = tpu.matmul %8, %135, %cst_56 {dimension_numbers = #tpu.dot_dimension_numbers<[1], [0], [0], [1], [0, 0, 1, 1], [], []>} : vector<77x60xbf16>, vector<60x64xbf16>, vector<77x64xf32> -> vector<77x64xf32>
    %137 = vector.extract_strided_slice %136 {offsets = [0, 0], sizes = [77, 32], strides = [1, 1]} : vector<77x64xf32> to vector<77x32xf32>
    %138 = vector.extract_strided_slice %136 {offsets = [0, 32], sizes = [77, 32], strides = [1, 1]} : vector<77x64xf32> to vector<77x32xf32>
    %139 = arith.maximumf %137, %138 : vector<77x32xf32>
    %140 = vector.broadcast %0 : vector<1x32xf32> to vector<77x32xf32>
    %141 = arith.addf %139, %140 : vector<77x32xf32>
    %cst_57 = arith.constant 0.000000e+00 : f32
    %142 = vector.broadcast %cst_57 : f32 to vector<77x32xf32>
    %143 = arith.maximumf %141, %142 : vector<77x32xf32>
    %144 = vector.extract_strided_slice %143 {offsets = [0, 0], sizes = [76, 32], strides = [1, 1]} : vector<77x32xf32> to vector<76x32xf32>
    %145 = vector.extract_strided_slice %143 {offsets = [1, 0], sizes = [76, 32], strides = [1, 1]} : vector<77x32xf32> to vector<76x32xf32>
    %146 = arith.maximumf %144, %145 : vector<76x32xf32>
    %147 = arith.truncf %146 : vector<76x32xf32> to vector<76x32xbf16>
    %cst_58 = arith.constant dense<0.000000e+00> : vector<38x32xf32>
    %148 = tpu.matmul %2, %147, %cst_58 {dimension_numbers = #tpu.dot_dimension_numbers<[1], [0], [0], [1], [0, 0, 1, 1], [], []>} : vector<38x76xbf16>, vector<76x32xbf16>, vector<38x32xf32> -> vector<38x32xf32>
    %149 = vector.extract_strided_slice %148 {offsets = [0, 0], sizes = [37, 32], strides = [1, 1]} : vector<38x32xf32> to vector<37x32xf32>
    %150 = tpu.concatenate %6, %149 in 0 : vector<1x32xf32>, vector<37x32xf32> -> vector<38x32xf32>
    %151 = vector.extract_strided_slice %148 {offsets = [1, 0], sizes = [37, 32], strides = [1, 1]} : vector<38x32xf32> to vector<37x32xf32>
    %152 = tpu.concatenate %151, %6 in 0 : vector<37x32xf32>, vector<1x32xf32> -> vector<38x32xf32>
    %153 = arith.truncf %150 : vector<38x32xf32> to vector<38x32xbf16>
    %c0_59 = arith.constant 0 : index
    %c768 = arith.constant 768 : index
    %154 = vector.load %arg9[%c0_59, %c768] : memref<38x1408xbf16, #tpu.memory_space<vmem>>, vector<38x32xbf16>
    tpu.vector_store %arg9[%c0_59, %c768], %153 {strides = array<i32>} : memref<38x1408xbf16, #tpu.memory_space<vmem>>, vector<38x32xbf16>,
    %155 = arith.truncf %148 : vector<38x32xf32> to vector<38x32xbf16>
    %c0_60 = arith.constant 0 : index
    %c800 = arith.constant 800 : index
    %156 = vector.load %arg9[%c0_60, %c800] : memref<38x1408xbf16, #tpu.memory_space<vmem>>, vector<38x32xbf16>
    tpu.vector_store %arg9[%c0_60, %c800], %155 {strides = array<i32>} : memref<38x1408xbf16, #tpu.memory_space<vmem>>, vector<38x32xbf16>,
    %157 = arith.truncf %152 : vector<38x32xf32> to vector<38x32xbf16>
    %c0_61 = arith.constant 0 : index
    %c832 = arith.constant 832 : index
    %158 = vector.load %arg9[%c0_61, %c832] : memref<38x1408xbf16, #tpu.memory_space<vmem>>, vector<38x32xbf16>
    tpu.vector_store %arg9[%c0_61, %c832], %157 {strides = array<i32>} : memref<38x1408xbf16, #tpu.memory_space<vmem>>, vector<38x32xbf16>,
    %c6 = arith.constant 6 : index
    %c0_62 = arith.constant 0 : index
    %c0_63 = arith.constant 0 : index
    %159 = vector.load %arg2[%c6, %c0_62, %c0_63] : memref<9x60x64xbf16, #tpu.memory_space<vmem>>, vector<1x60x64xbf16>
    %160 = vector.shape_cast %159 : vector<1x60x64xbf16> to vector<60x64xbf16>
    %cst_64 = arith.constant dense<0.000000e+00> : vector<77x64xf32>
    %161 = tpu.matmul %8, %160, %cst_64 {dimension_numbers = #tpu.dot_dimension_numbers<[1], [0], [0], [1], [0, 0, 1, 1], [], []>} : vector<77x60xbf16>, vector<60x64xbf16>, vector<77x64xf32> -> vector<77x64xf32>
    %162 = vector.extract_strided_slice %161 {offsets = [0, 0], sizes = [77, 32], strides = [1, 1]} : vector<77x64xf32> to vector<77x32xf32>
    %163 = vector.extract_strided_slice %161 {offsets = [0, 32], sizes = [77, 32], strides = [1, 1]} : vector<77x64xf32> to vector<77x32xf32>
    %164 = arith.maximumf %162, %163 : vector<77x32xf32>
    %165 = vector.broadcast %0 : vector<1x32xf32> to vector<77x32xf32>
    %166 = arith.addf %164, %165 : vector<77x32xf32>
    %cst_65 = arith.constant 0.000000e+00 : f32
    %167 = vector.broadcast %cst_65 : f32 to vector<77x32xf32>
    %168 = arith.maximumf %166, %167 : vector<77x32xf32>
    %169 = vector.extract_strided_slice %168 {offsets = [0, 0], sizes = [76, 32], strides = [1, 1]} : vector<77x32xf32> to vector<76x32xf32>
    %170 = vector.extract_strided_slice %168 {offsets = [1, 0], sizes = [76, 32], strides = [1, 1]} : vector<77x32xf32> to vector<76x32xf32>
    %171 = arith.maximumf %169, %170 : vector<76x32xf32>
    %172 = arith.truncf %171 : vector<76x32xf32> to vector<76x32xbf16>
    %cst_66 = arith.constant dense<0.000000e+00> : vector<38x32xf32>
    %173 = tpu.matmul %2, %172, %cst_66 {dimension_numbers = #tpu.dot_dimension_numbers<[1], [0], [0], [1], [0, 0, 1, 1], [], []>} : vector<38x76xbf16>, vector<76x32xbf16>, vector<38x32xf32> -> vector<38x32xf32>
    %174 = vector.extract_strided_slice %173 {offsets = [0, 0], sizes = [37, 32], strides = [1, 1]} : vector<38x32xf32> to vector<37x32xf32>
    %175 = tpu.concatenate %6, %174 in 0 : vector<1x32xf32>, vector<37x32xf32> -> vector<38x32xf32>
    %176 = vector.extract_strided_slice %173 {offsets = [1, 0], sizes = [37, 32], strides = [1, 1]} : vector<38x32xf32> to vector<37x32xf32>
    %177 = tpu.concatenate %176, %6 in 0 : vector<37x32xf32>, vector<1x32xf32> -> vector<38x32xf32>
    %178 = arith.truncf %175 : vector<38x32xf32> to vector<38x32xbf16>
    %c0_67 = arith.constant 0 : index
    %c896 = arith.constant 896 : index
    %179 = vector.load %arg9[%c0_67, %c896] : memref<38x1408xbf16, #tpu.memory_space<vmem>>, vector<38x32xbf16>
    tpu.vector_store %arg9[%c0_67, %c896], %178 {strides = array<i32>} : memref<38x1408xbf16, #tpu.memory_space<vmem>>, vector<38x32xbf16>,
    %180 = arith.truncf %173 : vector<38x32xf32> to vector<38x32xbf16>
    %c0_68 = arith.constant 0 : index
    %c928 = arith.constant 928 : index
    %181 = vector.load %arg9[%c0_68, %c928] : memref<38x1408xbf16, #tpu.memory_space<vmem>>, vector<38x32xbf16>
    tpu.vector_store %arg9[%c0_68, %c928], %180 {strides = array<i32>} : memref<38x1408xbf16, #tpu.memory_space<vmem>>, vector<38x32xbf16>,
    %182 = arith.truncf %177 : vector<38x32xf32> to vector<38x32xbf16>
    %c0_69 = arith.constant 0 : index
    %c960 = arith.constant 960 : index
    %183 = vector.load %arg9[%c0_69, %c960] : memref<38x1408xbf16, #tpu.memory_space<vmem>>, vector<38x32xbf16>
    tpu.vector_store %arg9[%c0_69, %c960], %182 {strides = array<i32>} : memref<38x1408xbf16, #tpu.memory_space<vmem>>, vector<38x32xbf16>,
    %c7 = arith.constant 7 : index
    %c0_70 = arith.constant 0 : index
    %c0_71 = arith.constant 0 : index
    %184 = vector.load %arg2[%c7, %c0_70, %c0_71] : memref<9x60x64xbf16, #tpu.memory_space<vmem>>, vector<1x60x64xbf16>
    %185 = vector.shape_cast %184 : vector<1x60x64xbf16> to vector<60x64xbf16>
    %cst_72 = arith.constant dense<0.000000e+00> : vector<77x64xf32>
    %186 = tpu.matmul %8, %185, %cst_72 {dimension_numbers = #tpu.dot_dimension_numbers<[1], [0], [0], [1], [0, 0, 1, 1], [], []>} : vector<77x60xbf16>, vector<60x64xbf16>, vector<77x64xf32> -> vector<77x64xf32>
    %187 = vector.extract_strided_slice %186 {offsets = [0, 0], sizes = [77, 32], strides = [1, 1]} : vector<77x64xf32> to vector<77x32xf32>
    %188 = vector.extract_strided_slice %186 {offsets = [0, 32], sizes = [77, 32], strides = [1, 1]} : vector<77x64xf32> to vector<77x32xf32>
    %189 = arith.maximumf %187, %188 : vector<77x32xf32>
    %190 = vector.broadcast %0 : vector<1x32xf32> to vector<77x32xf32>
    %191 = arith.addf %189, %190 : vector<77x32xf32>
    %cst_73 = arith.constant 0.000000e+00 : f32
    %192 = vector.broadcast %cst_73 : f32 to vector<77x32xf32>
    %193 = arith.maximumf %191, %192 : vector<77x32xf32>
    %194 = vector.extract_strided_slice %193 {offsets = [0, 0], sizes = [76, 32], strides = [1, 1]} : vector<77x32xf32> to vector<76x32xf32>
    %195 = vector.extract_strided_slice %193 {offsets = [1, 0], sizes = [76, 32], strides = [1, 1]} : vector<77x32xf32> to vector<76x32xf32>
    %196 = arith.maximumf %194, %195 : vector<76x32xf32>
    %197 = arith.truncf %196 : vector<76x32xf32> to vector<76x32xbf16>
    %cst_74 = arith.constant dense<0.000000e+00> : vector<38x32xf32>
    %198 = tpu.matmul %2, %197, %cst_74 {dimension_numbers = #tpu.dot_dimension_numbers<[1], [0], [0], [1], [0, 0, 1, 1], [], []>} : vector<38x76xbf16>, vector<76x32xbf16>, vector<38x32xf32> -> vector<38x32xf32>
    %199 = vector.extract_strided_slice %198 {offsets = [0, 0], sizes = [37, 32], strides = [1, 1]} : vector<38x32xf32> to vector<37x32xf32>
    %200 = tpu.concatenate %6, %199 in 0 : vector<1x32xf32>, vector<37x32xf32> -> vector<38x32xf32>
    %201 = vector.extract_strided_slice %198 {offsets = [1, 0], sizes = [37, 32], strides = [1, 1]} : vector<38x32xf32> to vector<37x32xf32>
    %202 = tpu.concatenate %201, %6 in 0 : vector<37x32xf32>, vector<1x32xf32> -> vector<38x32xf32>
    %203 = arith.truncf %200 : vector<38x32xf32> to vector<38x32xbf16>
    %c0_75 = arith.constant 0 : index
    %c1024 = arith.constant 1024 : index
    %204 = vector.load %arg9[%c0_75, %c1024] : memref<38x1408xbf16, #tpu.memory_space<vmem>>, vector<38x32xbf16>
    tpu.vector_store %arg9[%c0_75, %c1024], %203 {strides = array<i32>} : memref<38x1408xbf16, #tpu.memory_space<vmem>>, vector<38x32xbf16>,
    %205 = arith.truncf %198 : vector<38x32xf32> to vector<38x32xbf16>
    %c0_76 = arith.constant 0 : index
    %c1056 = arith.constant 1056 : index
    %206 = vector.load %arg9[%c0_76, %c1056] : memref<38x1408xbf16, #tpu.memory_space<vmem>>, vector<38x32xbf16>
    tpu.vector_store %arg9[%c0_76, %c1056], %205 {strides = array<i32>} : memref<38x1408xbf16, #tpu.memory_space<vmem>>, vector<38x32xbf16>,
    %207 = arith.truncf %202 : vector<38x32xf32> to vector<38x32xbf16>
    %c0_77 = arith.constant 0 : index
    %c1088 = arith.constant 1088 : index
    %208 = vector.load %arg9[%c0_77, %c1088] : memref<38x1408xbf16, #tpu.memory_space<vmem>>, vector<38x32xbf16>
    tpu.vector_store %arg9[%c0_77, %c1088], %207 {strides = array<i32>} : memref<38x1408xbf16, #tpu.memory_space<vmem>>, vector<38x32xbf16>,
    %c8 = arith.constant 8 : index
    %c0_78 = arith.constant 0 : index
    %c0_79 = arith.constant 0 : index
    %209 = vector.load %arg2[%c8, %c0_78, %c0_79] : memref<9x60x64xbf16, #tpu.memory_space<vmem>>, vector<1x60x64xbf16>
    %210 = vector.shape_cast %209 : vector<1x60x64xbf16> to vector<60x64xbf16>
    %cst_80 = arith.constant dense<0.000000e+00> : vector<77x64xf32>
    %211 = tpu.matmul %8, %210, %cst_80 {dimension_numbers = #tpu.dot_dimension_numbers<[1], [0], [0], [1], [0, 0, 1, 1], [], []>} : vector<77x60xbf16>, vector<60x64xbf16>, vector<77x64xf32> -> vector<77x64xf32>
    %212 = vector.extract_strided_slice %211 {offsets = [0, 0], sizes = [77, 32], strides = [1, 1]} : vector<77x64xf32> to vector<77x32xf32>
    %213 = vector.extract_strided_slice %211 {offsets = [0, 32], sizes = [77, 32], strides = [1, 1]} : vector<77x64xf32> to vector<77x32xf32>
    %214 = arith.maximumf %212, %213 : vector<77x32xf32>
    %215 = vector.broadcast %0 : vector<1x32xf32> to vector<77x32xf32>
    %216 = arith.addf %214, %215 : vector<77x32xf32>
    %cst_81 = arith.constant 0.000000e+00 : f32
    %217 = vector.broadcast %cst_81 : f32 to vector<77x32xf32>
    %218 = arith.maximumf %216, %217 : vector<77x32xf32>
    %219 = vector.extract_strided_slice %218 {offsets = [0, 0], sizes = [76, 32], strides = [1, 1]} : vector<77x32xf32> to vector<76x32xf32>
    %220 = vector.extract_strided_slice %218 {offsets = [1, 0], sizes = [76, 32], strides = [1, 1]} : vector<77x32xf32> to vector<76x32xf32>
    %221 = arith.maximumf %219, %220 : vector<76x32xf32>
    %222 = arith.truncf %221 : vector<76x32xf32> to vector<76x32xbf16>
    %cst_82 = arith.constant dense<0.000000e+00> : vector<38x32xf32>
    %223 = tpu.matmul %2, %222, %cst_82 {dimension_numbers = #tpu.dot_dimension_numbers<[1], [0], [0], [1], [0, 0, 1, 1], [], []>} : vector<38x76xbf16>, vector<76x32xbf16>, vector<38x32xf32> -> vector<38x32xf32>
    %224 = vector.extract_strided_slice %223 {offsets = [0, 0], sizes = [37, 32], strides = [1, 1]} : vector<38x32xf32> to vector<37x32xf32>
    %225 = tpu.concatenate %6, %224 in 0 : vector<1x32xf32>, vector<37x32xf32> -> vector<38x32xf32>
    %226 = vector.extract_strided_slice %223 {offsets = [1, 0], sizes = [37, 32], strides = [1, 1]} : vector<38x32xf32> to vector<37x32xf32>
    %227 = tpu.concatenate %226, %6 in 0 : vector<37x32xf32>, vector<1x32xf32> -> vector<38x32xf32>
    %228 = arith.truncf %225 : vector<38x32xf32> to vector<38x32xbf16>
    %c0_83 = arith.constant 0 : index
    %c1152 = arith.constant 1152 : index
    %229 = vector.load %arg9[%c0_83, %c1152] : memref<38x1408xbf16, #tpu.memory_space<vmem>>, vector<38x32xbf16>
    tpu.vector_store %arg9[%c0_83, %c1152], %228 {strides = array<i32>} : memref<38x1408xbf16, #tpu.memory_space<vmem>>, vector<38x32xbf16>,
    %230 = arith.truncf %223 : vector<38x32xf32> to vector<38x32xbf16>
    %c0_84 = arith.constant 0 : index
    %c1184 = arith.constant 1184 : index
    %231 = vector.load %arg9[%c0_84, %c1184] : memref<38x1408xbf16, #tpu.memory_space<vmem>>, vector<38x32xbf16>
    tpu.vector_store %arg9[%c0_84, %c1184], %230 {strides = array<i32>} : memref<38x1408xbf16, #tpu.memory_space<vmem>>, vector<38x32xbf16>,
    %232 = arith.truncf %227 : vector<38x32xf32> to vector<38x32xbf16>
    %c0_85 = arith.constant 0 : index
    %c1216 = arith.constant 1216 : index
    %233 = vector.load %arg9[%c0_85, %c1216] : memref<38x1408xbf16, #tpu.memory_space<vmem>>, vector<38x32xbf16>
    tpu.vector_store %arg9[%c0_85, %c1216], %232 {strides = array<i32>} : memref<38x1408xbf16, #tpu.memory_space<vmem>>, vector<38x32xbf16>,
    %c0_86 = arith.constant 0 : index
    %c0_87 = arith.constant 0 : index
    %234 = vector.load %arg9[%c0_86, %c0_87] : memref<38x1408xbf16, #tpu.memory_space<vmem>>, vector<38x512xbf16>
    %c0_88 = arith.constant 0 : index
    %c0_89 = arith.constant 0 : index
    %235 = vector.load %arg4[%c0_88, %c0_89] : memref<512x64xbf16, #tpu.memory_space<vmem>>, vector<512x64xbf16>
    %cst_90 = arith.constant dense<0.000000e+00> : vector<38x64xf32>
    %236 = tpu.matmul %234, %235, %cst_90 {dimension_numbers = #tpu.dot_dimension_numbers<[1], [0], [0], [1], [0, 0, 1, 1], [], []>} : vector<38x512xbf16>, vector<512x64xbf16>, vector<38x64xf32> -> vector<38x64xf32>
    %237 = vector.extract_strided_slice %236 {offsets = [0, 0], sizes = [38, 32], strides = [1, 1]} : vector<38x64xf32> to vector<38x32xf32>
    %238 = vector.extract_strided_slice %236 {offsets = [0, 32], sizes = [38, 32], strides = [1, 1]} : vector<38x64xf32> to vector<38x32xf32>
    %239 = arith.maximumf %237, %238 : vector<38x32xf32>
    %240 = vector.broadcast %1 : vector<1x32xf32> to vector<38x32xf32>
    %241 = arith.addf %239, %240 : vector<38x32xf32>
    %cst_91 = arith.constant 0.000000e+00 : f32
    %242 = vector.broadcast %cst_91 : f32 to vector<38x32xf32>
    %243 = arith.maximumf %241, %242 : vector<38x32xf32>
    %244 = vector.extract_strided_slice %243 {offsets = [0, 0], sizes = [37, 32], strides = [1, 1]} : vector<38x32xf32> to vector<37x32xf32>
    %245 = vector.extract_strided_slice %243 {offsets = [1, 0], sizes = [37, 32], strides = [1, 1]} : vector<38x32xf32> to vector<37x32xf32>
    %246 = arith.maximumf %244, %245 : vector<37x32xf32>
    %247 = arith.truncf %246 : vector<37x32xf32> to vector<37x32xbf16>
    %cst_92 = arith.constant dense<0.000000e+00> : vector<19x32xf32>
    %248 = tpu.matmul %3, %247, %cst_92 {dimension_numbers = #tpu.dot_dimension_numbers<[1], [0], [0], [1], [0, 0, 1, 1], [], []>} : vector<19x37xbf16>, vector<37x32xbf16>, vector<19x32xf32> -> vector<19x32xf32>
    %c0_93 = arith.constant 0 : index
    %c256_94 = arith.constant 256 : index
    %249 = vector.load %arg9[%c0_93, %c256_94] : memref<38x1408xbf16, #tpu.memory_space<vmem>>, vector<38x512xbf16>
    %c0_95 = arith.constant 0 : index
    %c0_96 = arith.constant 0 : index
    %250 = vector.load %arg4[%c0_95, %c0_96] : memref<512x64xbf16, #tpu.memory_space<vmem>>, vector<512x64xbf16>
    %cst_97 = arith.constant dense<0.000000e+00> : vector<38x64xf32>
    %251 = tpu.matmul %249, %250, %cst_97 {dimension_numbers = #tpu.dot_dimension_numbers<[1], [0], [0], [1], [0, 0, 1, 1], [], []>} : vector<38x512xbf16>, vector<512x64xbf16>, vector<38x64xf32> -> vector<38x64xf32>
    %252 = vector.extract_strided_slice %251 {offsets = [0, 0], sizes = [38, 32], strides = [1, 1]} : vector<38x64xf32> to vector<38x32xf32>
    %253 = vector.extract_strided_slice %251 {offsets = [0, 32], sizes = [38, 32], strides = [1, 1]} : vector<38x64xf32> to vector<38x32xf32>
    %254 = arith.maximumf %252, %253 : vector<38x32xf32>
    %255 = vector.broadcast %1 : vector<1x32xf32> to vector<38x32xf32>
    %256 = arith.addf %254, %255 : vector<38x32xf32>
    %cst_98 = arith.constant 0.000000e+00 : f32
    %257 = vector.broadcast %cst_98 : f32 to vector<38x32xf32>
    %258 = arith.maximumf %256, %257 : vector<38x32xf32>
    %259 = vector.extract_strided_slice %258 {offsets = [0, 0], sizes = [37, 32], strides = [1, 1]} : vector<38x32xf32> to vector<37x32xf32>
    %260 = vector.extract_strided_slice %258 {offsets = [1, 0], sizes = [37, 32], strides = [1, 1]} : vector<38x32xf32> to vector<37x32xf32>
    %261 = arith.maximumf %259, %260 : vector<37x32xf32>
    %262 = arith.truncf %261 : vector<37x32xf32> to vector<37x32xbf16>
    %cst_99 = arith.constant dense<0.000000e+00> : vector<19x32xf32>
    %263 = tpu.matmul %3, %262, %cst_99 {dimension_numbers = #tpu.dot_dimension_numbers<[1], [0], [0], [1], [0, 0, 1, 1], [], []>} : vector<19x37xbf16>, vector<37x32xbf16>, vector<19x32xf32> -> vector<19x32xf32>
    %c0_100 = arith.constant 0 : index
    %c512_101 = arith.constant 512 : index
    %264 = vector.load %arg9[%c0_100, %c512_101] : memref<38x1408xbf16, #tpu.memory_space<vmem>>, vector<38x512xbf16>
    %c0_102 = arith.constant 0 : index
    %c0_103 = arith.constant 0 : index
    %265 = vector.load %arg4[%c0_102, %c0_103] : memref<512x64xbf16, #tpu.memory_space<vmem>>, vector<512x64xbf16>
    %cst_104 = arith.constant dense<0.000000e+00> : vector<38x64xf32>
    %266 = tpu.matmul %264, %265, %cst_104 {dimension_numbers = #tpu.dot_dimension_numbers<[1], [0], [0], [1], [0, 0, 1, 1], [], []>} : vector<38x512xbf16>, vector<512x64xbf16>, vector<38x64xf32> -> vector<38x64xf32>
    %267 = vector.extract_strided_slice %266 {offsets = [0, 0], sizes = [38, 32], strides = [1, 1]} : vector<38x64xf32> to vector<38x32xf32>
    %268 = vector.extract_strided_slice %266 {offsets = [0, 32], sizes = [38, 32], strides = [1, 1]} : vector<38x64xf32> to vector<38x32xf32>
    %269 = arith.maximumf %267, %268 : vector<38x32xf32>
    %270 = vector.broadcast %1 : vector<1x32xf32> to vector<38x32xf32>
    %271 = arith.addf %269, %270 : vector<38x32xf32>
    %cst_105 = arith.constant 0.000000e+00 : f32
    %272 = vector.broadcast %cst_105 : f32 to vector<38x32xf32>
    %273 = arith.maximumf %271, %272 : vector<38x32xf32>
    %274 = vector.extract_strided_slice %273 {offsets = [0, 0], sizes = [37, 32], strides = [1, 1]} : vector<38x32xf32> to vector<37x32xf32>
    %275 = vector.extract_strided_slice %273 {offsets = [1, 0], sizes = [37, 32], strides = [1, 1]} : vector<38x32xf32> to vector<37x32xf32>
    %276 = arith.maximumf %274, %275 : vector<37x32xf32>
    %277 = arith.truncf %276 : vector<37x32xf32> to vector<37x32xbf16>
    %cst_106 = arith.constant dense<0.000000e+00> : vector<19x32xf32>
    %278 = tpu.matmul %3, %277, %cst_106 {dimension_numbers = #tpu.dot_dimension_numbers<[1], [0], [0], [1], [0, 0, 1, 1], [], []>} : vector<19x37xbf16>, vector<37x32xbf16>, vector<19x32xf32> -> vector<19x32xf32>
    %c0_107 = arith.constant 0 : index
    %c768_108 = arith.constant 768 : index
    %279 = vector.load %arg9[%c0_107, %c768_108] : memref<38x1408xbf16, #tpu.memory_space<vmem>>, vector<38x512xbf16>
    %c0_109 = arith.constant 0 : index
    %c0_110 = arith.constant 0 : index
    %280 = vector.load %arg4[%c0_109, %c0_110] : memref<512x64xbf16, #tpu.memory_space<vmem>>, vector<512x64xbf16>
    %cst_111 = arith.constant dense<0.000000e+00> : vector<38x64xf32>
    %281 = tpu.matmul %279, %280, %cst_111 {dimension_numbers = #tpu.dot_dimension_numbers<[1], [0], [0], [1], [0, 0, 1, 1], [], []>} : vector<38x512xbf16>, vector<512x64xbf16>, vector<38x64xf32> -> vector<38x64xf32>
    %282 = vector.extract_strided_slice %281 {offsets = [0, 0], sizes = [38, 32], strides = [1, 1]} : vector<38x64xf32> to vector<38x32xf32>
    %283 = vector.extract_strided_slice %281 {offsets = [0, 32], sizes = [38, 32], strides = [1, 1]} : vector<38x64xf32> to vector<38x32xf32>
    %284 = arith.maximumf %282, %283 : vector<38x32xf32>
    %285 = vector.broadcast %1 : vector<1x32xf32> to vector<38x32xf32>
    %286 = arith.addf %284, %285 : vector<38x32xf32>
    %cst_112 = arith.constant 0.000000e+00 : f32
    %287 = vector.broadcast %cst_112 : f32 to vector<38x32xf32>
    %288 = arith.maximumf %286, %287 : vector<38x32xf32>
    %289 = vector.extract_strided_slice %288 {offsets = [0, 0], sizes = [37, 32], strides = [1, 1]} : vector<38x32xf32> to vector<37x32xf32>
    %290 = vector.extract_strided_slice %288 {offsets = [1, 0], sizes = [37, 32], strides = [1, 1]} : vector<38x32xf32> to vector<37x32xf32>
    %291 = arith.maximumf %289, %290 : vector<37x32xf32>
    %292 = arith.truncf %291 : vector<37x32xf32> to vector<37x32xbf16>
    %cst_113 = arith.constant dense<0.000000e+00> : vector<19x32xf32>
    %293 = tpu.matmul %3, %292, %cst_113 {dimension_numbers = #tpu.dot_dimension_numbers<[1], [0], [0], [1], [0, 0, 1, 1], [], []>} : vector<19x37xbf16>, vector<37x32xbf16>, vector<19x32xf32> -> vector<19x32xf32>
    %294 = tpu.concatenate %248, %263, %278, %293 in 1 : vector<19x32xf32>, vector<19x32xf32>, vector<19x32xf32>, vector<19x32xf32> -> vector<19x128xf32>
    %295 = arith.truncf %294 : vector<19x128xf32> to vector<19x128xbf16>
    %c0_114 = arith.constant 0 : index
    %c0_115 = arith.constant 0 : index
    %c0_116 = arith.constant 0 : index
    %296 = vector.load %arg8[%c0_114, %c0_115, %c0_116] : memref<1x19x128xbf16, #tpu.memory_space<vmem>>, vector<1x19x128xbf16>
    %297 = vector.shape_cast %296 : vector<1x19x128xbf16> to vector<19x128xbf16>
    %298 = vector.shape_cast %295 : vector<19x128xbf16> to vector<1x19x128xbf16>
    tpu.vector_store %arg8[%c0_114, %c0_115, %c0_116], %298 {strides = array<i32>} : memref<1x19x128xbf16, #tpu.memory_space<vmem>>, vector<1x19x128xbf16>,
    return
  }
  func.func @transform_0(%arg0: i32) -> (i32, i32, i32) {
    %c0_i32 = arith.constant 0 : i32
    %c0_i32_0 = arith.constant 0 : i32
    %c0_i32_1 = arith.constant 0 : i32
    return %arg0, %c0_i32, %c0_i32_0 : i32, i32, i32
  }
  func.func @transform_1(%arg0: i32) -> (i32, i32, i32) {
    %c0_i32 = arith.constant 0 : i32
    %c0_i32_0 = arith.constant 0 : i32
    %c0_i32_1 = arith.constant 0 : i32
    %c0_i32_2 = arith.constant 0 : i32
    return %c0_i32, %c0_i32_0, %c0_i32_1 : i32, i32, i32
  }
  func.func @transform_2(%arg0: i32) -> (i32, i32) {
    %c0_i32 = arith.constant 0 : i32
    %c0_i32_0 = arith.constant 0 : i32
    %c0_i32_1 = arith.constant 0 : i32
    return %c0_i32, %c0_i32_0 : i32, i32
  }
  func.func @transform_3(%arg0: i32) -> (i32, i32) {
    %c0_i32 = arith.constant 0 : i32
    %c0_i32_0 = arith.constant 0 : i32
    %c0_i32_1 = arith.constant 0 : i32
    return %c0_i32, %c0_i32_0 : i32, i32
  }
  func.func @transform_4(%arg0: i32) -> (i32, i32) {
    %c0_i32 = arith.constant 0 : i32
    %c0_i32_0 = arith.constant 0 : i32
    %c0_i32_1 = arith.constant 0 : i32
    return %c0_i32, %c0_i32_0 : i32, i32
  }
  func.func @transform_5(%arg0: i32) -> (i32, i32) {
    %c0_i32 = arith.constant 0 : i32
    %c0_i32_0 = arith.constant 0 : i32
    %c0_i32_1 = arith.constant 0 : i32
    return %c0_i32, %c0_i32_0 : i32, i32
  }
  func.func @transform_6(%arg0: i32) -> (i32, i32) {
    %c0_i32 = arith.constant 0 : i32
    %c0_i32_0 = arith.constant 0 : i32
    %c0_i32_1 = arith.constant 0 : i32
    return %c0_i32, %c0_i32_0 : i32, i32
  }
  func.func @transform_7(%arg0: i32) -> (i32, i32, i32) {
    %c0_i32 = arith.constant 0 : i32
    %c0_i32_0 = arith.constant 0 : i32
    %c0_i32_1 = arith.constant 0 : i32
    return %arg0, %c0_i32, %c0_i32_0 : i32, i32, i32
  }
}

module attributes {stable_mosaic.version = 11 : i64} {
  func.func @lstm_head_kernel(%arg0: i32, %arg1: memref<16x2432xbf16, #tpu.memory_space<vmem>>, %arg2: memref<2432x192xbf16, #tpu.memory_space<vmem>>, %arg3: memref<1x192xf32, #tpu.memory_space<vmem>>, %arg4: memref<64x192xbf16, #tpu.memory_space<vmem>>, %arg5: memref<1x192xf32, #tpu.memory_space<vmem>>, %arg6: memref<64x32xf32, #tpu.memory_space<vmem>>, %arg7: memref<1x32xf32, #tpu.memory_space<vmem>>, %arg8: memref<32x6xf32, #tpu.memory_space<vmem>>, %arg9: memref<1x6xf32, #tpu.memory_space<vmem>>, %arg10: memref<16x6xf32, #tpu.memory_space<vmem>>) attributes {dimension_semantics = [#tpu.dimension_semantics<parallel>], iteration_bounds = array<i64: 1>, scalar_prefetch = 0 : i64, scratch_operands = 0 : i64, tpu.core_type = #tpu.core_type<tc>, window_params = [{transform_indices = @transform_0, window_bounds = array<i64: 16, 2432>}, {pipeline_mode = #tpu.pipeline_mode<synchronous>, transform_indices = @transform_1, window_bounds = array<i64: 2432, 192>}, {pipeline_mode = #tpu.pipeline_mode<synchronous>, transform_indices = @transform_2, window_bounds = array<i64: 1, 192>}, {pipeline_mode = #tpu.pipeline_mode<synchronous>, transform_indices = @transform_3, window_bounds = array<i64: 64, 192>}, {pipeline_mode = #tpu.pipeline_mode<synchronous>, transform_indices = @transform_4, window_bounds = array<i64: 1, 192>}, {pipeline_mode = #tpu.pipeline_mode<synchronous>, transform_indices = @transform_5, window_bounds = array<i64: 64, 32>}, {pipeline_mode = #tpu.pipeline_mode<synchronous>, transform_indices = @transform_6, window_bounds = array<i64: 1, 32>}, {pipeline_mode = #tpu.pipeline_mode<synchronous>, transform_indices = @transform_7, window_bounds = array<i64: 32, 6>}, {pipeline_mode = #tpu.pipeline_mode<synchronous>, transform_indices = @transform_8, window_bounds = array<i64: 1, 6>}, {transform_indices = @transform_9, window_bounds = array<i64: 16, 6>}]} {
    %c0 = arith.constant 0 : index
    %c0_0 = arith.constant 0 : index
    %0 = vector.load %arg1[%c0, %c0_0] : memref<16x2432xbf16, #tpu.memory_space<vmem>>, vector<16x2432xbf16>
    %c0_1 = arith.constant 0 : index
    %c0_2 = arith.constant 0 : index
    %1 = vector.load %arg2[%c0_1, %c0_2] : memref<2432x192xbf16, #tpu.memory_space<vmem>>, vector<2432x192xbf16>
    %cst = arith.constant dense<0.000000e+00> : vector<16x192xf32>
    %2 = tpu.matmul %0, %1, %cst {dimension_numbers = #tpu.dot_dimension_numbers<[1], [0], [0], [1], [0, 0, 1, 1], [], []>} : vector<16x2432xbf16>, vector<2432x192xbf16>, vector<16x192xf32> -> vector<16x192xf32>
    %c0_3 = arith.constant 0 : index
    %c0_4 = arith.constant 0 : index
    %3 = vector.load %arg3[%c0_3, %c0_4] : memref<1x192xf32, #tpu.memory_space<vmem>>, vector<1x192xf32>
    %4 = vector.broadcast %3 : vector<1x192xf32> to vector<16x192xf32>
    %5 = arith.addf %2, %4 : vector<16x192xf32>
    %6 = vector.extract_strided_slice %5 {offsets = [0, 0], sizes = [16, 128], strides = [1, 1]} : vector<16x192xf32> to vector<16x128xf32>
    %cst_5 = arith.constant 0.000000e+00 : f32
    %7 = vector.broadcast %cst_5 : f32 to vector<16x128xf32>
    %8 = arith.subf %7, %6 : vector<16x128xf32>
    %9 = math.exp %8 : vector<16x128xf32>
    %cst_6 = arith.constant 1.000000e+00 : f32
    %10 = vector.broadcast %cst_6 : f32 to vector<16x128xf32>
    %11 = arith.addf %10, %9 : vector<16x128xf32>
    %cst_7 = arith.constant 1.000000e+00 : f32
    %12 = vector.broadcast %cst_7 : f32 to vector<16x128xf32>
    %13 = arith.divf %12, %11 : vector<16x128xf32>
    %14 = vector.extract_strided_slice %5 {offsets = [0, 128], sizes = [16, 64], strides = [1, 1]} : vector<16x192xf32> to vector<16x64xf32>
    %15 = math.tanh %14 : vector<16x64xf32>
    %16 = vector.extract_strided_slice %13 {offsets = [0, 0], sizes = [16, 64], strides = [1, 1]} : vector<16x128xf32> to vector<16x64xf32>
    %17 = arith.mulf %16, %15 : vector<16x64xf32>
    %18 = vector.extract_strided_slice %13 {offsets = [0, 64], sizes = [16, 64], strides = [1, 1]} : vector<16x128xf32> to vector<16x64xf32>
    %19 = math.tanh %17 : vector<16x64xf32>
    %20 = arith.mulf %18, %19 : vector<16x64xf32>
    %21 = arith.truncf %20 : vector<16x64xf32> to vector<16x64xbf16>
    %c0_8 = arith.constant 0 : index
    %c0_9 = arith.constant 0 : index
    %22 = vector.load %arg4[%c0_8, %c0_9] : memref<64x192xbf16, #tpu.memory_space<vmem>>, vector<64x192xbf16>
    %cst_10 = arith.constant dense<0.000000e+00> : vector<16x192xf32>
    %23 = tpu.matmul %21, %22, %cst_10 {dimension_numbers = #tpu.dot_dimension_numbers<[1], [0], [0], [1], [0, 0, 1, 1], [], []>} : vector<16x64xbf16>, vector<64x192xbf16>, vector<16x192xf32> -> vector<16x192xf32>
    %c0_11 = arith.constant 0 : index
    %c0_12 = arith.constant 0 : index
    %24 = vector.load %arg5[%c0_11, %c0_12] : memref<1x192xf32, #tpu.memory_space<vmem>>, vector<1x192xf32>
    %25 = vector.broadcast %24 : vector<1x192xf32> to vector<16x192xf32>
    %26 = arith.addf %23, %25 : vector<16x192xf32>
    %27 = vector.extract_strided_slice %26 {offsets = [0, 0], sizes = [16, 128], strides = [1, 1]} : vector<16x192xf32> to vector<16x128xf32>
    %cst_13 = arith.constant 0.000000e+00 : f32
    %28 = vector.broadcast %cst_13 : f32 to vector<16x128xf32>
    %29 = arith.subf %28, %27 : vector<16x128xf32>
    %30 = math.exp %29 : vector<16x128xf32>
    %cst_14 = arith.constant 1.000000e+00 : f32
    %31 = vector.broadcast %cst_14 : f32 to vector<16x128xf32>
    %32 = arith.addf %31, %30 : vector<16x128xf32>
    %cst_15 = arith.constant 1.000000e+00 : f32
    %33 = vector.broadcast %cst_15 : f32 to vector<16x128xf32>
    %34 = arith.divf %33, %32 : vector<16x128xf32>
    %35 = vector.extract_strided_slice %26 {offsets = [0, 128], sizes = [16, 64], strides = [1, 1]} : vector<16x192xf32> to vector<16x64xf32>
    %36 = math.tanh %35 : vector<16x64xf32>
    %37 = vector.extract_strided_slice %34 {offsets = [0, 0], sizes = [16, 64], strides = [1, 1]} : vector<16x128xf32> to vector<16x64xf32>
    %38 = arith.mulf %37, %36 : vector<16x64xf32>
    %39 = vector.extract_strided_slice %34 {offsets = [0, 64], sizes = [16, 64], strides = [1, 1]} : vector<16x128xf32> to vector<16x64xf32>
    %40 = math.tanh %38 : vector<16x64xf32>
    %41 = arith.mulf %39, %40 : vector<16x64xf32>
    %c0_16 = arith.constant 0 : index
    %c0_17 = arith.constant 0 : index
    %42 = vector.load %arg6[%c0_16, %c0_17] : memref<64x32xf32, #tpu.memory_space<vmem>>, vector<64x32xf32>
    %cst_18 = arith.constant dense<0.000000e+00> : vector<16x32xf32>
    %43 = tpu.matmul %41, %42, %cst_18 {dimension_numbers = #tpu.dot_dimension_numbers<[1], [0], [0], [1], [0, 0, 1, 1], [], []>} : vector<16x64xf32>, vector<64x32xf32>, vector<16x32xf32> -> vector<16x32xf32>
    %c0_19 = arith.constant 0 : index
    %c0_20 = arith.constant 0 : index
    %44 = vector.load %arg7[%c0_19, %c0_20] : memref<1x32xf32, #tpu.memory_space<vmem>>, vector<1x32xf32>
    %45 = vector.broadcast %44 : vector<1x32xf32> to vector<16x32xf32>
    %46 = arith.addf %43, %45 : vector<16x32xf32>
    %cst_21 = arith.constant 0.000000e+00 : f32
    %47 = vector.broadcast %cst_21 : f32 to vector<16x32xf32>
    %48 = arith.maximumf %46, %47 : vector<16x32xf32>
    %c0_22 = arith.constant 0 : index
    %c0_23 = arith.constant 0 : index
    %49 = vector.load %arg8[%c0_22, %c0_23] : memref<32x6xf32, #tpu.memory_space<vmem>>, vector<32x6xf32>
    %cst_24 = arith.constant dense<0.000000e+00> : vector<16x6xf32>
    %50 = tpu.matmul %48, %49, %cst_24 {dimension_numbers = #tpu.dot_dimension_numbers<[1], [0], [0], [1], [0, 0, 1, 1], [], []>} : vector<16x32xf32>, vector<32x6xf32>, vector<16x6xf32> -> vector<16x6xf32>
    %c0_25 = arith.constant 0 : index
    %c0_26 = arith.constant 0 : index
    %51 = vector.load %arg9[%c0_25, %c0_26] : memref<1x6xf32, #tpu.memory_space<vmem>>, vector<1x6xf32>
    %52 = vector.broadcast %51 : vector<1x6xf32> to vector<16x6xf32>
    %53 = arith.addf %50, %52 : vector<16x6xf32>
    %c0_27 = arith.constant 0 : index
    %c0_28 = arith.constant 0 : index
    %54 = vector.load %arg10[%c0_27, %c0_28] : memref<16x6xf32, #tpu.memory_space<vmem>>, vector<16x6xf32>
    tpu.vector_store %arg10[%c0_27, %c0_28], %53 {strides = array<i32>} : memref<16x6xf32, #tpu.memory_space<vmem>>, vector<16x6xf32>,
    return
  }
  func.func @transform_0(%arg0: i32) -> (i32, i32) {
    %c0_i32 = arith.constant 0 : i32
    %c0_i32_0 = arith.constant 0 : i32
    return %arg0, %c0_i32 : i32, i32
  }
  func.func @transform_1(%arg0: i32) -> (i32, i32) {
    %c0_i32 = arith.constant 0 : i32
    %c0_i32_0 = arith.constant 0 : i32
    %c0_i32_1 = arith.constant 0 : i32
    return %c0_i32, %c0_i32_0 : i32, i32
  }
  func.func @transform_2(%arg0: i32) -> (i32, i32) {
    %c0_i32 = arith.constant 0 : i32
    %c0_i32_0 = arith.constant 0 : i32
    %c0_i32_1 = arith.constant 0 : i32
    return %c0_i32, %c0_i32_0 : i32, i32
  }
  func.func @transform_3(%arg0: i32) -> (i32, i32) {
    %c0_i32 = arith.constant 0 : i32
    %c0_i32_0 = arith.constant 0 : i32
    %c0_i32_1 = arith.constant 0 : i32
    return %c0_i32, %c0_i32_0 : i32, i32
  }
  func.func @transform_4(%arg0: i32) -> (i32, i32) {
    %c0_i32 = arith.constant 0 : i32
    %c0_i32_0 = arith.constant 0 : i32
    %c0_i32_1 = arith.constant 0 : i32
    return %c0_i32, %c0_i32_0 : i32, i32
  }
  func.func @transform_5(%arg0: i32) -> (i32, i32) {
    %c0_i32 = arith.constant 0 : i32
    %c0_i32_0 = arith.constant 0 : i32
    %c0_i32_1 = arith.constant 0 : i32
    return %c0_i32, %c0_i32_0 : i32, i32
  }
  func.func @transform_6(%arg0: i32) -> (i32, i32) {
    %c0_i32 = arith.constant 0 : i32
    %c0_i32_0 = arith.constant 0 : i32
    %c0_i32_1 = arith.constant 0 : i32
    return %c0_i32, %c0_i32_0 : i32, i32
  }
  func.func @transform_7(%arg0: i32) -> (i32, i32) {
    %c0_i32 = arith.constant 0 : i32
    %c0_i32_0 = arith.constant 0 : i32
    %c0_i32_1 = arith.constant 0 : i32
    return %c0_i32, %c0_i32_0 : i32, i32
  }
  func.func @transform_8(%arg0: i32) -> (i32, i32) {
    %c0_i32 = arith.constant 0 : i32
    %c0_i32_0 = arith.constant 0 : i32
    %c0_i32_1 = arith.constant 0 : i32
    return %c0_i32, %c0_i32_0 : i32, i32
  }
  func.func @transform_9(%arg0: i32) -> (i32, i32) {
    %c0_i32 = arith.constant 0 : i32
    %c0_i32_0 = arith.constant 0 : i32
    return %arg0, %c0_i32 : i32, i32
  }
}

</mosaic_0001>

<llo_original>
// kernel: forward.2
$region0: #{forward.2}
  #allocation0 [shape = 'u32[]', space=smem, size = 0x4, offset = 0x4, fixed_abs, tag = 'smem constant byte address 0x4 - core index']
  #allocation1 [shape = 'u32[144,128]{1,0:T(1,128)}', space=vmem, size = 0x12000, scoped, tag = 'internal scratch']
  #allocation2 [shape = 'bf16[38,1408]{1,0:T(8,128)(2,1)}', space=vmem, size = 0x1b800, scoped, tag = 'scratch operand']
  %s0 = inlined_call_operand.vmem [shape: bf16[2,77,60], index: 0, kind: input, shape index: {}]
  %s1 = inlined_call_operand.vmem [shape: bf16[9,60,64], index: 1, kind: input, shape index: {}]
  %s2 = inlined_call_operand.vmem [shape: f32[1,32], index: 2, kind: input, shape index: {}]
  %s3 = inlined_call_operand.vmem [shape: bf16[512,64], index: 3, kind: input, shape index: {}]
  %s4 = inlined_call_operand.vmem [shape: f32[1,32], index: 4, kind: input, shape index: {}]
  %s5 = inlined_call_operand.vmem [shape: bf16[38,76], index: 5, kind: input, shape index: {}]
  %s6 = inlined_call_operand.vmem [shape: bf16[19,37], index: 6, kind: input, shape index: {}]
  %s7 = inlined_call_operand.vmem [shape: bf16[2,19,128], index: 7, kind: output, shape index: {}]
  %s8 = sld [smem:[#allocation0]]
  $region61: #{forward.2} parent=0
    _
  %s10 = ssub.s32 1, %s8
  %s11 = scalar_select 0, %s10, %s8
  loop: start=0, step=1, limit=4
  $region2: #{forward.2} parent=0 // loop_pre_header
    _
  $region3: #{forward.2} parent=0 // loop_header
    %s13 = sphi 0, %s17
    %p14 = scmp.ge.s32.totalorder %s13, 4
    %s23 = sphi 0, %s25
    %s26 = sphi 0, %s23
    %s27 = sphi 0, %s26
    %s43 = sphi 0, %s27
    %s47 = sphi 0, %s47
    %s49 = sphi 0, %s47
    %s50 = sphi 0, %s49
    %s64 = sphi 0, %s50
    %s68 = sphi 0, %s68
    %s70 = sphi 0, %s68
    %s71 = sphi 0, %s70
    %s85 = sphi 0, %s71
    %s89 = sphi 0, %s89
    %s91 = sphi 0, %s89
    %s92 = sphi 0, %s91
    %s106 = sphi 0, %s92
    %s110 = sphi 0, %s110
    %s112 = sphi 0, %s110
    %s113 = sphi 0, %s112
    %s127 = sphi 0, %s113
    %s131 = sphi 0, %s131
    %s133 = sphi 0, %s131
    %s134 = sphi 0, %s133
    %s148 = sphi 0, %s134
    %s152 = sphi 0, %s152
    %s154 = sphi 0, %s152
    %s155 = sphi 0, %s154
    %s169 = sphi 0, %s155
    %s175 = sphi 0, %s177
    %s178 = sphi 0, %s175
    %s179 = sphi 0, %s178
    %s195 = sphi 0, %s179
  $region4: #{forward.2} parent=0 // loop_header_branch
    %16 = sbr.rel (%p14) target = $region8
  $region5: #{forward.2} parent=0 // loop_body
    %s18 = ssub.s32 %s13, 1
    %s19 = ssub.s32 %s13, 2
    %s20 = sadd.s32 %s13, 1
    %s21 = ssub.s32 %s13, %s20
    %p22 = scmp.eq.s32.totalorder %s21, 0
    %s24 = sadd.s32 %s23, 1
    %s25 = scalar_select %p22, %s23, %s24
    %p28 = pneg %p22
    %p29 = scmp.eq.s32.totalorder %s13, 1
    %p30 = por %p28, %p29
    %p31 = scmp.ne.s32.totalorder %s23, %s26
    %p32 = scmp.eq.s32.totalorder %s13, 0
    %p33 = por %p31, %p32
    %p34 = scmp.ne.s32.totalorder %s23, %s26
    %p35 = scmp.eq.s32.totalorder %s18, 1
    %p36 = por %p34, %p35
    %p37 = scmp.ne.s32.totalorder %s26, %s27
    %p38 = scmp.eq.s32.totalorder %s18, 0
    %p39 = por %p37, %p38
    %p40 = scmp.ne.s32.totalorder %s26, %s27
    %p41 = scmp.eq.s32.totalorder %s19, 1
    %p42 = por %p40, %p41
    %p44 = scmp.ne.s32.totalorder %s27, %s43
    %p45 = scmp.eq.s32.totalorder %s19, 0
    %p46 = por %p44, %p45
    %s48 = sadd.s32 %s47, 1
    %p51 = scmp.eq.s32.totalorder %s13, 1
    %p52 = scmp.ne.s32.totalorder %s47, %s49
    %p53 = scmp.eq.s32.totalorder %s13, 0
    %p54 = por %p52, %p53
    %p55 = scmp.ne.s32.totalorder %s47, %s49
    %p56 = scmp.eq.s32.totalorder %s18, 1
    %p57 = por %p55, %p56
    %p58 = scmp.ne.s32.totalorder %s49, %s50
    %p59 = scmp.eq.s32.totalorder %s18, 0
    %p60 = por %p58, %p59
    %p61 = scmp.ne.s32.totalorder %s49, %s50
    %p62 = scmp.eq.s32.totalorder %s19, 1
    %p63 = por %p61, %p62
    %p65 = scmp.ne.s32.totalorder %s50, %s64
    %p66 = scmp.eq.s32.totalorder %s19, 0
    %p67 = por %p65, %p66
    %s69 = sadd.s32 %s68, 1
    %p72 = scmp.eq.s32.totalorder %s13, 1
    %p73 = scmp.ne.s32.totalorder %s68, %s70
    %p74 = scmp.eq.s32.totalorder %s13, 0
    %p75 = por %p73, %p74
    %p76 = scmp.ne.s32.totalorder %s68, %s70
    %p77 = scmp.eq.s32.totalorder %s18, 1
    %p78 = por %p76, %p77
    %p79 = scmp.ne.s32.totalorder %s70, %s71
    %p80 = scmp.eq.s32.totalorder %s18, 0
    %p81 = por %p79, %p80
    %p82 = scmp.ne.s32.totalorder %s70, %s71
    %p83 = scmp.eq.s32.totalorder %s19, 1
    %p84 = por %p82, %p83
    %p86 = scmp.ne.s32.totalorder %s71, %s85
    %p87 = scmp.eq.s32.totalorder %s19, 0
    %p88 = por %p86, %p87
    %s90 = sadd.s32 %s89, 1
    %p93 = scmp.eq.s32.totalorder %s13, 1
    %p94 = scmp.ne.s32.totalorder %s89, %s91
    %p95 = scmp.eq.s32.totalorder %s13, 0
    %p96 = por %p94, %p95
    %p97 = scmp.ne.s32.totalorder %s89, %s91
    %p98 = scmp.eq.s32.totalorder %s18, 1
    %p99 = por %p97, %p98
    %p100 = scmp.ne.s32.totalorder %s91, %s92
    %p101 = scmp.eq.s32.totalorder %s18, 0
    %p102 = por %p100, %p101
    %p103 = scmp.ne.s32.totalorder %s91, %s92
    %p104 = scmp.eq.s32.totalorder %s19, 1
    %p105 = por %p103, %p104
    %p107 = scmp.ne.s32.totalorder %s92, %s106
    %p108 = scmp.eq.s32.totalorder %s19, 0
    %p109 = por %p107, %p108
    %s111 = sadd.s32 %s110, 1
    %p114 = scmp.eq.s32.totalorder %s13, 1
    %p115 = scmp.ne.s32.totalorder %s110, %s112
    %p116 = scmp.eq.s32.totalorder %s13, 0
    %p117 = por %p115, %p116
    %p118 = scmp.ne.s32.totalorder %s110, %s112
    %p119 = scmp.eq.s32.totalorder %s18, 1
    %p120 = por %p118, %p119
    %p121 = scmp.ne.s32.totalorder %s112, %s113
    %p122 = scmp.eq.s32.totalorder %s18, 0
    %p123 = por %p121, %p122
    %p124 = scmp.ne.s32.totalorder %s112, %s113
    %p125 = scmp.eq.s32.totalorder %s19, 1
    %p126 = por %p124, %p125
    %p128 = scmp.ne.s32.totalorder %s113, %s127
    %p129 = scmp.eq.s32.totalorder %s19, 0
    %p130 = por %p128, %p129
    %s132 = sadd.s32 %s131, 1
    %p135 = scmp.eq.s32.totalorder %s13, 1
    %p136 = scmp.ne.s32.totalorder %s131, %s133
    %p137 = scmp.eq.s32.totalorder %s13, 0
    %p138 = por %p136, %p137
    %p139 = scmp.ne.s32.totalorder %s131, %s133
    %p140 = scmp.eq.s32.totalorder %s18, 1
    %p141 = por %p139, %p140
    %p142 = scmp.ne.s32.totalorder %s133, %s134
    %p143 = scmp.eq.s32.totalorder %s18, 0
    %p144 = por %p142, %p143
    %p145 = scmp.ne.s32.totalorder %s133, %s134
    %p146 = scmp.eq.s32.totalorder %s19, 1
    %p147 = por %p145, %p146
    %p149 = scmp.ne.s32.totalorder %s134, %s148
    %p150 = scmp.eq.s32.totalorder %s19, 0
    %p151 = por %p149, %p150
    %s153 = sadd.s32 %s152, 1
    %p156 = scmp.eq.s32.totalorder %s13, 1
    %p157 = scmp.ne.s32.totalorder %s152, %s154
    %p158 = scmp.eq.s32.totalorder %s13, 0
    %p159 = por %p157, %p158
    %p160 = scmp.ne.s32.totalorder %s152, %s154
    %p161 = scmp.eq.s32.totalorder %s18, 1
    %p162 = por %p160, %p161
    %p163 = scmp.ne.s32.totalorder %s154, %s155
    %p164 = scmp.eq.s32.totalorder %s18, 0
    %p165 = por %p163, %p164
    %p166 = scmp.ne.s32.totalorder %s154, %s155
    %p167 = scmp.eq.s32.totalorder %s19, 1
    %p168 = por %p166, %p167
    %p170 = scmp.ne.s32.totalorder %s155, %s169
    %p171 = scmp.eq.s32.totalorder %s19, 0
    %p172 = por %p170, %p171
    %s173 = ssub.s32 %s13, %s20
    %p174 = scmp.eq.s32.totalorder %s173, 0
    %s176 = sadd.s32 %s175, 1
    %s177 = scalar_select %p174, %s175, %s176
    %p180 = pneg %p174
    %p181 = scmp.eq.s32.totalorder %s13, 1
    %p182 = por %p180, %p181
    %p183 = scmp.ne.s32.totalorder %s175, %s178
    %p184 = scmp.eq.s32.totalorder %s13, 0
    %p185 = por %p183, %p184
    %p186 = scmp.ne.s32.totalorder %s175, %s178
    %p187 = scmp.eq.s32.totalorder %s18, 1
    %p188 = por %p186, %p187
    %p189 = scmp.ne.s32.totalorder %s178, %s179
    %p190 = scmp.eq.s32.totalorder %s18, 0
    %p191 = por %p189, %p190
    %p192 = scmp.ne.s32.totalorder %s178, %s179
    %p193 = scmp.eq.s32.totalorder %s19, 1
    %p194 = por %p192, %p193
    %p196 = scmp.ne.s32.totalorder %s179, %s195
    %p197 = scmp.eq.s32.totalorder %s19, 0
    %p198 = por %p196, %p197
    %p199 = scmp.le.s32.totalorder 1, %s13
    %p200 = scmp.lt.s32.totalorder %s13, 3
    %p201 = pnand %p199, %p200
    %p202 = pneg %p201
    // Predicated region
    $region9: #{forward.2} parent=5 // pred_check
      _
    $region10: #{forward.2} parent=5 // pred_check_branch
      %204 = sbr.rel (%p201) target = $region12
    $region11: #{forward.2} parent=5 // pred_region
      %s205 = ssub.s32 %s13, 1
      // Predicated region
      $region13: #{forward.2} parent=11 // pred_check
        %p206 = pneg %p60
      $region14: #{forward.2} parent=11 // pred_check_branch
        %208 = sbr.rel (%p206) target = $region16
      $region15: #{forward.2} parent=11 // pred_region
        _
      $region16: #{forward.2} parent=11 // pred_fallthru
        _
      // Predicated region
      $region17: #{forward.2} parent=11 // pred_check
        %p209 = pneg %p81
      $region18: #{forward.2} parent=11 // pred_check_branch
        %211 = sbr.rel (%p209) target = $region20
      $region19: #{forward.2} parent=11 // pred_region
        _
      $region20: #{forward.2} parent=11 // pred_fallthru
        _
      // Predicated region
      $region21: #{forward.2} parent=11 // pred_check
        %p212 = pneg %p102
      $region22: #{forward.2} parent=11 // pred_check_branch
        %214 = sbr.rel (%p212) target = $region24
      $region23: #{forward.2} parent=11 // pred_region
        _
      $region24: #{forward.2} parent=11 // pred_fallthru
        _
      // Predicated region
      $region25: #{forward.2} parent=11 // pred_check
        %p215 = pneg %p123
      $region26: #{forward.2} parent=11 // pred_check_branch
        %217 = sbr.rel (%p215) target = $region28
      $region27: #{forward.2} parent=11 // pred_region
        _
      $region28: #{forward.2} parent=11 // pred_fallthru
        _
      // Predicated region
      $region29: #{forward.2} parent=11 // pred_check
        %p218 = pneg %p144
      $region30: #{forward.2} parent=11 // pred_check_branch
        %220 = sbr.rel (%p218) target = $region32
      $region31: #{forward.2} parent=11 // pred_region
        _
      $region32: #{forward.2} parent=11 // pred_fallthru
        _
      // Predicated region
      $region33: #{forward.2} parent=11 // pred_check
        %p221 = pneg %p165
      $region34: #{forward.2} parent=11 // pred_check_branch
        %223 = sbr.rel (%p221) target = $region36
      $region35: #{forward.2} parent=11 // pred_region
        _
      $region36: #{forward.2} parent=11 // pred_fallthru
        _
    $region12: #{forward.2} parent=5 // pred_fallthru
      _
    %p224 = scmp.lt.s32.totalorder %s13, 2
    // Predicated region
    $region37: #{forward.2} parent=5 // pred_check
      %p225 = pneg %p224
    $region38: #{forward.2} parent=5 // pred_check_branch
      %227 = sbr.rel (%p225) target = $region40
    $region39: #{forward.2} parent=5 // pred_region
      // Predicated region
      $region41: #{forward.2} parent=39 // pred_check
        %p228 = pneg %p33
      $region42: #{forward.2} parent=39 // pred_check_branch
        %230 = sbr.rel (%p228) target = $region44
      $region43: #{forward.2} parent=39 // pred_region
        %p231 = scmp.lt.s32.totalorder %s13, 1
        %s232 = scalar_select %p231, %s13, 1
        %s233 = smul.addr %s232, 10
        %s234 = smul.addr %s233, 4
        %s235 = scalar_lea.vmem %s0, %s234
      $region44: #{forward.2} parent=39 // pred_fallthru
        _
    $region40: #{forward.2} parent=5 // pred_fallthru
      _
    %p236 = scmp.le.s32.totalorder 1, %s13
    %p237 = scmp.lt.s32.totalorder %s13, 3
    %p238 = pnand %p236, %p237
    %p239 = pneg %p238
    // Predicated region
    $region45: #{forward.2} parent=5 // pred_check
      _
    $region46: #{forward.2} parent=5 // pred_check_branch
      %241 = sbr.rel (%p238) target = $region48
    $region47: #{forward.2} parent=5 // pred_region
      %s242 = ssub.s32 %s13, 1
      %p243 = scmp.lt.s32.totalorder %s18, 1
      %s244 = scalar_select %p243, %s18, 1
      %s245 = smul.addr %s244, 10
      %s246 = smul.addr %s245, 4
      %s247 = scalar_lea.vmem %s0, %s246
      %p248 = pneg %p39
      %p249 = pneg %p36
      %p250 = pneg %p60
      %p251 = pneg %p57
      %p252 = pneg %p81
      %p253 = pneg %p78
      %p254 = pneg %p102
      %p255 = pneg %p99
      %p256 = pneg %p123
      %p257 = pneg %p120
      %p258 = pneg %p144
      %p259 = pneg %p141
      %p260 = pneg %p165
      %p261 = pneg %p162
      %p262 = pneg %p191
      %p263 = pneg %p188
      %p264 = scmp.lt.s32.totalorder %s18, 1
      %s265 = scalar_select %p264, %s18, 1
      %s266 = smul.addr %s265, 3
      %s267 = smul.addr %s266, 4
      %s268 = scalar_lea.vmem %s7, %s267
      %p269 = scmp.lt.s32.totalorder %s18, 1
      %s270 = scalar_select %p269, %s18, 1
      %s271 = smul.addr %s270, 10
      %s272 = smul.addr %s271, 4
      %s273 = scalar_lea.vmem %s0, %s272
      %p274 = scmp.lt.s32.totalorder %s18, 1
      %s275 = scalar_select %p274, %s18, 1
      %s276 = smul.addr %s275, 3
      %s277 = smul.addr %s276, 4
      %s278 = scalar_lea.vmem %s7, %s277
      %v280 = vld [vmem:[%s2] sm:$0x1]
      %v281 = vld [vmem:[%s4] sm:$0x1]
      %v282 = vld [vmem:[%s5] sm:$0xf]
      %v283 = vld [vmem:[%s5 + $0x4] sm:$0xf]
      %v284 = vld [vmem:[%s5 + $0x8] sm:$0xf]
      %v285 = vld [vmem:[%s5 + $0xc] sm:$0xf]
      %v286 = vld [vmem:[%s5 + $0x10] sm:$0x7]
      %v287 = vld [vmem:[%s6] sm:$0xf]
      %v288 = vld [vmem:[%s6 + $0x4] sm:$0xf]
      %v289 = vld [vmem:[%s6 + $0x8] sm:$0x3]
      %290 = vst [vmem:[#allocation2] sm:$0xff] 0
      %291 = vst [vmem:[#allocation2 + $0x8] sm:$0xff] 0
      %292 = vst [vmem:[#allocation2 + $0x10] sm:$0xff] 0
      %293 = vst [vmem:[#allocation2 + $0x18] sm:$0xff] 0
      %294 = vst [vmem:[#allocation2 + $0x20] sm:$0xff] 0
      %295 = vst [vmem:[#allocation2 + $0x28] sm:$0xf] 0
      %296 = vst [vmem:[#allocation2 + $0x2c] sm:$0xff] 0
      %297 = vst [vmem:[#allocation2 + $0x34] sm:$0xff] 0
      %298 = vst [vmem:[#allocation2 + $0x3c] sm:$0xff] 0
      %299 = vst [vmem:[#allocation2 + $0x44] sm:$0xff] 0
      %300 = vst [vmem:[#allocation2 + $0x4c] sm:$0xff] 0
      %301 = vst [vmem:[#allocation2 + $0x54] sm:$0xf] 0
      %302 = vst [vmem:[#allocation2 + $0x58] sm:$0xff] 0
      %303 = vst [vmem:[#allocation2 + $0x60] sm:$0xff] 0
      %304 = vst [vmem:[#allocation2 + $0x68] sm:$0xff] 0
      %305 = vst [vmem:[#allocation2 + $0x70] sm:$0xff] 0
      %306 = vst [vmem:[#allocation2 + $0x78] sm:$0xff] 0
      %307 = vst [vmem:[#allocation2 + $0x80] sm:$0xf] 0
      %308 = vst [vmem:[#allocation2 + $0x84] sm:$0xff] 0
      %309 = vst [vmem:[#allocation2 + $0x8c] sm:$0xff] 0
      %310 = vst [vmem:[#allocation2 + $0x94] sm:$0xff] 0
      %311 = vst [vmem:[#allocation2 + $0x9c] sm:$0xff] 0
      %312 = vst [vmem:[#allocation2 + $0xa4] sm:$0xff] 0
      %313 = vst [vmem:[#allocation2 + $0xac] sm:$0xf] 0
      %314 = vst [vmem:[#allocation2 + $0xb0] sm:$0x77] 0
      %315 = vst [vmem:[#allocation2 + $0xb8] sm:$0x77] 0
      %316 = vst [vmem:[#allocation2 + $0xc0] sm:$0x77] 0
      %317 = vst [vmem:[#allocation2 + $0xc8] sm:$0x77] 0
      %318 = vst [vmem:[#allocation2 + $0xd0] sm:$0x77] 0
      %319 = vst [vmem:[#allocation2 + $0xd8] sm:$0x7] 0
      %v320 = vld [vmem:[%s273] sm:$0xf]
      %v321 = vld [vmem:[%s273 + $0x4] sm:$0xf]
      %v322 = vld [vmem:[%s273 + $0x8] sm:$0xf]
      %v323 = vld [vmem:[%s273 + $0xc] sm:$0xf]
      %v324 = vld [vmem:[%s273 + $0x10] sm:$0xf]
      %v325 = vld [vmem:[%s273 + $0x14] sm:$0xf]
      %v326 = vld [vmem:[%s273 + $0x18] sm:$0xf]
      %v327 = vld [vmem:[%s273 + $0x1c] sm:$0xf]
      %v328 = vld [vmem:[%s273 + $0x20] sm:$0xf]
      %v329 = vld [vmem:[%s273 + $0x24] sm:$0x7]
      %v330 = vld [vmem:[%s1] sm:$0xf]
      %v331 = vld [vmem:[%s1 + $0x4] sm:$0xf]
      %v332 = vld [vmem:[%s1 + $0x8] sm:$0xf]
      %v333 = vld [vmem:[%s1 + $0xc] sm:$0xf]
      %v334 = vld [vmem:[%s1 + $0x10] sm:$0xf]
      %v335 = vld [vmem:[%s1 + $0x14] sm:$0xf]
      %v336 = vld [vmem:[%s1 + $0x18] sm:$0xf]
      %v337 = vld [vmem:[%s1 + $0x1c] sm:$0x3]
      %v348 = vunpack.c.l.b16 %v320
      %v349 = vunpack.c.l.b16 %v321
      %v350 = vunpack.c.l.b16 %v322
      %v351 = vunpack.c.l.b16 %v323
      %v352 = vunpack.c.l.b16 %v324
      %v353 = vunpack.c.l.b16 %v325
      %v354 = vunpack.c.l.b16 %v326
      %v355 = vunpack.c.l.b16 %v327
      %v356 = vunpack.c.l.b16 %v328
      %v357 = vunpack.c.l.b16 %v329
      %v358 = vpack.c.b16 %v349, %v348
      %v359 = vpack.c.b16 %v351, %v350
      %v360 = vpack.c.b16 %v353, %v352
      %v361 = vpack.c.b16 %v355, %v354
      %v362 = vpack.c.b16 %v357, %v356
      %v371 = vunpack.c.l.b16 %v330
      %v372 = vunpack.c.l.b16 %v331
      %v373 = vunpack.c.l.b16 %v332
      %v374 = vunpack.c.l.b16 %v333
      %v375 = vunpack.c.l.b16 %v334
      %v376 = vunpack.c.l.b16 %v335
      %v377 = vunpack.c.l.b16 %v336
      %v378 = vunpack.c.l.b16 %v337
      %v379 = vpack.c.b16 %v372, %v371
      %v380 = vpack.c.b16 %v374, %v373
      %v381 = vpack.c.b16 %v376, %v375
      %v382 = vpack.c.b16 %v378, %v377
      %vm386 = vcmask 490496
      %v388 = vsel %vm386, %v358, 0
      %v391 = vsel %vm386, %v359, 0
      %v394 = vsel %vm386, %v360, 0
      %v397 = vsel %vm386, %v361, 0
      %v400 = vsel %vm386, %v362, 0
      %vm402 = vcmask 1045504
      %v404 = vsel %vm402, %v382, 0
      %406 = vmatprep.subr.bf16.mxu0 0
      %407 = vmatpush1.bf16.msra.mxu0 %v379
      %408 = vmatprep.subr.bf16.mxu0 0
      %409 = vmatpush1.bf16.msra.mxu0 %v380
      %410 = vmatprep.subr.bf16.mxu0 0
      %411 = vmatpush1.bf16.msra.mxu0 %v381
      %412 = vmatprep.subr.bf16.mxu0 0
      %413 = vmatpush1.bf16.msra.mxu0 %v404
      %414 = vmatprep.subr.bf16.mxu0 0
      %415 = vmatpush1.bf16.msra.mxu0 0
      %416 = vmatprep.subr.bf16.mxu0 0
      %417 = vmatpush1.bf16.msra.mxu0 0
      %418 = vmatprep.subr.bf16.mxu0 0
      %419 = vmatpush1.bf16.msra.mxu0 0
      %420 = vmatprep.subr.bf16.mxu0 0
      %421 = vmatpush1.bf16.msra.mxu0 0
      %422 = vmatprep.subr.bf16.mxu0 0
      %423 = vmatpush1.bf16.msra.mxu0 0
      %424 = vmatprep.subr.bf16.mxu0 0
      %425 = vmatpush1.bf16.msra.mxu0 0
      %426 = vmatprep.subr.bf16.mxu0 0
      %427 = vmatpush1.bf16.msra.mxu0 0
      %428 = vmatprep.subr.bf16.mxu0 0
      %429 = vmatpush1.bf16.msra.mxu0 0
      %430 = vmatprep.subr.bf16.mxu0 0
      %431 = vmatpush1.bf16.msra.mxu0 0
      %432 = vmatprep.subr.bf16.mxu0 0
      %433 = vmatpush1.bf16.msra.mxu0 0
      %434 = vmatprep.subr.bf16.mxu0 0
      %435 = vmatpush1.bf16.msra.mxu0 0
      %436 = vmatprep.subr.bf16.mxu0 0
      %437 = vmatpush1.bf16.msra.mxu0 0
      %438 = vmatprep.mubr.bf16.mxu0 0
      %439 = vmatmul.mubr.bf16.gmra.mrb[0].mxu0 %v388
      %v440 = vpop.f32.mrb[0].mxu0
      %v441 = vadd.f32 0.0, %v440
      %v442 = vpop.f32.mrb[0].mxu0
      %v443 = vpop.f32.mrb[0].mxu0
      %v444 = vadd.f32 0.0, %v443
      %v445 = vpop.f32.mrb[0].mxu0
      %446 = vmatprep.mubr.bf16.mxu0 0
      %447 = vmatmul.mubr.bf16.gmra.mrb[0].mxu0 %v391
      %v448 = vpop.f32.mrb[0].mxu0
      %v449 = vadd.f32 0.0, %v448
      %v450 = vpop.f32.mrb[0].mxu0
      %v451 = vpop.f32.mrb[0].mxu0
      %v452 = vadd.f32 0.0, %v451
      %v453 = vpop.f32.mrb[0].mxu0
      %454 = vmatprep.mubr.bf16.mxu0 0
      %455 = vmatmul.mubr.bf16.gmra.mrb[0].mxu0 %v394
      %v456 = vpop.f32.mrb[0].mxu0
      %v457 = vadd.f32 0.0, %v456
      %v458 = vpop.f32.mrb[0].mxu0
      %v459 = vpop.f32.mrb[0].mxu0
      %v460 = vadd.f32 0.0, %v459
      %v461 = vpop.f32.mrb[0].mxu0
      %462 = vmatprep.mubr.bf16.mxu0 0
      %463 = vmatmul.mubr.bf16.gmra.mrb[0].mxu0 %v397
      %v464 = vpop.f32.mrb[0].mxu0
      %v465 = vadd.f32 0.0, %v464
      %v466 = vpop.f32.mrb[0].mxu0
      %v467 = vpop.f32.mrb[0].mxu0
      %v468 = vadd.f32 0.0, %v467
      %v469 = vpop.f32.mrb[0].mxu0
      %470 = vmatprep.mubr.bf16.mxu0 0
      %471 = vmatmul.mubr.bf16.gmra.mrb[0].mxu0 %v400
      %v472 = vpop.f32.mrb[0].mxu0
      %v473 = vadd.f32 0.0, %v472
      %v474 = vpop.f32.mrb[0].mxu0
      %v475 = vpop.f32.mrb[0].mxu0
      %v476 = vadd.f32 0.0, %v475
      %v477 = vpop.f32.mrb[0].mxu0
      %478 = vdwg.mxu0
      %489 = vrot.lane.b32.xlu0 %v441, 96
      %v490 = vpop.permute.xlu0 %489
      %491 = vrot.lane.b32.xlu0 %v444, 96
      %v492 = vpop.permute.xlu0 %491
      %493 = vrot.lane.b32.xlu0 %v449, 96
      %v494 = vpop.permute.xlu0 %493
      %495 = vrot.lane.b32.xlu0 %v452, 96
      %v496 = vpop.permute.xlu0 %495
      %497 = vrot.lane.b32.xlu0 %v457, 96
      %v498 = vpop.permute.xlu0 %497
      %499 = vrot.lane.b32.xlu0 %v460, 96
      %v500 = vpop.permute.xlu0 %499
      %501 = vrot.lane.b32.xlu0 %v465, 96
      %v502 = vpop.permute.xlu0 %501
      %503 = vrot.lane.b32.xlu0 %v468, 96
      %v504 = vpop.permute.xlu0 %503
      %505 = vrot.lane.b32.xlu0 %v473, 96
      %v506 = vpop.permute.xlu0 %505
      %507 = vrot.lane.b32.xlu0 %v476, 96
      %v508 = vpop.permute.xlu0 %507
      %v519 = vmax.f32 %v441, %v490
      %v520 = vmax.f32 %v444, %v492
      %v521 = vmax.f32 %v449, %v494
      %v522 = vmax.f32 %v452, %v496
      %v523 = vmax.f32 %v457, %v498
      %v524 = vmax.f32 %v460, %v500
      %v525 = vmax.f32 %v465, %v502
      %v526 = vmax.f32 %v468, %v504
      %v527 = vmax.f32 %v473, %v506
      %v528 = vmax.f32 %v476, %v508
      %v530 = vlaneseq
      %v531 = vshrl.u32 %v530, 7
      %v532 = vsub.s32 0, %v531
      %v533 = vrot.slane %v280, %v532
      %v535 = vadd.f32 %v519, %v533
      %v536 = vadd.f32 %v520, %v533
      %v537 = vadd.f32 %v521, %v533
      %v538 = vadd.f32 %v522, %v533
      %v539 = vadd.f32 %v523, %v533
      %v540 = vadd.f32 %v524, %v533
      %v541 = vadd.f32 %v525, %v533
      %v542 = vadd.f32 %v526, %v533
      %v543 = vadd.f32 %v527, %v533
      %v544 = vadd.f32 %v528, %v533
      %v545 = vmax.f32 %v535, 0.0
      %v546 = vmax.f32 %v536, 0.0
      %v547 = vmax.f32 %v537, 0.0
      %v548 = vmax.f32 %v538, 0.0
      %v549 = vmax.f32 %v539, 0.0
      %v550 = vmax.f32 %v540, 0.0
      %v551 = vmax.f32 %v541, 0.0
      %v552 = vmax.f32 %v542, 0.0
      %v553 = vmax.f32 %v543, 0.0
      %v554 = vmax.f32 %v544, 0.0
      %vm565 = vcmask 1046528
      %v566 = vrot.slane %v545, 1
      %v567 = vrot.slane %v546, 1
      %v568 = vsel %vm565, %v566, %v567
      %v569 = vrot.slane %v547, 1
      %v570 = vsel %vm565, %v567, %v569
      %v571 = vrot.slane %v548, 1
      %v572 = vsel %vm565, %v569, %v571
      %v573 = vrot.slane %v549, 1
      %v574 = vsel %vm565, %v571, %v573
      %v575 = vrot.slane %v550, 1
      %v576 = vsel %vm565, %v573, %v575
      %v577 = vrot.slane %v551, 1
      %v578 = vsel %vm565, %v575, %v577
      %v579 = vrot.slane %v552, 1
      %v580 = vsel %vm565, %v577, %v579
      %v581 = vrot.slane %v553, 1
      %v582 = vsel %vm565, %v579, %v581
      %v583 = vrot.slane %v554, 1
      %v584 = vsel %vm565, %v581, %v583
      %v595 = vmax.f32 %v545, %v568
      %v596 = vmax.f32 %v546, %v570
      %v597 = vmax.f32 %v547, %v572
      %v598 = vmax.f32 %v548, %v574
      %v599 = vmax.f32 %v549, %v576
      %v600 = vmax.f32 %v550, %v578
      %v601 = vmax.f32 %v551, %v580
      %v602 = vmax.f32 %v552, %v582
      %v603 = vmax.f32 %v553, %v584
      %v604 = vmax.f32 %v554, %v583
      %v605 = vpack.c.bf16 %v596, %v595
      %v606 = vpack.c.bf16 %v598, %v597
      %v607 = vpack.c.bf16 %v600, %v599
      %v608 = vpack.c.bf16 %v602, %v601
      %v609 = vpack.c.bf16 %v604, %v603
      %v615 = vunpack.c.l.b16 %v282
      %v616 = vunpack.c.l.b16 %v283
      %v617 = vunpack.c.l.b16 %v284
      %v618 = vunpack.c.l.b16 %v285
      %v619 = vunpack.c.l.b16 %v286
      %v620 = vpack.c.b16 %v616, %v615
      %v621 = vpack.c.b16 %v618, %v617
      %v622 = vpack.c.b16 %v619, %v619
      %vm623 = vcmask 621568
      %v625 = vsel %vm623, %v620, 0
      %v628 = vsel %vm623, %v621, 0
      %v631 = vsel %vm623, %v622, 0
      %v634 = vsel %vm402, %v609, 0
      %636 = vmatprep.subr.bf16.mxu0 0
      %637 = vmatpush1.bf16.msra.mxu0 %v605
      %638 = vmatprep.subr.bf16.mxu0 0
      %639 = vmatpush1.bf16.msra.mxu0 %v606
      %640 = vmatprep.subr.bf16.mxu0 0
      %641 = vmatpush1.bf16.msra.mxu0 %v607
      %642 = vmatprep.subr.bf16.mxu0 0
      %643 = vmatpush1.bf16.msra.mxu0 %v608
      %644 = vmatprep.subr.bf16.mxu0 0
      %645 = vmatpush1.bf16.msra.mxu0 %v634
      %646 = vmatprep.subr.bf16.mxu0 0
      %647 = vmatpush1.bf16.msra.mxu0 0
      %648 = vmatprep.subr.bf16.mxu0 0
      %649 = vmatpush1.bf16.msra.mxu0 0
      %650 = vmatprep.subr.bf16.mxu0 0
      %651 = vmatpush1.bf16.msra.mxu0 0
      %652 = vmatprep.subr.bf16.mxu0 0
      %653 = vmatpush1.bf16.msra.mxu0 0
      %654 = vmatprep.subr.bf16.mxu0 0
      %655 = vmatpush1.bf16.msra.mxu0 0
      %656 = vmatprep.subr.bf16.mxu0 0
      %657 = vmatpush1.bf16.msra.mxu0 0
      %658 = vmatprep.subr.bf16.mxu0 0
      %659 = vmatpush1.bf16.msra.mxu0 0
      %660 = vmatprep.subr.bf16.mxu0 0
      %661 = vmatpush1.bf16.msra.mxu0 0
      %662 = vmatprep.subr.bf16.mxu0 0
      %663 = vmatpush1.bf16.msra.mxu0 0
      %664 = vmatprep.subr.bf16.mxu0 0
      %665 = vmatpush1.bf16.msra.mxu0 0
      %666 = vmatprep.subr.bf16.mxu0 0
      %667 = vmatpush1.bf16.msra.mxu0 0
      %668 = vmatprep.mubr.bf16.mxu0 0
      %669 = vmatmul.mubr.bf16.gmra.mrb[0].mxu0 %v625
      %v670 = vpop.f32.mrb[0].mxu0
      %v671 = vadd.f32 0.0, %v670
      %v672 = vpop.f32.mrb[0].mxu0
      %v673 = vpop.f32.mrb[0].mxu0
      %v674 = vadd.f32 0.0, %v673
      %v675 = vpop.f32.mrb[0].mxu0
      %676 = vmatprep.mubr.bf16.mxu0 0
      %677 = vmatmul.mubr.bf16.gmra.mrb[0].mxu0 %v628
      %v678 = vpop.f32.mrb[0].mxu0
      %v679 = vadd.f32 0.0, %v678
      %v680 = vpop.f32.mrb[0].mxu0
      %v681 = vpop.f32.mrb[0].mxu0
      %v682 = vadd.f32 0.0, %v681
      %v683 = vpop.f32.mrb[0].mxu0
      %684 = vmatprep.mubr.bf16.mxu0 0
      %685 = vmatmul.mubr.bf16.gmra.mrb[0].mxu0 %v631
      %v686 = vpop.f32.mrb[0].mxu0
      %v687 = vadd.f32 0.0, %v686
      %v688 = vpop.f32.mrb[0].mxu0
      %v689 = vpop.f32.mrb[0].mxu0
      %v690 = vpop.f32.mrb[0].mxu0
      %691 = vdwg.mxu0
      %vm697 = vcmask 1040384
      %v698 = vrot.slane %v671, 7
      %v699 = vrot.slane %v674, 7
      %v700 = vsel %vm697, %v698, %v699
      %v701 = vrot.slane %v679, 7
      %v702 = vsel %vm697, %v699, %v701
      %v703 = vrot.slane %v682, 7
      %v704 = vsel %vm697, %v701, %v703
      %v705 = vrot.slane %v687, 7
      %v706 = vsel %vm697, %v703, %v705
      %v712 = vsel %vm697, 0.0, %v698
      %v713 = vrot.slane %v671, 1
      %v714 = vrot.slane %v674, 1
      %v715 = vsel %vm565, %v713, %v714
      %v716 = vrot.slane %v679, 1
      %v717 = vsel %vm565, %v714, %v716
      %v718 = vrot.slane %v682, 1
      %v719 = vsel %vm565, %v716, %v718
      %v720 = vrot.slane %v687, 1
      %v721 = vsel %vm565, %v718, %v720
      %vm727 = vcmask 1044480
      %v728 = vsel %vm727, %v720, 0.0
      %v729 = vpack.c.bf16 %v700, %v712
      %v730 = vpack.c.bf16 %v704, %v702
      %v731 = vpack.c.bf16 %v706, %v706
      %v735 = vunpack.c.l.b16 %v729
      %v736 = vunpack.c.h.b16 %v729
      %v737 = vunpack.c.l.b16 %v730
      %v738 = vunpack.c.h.b16 %v730
      %v739 = vunpack.c.l.b16 %v731
      %v740 = vpack.c.b16 %v735, %v735
      %v741 = vpack.c.b16 %v736, %v736
      %v742 = vpack.c.b16 %v737, %v737
      %v743 = vpack.c.b16 %v738, %v738
      %v744 = vpack.c.b16 %v739, %v739
      %vm750 = vcmask 257024
      %751 = vst.msk [vmem:[#allocation2 + $0x4] sm:$0xf] %vm750, %v740
      %752 = vst.msk [vmem:[#allocation2 + $0x30] sm:$0xf] %vm750, %v741
      %753 = vst.msk [vmem:[#allocation2 + $0x5c] sm:$0xf] %vm750, %v742
      %754 = vst.msk [vmem:[#allocation2 + $0x88] sm:$0xf] %vm750, %v743
      %vm755 = vcmask 256000
      %756 = vst.msk [vmem:[#allocation2 + $0xb4] sm:$0x7] %vm755, %v744
      %v757 = vpack.c.bf16 %v674, %v671
      %v758 = vpack.c.bf16 %v682, %v679
      %v759 = vpack.c.bf16 %v687, %v687
      %v763 = vunpack.c.l.b16 %v757
      %v764 = vunpack.c.h.b16 %v757
      %v765 = vunpack.c.l.b16 %v758
      %v766 = vunpack.c.h.b16 %v758
      %v767 = vunpack.c.l.b16 %v759
      %v768 = vpack.c.b16 %v763, %v763
      %v769 = vpack.c.b16 %v764, %v764
      %v770 = vpack.c.b16 %v765, %v765
      %v771 = vpack.c.b16 %v766, %v766
      %v772 = vpack.c.b16 %v767, %v767
      %773 = vrot.lane.b32.xlu0 %v768, 32
      %v774 = vpop.permute.xlu0 %773
      %775 = vrot.lane.b32.xlu0 %v769, 32
      %v776 = vpop.permute.xlu0 %775
      %777 = vrot.lane.b32.xlu0 %v770, 32
      %v778 = vpop.permute.xlu0 %777
      %779 = vrot.lane.b32.xlu0 %v771, 32
      %v780 = vpop.permute.xlu0 %779
      %781 = vrot.lane.b32.xlu0 %v772, 32
      %v782 = vpop.permute.xlu0 %781
      %vm788 = vcmask 519424
      %789 = vst.msk [vmem:[#allocation2 + $0x4] sm:$0xf] %vm788, %v774
      %790 = vst.msk [vmem:[#allocation2 + $0x30] sm:$0xf] %vm788, %v776
      %791 = vst.msk [vmem:[#allocation2 + $0x5c] sm:$0xf] %vm788, %v778
      %792 = vst.msk [vmem:[#allocation2 + $0x88] sm:$0xf] %vm788, %v780
      %vm793 = vcmask 518400
      %794 = vst.msk [vmem:[#allocation2 + $0xb4] sm:$0x7] %vm793, %v782
      %v795 = vpack.c.bf16 %v717, %v715
      %v796 = vpack.c.bf16 %v721, %v719
      %v797 = vpack.c.bf16 %v728, %v728
      %v801 = vunpack.c.l.b16 %v795
      %v802 = vunpack.c.h.b16 %v795
      %v803 = vunpack.c.l.b16 %v796
      %v804 = vunpack.c.h.b16 %v796
      %v805 = vunpack.c.l.b16 %v797
      %v806 = vpack.c.b16 %v801, %v801
      %v807 = vpack.c.b16 %v802, %v802
      %v808 = vpack.c.b16 %v803, %v803
      %v809 = vpack.c.b16 %v804, %v804
      %v810 = vpack.c.b16 %v805, %v805
      %811 = vrot.lane.b32.xlu0 %v806, 64
      %v812 = vpop.permute.xlu0 %811
      %813 = vrot.lane.b32.xlu0 %v807, 64
      %v814 = vpop.permute.xlu0 %813
      %815 = vrot.lane.b32.xlu0 %v808, 64
      %v816 = vpop.permute.xlu0 %815
      %817 = vrot.lane.b32.xlu0 %v809, 64
      %v818 = vpop.permute.xlu0 %817
      %819 = vrot.lane.b32.xlu0 %v810, 64
      %v820 = vpop.permute.xlu0 %819
      %vm826 = vcmask 781824
      %827 = vst.msk [vmem:[#allocation2 + $0x4] sm:$0xf] %vm826, %v812
      %828 = vst.msk [vmem:[#allocation2 + $0x30] sm:$0xf] %vm826, %v814
      %829 = vst.msk [vmem:[#allocation2 + $0x5c] sm:$0xf] %vm826, %v816
      %830 = vst.msk [vmem:[#allocation2 + $0x88] sm:$0xf] %vm826, %v818
      %vm831 = vcmask 780800
      %832 = vst.msk [vmem:[#allocation2 + $0xb4] sm:$0x7] %vm831, %v820
      %s833 = scalar_lea.vmem %s1, 32
      %v834 = vld [vmem:[%s833] sm:$0xf]
      %v835 = vld [vmem:[%s833 + $0x4] sm:$0xf]
      %v836 = vld [vmem:[%s833 + $0x8] sm:$0xf]
      %v837 = vld [vmem:[%s833 + $0xc] sm:$0xf]
      %v838 = vld [vmem:[%s833 + $0x10] sm:$0xf]
      %v839 = vld [vmem:[%s833 + $0x14] sm:$0xf]
      %v840 = vld [vmem:[%s833 + $0x18] sm:$0xf]
      %v841 = vld [vmem:[%s833 + $0x1c] sm:$0x3]
      %v850 = vunpack.c.l.b16 %v834
      %v851 = vunpack.c.l.b16 %v835
      %v852 = vunpack.c.l.b16 %v836
      %v853 = vunpack.c.l.b16 %v837
      %v854 = vunpack.c.l.b16 %v838
      %v855 = vunpack.c.l.b16 %v839
      %v856 = vunpack.c.l.b16 %v840
      %v857 = vunpack.c.l.b16 %v841
      %v858 = vpack.c.b16 %v851, %v850
      %v859 = vpack.c.b16 %v853, %v852
      %v860 = vpack.c.b16 %v855, %v854
      %v861 = vpack.c.b16 %v857, %v856
      %v866 = vsel %vm402, %v861, 0
      %868 = vmatprep.subr.bf16.mxu0 0
      %869 = vmatpush1.bf16.msra.mxu0 %v858
      %870 = vmatprep.subr.bf16.mxu0 0
      %871 = vmatpush1.bf16.msra.mxu0 %v859
      %872 = vmatprep.subr.bf16.mxu0 0
      %873 = vmatpush1.bf16.msra.mxu0 %v860
      %874 = vmatprep.subr.bf16.mxu0 0
      %875 = vmatpush1.bf16.msra.mxu0 %v866
      %876 = vmatprep.subr.bf16.mxu0 0
      %877 = vmatpush1.bf16.msra.mxu0 0
      %878 = vmatprep.subr.bf16.mxu0 0
      %879 = vmatpush1.bf16.msra.mxu0 0
      %880 = vmatprep.subr.bf16.mxu0 0
      %881 = vmatpush1.bf16.msra.mxu0 0
      %882 = vmatprep.subr.bf16.mxu0 0
      %883 = vmatpush1.bf16.msra.mxu0 0
      %884 = vmatprep.subr.bf16.mxu0 0
      %885 = vmatpush1.bf16.msra.mxu0 0
      %886 = vmatprep.subr.bf16.mxu0 0
      %887 = vmatpush1.bf16.msra.mxu0 0
      %888 = vmatprep.subr.bf16.mxu0 0
      %889 = vmatpush1.bf16.msra.mxu0 0
      %890 = vmatprep.subr.bf16.mxu0 0
      %891 = vmatpush1.bf16.msra.mxu0 0
      %892 = vmatprep.subr.bf16.mxu0 0
      %893 = vmatpush1.bf16.msra.mxu0 0
      %894 = vmatprep.subr.bf16.mxu0 0
      %895 = vmatpush1.bf16.msra.mxu0 0
      %896 = vmatprep.subr.bf16.mxu0 0
      %897 = vmatpush1.bf16.msra.mxu0 0
      %898 = vmatprep.subr.bf16.mxu0 0
      %899 = vmatpush1.bf16.msra.mxu0 0
      %900 = vmatprep.mubr.bf16.mxu0 0
      %901 = vmatmul.mubr.bf16.gmra.mrb[0].mxu0 %v388
      %v902 = vpop.f32.mrb[0].mxu0
      %v903 = vadd.f32 0.0, %v902
      %v904 = vpop.f32.mrb[0].mxu0
      %v905 = vpop.f32.mrb[0].mxu0
      %v906 = vadd.f32 0.0, %v905
      %v907 = vpop.f32.mrb[0].mxu0
      %908 = vmatprep.mubr.bf16.mxu0 0
      %909 = vmatmul.mubr.bf16.gmra.mrb[0].mxu0 %v391
      %v910 = vpop.f32.mrb[0].mxu0
      %v911 = vadd.f32 0.0, %v910
      %v912 = vpop.f32.mrb[0].mxu0
      %v913 = vpop.f32.mrb[0].mxu0
      %v914 = vadd.f32 0.0, %v913
      %v915 = vpop.f32.mrb[0].mxu0
      %916 = vmatprep.mubr.bf16.mxu0 0
      %917 = vmatmul.mubr.bf16.gmra.mrb[0].mxu0 %v394
      %v918 = vpop.f32.mrb[0].mxu0
      %v919 = vadd.f32 0.0, %v918
      %v920 = vpop.f32.mrb[0].mxu0
      %v921 = vpop.f32.mrb[0].mxu0
      %v922 = vadd.f32 0.0, %v921
      %v923 = vpop.f32.mrb[0].mxu0
      %924 = vmatprep.mubr.bf16.mxu0 0
      %925 = vmatmul.mubr.bf16.gmra.mrb[0].mxu0 %v397
      %v926 = vpop.f32.mrb[0].mxu0
      %v927 = vadd.f32 0.0, %v926
      %v928 = vpop.f32.mrb[0].mxu0
      %v929 = vpop.f32.mrb[0].mxu0
      %v930 = vadd.f32 0.0, %v929
      %v931 = vpop.f32.mrb[0].mxu0
      %932 = vmatprep.mubr.bf16.mxu0 0
      %933 = vmatmul.mubr.bf16.gmra.mrb[0].mxu0 %v400
      %v934 = vpop.f32.mrb[0].mxu0
      %v935 = vadd.f32 0.0, %v934
      %v936 = vpop.f32.mrb[0].mxu0
      %v937 = vpop.f32.mrb[0].mxu0
      %v938 = vadd.f32 0.0, %v937
      %v939 = vpop.f32.mrb[0].mxu0
      %940 = vdwg.mxu0
      %951 = vrot.lane.b32.xlu0 %v903, 96
      %v952 = vpop.permute.xlu0 %951
      %953 = vrot.lane.b32.xlu0 %v906, 96
      %v954 = vpop.permute.xlu0 %953
      %955 = vrot.lane.b32.xlu0 %v911, 96
      %v956 = vpop.permute.xlu0 %955
      %957 = vrot.lane.b32.xlu0 %v914, 96
      %v958 = vpop.permute.xlu0 %957
      %959 = vrot.lane.b32.xlu0 %v919, 96
      %v960 = vpop.permute.xlu0 %959
      %961 = vrot.lane.b32.xlu0 %v922, 96
      %v962 = vpop.permute.xlu0 %961
      %963 = vrot.lane.b32.xlu0 %v927, 96
      %v964 = vpop.permute.xlu0 %963
      %965 = vrot.lane.b32.xlu0 %v930, 96
      %v966 = vpop.permute.xlu0 %965
      %967 = vrot.lane.b32.xlu0 %v935, 96
      %v968 = vpop.permute.xlu0 %967
      %969 = vrot.lane.b32.xlu0 %v938, 96
      %v970 = vpop.permute.xlu0 %969
      %v981 = vmax.f32 %v903, %v952
      %v982 = vmax.f32 %v906, %v954
      %v983 = vmax.f32 %v911, %v956
      %v984 = vmax.f32 %v914, %v958
      %v985 = vmax.f32 %v919, %v960
      %v986 = vmax.f32 %v922, %v962
      %v987 = vmax.f32 %v927, %v964
      %v988 = vmax.f32 %v930, %v966
      %v989 = vmax.f32 %v935, %v968
      %v990 = vmax.f32 %v938, %v970
      %v991 = vadd.f32 %v981, %v533
      %v992 = vadd.f32 %v982, %v533
      %v993 = vadd.f32 %v983, %v533
      %v994 = vadd.f32 %v984, %v533
      %v995 = vadd.f32 %v985, %v533
      %v996 = vadd.f32 %v986, %v533
      %v997 = vadd.f32 %v987, %v533
      %v998 = vadd.f32 %v988, %v533
      %v999 = vadd.f32 %v989, %v533
      %v1000 = vadd.f32 %v990, %v533
      %v1001 = vmax.f32 %v991, 0.0
      %v1002 = vmax.f32 %v992, 0.0
      %v1003 = vmax.f32 %v993, 0.0
      %v1004 = vmax.f32 %v994, 0.0
      %v1005 = vmax.f32 %v995, 0.0
      %v1006 = vmax.f32 %v996, 0.0
      %v1007 = vmax.f32 %v997, 0.0
      %v1008 = vmax.f32 %v998, 0.0
      %v1009 = vmax.f32 %v999, 0.0
      %v1010 = vmax.f32 %v1000, 0.0
      %v1021 = vrot.slane %v1001, 1
      %v1022 = vrot.slane %v1002, 1
      %v1023 = vsel %vm565, %v1021, %v1022
      %v1024 = vrot.slane %v1003, 1
      %v1025 = vsel %vm565, %v1022, %v1024
      %v1026 = vrot.slane %v1004, 1
      %v1027 = vsel %vm565, %v1024, %v1026
      %v1028 = vrot.slane %v1005, 1
      %v1029 = vsel %vm565, %v1026, %v1028
      %v1030 = vrot.slane %v1006, 1
      %v1031 = vsel %vm565, %v1028, %v1030
      %v1032 = vrot.slane %v1007, 1
      %v1033 = vsel %vm565, %v1030, %v1032
      %v1034 = vrot.slane %v1008, 1
      %v1035 = vsel %vm565, %v1032, %v1034
      %v1036 = vrot.slane %v1009, 1
      %v1037 = vsel %vm565, %v1034, %v1036
      %v1038 = vrot.slane %v1010, 1
      %v1039 = vsel %vm565, %v1036, %v1038
      %v1050 = vmax.f32 %v1001, %v1023
      %v1051 = vmax.f32 %v1002, %v1025
      %v1052 = vmax.f32 %v1003, %v1027
      %v1053 = vmax.f32 %v1004, %v1029
      %v1054 = vmax.f32 %v1005, %v1031
      %v1055 = vmax.f32 %v1006, %v1033
      %v1056 = vmax.f32 %v1007, %v1035
      %v1057 = vmax.f32 %v1008, %v1037
      %v1058 = vmax.f32 %v1009, %v1039
      %v1059 = vmax.f32 %v1010, %v1038
      %v1060 = vpack.c.bf16 %v1051, %v1050
      %v1061 = vpack.c.bf16 %v1053, %v1052
      %v1062 = vpack.c.bf16 %v1055, %v1054
      %v1063 = vpack.c.bf16 %v1057, %v1056
      %v1064 = vpack.c.bf16 %v1059, %v1058
      %v1066 = vsel %vm402, %v1064, 0
      %1068 = vmatprep.subr.bf16.mxu0 0
      %1069 = vmatpush1.bf16.msra.mxu0 %v1060
      %1070 = vmatprep.subr.bf16.mxu0 0
      %1071 = vmatpush1.bf16.msra.mxu0 %v1061
      %1072 = vmatprep.subr.bf16.mxu0 0
      %1073 = vmatpush1.bf16.msra.mxu0 %v1062
      %1074 = vmatprep.subr.bf16.mxu0 0
      %1075 = vmatpush1.bf16.msra.mxu0 %v1063
      %1076 = vmatprep.subr.bf16.mxu0 0
      %1077 = vmatpush1.bf16.msra.mxu0 %v1066
      %1078 = vmatprep.subr.bf16.mxu0 0
      %1079 = vmatpush1.bf16.msra.mxu0 0
      %1080 = vmatprep.subr.bf16.mxu0 0
      %1081 = vmatpush1.bf16.msra.mxu0 0
      %1082 = vmatprep.subr.bf16.mxu0 0
      %1083 = vmatpush1.bf16.msra.mxu0 0
      %1084 = vmatprep.subr.bf16.mxu0 0
      %1085 = vmatpush1.bf16.msra.mxu0 0
      %1086 = vmatprep.subr.bf16.mxu0 0
      %1087 = vmatpush1.bf16.msra.mxu0 0
      %1088 = vmatprep.subr.bf16.mxu0 0
      %1089 = vmatpush1.bf16.msra.mxu0 0
      %1090 = vmatprep.subr.bf16.mxu0 0
      %1091 = vmatpush1.bf16.msra.mxu0 0
      %1092 = vmatprep.subr.bf16.mxu0 0
      %1093 = vmatpush1.bf16.msra.mxu0 0
      %1094 = vmatprep.subr.bf16.mxu0 0
      %1095 = vmatpush1.bf16.msra.mxu0 0
      %1096 = vmatprep.subr.bf16.mxu0 0
      %1097 = vmatpush1.bf16.msra.mxu0 0
      %1098 = vmatprep.subr.bf16.mxu0 0
      %1099 = vmatpush1.bf16.msra.mxu0 0
      %1100 = vmatprep.mubr.bf16.mxu0 0
      %1101 = vmatmul.mubr.bf16.gmra.mrb[0].mxu0 %v625
      %v1102 = vpop.f32.mrb[0].mxu0
      %v1103 = vadd.f32 0.0, %v1102
      %v1104 = vpop.f32.mrb[0].mxu0
      %v1105 = vpop.f32.mrb[0].mxu0
      %v1106 = vadd.f32 0.0, %v1105
      %v1107 = vpop.f32.mrb[0].mxu0
      %1108 = vmatprep.mubr.bf16.mxu0 0
      %1109 = vmatmul.mubr.bf16.gmra.mrb[0].mxu0 %v628
      %v1110 = vpop.f32.mrb[0].mxu0
      %v1111 = vadd.f32 0.0, %v1110
      %v1112 = vpop.f32.mrb[0].mxu0
      %v1113 = vpop.f32.mrb[0].mxu0
      %v1114 = vadd.f32 0.0, %v1113
      %v1115 = vpop.f32.mrb[0].mxu0
      %1116 = vmatprep.mubr.bf16.mxu0 0
      %1117 = vmatmul.mubr.bf16.gmra.mrb[0].mxu0 %v631
      %v1118 = vpop.f32.mrb[0].mxu0
      %v1119 = vadd.f32 0.0, %v1118
      %v1120 = vpop.f32.mrb[0].mxu0
      %v1121 = vpop.f32.mrb[0].mxu0
      %v1122 = vpop.f32.mrb[0].mxu0
      %1123 = vdwg.mxu0
      %v1129 = vrot.slane %v1103, 7
      %v1130 = vrot.slane %v1106, 7
      %v1131 = vsel %vm697, %v1129, %v1130
      %v1132 = vrot.slane %v1111, 7
      %v1133 = vsel %vm697, %v1130, %v1132
      %v1134 = vrot.slane %v1114, 7
      %v1135 = vsel %vm697, %v1132, %v1134
      %v1136 = vrot.slane %v1119, 7
      %v1137 = vsel %vm697, %v1134, %v1136
      %v1143 = vsel %vm697, 0.0, %v1129
      %v1144 = vrot.slane %v1103, 1
      %v1145 = vrot.slane %v1106, 1
      %v1146 = vsel %vm565, %v1144, %v1145
      %v1147 = vrot.slane %v1111, 1
      %v1148 = vsel %vm565, %v1145, %v1147
      %v1149 = vrot.slane %v1114, 1
      %v1150 = vsel %vm565, %v1147, %v1149
      %v1151 = vrot.slane %v1119, 1
      %v1152 = vsel %vm565, %v1149, %v1151
      %v1158 = vsel %vm727, %v1151, 0.0
      %v1159 = vpack.c.bf16 %v1131, %v1143
      %v1160 = vpack.c.bf16 %v1135, %v1133
      %v1161 = vpack.c.bf16 %v1137, %v1137
      %v1165 = vunpack.c.l.b16 %v1159
      %v1166 = vunpack.c.h.b16 %v1159
      %v1167 = vunpack.c.l.b16 %v1160
      %v1168 = vunpack.c.h.b16 %v1160
      %v1169 = vunpack.c.l.b16 %v1161
      %v1170 = vpack.c.b16 %v1165, %v1165
      %v1171 = vpack.c.b16 %v1166, %v1166
      %v1172 = vpack.c.b16 %v1167, %v1167
      %v1173 = vpack.c.b16 %v1168, %v1168
      %v1174 = vpack.c.b16 %v1169, %v1169
      %1180 = vst.msk [vmem:[#allocation2 + $0x8] sm:$0xf] %vm750, %v1170
      %1181 = vst.msk [vmem:[#allocation2 + $0x34] sm:$0xf] %vm750, %v1171
      %1182 = vst.msk [vmem:[#allocation2 + $0x60] sm:$0xf] %vm750, %v1172
      %1183 = vst.msk [vmem:[#allocation2 + $0x8c] sm:$0xf] %vm750, %v1173
      %1184 = vst.msk [vmem:[#allocation2 + $0xb8] sm:$0x7] %vm755, %v1174
      %v1185 = vpack.c.bf16 %v1106, %v1103
      %v1186 = vpack.c.bf16 %v1114, %v1111
      %v1187 = vpack.c.bf16 %v1119, %v1119
      %v1191 = vunpack.c.l.b16 %v1185
      %v1192 = vunpack.c.h.b16 %v1185
      %v1193 = vunpack.c.l.b16 %v1186
      %v1194 = vunpack.c.h.b16 %v1186
      %v1195 = vunpack.c.l.b16 %v1187
      %v1196 = vpack.c.b16 %v1191, %v1191
      %v1197 = vpack.c.b16 %v1192, %v1192
      %v1198 = vpack.c.b16 %v1193, %v1193
      %v1199 = vpack.c.b16 %v1194, %v1194
      %v1200 = vpack.c.b16 %v1195, %v1195
      %1201 = vrot.lane.b32.xlu0 %v1196, 32
      %v1202 = vpop.permute.xlu0 %1201
      %1203 = vrot.lane.b32.xlu0 %v1197, 32
      %v1204 = vpop.permute.xlu0 %1203
      %1205 = vrot.lane.b32.xlu0 %v1198, 32
      %v1206 = vpop.permute.xlu0 %1205
      %1207 = vrot.lane.b32.xlu0 %v1199, 32
      %v1208 = vpop.permute.xlu0 %1207
      %1209 = vrot.lane.b32.xlu0 %v1200, 32
      %v1210 = vpop.permute.xlu0 %1209
      %1216 = vst.msk [vmem:[#allocation2 + $0x8] sm:$0xf] %vm788, %v1202
      %1217 = vst.msk [vmem:[#allocation2 + $0x34] sm:$0xf] %vm788, %v1204
      %1218 = vst.msk [vmem:[#allocation2 + $0x60] sm:$0xf] %vm788, %v1206
      %1219 = vst.msk [vmem:[#allocation2 + $0x8c] sm:$0xf] %vm788, %v1208
      %1220 = vst.msk [vmem:[#allocation2 + $0xb8] sm:$0x7] %vm793, %v1210
      %v1221 = vpack.c.bf16 %v1148, %v1146
      %v1222 = vpack.c.bf16 %v1152, %v1150
      %v1223 = vpack.c.bf16 %v1158, %v1158
      %v1227 = vunpack.c.l.b16 %v1221
      %v1228 = vunpack.c.h.b16 %v1221
      %v1229 = vunpack.c.l.b16 %v1222
      %v1230 = vunpack.c.h.b16 %v1222
      %v1231 = vunpack.c.l.b16 %v1223
      %v1232 = vpack.c.b16 %v1227, %v1227
      %v1233 = vpack.c.b16 %v1228, %v1228
      %v1234 = vpack.c.b16 %v1229, %v1229
      %v1235 = vpack.c.b16 %v1230, %v1230
      %v1236 = vpack.c.b16 %v1231, %v1231
      %1237 = vrot.lane.b32.xlu0 %v1232, 64
      %v1238 = vpop.permute.xlu0 %1237
      %1239 = vrot.lane.b32.xlu0 %v1233, 64
      %v1240 = vpop.permute.xlu0 %1239
      %1241 = vrot.lane.b32.xlu0 %v1234, 64
      %v1242 = vpop.permute.xlu0 %1241
      %1243 = vrot.lane.b32.xlu0 %v1235, 64
      %v1244 = vpop.permute.xlu0 %1243
      %1245 = vrot.lane.b32.xlu0 %v1236, 64
      %v1246 = vpop.permute.xlu0 %1245
      %1252 = vst.msk [vmem:[#allocation2 + $0x8] sm:$0xf] %vm826, %v1238
      %1253 = vst.msk [vmem:[#allocation2 + $0x34] sm:$0xf] %vm826, %v1240
      %1254 = vst.msk [vmem:[#allocation2 + $0x60] sm:$0xf] %vm826, %v1242
      %1255 = vst.msk [vmem:[#allocation2 + $0x8c] sm:$0xf] %vm826, %v1244
      %1256 = vst.msk [vmem:[#allocation2 + $0xb8] sm:$0x7] %vm831, %v1246
      %s1257 = scalar_lea.vmem %s1, 64
      %v1258 = vld [vmem:[%s1257] sm:$0xf]
      %v1259 = vld [vmem:[%s1257 + $0x4] sm:$0xf]
      %v1260 = vld [vmem:[%s1257 + $0x8] sm:$0xf]
      %v1261 = vld [vmem:[%s1257 + $0xc] sm:$0xf]
      %v1262 = vld [vmem:[%s1257 + $0x10] sm:$0xf]
      %v1263 = vld [vmem:[%s1257 + $0x14] sm:$0xf]
      %v1264 = vld [vmem:[%s1257 + $0x18] sm:$0xf]
      %v1265 = vld [vmem:[%s1257 + $0x1c] sm:$0x3]
      %v1274 = vunpack.c.l.b16 %v1258
      %v1275 = vunpack.c.l.b16 %v1259
      %v1276 = vunpack.c.l.b16 %v1260
      %v1277 = vunpack.c.l.b16 %v1261
      %v1278 = vunpack.c.l.b16 %v1262
      %v1279 = vunpack.c.l.b16 %v1263
      %v1280 = vunpack.c.l.b16 %v1264
      %v1281 = vunpack.c.l.b16 %v1265
      %v1282 = vpack.c.b16 %v1275, %v1274
      %v1283 = vpack.c.b16 %v1277, %v1276
      %v1284 = vpack.c.b16 %v1279, %v1278
      %v1285 = vpack.c.b16 %v1281, %v1280
      %v1290 = vsel %vm402, %v1285, 0
      %1292 = vmatprep.subr.bf16.mxu0 0
      %1293 = vmatpush1.bf16.msra.mxu0 %v1282
      %1294 = vmatprep.subr.bf16.mxu0 0
      %1295 = vmatpush1.bf16.msra.mxu0 %v1283
      %1296 = vmatprep.subr.bf16.mxu0 0
      %1297 = vmatpush1.bf16.msra.mxu0 %v1284
      %1298 = vmatprep.subr.bf16.mxu0 0
      %1299 = vmatpush1.bf16.msra.mxu0 %v1290
      %1300 = vmatprep.subr.bf16.mxu0 0
      %1301 = vmatpush1.bf16.msra.mxu0 0
      %1302 = vmatprep.subr.bf16.mxu0 0
      %1303 = vmatpush1.bf16.msra.mxu0 0
      %1304 = vmatprep.subr.bf16.mxu0 0
      %1305 = vmatpush1.bf16.msra.mxu0 0
      %1306 = vmatprep.subr.bf16.mxu0 0
      %1307 = vmatpush1.bf16.msra.mxu0 0
      %1308 = vmatprep.subr.bf16.mxu0 0
      %1309 = vmatpush1.bf16.msra.mxu0 0
      %1310 = vmatprep.subr.bf16.mxu0 0
      %1311 = vmatpush1.bf16.msra.mxu0 0
      %1312 = vmatprep.subr.bf16.mxu0 0
      %1313 = vmatpush1.bf16.msra.mxu0 0
      %1314 = vmatprep.subr.bf16.mxu0 0
      %1315 = vmatpush1.bf16.msra.mxu0 0
      %1316 = vmatprep.subr.bf16.mxu0 0
      %1317 = vmatpush1.bf16.msra.mxu0 0
      %1318 = vmatprep.subr.bf16.mxu0 0
      %1319 = vmatpush1.bf16.msra.mxu0 0
      %1320 = vmatprep.subr.bf16.mxu0 0
      %1321 = vmatpush1.bf16.msra.mxu0 0
      %1322 = vmatprep.subr.bf16.mxu0 0
      %1323 = vmatpush1.bf16.msra.mxu0 0
      %1324 = vmatprep.mubr.bf16.mxu0 0
      %1325 = vmatmul.mubr.bf16.gmra.mrb[0].mxu0 %v388
      %v1326 = vpop.f32.mrb[0].mxu0
      %v1327 = vadd.f32 0.0, %v1326
      %v1328 = vpop.f32.mrb[0].mxu0
      %v1329 = vpop.f32.mrb[0].mxu0
      %v1330 = vadd.f32 0.0, %v1329
      %v1331 = vpop.f32.mrb[0].mxu0
      %1332 = vmatprep.mubr.bf16.mxu0 0
      %1333 = vmatmul.mubr.bf16.gmra.mrb[0].mxu0 %v391
      %v1334 = vpop.f32.mrb[0].mxu0
      %v1335 = vadd.f32 0.0, %v1334
      %v1336 = vpop.f32.mrb[0].mxu0
      %v1337 = vpop.f32.mrb[0].mxu0
      %v1338 = vadd.f32 0.0, %v1337
      %v1339 = vpop.f32.mrb[0].mxu0
      %1340 = vmatprep.mubr.bf16.mxu0 0
      %1341 = vmatmul.mubr.bf16.gmra.mrb[0].mxu0 %v394
      %v1342 = vpop.f32.mrb[0].mxu0
      %v1343 = vadd.f32 0.0, %v1342
      %v1344 = vpop.f32.mrb[0].mxu0
      %v1345 = vpop.f32.mrb[0].mxu0
      %v1346 = vadd.f32 0.0, %v1345
      %v1347 = vpop.f32.mrb[0].mxu0
      %1348 = vmatprep.mubr.bf16.mxu0 0
      %1349 = vmatmul.mubr.bf16.gmra.mrb[0].mxu0 %v397
      %v1350 = vpop.f32.mrb[0].mxu0
      %v1351 = vadd.f32 0.0, %v1350
      %v1352 = vpop.f32.mrb[0].mxu0
      %v1353 = vpop.f32.mrb[0].mxu0
      %v1354 = vadd.f32 0.0, %v1353
      %v1355 = vpop.f32.mrb[0].mxu0
      %1356 = vmatprep.mubr.bf16.mxu0 0
      %1357 = vmatmul.mubr.bf16.gmra.mrb[0].mxu0 %v400
      %v1358 = vpop.f32.mrb[0].mxu0
      %v1359 = vadd.f32 0.0, %v1358
      %v1360 = vpop.f32.mrb[0].mxu0
      %v1361 = vpop.f32.mrb[0].mxu0
      %v1362 = vadd.f32 0.0, %v1361
      %v1363 = vpop.f32.mrb[0].mxu0
      %1364 = vdwg.mxu0
      %1375 = vrot.lane.b32.xlu0 %v1327, 96
      %v1376 = vpop.permute.xlu0 %1375
      %1377 = vrot.lane.b32.xlu0 %v1330, 96
      %v1378 = vpop.permute.xlu0 %1377
      %1379 = vrot.lane.b32.xlu0 %v1335, 96
      %v1380 = vpop.permute.xlu0 %1379
      %1381 = vrot.lane.b32.xlu0 %v1338, 96
      %v1382 = vpop.permute.xlu0 %1381
      %1383 = vrot.lane.b32.xlu0 %v1343, 96
      %v1384 = vpop.permute.xlu0 %1383
      %1385 = vrot.lane.b32.xlu0 %v1346, 96
      %v1386 = vpop.permute.xlu0 %1385
      %1387 = vrot.lane.b32.xlu0 %v1351, 96
      %v1388 = vpop.permute.xlu0 %1387
      %1389 = vrot.lane.b32.xlu0 %v1354, 96
      %v1390 = vpop.permute.xlu0 %1389
      %1391 = vrot.lane.b32.xlu0 %v1359, 96
      %v1392 = vpop.permute.xlu0 %1391
      %1393 = vrot.lane.b32.xlu0 %v1362, 96
      %v1394 = vpop.permute.xlu0 %1393
      %v1405 = vmax.f32 %v1327, %v1376
      %v1406 = vmax.f32 %v1330, %v1378
      %v1407 = vmax.f32 %v1335, %v1380
      %v1408 = vmax.f32 %v1338, %v1382
      %v1409 = vmax.f32 %v1343, %v1384
      %v1410 = vmax.f32 %v1346, %v1386
      %v1411 = vmax.f32 %v1351, %v1388
      %v1412 = vmax.f32 %v1354, %v1390
      %v1413 = vmax.f32 %v1359, %v1392
      %v1414 = vmax.f32 %v1362, %v1394
      %v1415 = vadd.f32 %v1405, %v533
      %v1416 = vadd.f32 %v1406, %v533
      %v1417 = vadd.f32 %v1407, %v533
      %v1418 = vadd.f32 %v1408, %v533
      %v1419 = vadd.f32 %v1409, %v533
      %v1420 = vadd.f32 %v1410, %v533
      %v1421 = vadd.f32 %v1411, %v533
      %v1422 = vadd.f32 %v1412, %v533
      %v1423 = vadd.f32 %v1413, %v533
      %v1424 = vadd.f32 %v1414, %v533
      %v1425 = vmax.f32 %v1415, 0.0
      %v1426 = vmax.f32 %v1416, 0.0
      %v1427 = vmax.f32 %v1417, 0.0
      %v1428 = vmax.f32 %v1418, 0.0
      %v1429 = vmax.f32 %v1419, 0.0
      %v1430 = vmax.f32 %v1420, 0.0
      %v1431 = vmax.f32 %v1421, 0.0
      %v1432 = vmax.f32 %v1422, 0.0
      %v1433 = vmax.f32 %v1423, 0.0
      %v1434 = vmax.f32 %v1424, 0.0
      %v1445 = vrot.slane %v1425, 1
      %v1446 = vrot.slane %v1426, 1
      %v1447 = vsel %vm565, %v1445, %v1446
      %v1448 = vrot.slane %v1427, 1
      %v1449 = vsel %vm565, %v1446, %v1448
      %v1450 = vrot.slane %v1428, 1
      %v1451 = vsel %vm565, %v1448, %v1450
      %v1452 = vrot.slane %v1429, 1
      %v1453 = vsel %vm565, %v1450, %v1452
      %v1454 = vrot.slane %v1430, 1
      %v1455 = vsel %vm565, %v1452, %v1454
      %v1456 = vrot.slane %v1431, 1
      %v1457 = vsel %vm565, %v1454, %v1456
      %v1458 = vrot.slane %v1432, 1
      %v1459 = vsel %vm565, %v1456, %v1458
      %v1460 = vrot.slane %v1433, 1
      %v1461 = vsel %vm565, %v1458, %v1460
      %v1462 = vrot.slane %v1434, 1
      %v1463 = vsel %vm565, %v1460, %v1462
      %v1474 = vmax.f32 %v1425, %v1447
      %v1475 = vmax.f32 %v1426, %v1449
      %v1476 = vmax.f32 %v1427, %v1451
      %v1477 = vmax.f32 %v1428, %v1453
      %v1478 = vmax.f32 %v1429, %v1455
      %v1479 = vmax.f32 %v1430, %v1457
      %v1480 = vmax.f32 %v1431, %v1459
      %v1481 = vmax.f32 %v1432, %v1461
      %v1482 = vmax.f32 %v1433, %v1463
      %v1483 = vmax.f32 %v1434, %v1462
      %v1484 = vpack.c.bf16 %v1475, %v1474
      %v1485 = vpack.c.bf16 %v1477, %v1476
      %v1486 = vpack.c.bf16 %v1479, %v1478
      %v1487 = vpack.c.bf16 %v1481, %v1480
      %v1488 = vpack.c.bf16 %v1483, %v1482
      %v1490 = vsel %vm402, %v1488, 0
      %1492 = vmatprep.subr.bf16.mxu0 0
      %1493 = vmatpush1.bf16.msra.mxu0 %v1484
      %1494 = vmatprep.subr.bf16.mxu0 0
      %1495 = vmatpush1.bf16.msra.mxu0 %v1485
      %1496 = vmatprep.subr.bf16.mxu0 0
      %1497 = vmatpush1.bf16.msra.mxu0 %v1486
      %1498 = vmatprep.subr.bf16.mxu0 0
      %1499 = vmatpush1.bf16.msra.mxu0 %v1487
      %1500 = vmatprep.subr.bf16.mxu0 0
      %1501 = vmatpush1.bf16.msra.mxu0 %v1490
      %1502 = vmatprep.subr.bf16.mxu0 0
      %1503 = vmatpush1.bf16.msra.mxu0 0
      %1504 = vmatprep.subr.bf16.mxu0 0
      %1505 = vmatpush1.bf16.msra.mxu0 0
      %1506 = vmatprep.subr.bf16.mxu0 0
      %1507 = vmatpush1.bf16.msra.mxu0 0
      %1508 = vmatprep.subr.bf16.mxu0 0
      %1509 = vmatpush1.bf16.msra.mxu0 0
      %1510 = vmatprep.subr.bf16.mxu0 0
      %1511 = vmatpush1.bf16.msra.mxu0 0
      %1512 = vmatprep.subr.bf16.mxu0 0
      %1513 = vmatpush1.bf16.msra.mxu0 0
      %1514 = vmatprep.subr.bf16.mxu0 0
      %1515 = vmatpush1.bf16.msra.mxu0 0
      %1516 = vmatprep.subr.bf16.mxu0 0
      %1517 = vmatpush1.bf16.msra.mxu0 0
      %1518 = vmatprep.subr.bf16.mxu0 0
      %1519 = vmatpush1.bf16.msra.mxu0 0
      %1520 = vmatprep.subr.bf16.mxu0 0
      %1521 = vmatpush1.bf16.msra.mxu0 0
      %1522 = vmatprep.subr.bf16.mxu0 0
      %1523 = vmatpush1.bf16.msra.mxu0 0
      %1524 = vmatprep.mubr.bf16.mxu0 0
      %1525 = vmatmul.mubr.bf16.gmra.mrb[0].mxu0 %v625
      %v1526 = vpop.f32.mrb[0].mxu0
      %v1527 = vadd.f32 0.0, %v1526
      %v1528 = vpop.f32.mrb[0].mxu0
      %v1529 = vpop.f32.mrb[0].mxu0
      %v1530 = vadd.f32 0.0, %v1529
      %v1531 = vpop.f32.mrb[0].mxu0
      %1532 = vmatprep.mubr.bf16.mxu0 0
      %1533 = vmatmul.mubr.bf16.gmra.mrb[0].mxu0 %v628
      %v1534 = vpop.f32.mrb[0].mxu0
      %v1535 = vadd.f32 0.0, %v1534
      %v1536 = vpop.f32.mrb[0].mxu0
      %v1537 = vpop.f32.mrb[0].mxu0
      %v1538 = vadd.f32 0.0, %v1537
      %v1539 = vpop.f32.mrb[0].mxu0
      %1540 = vmatprep.mubr.bf16.mxu0 0
      %1541 = vmatmul.mubr.bf16.gmra.mrb[0].mxu0 %v631
      %v1542 = vpop.f32.mrb[0].mxu0
      %v1543 = vadd.f32 0.0, %v1542
      %v1544 = vpop.f32.mrb[0].mxu0
      %v1545 = vpop.f32.mrb[0].mxu0
      %v1546 = vpop.f32.mrb[0].mxu0
      %1547 = vdwg.mxu0
      %v1553 = vrot.slane %v1527, 7
      %v1554 = vrot.slane %v1530, 7
      %v1555 = vsel %vm697, %v1553, %v1554
      %v1556 = vrot.slane %v1535, 7
      %v1557 = vsel %vm697, %v1554, %v1556
      %v1558 = vrot.slane %v1538, 7
      %v1559 = vsel %vm697, %v1556, %v1558
      %v1560 = vrot.slane %v1543, 7
      %v1561 = vsel %vm697, %v1558, %v1560
      %v1567 = vsel %vm697, 0.0, %v1553
      %v1568 = vrot.slane %v1527, 1
      %v1569 = vrot.slane %v1530, 1
      %v1570 = vsel %vm565, %v1568, %v1569
      %v1571 = vrot.slane %v1535, 1
      %v1572 = vsel %vm565, %v1569, %v1571
      %v1573 = vrot.slane %v1538, 1
      %v1574 = vsel %vm565, %v1571, %v1573
      %v1575 = vrot.slane %v1543, 1
      %v1576 = vsel %vm565, %v1573, %v1575
      %v1582 = vsel %vm727, %v1575, 0.0
      %v1583 = vpack.c.bf16 %v1555, %v1567
      %v1584 = vpack.c.bf16 %v1559, %v1557
      %v1585 = vpack.c.bf16 %v1561, %v1561
      %v1589 = vunpack.c.l.b16 %v1583
      %v1590 = vunpack.c.h.b16 %v1583
      %v1591 = vunpack.c.l.b16 %v1584
      %v1592 = vunpack.c.h.b16 %v1584
      %v1593 = vunpack.c.l.b16 %v1585
      %v1594 = vpack.c.b16 %v1589, %v1589
      %v1595 = vpack.c.b16 %v1590, %v1590
      %v1596 = vpack.c.b16 %v1591, %v1591
      %v1597 = vpack.c.b16 %v1592, %v1592
      %v1598 = vpack.c.b16 %v1593, %v1593
      %1604 = vst.msk [vmem:[#allocation2 + $0xc] sm:$0xf] %vm750, %v1594
      %1605 = vst.msk [vmem:[#allocation2 + $0x38] sm:$0xf] %vm750, %v1595
      %1606 = vst.msk [vmem:[#allocation2 + $0x64] sm:$0xf] %vm750, %v1596
      %1607 = vst.msk [vmem:[#allocation2 + $0x90] sm:$0xf] %vm750, %v1597
      %1608 = vst.msk [vmem:[#allocation2 + $0xbc] sm:$0x7] %vm755, %v1598
      %v1609 = vpack.c.bf16 %v1530, %v1527
      %v1610 = vpack.c.bf16 %v1538, %v1535
      %v1611 = vpack.c.bf16 %v1543, %v1543
      %v1615 = vunpack.c.l.b16 %v1609
      %v1616 = vunpack.c.h.b16 %v1609
      %v1617 = vunpack.c.l.b16 %v1610
      %v1618 = vunpack.c.h.b16 %v1610
      %v1619 = vunpack.c.l.b16 %v1611
      %v1620 = vpack.c.b16 %v1615, %v1615
      %v1621 = vpack.c.b16 %v1616, %v1616
      %v1622 = vpack.c.b16 %v1617, %v1617
      %v1623 = vpack.c.b16 %v1618, %v1618
      %v1624 = vpack.c.b16 %v1619, %v1619
      %1625 = vrot.lane.b32.xlu0 %v1620, 32
      %v1626 = vpop.permute.xlu0 %1625
      %1627 = vrot.lane.b32.xlu0 %v1621, 32
      %v1628 = vpop.permute.xlu0 %1627
      %1629 = vrot.lane.b32.xlu0 %v1622, 32
      %v1630 = vpop.permute.xlu0 %1629
      %1631 = vrot.lane.b32.xlu0 %v1623, 32
      %v1632 = vpop.permute.xlu0 %1631
      %1633 = vrot.lane.b32.xlu0 %v1624, 32
      %v1634 = vpop.permute.xlu0 %1633
      %1640 = vst.msk [vmem:[#allocation2 + $0xc] sm:$0xf] %vm788, %v1626
      %1641 = vst.msk [vmem:[#allocation2 + $0x38] sm:$0xf] %vm788, %v1628
      %1642 = vst.msk [vmem:[#allocation2 + $0x64] sm:$0xf] %vm788, %v1630
      %1643 = vst.msk [vmem:[#allocation2 + $0x90] sm:$0xf] %vm788, %v1632
      %1644 = vst.msk [vmem:[#allocation2 + $0xbc] sm:$0x7] %vm793, %v1634
      %v1645 = vpack.c.bf16 %v1572, %v1570
      %v1646 = vpack.c.bf16 %v1576, %v1574
      %v1647 = vpack.c.bf16 %v1582, %v1582
      %v1651 = vunpack.c.l.b16 %v1645
      %v1652 = vunpack.c.h.b16 %v1645
      %v1653 = vunpack.c.l.b16 %v1646
      %v1654 = vunpack.c.h.b16 %v1646
      %v1655 = vunpack.c.l.b16 %v1647
      %v1656 = vpack.c.b16 %v1651, %v1651
      %v1657 = vpack.c.b16 %v1652, %v1652
      %v1658 = vpack.c.b16 %v1653, %v1653
      %v1659 = vpack.c.b16 %v1654, %v1654
      %v1660 = vpack.c.b16 %v1655, %v1655
      %1661 = vrot.lane.b32.xlu0 %v1656, 64
      %v1662 = vpop.permute.xlu0 %1661
      %1663 = vrot.lane.b32.xlu0 %v1657, 64
      %v1664 = vpop.permute.xlu0 %1663
      %1665 = vrot.lane.b32.xlu0 %v1658, 64
      %v1666 = vpop.permute.xlu0 %1665
      %1667 = vrot.lane.b32.xlu0 %v1659, 64
      %v1668 = vpop.permute.xlu0 %1667
      %1669 = vrot.lane.b32.xlu0 %v1660, 64
      %v1670 = vpop.permute.xlu0 %1669
      %1676 = vst.msk [vmem:[#allocation2 + $0xc] sm:$0xf] %vm826, %v1662
      %1677 = vst.msk [vmem:[#allocation2 + $0x38] sm:$0xf] %vm826, %v1664
      %1678 = vst.msk [vmem:[#allocation2 + $0x64] sm:$0xf] %vm826, %v1666
      %1679 = vst.msk [vmem:[#allocation2 + $0x90] sm:$0xf] %vm826, %v1668
      %1680 = vst.msk [vmem:[#allocation2 + $0xbc] sm:$0x7] %vm831, %v1670
      %s1681 = scalar_lea.vmem %s1, 96
      %v1682 = vld [vmem:[%s1681] sm:$0xf]
      %v1683 = vld [vmem:[%s1681 + $0x4] sm:$0xf]
      %v1684 = vld [vmem:[%s1681 + $0x8] sm:$0xf]
      %v1685 = vld [vmem:[%s1681 + $0xc] sm:$0xf]
      %v1686 = vld [vmem:[%s1681 + $0x10] sm:$0xf]
      %v1687 = vld [vmem:[%s1681 + $0x14] sm:$0xf]
      %v1688 = vld [vmem:[%s1681 + $0x18] sm:$0xf]
      %v1689 = vld [vmem:[%s1681 + $0x1c] sm:$0x3]
      %v1698 = vunpack.c.l.b16 %v1682
      %v1699 = vunpack.c.l.b16 %v1683
      %v1700 = vunpack.c.l.b16 %v1684
      %v1701 = vunpack.c.l.b16 %v1685
      %v1702 = vunpack.c.l.b16 %v1686
      %v1703 = vunpack.c.l.b16 %v1687
      %v1704 = vunpack.c.l.b16 %v1688
      %v1705 = vunpack.c.l.b16 %v1689
      %v1706 = vpack.c.b16 %v1699, %v1698
      %v1707 = vpack.c.b16 %v1701, %v1700
      %v1708 = vpack.c.b16 %v1703, %v1702
      %v1709 = vpack.c.b16 %v1705, %v1704
      %v1714 = vsel %vm402, %v1709, 0
      %1716 = vmatprep.subr.bf16.mxu0 0
      %1717 = vmatpush1.bf16.msra.mxu0 %v1706
      %1718 = vmatprep.subr.bf16.mxu0 0
      %1719 = vmatpush1.bf16.msra.mxu0 %v1707
      %1720 = vmatprep.subr.bf16.mxu0 0
      %1721 = vmatpush1.bf16.msra.mxu0 %v1708
      %1722 = vmatprep.subr.bf16.mxu0 0
      %1723 = vmatpush1.bf16.msra.mxu0 %v1714
      %1724 = vmatprep.subr.bf16.mxu0 0
      %1725 = vmatpush1.bf16.msra.mxu0 0
      %1726 = vmatprep.subr.bf16.mxu0 0
      %1727 = vmatpush1.bf16.msra.mxu0 0
      %1728 = vmatprep.subr.bf16.mxu0 0
      %1729 = vmatpush1.bf16.msra.mxu0 0
      %1730 = vmatprep.subr.bf16.mxu0 0
      %1731 = vmatpush1.bf16.msra.mxu0 0
      %1732 = vmatprep.subr.bf16.mxu0 0
      %1733 = vmatpush1.bf16.msra.mxu0 0
      %1734 = vmatprep.subr.bf16.mxu0 0
      %1735 = vmatpush1.bf16.msra.mxu0 0
      %1736 = vmatprep.subr.bf16.mxu0 0
      %1737 = vmatpush1.bf16.msra.mxu0 0
      %1738 = vmatprep.subr.bf16.mxu0 0
      %1739 = vmatpush1.bf16.msra.mxu0 0
      %1740 = vmatprep.subr.bf16.mxu0 0
      %1741 = vmatpush1.bf16.msra.mxu0 0
      %1742 = vmatprep.subr.bf16.mxu0 0
      %1743 = vmatpush1.bf16.msra.mxu0 0
      %1744 = vmatprep.subr.bf16.mxu0 0
      %1745 = vmatpush1.bf16.msra.mxu0 0
      %1746 = vmatprep.subr.bf16.mxu0 0
      %1747 = vmatpush1.bf16.msra.mxu0 0
      %1748 = vmatprep.mubr.bf16.mxu0 0
      %1749 = vmatmul.mubr.bf16.gmra.mrb[0].mxu0 %v388
      %v1750 = vpop.f32.mrb[0].mxu0
      %v1751 = vadd.f32 0.0, %v1750
      %v1752 = vpop.f32.mrb[0].mxu0
      %v1753 = vpop.f32.mrb[0].mxu0
      %v1754 = vadd.f32 0.0, %v1753
      %v1755 = vpop.f32.mrb[0].mxu0
      %1756 = vmatprep.mubr.bf16.mxu0 0
      %1757 = vmatmul.mubr.bf16.gmra.mrb[0].mxu0 %v391
      %v1758 = vpop.f32.mrb[0].mxu0
      %v1759 = vadd.f32 0.0, %v1758
      %v1760 = vpop.f32.mrb[0].mxu0
      %v1761 = vpop.f32.mrb[0].mxu0
      %v1762 = vadd.f32 0.0, %v1761
      %v1763 = vpop.f32.mrb[0].mxu0
      %1764 = vmatprep.mubr.bf16.mxu0 0
      %1765 = vmatmul.mubr.bf16.gmra.mrb[0].mxu0 %v394
      %v1766 = vpop.f32.mrb[0].mxu0
      %v1767 = vadd.f32 0.0, %v1766
      %v1768 = vpop.f32.mrb[0].mxu0
      %v1769 = vpop.f32.mrb[0].mxu0
      %v1770 = vadd.f32 0.0, %v1769
      %v1771 = vpop.f32.mrb[0].mxu0
      %1772 = vmatprep.mubr.bf16.mxu0 0
      %1773 = vmatmul.mubr.bf16.gmra.mrb[0].mxu0 %v397
      %v1774 = vpop.f32.mrb[0].mxu0
      %v1775 = vadd.f32 0.0, %v1774
      %v1776 = vpop.f32.mrb[0].mxu0
      %v1777 = vpop.f32.mrb[0].mxu0
      %v1778 = vadd.f32 0.0, %v1777
      %v1779 = vpop.f32.mrb[0].mxu0
      %1780 = vmatprep.mubr.bf16.mxu0 0
      %1781 = vmatmul.mubr.bf16.gmra.mrb[0].mxu0 %v400
      %v1782 = vpop.f32.mrb[0].mxu0
      %v1783 = vadd.f32 0.0, %v1782
      %v1784 = vpop.f32.mrb[0].mxu0
      %v1785 = vpop.f32.mrb[0].mxu0
      %v1786 = vadd.f32 0.0, %v1785
      %v1787 = vpop.f32.mrb[0].mxu0
      %1788 = vdwg.mxu0
      %1799 = vrot.lane.b32.xlu0 %v1751, 96
      %v1800 = vpop.permute.xlu0 %1799
      %1801 = vrot.lane.b32.xlu0 %v1754, 96
      %v1802 = vpop.permute.xlu0 %1801
      %1803 = vrot.lane.b32.xlu0 %v1759, 96
      %v1804 = vpop.permute.xlu0 %1803
      %1805 = vrot.lane.b32.xlu0 %v1762, 96
      %v1806 = vpop.permute.xlu0 %1805
      %1807 = vrot.lane.b32.xlu0 %v1767, 96
      %v1808 = vpop.permute.xlu0 %1807
      %1809 = vrot.lane.b32.xlu0 %v1770, 96
      %v1810 = vpop.permute.xlu0 %1809
      %1811 = vrot.lane.b32.xlu0 %v1775, 96
      %v1812 = vpop.permute.xlu0 %1811
      %1813 = vrot.lane.b32.xlu0 %v1778, 96
      %v1814 = vpop.permute.xlu0 %1813
      %1815 = vrot.lane.b32.xlu0 %v1783, 96
      %v1816 = vpop.permute.xlu0 %1815
      %1817 = vrot.lane.b32.xlu0 %v1786, 96
      %v1818 = vpop.permute.xlu0 %1817
      %v1829 = vmax.f32 %v1751, %v1800
      %v1830 = vmax.f32 %v1754, %v1802
      %v1831 = vmax.f32 %v1759, %v1804
      %v1832 = vmax.f32 %v1762, %v1806
      %v1833 = vmax.f32 %v1767, %v1808
      %v1834 = vmax.f32 %v1770, %v1810
      %v1835 = vmax.f32 %v1775, %v1812
      %v1836 = vmax.f32 %v1778, %v1814
      %v1837 = vmax.f32 %v1783, %v1816
      %v1838 = vmax.f32 %v1786, %v1818
      %v1839 = vadd.f32 %v1829, %v533
      %v1840 = vadd.f32 %v1830, %v533
      %v1841 = vadd.f32 %v1831, %v533
      %v1842 = vadd.f32 %v1832, %v533
      %v1843 = vadd.f32 %v1833, %v533
      %v1844 = vadd.f32 %v1834, %v533
      %v1845 = vadd.f32 %v1835, %v533
      %v1846 = vadd.f32 %v1836, %v533
      %v1847 = vadd.f32 %v1837, %v533
      %v1848 = vadd.f32 %v1838, %v533
      %v1849 = vmax.f32 %v1839, 0.0
      %v1850 = vmax.f32 %v1840, 0.0
      %v1851 = vmax.f32 %v1841, 0.0
      %v1852 = vmax.f32 %v1842, 0.0
      %v1853 = vmax.f32 %v1843, 0.0
      %v1854 = vmax.f32 %v1844, 0.0
      %v1855 = vmax.f32 %v1845, 0.0
      %v1856 = vmax.f32 %v1846, 0.0
      %v1857 = vmax.f32 %v1847, 0.0
      %v1858 = vmax.f32 %v1848, 0.0
      %v1869 = vrot.slane %v1849, 1
      %v1870 = vrot.slane %v1850, 1
      %v1871 = vsel %vm565, %v1869, %v1870
      %v1872 = vrot.slane %v1851, 1
      %v1873 = vsel %vm565, %v1870, %v1872
      %v1874 = vrot.slane %v1852, 1
      %v1875 = vsel %vm565, %v1872, %v1874
      %v1876 = vrot.slane %v1853, 1
      %v1877 = vsel %vm565, %v1874, %v1876
      %v1878 = vrot.slane %v1854, 1
      %v1879 = vsel %vm565, %v1876, %v1878
      %v1880 = vrot.slane %v1855, 1
      %v1881 = vsel %vm565, %v1878, %v1880
      %v1882 = vrot.slane %v1856, 1
      %v1883 = vsel %vm565, %v1880, %v1882
      %v1884 = vrot.slane %v1857, 1
      %v1885 = vsel %vm565, %v1882, %v1884
      %v1886 = vrot.slane %v1858, 1
      %v1887 = vsel %vm565, %v1884, %v1886
      %v1898 = vmax.f32 %v1849, %v1871
      %v1899 = vmax.f32 %v1850, %v1873
      %v1900 = vmax.f32 %v1851, %v1875
      %v1901 = vmax.f32 %v1852, %v1877
      %v1902 = vmax.f32 %v1853, %v1879
      %v1903 = vmax.f32 %v1854, %v1881
      %v1904 = vmax.f32 %v1855, %v1883
      %v1905 = vmax.f32 %v1856, %v1885
      %v1906 = vmax.f32 %v1857, %v1887
      %v1907 = vmax.f32 %v1858, %v1886
      %v1908 = vpack.c.bf16 %v1899, %v1898
      %v1909 = vpack.c.bf16 %v1901, %v1900
      %v1910 = vpack.c.bf16 %v1903, %v1902
      %v1911 = vpack.c.bf16 %v1905, %v1904
      %v1912 = vpack.c.bf16 %v1907, %v1906
      %v1914 = vsel %vm402, %v1912, 0
      %1916 = vmatprep.subr.bf16.mxu0 0
      %1917 = vmatpush1.bf16.msra.mxu0 %v1908
      %1918 = vmatprep.subr.bf16.mxu0 0
      %1919 = vmatpush1.bf16.msra.mxu0 %v1909
      %1920 = vmatprep.subr.bf16.mxu0 0
      %1921 = vmatpush1.bf16.msra.mxu0 %v1910
      %1922 = vmatprep.subr.bf16.mxu0 0
      %1923 = vmatpush1.bf16.msra.mxu0 %v1911
      %1924 = vmatprep.subr.bf16.mxu0 0
      %1925 = vmatpush1.bf16.msra.mxu0 %v1914
      %1926 = vmatprep.subr.bf16.mxu0 0
      %1927 = vmatpush1.bf16.msra.mxu0 0
      %1928 = vmatprep.subr.bf16.mxu0 0
      %1929 = vmatpush1.bf16.msra.mxu0 0
      %1930 = vmatprep.subr.bf16.mxu0 0
      %1931 = vmatpush1.bf16.msra.mxu0 0
      %1932 = vmatprep.subr.bf16.mxu0 0
      %1933 = vmatpush1.bf16.msra.mxu0 0
      %1934 = vmatprep.subr.bf16.mxu0 0
      %1935 = vmatpush1.bf16.msra.mxu0 0
      %1936 = vmatprep.subr.bf16.mxu0 0
      %1937 = vmatpush1.bf16.msra.mxu0 0
      %1938 = vmatprep.subr.bf16.mxu0 0
      %1939 = vmatpush1.bf16.msra.mxu0 0
      %1940 = vmatprep.subr.bf16.mxu0 0
      %1941 = vmatpush1.bf16.msra.mxu0 0
      %1942 = vmatprep.subr.bf16.mxu0 0
      %1943 = vmatpush1.bf16.msra.mxu0 0
      %1944 = vmatprep.subr.bf16.mxu0 0
      %1945 = vmatpush1.bf16.msra.mxu0 0
      %1946 = vmatprep.subr.bf16.mxu0 0
      %1947 = vmatpush1.bf16.msra.mxu0 0
      %1948 = vmatprep.mubr.bf16.mxu0 0
      %1949 = vmatmul.mubr.bf16.gmra.mrb[0].mxu0 %v625
      %v1950 = vpop.f32.mrb[0].mxu0
      %v1951 = vadd.f32 0.0, %v1950
      %v1952 = vpop.f32.mrb[0].mxu0
      %v1953 = vpop.f32.mrb[0].mxu0
      %v1954 = vadd.f32 0.0, %v1953
      %v1955 = vpop.f32.mrb[0].mxu0
      %1956 = vmatprep.mubr.bf16.mxu0 0
      %1957 = vmatmul.mubr.bf16.gmra.mrb[0].mxu0 %v628
      %v1958 = vpop.f32.mrb[0].mxu0
      %v1959 = vadd.f32 0.0, %v1958
      %v1960 = vpop.f32.mrb[0].mxu0
      %v1961 = vpop.f32.mrb[0].mxu0
      %v1962 = vadd.f32 0.0, %v1961
      %v1963 = vpop.f32.mrb[0].mxu0
      %1964 = vmatprep.mubr.bf16.mxu0 0
      %1965 = vmatmul.mubr.bf16.gmra.mrb[0].mxu0 %v631
      %v1966 = vpop.f32.mrb[0].mxu0
      %v1967 = vadd.f32 0.0, %v1966
      %v1968 = vpop.f32.mrb[0].mxu0
      %v1969 = vpop.f32.mrb[0].mxu0
      %v1970 = vpop.f32.mrb[0].mxu0
      %1971 = vdwg.mxu0
      %v1977 = vrot.slane %v1951, 7
      %v1978 = vrot.slane %v1954, 7
      %v1979 = vsel %vm697, %v1977, %v1978
      %v1980 = vrot.slane %v1959, 7
      %v1981 = vsel %vm697, %v1978, %v1980
      %v1982 = vrot.slane %v1962, 7
      %v1983 = vsel %vm697, %v1980, %v1982
      %v1984 = vrot.slane %v1967, 7
      %v1985 = vsel %vm697, %v1982, %v1984
      %v1991 = vsel %vm697, 0.0, %v1977
      %v1992 = vrot.slane %v1951, 1
      %v1993 = vrot.slane %v1954, 1
      %v1994 = vsel %vm565, %v1992, %v1993
      %v1995 = vrot.slane %v1959, 1
      %v1996 = vsel %vm565, %v1993, %v1995
      %v1997 = vrot.slane %v1962, 1
      %v1998 = vsel %vm565, %v1995, %v1997
      %v1999 = vrot.slane %v1967, 1
      %v2000 = vsel %vm565, %v1997, %v1999
      %v2006 = vsel %vm727, %v1999, 0.0
      %v2007 = vpack.c.bf16 %v1979, %v1991
      %v2008 = vpack.c.bf16 %v1983, %v1981
      %v2009 = vpack.c.bf16 %v1985, %v1985
      %v2013 = vunpack.c.l.b16 %v2007
      %v2014 = vunpack.c.h.b16 %v2007
      %v2015 = vunpack.c.l.b16 %v2008
      %v2016 = vunpack.c.h.b16 %v2008
      %v2017 = vunpack.c.l.b16 %v2009
      %v2018 = vpack.c.b16 %v2013, %v2013
      %v2019 = vpack.c.b16 %v2014, %v2014
      %v2020 = vpack.c.b16 %v2015, %v2015
      %v2021 = vpack.c.b16 %v2016, %v2016
      %v2022 = vpack.c.b16 %v2017, %v2017
      %2028 = vst.msk [vmem:[#allocation2 + $0x10] sm:$0xf] %vm750, %v2018
      %2029 = vst.msk [vmem:[#allocation2 + $0x3c] sm:$0xf] %vm750, %v2019
      %2030 = vst.msk [vmem:[#allocation2 + $0x68] sm:$0xf] %vm750, %v2020
      %2031 = vst.msk [vmem:[#allocation2 + $0x94] sm:$0xf] %vm750, %v2021
      %2032 = vst.msk [vmem:[#allocation2 + $0xc0] sm:$0x7] %vm755, %v2022
      %v2033 = vpack.c.bf16 %v1954, %v1951
      %v2034 = vpack.c.bf16 %v1962, %v1959
      %v2035 = vpack.c.bf16 %v1967, %v1967
      %v2039 = vunpack.c.l.b16 %v2033
      %v2040 = vunpack.c.h.b16 %v2033
      %v2041 = vunpack.c.l.b16 %v2034
      %v2042 = vunpack.c.h.b16 %v2034
      %v2043 = vunpack.c.l.b16 %v2035
      %v2044 = vpack.c.b16 %v2039, %v2039
      %v2045 = vpack.c.b16 %v2040, %v2040
      %v2046 = vpack.c.b16 %v2041, %v2041
      %v2047 = vpack.c.b16 %v2042, %v2042
      %v2048 = vpack.c.b16 %v2043, %v2043
      %2049 = vrot.lane.b32.xlu0 %v2044, 32
      %v2050 = vpop.permute.xlu0 %2049
      %2051 = vrot.lane.b32.xlu0 %v2045, 32
      %v2052 = vpop.permute.xlu0 %2051
      %2053 = vrot.lane.b32.xlu0 %v2046, 32
      %v2054 = vpop.permute.xlu0 %2053
      %2055 = vrot.lane.b32.xlu0 %v2047, 32
      %v2056 = vpop.permute.xlu0 %2055
      %2057 = vrot.lane.b32.xlu0 %v2048, 32
      %v2058 = vpop.permute.xlu0 %2057
      %2064 = vst.msk [vmem:[#allocation2 + $0x10] sm:$0xf] %vm788, %v2050
      %2065 = vst.msk [vmem:[#allocation2 + $0x3c] sm:$0xf] %vm788, %v2052
      %2066 = vst.msk [vmem:[#allocation2 + $0x68] sm:$0xf] %vm788, %v2054
      %2067 = vst.msk [vmem:[#allocation2 + $0x94] sm:$0xf] %vm788, %v2056
      %2068 = vst.msk [vmem:[#allocation2 + $0xc0] sm:$0x7] %vm793, %v2058
      %v2069 = vpack.c.bf16 %v1996, %v1994
      %v2070 = vpack.c.bf16 %v2000, %v1998
      %v2071 = vpack.c.bf16 %v2006, %v2006
      %v2075 = vunpack.c.l.b16 %v2069
      %v2076 = vunpack.c.h.b16 %v2069
      %v2077 = vunpack.c.l.b16 %v2070
      %v2078 = vunpack.c.h.b16 %v2070
      %v2079 = vunpack.c.l.b16 %v2071
      %v2080 = vpack.c.b16 %v2075, %v2075
      %v2081 = vpack.c.b16 %v2076, %v2076
      %v2082 = vpack.c.b16 %v2077, %v2077
      %v2083 = vpack.c.b16 %v2078, %v2078
      %v2084 = vpack.c.b16 %v2079, %v2079
      %2085 = vrot.lane.b32.xlu0 %v2080, 64
      %v2086 = vpop.permute.xlu0 %2085
      %2087 = vrot.lane.b32.xlu0 %v2081, 64
      %v2088 = vpop.permute.xlu0 %2087
      %2089 = vrot.lane.b32.xlu0 %v2082, 64
      %v2090 = vpop.permute.xlu0 %2089
      %2091 = vrot.lane.b32.xlu0 %v2083, 64
      %v2092 = vpop.permute.xlu0 %2091
      %2093 = vrot.lane.b32.xlu0 %v2084, 64
      %v2094 = vpop.permute.xlu0 %2093
      %2100 = vst.msk [vmem:[#allocation2 + $0x10] sm:$0xf] %vm826, %v2086
      %2101 = vst.msk [vmem:[#allocation2 + $0x3c] sm:$0xf] %vm826, %v2088
      %2102 = vst.msk [vmem:[#allocation2 + $0x68] sm:$0xf] %vm826, %v2090
      %2103 = vst.msk [vmem:[#allocation2 + $0x94] sm:$0xf] %vm826, %v2092
      %2104 = vst.msk [vmem:[#allocation2 + $0xc0] sm:$0x7] %vm831, %v2094
      %s2105 = scalar_lea.vmem %s1, 128
      %v2106 = vld [vmem:[%s2105] sm:$0xf]
      %v2107 = vld [vmem:[%s2105 + $0x4] sm:$0xf]
      %v2108 = vld [vmem:[%s2105 + $0x8] sm:$0xf]
      %v2109 = vld [vmem:[%s2105 + $0xc] sm:$0xf]
      %v2110 = vld [vmem:[%s2105 + $0x10] sm:$0xf]
      %v2111 = vld [vmem:[%s2105 + $0x14] sm:$0xf]
      %v2112 = vld [vmem:[%s2105 + $0x18] sm:$0xf]
      %v2113 = vld [vmem:[%s2105 + $0x1c] sm:$0x3]
      %v2122 = vunpack.c.l.b16 %v2106
      %v2123 = vunpack.c.l.b16 %v2107
      %v2124 = vunpack.c.l.b16 %v2108
      %v2125 = vunpack.c.l.b16 %v2109
      %v2126 = vunpack.c.l.b16 %v2110
      %v2127 = vunpack.c.l.b16 %v2111
      %v2128 = vunpack.c.l.b16 %v2112
      %v2129 = vunpack.c.l.b16 %v2113
      %v2130 = vpack.c.b16 %v2123, %v2122
      %v2131 = vpack.c.b16 %v2125, %v2124
      %v2132 = vpack.c.b16 %v2127, %v2126
      %v2133 = vpack.c.b16 %v2129, %v2128
      %v2138 = vsel %vm402, %v2133, 0
      %2140 = vmatprep.subr.bf16.mxu0 0
      %2141 = vmatpush1.bf16.msra.mxu0 %v2130
      %2142 = vmatprep.subr.bf16.mxu0 0
      %2143 = vmatpush1.bf16.msra.mxu0 %v2131
      %2144 = vmatprep.subr.bf16.mxu0 0
      %2145 = vmatpush1.bf16.msra.mxu0 %v2132
      %2146 = vmatprep.subr.bf16.mxu0 0
      %2147 = vmatpush1.bf16.msra.mxu0 %v2138
      %2148 = vmatprep.subr.bf16.mxu0 0
      %2149 = vmatpush1.bf16.msra.mxu0 0
      %2150 = vmatprep.subr.bf16.mxu0 0
      %2151 = vmatpush1.bf16.msra.mxu0 0
      %2152 = vmatprep.subr.bf16.mxu0 0
      %2153 = vmatpush1.bf16.msra.mxu0 0
      %2154 = vmatprep.subr.bf16.mxu0 0
      %2155 = vmatpush1.bf16.msra.mxu0 0
      %2156 = vmatprep.subr.bf16.mxu0 0
      %2157 = vmatpush1.bf16.msra.mxu0 0
      %2158 = vmatprep.subr.bf16.mxu0 0
      %2159 = vmatpush1.bf16.msra.mxu0 0
      %2160 = vmatprep.subr.bf16.mxu0 0
      %2161 = vmatpush1.bf16.msra.mxu0 0
      %2162 = vmatprep.subr.bf16.mxu0 0
      %2163 = vmatpush1.bf16.msra.mxu0 0
      %2164 = vmatprep.subr.bf16.mxu0 0
      %2165 = vmatpush1.bf16.msra.mxu0 0
      %2166 = vmatprep.subr.bf16.mxu0 0
      %2167 = vmatpush1.bf16.msra.mxu0 0
      %2168 = vmatprep.subr.bf16.mxu0 0
      %2169 = vmatpush1.bf16.msra.mxu0 0
      %2170 = vmatprep.subr.bf16.mxu0 0
      %2171 = vmatpush1.bf16.msra.mxu0 0
      %2172 = vmatprep.mubr.bf16.mxu0 0
      %2173 = vmatmul.mubr.bf16.gmra.mrb[0].mxu0 %v388
      %v2174 = vpop.f32.mrb[0].mxu0
      %v2175 = vadd.f32 0.0, %v2174
      %v2176 = vpop.f32.mrb[0].mxu0
      %v2177 = vpop.f32.mrb[0].mxu0
      %v2178 = vadd.f32 0.0, %v2177
      %v2179 = vpop.f32.mrb[0].mxu0
      %2180 = vmatprep.mubr.bf16.mxu0 0
      %2181 = vmatmul.mubr.bf16.gmra.mrb[0].mxu0 %v391
      %v2182 = vpop.f32.mrb[0].mxu0
      %v2183 = vadd.f32 0.0, %v2182
      %v2184 = vpop.f32.mrb[0].mxu0
      %v2185 = vpop.f32.mrb[0].mxu0
      %v2186 = vadd.f32 0.0, %v2185
      %v2187 = vpop.f32.mrb[0].mxu0
      %2188 = vmatprep.mubr.bf16.mxu0 0
      %2189 = vmatmul.mubr.bf16.gmra.mrb[0].mxu0 %v394
      %v2190 = vpop.f32.mrb[0].mxu0
      %v2191 = vadd.f32 0.0, %v2190
      %v2192 = vpop.f32.mrb[0].mxu0
      %v2193 = vpop.f32.mrb[0].mxu0
      %v2194 = vadd.f32 0.0, %v2193
      %v2195 = vpop.f32.mrb[0].mxu0
      %2196 = vmatprep.mubr.bf16.mxu0 0
      %2197 = vmatmul.mubr.bf16.gmra.mrb[0].mxu0 %v397
      %v2198 = vpop.f32.mrb[0].mxu0
      %v2199 = vadd.f32 0.0, %v2198
      %v2200 = vpop.f32.mrb[0].mxu0
      %v2201 = vpop.f32.mrb[0].mxu0
      %v2202 = vadd.f32 0.0, %v2201
      %v2203 = vpop.f32.mrb[0].mxu0
      %2204 = vmatprep.mubr.bf16.mxu0 0
      %2205 = vmatmul.mubr.bf16.gmra.mrb[0].mxu0 %v400
      %v2206 = vpop.f32.mrb[0].mxu0
      %v2207 = vadd.f32 0.0, %v2206
      %v2208 = vpop.f32.mrb[0].mxu0
      %v2209 = vpop.f32.mrb[0].mxu0
      %v2210 = vadd.f32 0.0, %v2209
      %v2211 = vpop.f32.mrb[0].mxu0
      %2212 = vdwg.mxu0
      %2223 = vrot.lane.b32.xlu0 %v2175, 96
      %v2224 = vpop.permute.xlu0 %2223
      %2225 = vrot.lane.b32.xlu0 %v2178, 96
      %v2226 = vpop.permute.xlu0 %2225
      %2227 = vrot.lane.b32.xlu0 %v2183, 96
      %v2228 = vpop.permute.xlu0 %2227
      %2229 = vrot.lane.b32.xlu0 %v2186, 96
      %v2230 = vpop.permute.xlu0 %2229
      %2231 = vrot.lane.b32.xlu0 %v2191, 96
      %v2232 = vpop.permute.xlu0 %2231
      %2233 = vrot.lane.b32.xlu0 %v2194, 96
      %v2234 = vpop.permute.xlu0 %2233
      %2235 = vrot.lane.b32.xlu0 %v2199, 96
      %v2236 = vpop.permute.xlu0 %2235
      %2237 = vrot.lane.b32.xlu0 %v2202, 96
      %v2238 = vpop.permute.xlu0 %2237
      %2239 = vrot.lane.b32.xlu0 %v2207, 96
      %v2240 = vpop.permute.xlu0 %2239
      %2241 = vrot.lane.b32.xlu0 %v2210, 96
      %v2242 = vpop.permute.xlu0 %2241
      %v2253 = vmax.f32 %v2175, %v2224
      %v2254 = vmax.f32 %v2178, %v2226
      %v2255 = vmax.f32 %v2183, %v2228
      %v2256 = vmax.f32 %v2186, %v2230
      %v2257 = vmax.f32 %v2191, %v2232
      %v2258 = vmax.f32 %v2194, %v2234
      %v2259 = vmax.f32 %v2199, %v2236
      %v2260 = vmax.f32 %v2202, %v2238
      %v2261 = vmax.f32 %v2207, %v2240
      %v2262 = vmax.f32 %v2210, %v2242
      %v2263 = vadd.f32 %v2253, %v533
      %v2264 = vadd.f32 %v2254, %v533
      %v2265 = vadd.f32 %v2255, %v533
      %v2266 = vadd.f32 %v2256, %v533
      %v2267 = vadd.f32 %v2257, %v533
      %v2268 = vadd.f32 %v2258, %v533
      %v2269 = vadd.f32 %v2259, %v533
      %v2270 = vadd.f32 %v2260, %v533
      %v2271 = vadd.f32 %v2261, %v533
      %v2272 = vadd.f32 %v2262, %v533
      %v2273 = vmax.f32 %v2263, 0.0
      %v2274 = vmax.f32 %v2264, 0.0
      %v2275 = vmax.f32 %v2265, 0.0
      %v2276 = vmax.f32 %v2266, 0.0
      %v2277 = vmax.f32 %v2267, 0.0
      %v2278 = vmax.f32 %v2268, 0.0
      %v2279 = vmax.f32 %v2269, 0.0
      %v2280 = vmax.f32 %v2270, 0.0
      %v2281 = vmax.f32 %v2271, 0.0
      %v2282 = vmax.f32 %v2272, 0.0
      %v2293 = vrot.slane %v2273, 1
      %v2294 = vrot.slane %v2274, 1
      %v2295 = vsel %vm565, %v2293, %v2294
      %v2296 = vrot.slane %v2275, 1
      %v2297 = vsel %vm565, %v2294, %v2296
      %v2298 = vrot.slane %v2276, 1
      %v2299 = vsel %vm565, %v2296, %v2298
      %v2300 = vrot.slane %v2277, 1
      %v2301 = vsel %vm565, %v2298, %v2300
      %v2302 = vrot.slane %v2278, 1
      %v2303 = vsel %vm565, %v2300, %v2302
      %v2304 = vrot.slane %v2279, 1
      %v2305 = vsel %vm565, %v2302, %v2304
      %v2306 = vrot.slane %v2280, 1
      %v2307 = vsel %vm565, %v2304, %v2306
      %v2308 = vrot.slane %v2281, 1
      %v2309 = vsel %vm565, %v2306, %v2308
      %v2310 = vrot.slane %v2282, 1
      %v2311 = vsel %vm565, %v2308, %v2310
      %v2322 = vmax.f32 %v2273, %v2295
      %v2323 = vmax.f32 %v2274, %v2297
      %v2324 = vmax.f32 %v2275, %v2299
      %v2325 = vmax.f32 %v2276, %v2301
      %v2326 = vmax.f32 %v2277, %v2303
      %v2327 = vmax.f32 %v2278, %v2305
      %v2328 = vmax.f32 %v2279, %v2307
      %v2329 = vmax.f32 %v2280, %v2309
      %v2330 = vmax.f32 %v2281, %v2311
      %v2331 = vmax.f32 %v2282, %v2310
      %v2332 = vpack.c.bf16 %v2323, %v2322
      %v2333 = vpack.c.bf16 %v2325, %v2324
      %v2334 = vpack.c.bf16 %v2327, %v2326
      %v2335 = vpack.c.bf16 %v2329, %v2328
      %v2336 = vpack.c.bf16 %v2331, %v2330
      %v2338 = vsel %vm402, %v2336, 0
      %2340 = vmatprep.subr.bf16.mxu0 0
      %2341 = vmatpush1.bf16.msra.mxu0 %v2332
      %2342 = vmatprep.subr.bf16.mxu0 0
      %2343 = vmatpush1.bf16.msra.mxu0 %v2333
      %2344 = vmatprep.subr.bf16.mxu0 0
      %2345 = vmatpush1.bf16.msra.mxu0 %v2334
      %2346 = vmatprep.subr.bf16.mxu0 0
      %2347 = vmatpush1.bf16.msra.mxu0 %v2335
      %2348 = vmatprep.subr.bf16.mxu0 0
      %2349 = vmatpush1.bf16.msra.mxu0 %v2338
      %2350 = vmatprep.subr.bf16.mxu0 0
      %2351 = vmatpush1.bf16.msra.mxu0 0
      %2352 = vmatprep.subr.bf16.mxu0 0
      %2353 = vmatpush1.bf16.msra.mxu0 0
      %2354 = vmatprep.subr.bf16.mxu0 0
      %2355 = vmatpush1.bf16.msra.mxu0 0
      %2356 = vmatprep.subr.bf16.mxu0 0
      %2357 = vmatpush1.bf16.msra.mxu0 0
      %2358 = vmatprep.subr.bf16.mxu0 0
      %2359 = vmatpush1.bf16.msra.mxu0 0
      %2360 = vmatprep.subr.bf16.mxu0 0
      %2361 = vmatpush1.bf16.msra.mxu0 0
      %2362 = vmatprep.subr.bf16.mxu0 0
      %2363 = vmatpush1.bf16.msra.mxu0 0
      %2364 = vmatprep.subr.bf16.mxu0 0
      %2365 = vmatpush1.bf16.msra.mxu0 0
      %2366 = vmatprep.subr.bf16.mxu0 0
      %2367 = vmatpush1.bf16.msra.mxu0 0
      %2368 = vmatprep.subr.bf16.mxu0 0
      %2369 = vmatpush1.bf16.msra.mxu0 0
      %2370 = vmatprep.subr.bf16.mxu0 0
      %2371 = vmatpush1.bf16.msra.mxu0 0
      %2372 = vmatprep.mubr.bf16.mxu0 0
      %2373 = vmatmul.mubr.bf16.gmra.mrb[0].mxu0 %v625
      %v2374 = vpop.f32.mrb[0].mxu0
      %v2375 = vadd.f32 0.0, %v2374
      %v2376 = vpop.f32.mrb[0].mxu0
      %v2377 = vpop.f32.mrb[0].mxu0
      %v2378 = vadd.f32 0.0, %v2377
      %v2379 = vpop.f32.mrb[0].mxu0
      %2380 = vmatprep.mubr.bf16.mxu0 0
      %2381 = vmatmul.mubr.bf16.gmra.mrb[0].mxu0 %v628
      %v2382 = vpop.f32.mrb[0].mxu0
      %v2383 = vadd.f32 0.0, %v2382
      %v2384 = vpop.f32.mrb[0].mxu0
      %v2385 = vpop.f32.mrb[0].mxu0
      %v2386 = vadd.f32 0.0, %v2385
      %v2387 = vpop.f32.mrb[0].mxu0
      %2388 = vmatprep.mubr.bf16.mxu0 0
      %2389 = vmatmul.mubr.bf16.gmra.mrb[0].mxu0 %v631
      %v2390 = vpop.f32.mrb[0].mxu0
      %v2391 = vadd.f32 0.0, %v2390
      %v2392 = vpop.f32.mrb[0].mxu0
      %v2393 = vpop.f32.mrb[0].mxu0
      %v2394 = vpop.f32.mrb[0].mxu0
      %2395 = vdwg.mxu0
      %v2401 = vrot.slane %v2375, 7
      %v2402 = vrot.slane %v2378, 7
      %v2403 = vsel %vm697, %v2401, %v2402
      %v2404 = vrot.slane %v2383, 7
      %v2405 = vsel %vm697, %v2402, %v2404
      %v2406 = vrot.slane %v2386, 7
      %v2407 = vsel %vm697, %v2404, %v2406
      %v2408 = vrot.slane %v2391, 7
      %v2409 = vsel %vm697, %v2406, %v2408
      %v2415 = vsel %vm697, 0.0, %v2401
      %v2416 = vrot.slane %v2375, 1
      %v2417 = vrot.slane %v2378, 1
      %v2418 = vsel %vm565, %v2416, %v2417
      %v2419 = vrot.slane %v2383, 1
      %v2420 = vsel %vm565, %v2417, %v2419
      %v2421 = vrot.slane %v2386, 1
      %v2422 = vsel %vm565, %v2419, %v2421
      %v2423 = vrot.slane %v2391, 1
      %v2424 = vsel %vm565, %v2421, %v2423
      %v2430 = vsel %vm727, %v2423, 0.0
      %v2431 = vpack.c.bf16 %v2403, %v2415
      %v2432 = vpack.c.bf16 %v2407, %v2405
      %v2433 = vpack.c.bf16 %v2409, %v2409
      %v2437 = vunpack.c.l.b16 %v2431
      %v2438 = vunpack.c.h.b16 %v2431
      %v2439 = vunpack.c.l.b16 %v2432
      %v2440 = vunpack.c.h.b16 %v2432
      %v2441 = vunpack.c.l.b16 %v2433
      %v2442 = vpack.c.b16 %v2437, %v2437
      %v2443 = vpack.c.b16 %v2438, %v2438
      %v2444 = vpack.c.b16 %v2439, %v2439
      %v2445 = vpack.c.b16 %v2440, %v2440
      %v2446 = vpack.c.b16 %v2441, %v2441
      %2452 = vst.msk [vmem:[#allocation2 + $0x14] sm:$0xf] %vm750, %v2442
      %2453 = vst.msk [vmem:[#allocation2 + $0x40] sm:$0xf] %vm750, %v2443
      %2454 = vst.msk [vmem:[#allocation2 + $0x6c] sm:$0xf] %vm750, %v2444
      %2455 = vst.msk [vmem:[#allocation2 + $0x98] sm:$0xf] %vm750, %v2445
      %2456 = vst.msk [vmem:[#allocation2 + $0xc4] sm:$0x7] %vm755, %v2446
      %v2457 = vpack.c.bf16 %v2378, %v2375
      %v2458 = vpack.c.bf16 %v2386, %v2383
      %v2459 = vpack.c.bf16 %v2391, %v2391
      %v2463 = vunpack.c.l.b16 %v2457
      %v2464 = vunpack.c.h.b16 %v2457
      %v2465 = vunpack.c.l.b16 %v2458
      %v2466 = vunpack.c.h.b16 %v2458
      %v2467 = vunpack.c.l.b16 %v2459
      %v2468 = vpack.c.b16 %v2463, %v2463
      %v2469 = vpack.c.b16 %v2464, %v2464
      %v2470 = vpack.c.b16 %v2465, %v2465
      %v2471 = vpack.c.b16 %v2466, %v2466
      %v2472 = vpack.c.b16 %v2467, %v2467
      %2473 = vrot.lane.b32.xlu0 %v2468, 32
      %v2474 = vpop.permute.xlu0 %2473
      %2475 = vrot.lane.b32.xlu0 %v2469, 32
      %v2476 = vpop.permute.xlu0 %2475
      %2477 = vrot.lane.b32.xlu0 %v2470, 32
      %v2478 = vpop.permute.xlu0 %2477
      %2479 = vrot.lane.b32.xlu0 %v2471, 32
      %v2480 = vpop.permute.xlu0 %2479
      %2481 = vrot.lane.b32.xlu0 %v2472, 32
      %v2482 = vpop.permute.xlu0 %2481
      %2488 = vst.msk [vmem:[#allocation2 + $0x14] sm:$0xf] %vm788, %v2474
      %2489 = vst.msk [vmem:[#allocation2 + $0x40] sm:$0xf] %vm788, %v2476
      %2490 = vst.msk [vmem:[#allocation2 + $0x6c] sm:$0xf] %vm788, %v2478
      %2491 = vst.msk [vmem:[#allocation2 + $0x98] sm:$0xf] %vm788, %v2480
      %2492 = vst.msk [vmem:[#allocation2 + $0xc4] sm:$0x7] %vm793, %v2482
      %v2493 = vpack.c.bf16 %v2420, %v2418
      %v2494 = vpack.c.bf16 %v2424, %v2422
      %v2495 = vpack.c.bf16 %v2430, %v2430
      %v2499 = vunpack.c.l.b16 %v2493
      %v2500 = vunpack.c.h.b16 %v2493
      %v2501 = vunpack.c.l.b16 %v2494
      %v2502 = vunpack.c.h.b16 %v2494
      %v2503 = vunpack.c.l.b16 %v2495
      %v2504 = vpack.c.b16 %v2499, %v2499
      %v2505 = vpack.c.b16 %v2500, %v2500
      %v2506 = vpack.c.b16 %v2501, %v2501
      %v2507 = vpack.c.b16 %v2502, %v2502
      %v2508 = vpack.c.b16 %v2503, %v2503
      %2509 = vrot.lane.b32.xlu0 %v2504, 64
      %v2510 = vpop.permute.xlu0 %2509
      %2511 = vrot.lane.b32.xlu0 %v2505, 64
      %v2512 = vpop.permute.xlu0 %2511
      %2513 = vrot.lane.b32.xlu0 %v2506, 64
      %v2514 = vpop.permute.xlu0 %2513
      %2515 = vrot.lane.b32.xlu0 %v2507, 64
      %v2516 = vpop.permute.xlu0 %2515
      %2517 = vrot.lane.b32.xlu0 %v2508, 64
      %v2518 = vpop.permute.xlu0 %2517
      %2524 = vst.msk [vmem:[#allocation2 + $0x14] sm:$0xf] %vm826, %v2510
      %2525 = vst.msk [vmem:[#allocation2 + $0x40] sm:$0xf] %vm826, %v2512
      %2526 = vst.msk [vmem:[#allocation2 + $0x6c] sm:$0xf] %vm826, %v2514
      %2527 = vst.msk [vmem:[#allocation2 + $0x98] sm:$0xf] %vm826, %v2516
      %2528 = vst.msk [vmem:[#allocation2 + $0xc4] sm:$0x7] %vm831, %v2518
      %s2529 = scalar_lea.vmem %s1, 160
      %v2530 = vld [vmem:[%s2529] sm:$0xf]
      %v2531 = vld [vmem:[%s2529 + $0x4] sm:$0xf]
      %v2532 = vld [vmem:[%s2529 + $0x8] sm:$0xf]
      %v2533 = vld [vmem:[%s2529 + $0xc] sm:$0xf]
      %v2534 = vld [vmem:[%s2529 + $0x10] sm:$0xf]
      %v2535 = vld [vmem:[%s2529 + $0x14] sm:$0xf]
      %v2536 = vld [vmem:[%s2529 + $0x18] sm:$0xf]
      %v2537 = vld [vmem:[%s2529 + $0x1c] sm:$0x3]
      %v2546 = vunpack.c.l.b16 %v2530
      %v2547 = vunpack.c.l.b16 %v2531
      %v2548 = vunpack.c.l.b16 %v2532
      %v2549 = vunpack.c.l.b16 %v2533
      %v2550 = vunpack.c.l.b16 %v2534
      %v2551 = vunpack.c.l.b16 %v2535
      %v2552 = vunpack.c.l.b16 %v2536
      %v2553 = vunpack.c.l.b16 %v2537
      %v2554 = vpack.c.b16 %v2547, %v2546
      %v2555 = vpack.c.b16 %v2549, %v2548
      %v2556 = vpack.c.b16 %v2551, %v2550
      %v2557 = vpack.c.b16 %v2553, %v2552
      %v2562 = vsel %vm402, %v2557, 0
      %2564 = vmatprep.subr.bf16.mxu0 0
      %2565 = vmatpush1.bf16.msra.mxu0 %v2554
      %2566 = vmatprep.subr.bf16.mxu0 0
      %2567 = vmatpush1.bf16.msra.mxu0 %v2555
      %2568 = vmatprep.subr.bf16.mxu0 0
      %2569 = vmatpush1.bf16.msra.mxu0 %v2556
      %2570 = vmatprep.subr.bf16.mxu0 0
      %2571 = vmatpush1.bf16.msra.mxu0 %v2562
      %2572 = vmatprep.subr.bf16.mxu0 0
      %2573 = vmatpush1.bf16.msra.mxu0 0
      %2574 = vmatprep.subr.bf16.mxu0 0
      %2575 = vmatpush1.bf16.msra.mxu0 0
      %2576 = vmatprep.subr.bf16.mxu0 0
      %2577 = vmatpush1.bf16.msra.mxu0 0
      %2578 = vmatprep.subr.bf16.mxu0 0
      %2579 = vmatpush1.bf16.msra.mxu0 0
      %2580 = vmatprep.subr.bf16.mxu0 0
      %2581 = vmatpush1.bf16.msra.mxu0 0
      %2582 = vmatprep.subr.bf16.mxu0 0
      %2583 = vmatpush1.bf16.msra.mxu0 0
      %2584 = vmatprep.subr.bf16.mxu0 0
      %2585 = vmatpush1.bf16.msra.mxu0 0
      %2586 = vmatprep.subr.bf16.mxu0 0
      %2587 = vmatpush1.bf16.msra.mxu0 0
      %2588 = vmatprep.subr.bf16.mxu0 0
      %2589 = vmatpush1.bf16.msra.mxu0 0
      %2590 = vmatprep.subr.bf16.mxu0 0
      %2591 = vmatpush1.bf16.msra.mxu0 0
      %2592 = vmatprep.subr.bf16.mxu0 0
      %2593 = vmatpush1.bf16.msra.mxu0 0
      %2594 = vmatprep.subr.bf16.mxu0 0
      %2595 = vmatpush1.bf16.msra.mxu0 0
      %2596 = vmatprep.mubr.bf16.mxu0 0
      %2597 = vmatmul.mubr.bf16.gmra.mrb[0].mxu0 %v388
      %v2598 = vpop.f32.mrb[0].mxu0
      %v2599 = vadd.f32 0.0, %v2598
      %v2600 = vpop.f32.mrb[0].mxu0
      %v2601 = vpop.f32.mrb[0].mxu0
      %v2602 = vadd.f32 0.0, %v2601
      %v2603 = vpop.f32.mrb[0].mxu0
      %2604 = vmatprep.mubr.bf16.mxu0 0
      %2605 = vmatmul.mubr.bf16.gmra.mrb[0].mxu0 %v391
      %v2606 = vpop.f32.mrb[0].mxu0
      %v2607 = vadd.f32 0.0, %v2606
      %v2608 = vpop.f32.mrb[0].mxu0
      %v2609 = vpop.f32.mrb[0].mxu0
      %v2610 = vadd.f32 0.0, %v2609
      %v2611 = vpop.f32.mrb[0].mxu0
      %2612 = vmatprep.mubr.bf16.mxu0 0
      %2613 = vmatmul.mubr.bf16.gmra.mrb[0].mxu0 %v394
      %v2614 = vpop.f32.mrb[0].mxu0
      %v2615 = vadd.f32 0.0, %v2614
      %v2616 = vpop.f32.mrb[0].mxu0
      %v2617 = vpop.f32.mrb[0].mxu0
      %v2618 = vadd.f32 0.0, %v2617
      %v2619 = vpop.f32.mrb[0].mxu0
      %2620 = vmatprep.mubr.bf16.mxu0 0
      %2621 = vmatmul.mubr.bf16.gmra.mrb[0].mxu0 %v397
      %v2622 = vpop.f32.mrb[0].mxu0
      %v2623 = vadd.f32 0.0, %v2622
      %v2624 = vpop.f32.mrb[0].mxu0
      %v2625 = vpop.f32.mrb[0].mxu0
      %v2626 = vadd.f32 0.0, %v2625
      %v2627 = vpop.f32.mrb[0].mxu0
      %2628 = vmatprep.mubr.bf16.mxu0 0
      %2629 = vmatmul.mubr.bf16.gmra.mrb[0].mxu0 %v400
      %v2630 = vpop.f32.mrb[0].mxu0
      %v2631 = vadd.f32 0.0, %v2630
      %v2632 = vpop.f32.mrb[0].mxu0
      %v2633 = vpop.f32.mrb[0].mxu0
      %v2634 = vadd.f32 0.0, %v2633
      %v2635 = vpop.f32.mrb[0].mxu0
      %2636 = vdwg.mxu0
      %2647 = vrot.lane.b32.xlu0 %v2599, 96
      %v2648 = vpop.permute.xlu0 %2647
      %2649 = vrot.lane.b32.xlu0 %v2602, 96
      %v2650 = vpop.permute.xlu0 %2649
      %2651 = vrot.lane.b32.xlu0 %v2607, 96
      %v2652 = vpop.permute.xlu0 %2651
      %2653 = vrot.lane.b32.xlu0 %v2610, 96
      %v2654 = vpop.permute.xlu0 %2653
      %2655 = vrot.lane.b32.xlu0 %v2615, 96
      %v2656 = vpop.permute.xlu0 %2655
      %2657 = vrot.lane.b32.xlu0 %v2618, 96
      %v2658 = vpop.permute.xlu0 %2657
      %2659 = vrot.lane.b32.xlu0 %v2623, 96
      %v2660 = vpop.permute.xlu0 %2659
      %2661 = vrot.lane.b32.xlu0 %v2626, 96
      %v2662 = vpop.permute.xlu0 %2661
      %2663 = vrot.lane.b32.xlu0 %v2631, 96
      %v2664 = vpop.permute.xlu0 %2663
      %2665 = vrot.lane.b32.xlu0 %v2634, 96
      %v2666 = vpop.permute.xlu0 %2665
      %v2677 = vmax.f32 %v2599, %v2648
      %v2678 = vmax.f32 %v2602, %v2650
      %v2679 = vmax.f32 %v2607, %v2652
      %v2680 = vmax.f32 %v2610, %v2654
      %v2681 = vmax.f32 %v2615, %v2656
      %v2682 = vmax.f32 %v2618, %v2658
      %v2683 = vmax.f32 %v2623, %v2660
      %v2684 = vmax.f32 %v2626, %v2662
      %v2685 = vmax.f32 %v2631, %v2664
      %v2686 = vmax.f32 %v2634, %v2666
      %v2687 = vadd.f32 %v2677, %v533
      %v2688 = vadd.f32 %v2678, %v533
      %v2689 = vadd.f32 %v2679, %v533
      %v2690 = vadd.f32 %v2680, %v533
      %v2691 = vadd.f32 %v2681, %v533
      %v2692 = vadd.f32 %v2682, %v533
      %v2693 = vadd.f32 %v2683, %v533
      %v2694 = vadd.f32 %v2684, %v533
      %v2695 = vadd.f32 %v2685, %v533
      %v2696 = vadd.f32 %v2686, %v533
      %v2697 = vmax.f32 %v2687, 0.0
      %v2698 = vmax.f32 %v2688, 0.0
      %v2699 = vmax.f32 %v2689, 0.0
      %v2700 = vmax.f32 %v2690, 0.0
      %v2701 = vmax.f32 %v2691, 0.0
      %v2702 = vmax.f32 %v2692, 0.0
      %v2703 = vmax.f32 %v2693, 0.0
      %v2704 = vmax.f32 %v2694, 0.0
      %v2705 = vmax.f32 %v2695, 0.0
      %v2706 = vmax.f32 %v2696, 0.0
      %v2717 = vrot.slane %v2697, 1
      %v2718 = vrot.slane %v2698, 1
      %v2719 = vsel %vm565, %v2717, %v2718
      %v2720 = vrot.slane %v2699, 1
      %v2721 = vsel %vm565, %v2718, %v2720
      %v2722 = vrot.slane %v2700, 1
      %v2723 = vsel %vm565, %v2720, %v2722
      %v2724 = vrot.slane %v2701, 1
      %v2725 = vsel %vm565, %v2722, %v2724
      %v2726 = vrot.slane %v2702, 1
      %v2727 = vsel %vm565, %v2724, %v2726
      %v2728 = vrot.slane %v2703, 1
      %v2729 = vsel %vm565, %v2726, %v2728
      %v2730 = vrot.slane %v2704, 1
      %v2731 = vsel %vm565, %v2728, %v2730
      %v2732 = vrot.slane %v2705, 1
      %v2733 = vsel %vm565, %v2730, %v2732
      %v2734 = vrot.slane %v2706, 1
      %v2735 = vsel %vm565, %v2732, %v2734
      %v2746 = vmax.f32 %v2697, %v2719
      %v2747 = vmax.f32 %v2698, %v2721
      %v2748 = vmax.f32 %v2699, %v2723
      %v2749 = vmax.f32 %v2700, %v2725
      %v2750 = vmax.f32 %v2701, %v2727
      %v2751 = vmax.f32 %v2702, %v2729
      %v2752 = vmax.f32 %v2703, %v2731
      %v2753 = vmax.f32 %v2704, %v2733
      %v2754 = vmax.f32 %v2705, %v2735
      %v2755 = vmax.f32 %v2706, %v2734
      %v2756 = vpack.c.bf16 %v2747, %v2746
      %v2757 = vpack.c.bf16 %v2749, %v2748
      %v2758 = vpack.c.bf16 %v2751, %v2750
      %v2759 = vpack.c.bf16 %v2753, %v2752
      %v2760 = vpack.c.bf16 %v2755, %v2754
      %v2762 = vsel %vm402, %v2760, 0
      %2764 = vmatprep.subr.bf16.mxu0 0
      %2765 = vmatpush1.bf16.msra.mxu0 %v2756
      %2766 = vmatprep.subr.bf16.mxu0 0
      %2767 = vmatpush1.bf16.msra.mxu0 %v2757
      %2768 = vmatprep.subr.bf16.mxu0 0
      %2769 = vmatpush1.bf16.msra.mxu0 %v2758
      %2770 = vmatprep.subr.bf16.mxu0 0
      %2771 = vmatpush1.bf16.msra.mxu0 %v2759
      %2772 = vmatprep.subr.bf16.mxu0 0
      %2773 = vmatpush1.bf16.msra.mxu0 %v2762
      %2774 = vmatprep.subr.bf16.mxu0 0
      %2775 = vmatpush1.bf16.msra.mxu0 0
      %2776 = vmatprep.subr.bf16.mxu0 0
      %2777 = vmatpush1.bf16.msra.mxu0 0
      %2778 = vmatprep.subr.bf16.mxu0 0
      %2779 = vmatpush1.bf16.msra.mxu0 0
      %2780 = vmatprep.subr.bf16.mxu0 0
      %2781 = vmatpush1.bf16.msra.mxu0 0
      %2782 = vmatprep.subr.bf16.mxu0 0
      %2783 = vmatpush1.bf16.msra.mxu0 0
      %2784 = vmatprep.subr.bf16.mxu0 0
      %2785 = vmatpush1.bf16.msra.mxu0 0
      %2786 = vmatprep.subr.bf16.mxu0 0
      %2787 = vmatpush1.bf16.msra.mxu0 0
      %2788 = vmatprep.subr.bf16.mxu0 0
      %2789 = vmatpush1.bf16.msra.mxu0 0
      %2790 = vmatprep.subr.bf16.mxu0 0
      %2791 = vmatpush1.bf16.msra.mxu0 0
      %2792 = vmatprep.subr.bf16.mxu0 0
      %2793 = vmatpush1.bf16.msra.mxu0 0
      %2794 = vmatprep.subr.bf16.mxu0 0
      %2795 = vmatpush1.bf16.msra.mxu0 0
      %2796 = vmatprep.mubr.bf16.mxu0 0
      %2797 = vmatmul.mubr.bf16.gmra.mrb[0].mxu0 %v625
      %v2798 = vpop.f32.mrb[0].mxu0
      %v2799 = vadd.f32 0.0, %v2798
      %v2800 = vpop.f32.mrb[0].mxu0
      %v2801 = vpop.f32.mrb[0].mxu0
      %v2802 = vadd.f32 0.0, %v2801
      %v2803 = vpop.f32.mrb[0].mxu0
      %2804 = vmatprep.mubr.bf16.mxu0 0
      %2805 = vmatmul.mubr.bf16.gmra.mrb[0].mxu0 %v628
      %v2806 = vpop.f32.mrb[0].mxu0
      %v2807 = vadd.f32 0.0, %v2806
      %v2808 = vpop.f32.mrb[0].mxu0
      %v2809 = vpop.f32.mrb[0].mxu0
      %v2810 = vadd.f32 0.0, %v2809
      %v2811 = vpop.f32.mrb[0].mxu0
      %2812 = vmatprep.mubr.bf16.mxu0 0
      %2813 = vmatmul.mubr.bf16.gmra.mrb[0].mxu0 %v631
      %v2814 = vpop.f32.mrb[0].mxu0
      %v2815 = vadd.f32 0.0, %v2814
      %v2816 = vpop.f32.mrb[0].mxu0
      %v2817 = vpop.f32.mrb[0].mxu0
      %v2818 = vpop.f32.mrb[0].mxu0
      %2819 = vdwg.mxu0
      %v2825 = vrot.slane %v2799, 7
      %v2826 = vrot.slane %v2802, 7
      %v2827 = vsel %vm697, %v2825, %v2826
      %v2828 = vrot.slane %v2807, 7
      %v2829 = vsel %vm697, %v2826, %v2828
      %v2830 = vrot.slane %v2810, 7
      %v2831 = vsel %vm697, %v2828, %v2830
      %v2832 = vrot.slane %v2815, 7
      %v2833 = vsel %vm697, %v2830, %v2832
      %v2839 = vsel %vm697, 0.0, %v2825
      %v2840 = vrot.slane %v2799, 1
      %v2841 = vrot.slane %v2802, 1
      %v2842 = vsel %vm565, %v2840, %v2841
      %v2843 = vrot.slane %v2807, 1
      %v2844 = vsel %vm565, %v2841, %v2843
      %v2845 = vrot.slane %v2810, 1
      %v2846 = vsel %vm565, %v2843, %v2845
      %v2847 = vrot.slane %v2815, 1
      %v2848 = vsel %vm565, %v2845, %v2847
      %v2854 = vsel %vm727, %v2847, 0.0
      %v2855 = vpack.c.bf16 %v2827, %v2839
      %v2856 = vpack.c.bf16 %v2831, %v2829
      %v2857 = vpack.c.bf16 %v2833, %v2833
      %v2861 = vunpack.c.l.b16 %v2855
      %v2862 = vunpack.c.h.b16 %v2855
      %v2863 = vunpack.c.l.b16 %v2856
      %v2864 = vunpack.c.h.b16 %v2856
      %v2865 = vunpack.c.l.b16 %v2857
      %v2866 = vpack.c.b16 %v2861, %v2861
      %v2867 = vpack.c.b16 %v2862, %v2862
      %v2868 = vpack.c.b16 %v2863, %v2863
      %v2869 = vpack.c.b16 %v2864, %v2864
      %v2870 = vpack.c.b16 %v2865, %v2865
      %2876 = vst.msk [vmem:[#allocation2 + $0x18] sm:$0xf] %vm750, %v2866
      %2877 = vst.msk [vmem:[#allocation2 + $0x44] sm:$0xf] %vm750, %v2867
      %2878 = vst.msk [vmem:[#allocation2 + $0x70] sm:$0xf] %vm750, %v2868
      %2879 = vst.msk [vmem:[#allocation2 + $0x9c] sm:$0xf] %vm750, %v2869
      %2880 = vst.msk [vmem:[#allocation2 + $0xc8] sm:$0x7] %vm755, %v2870
      %v2881 = vpack.c.bf16 %v2802, %v2799
      %v2882 = vpack.c.bf16 %v2810, %v2807
      %v2883 = vpack.c.bf16 %v2815, %v2815
      %v2887 = vunpack.c.l.b16 %v2881
      %v2888 = vunpack.c.h.b16 %v2881
      %v2889 = vunpack.c.l.b16 %v2882
      %v2890 = vunpack.c.h.b16 %v2882
      %v2891 = vunpack.c.l.b16 %v2883
      %v2892 = vpack.c.b16 %v2887, %v2887
      %v2893 = vpack.c.b16 %v2888, %v2888
      %v2894 = vpack.c.b16 %v2889, %v2889
      %v2895 = vpack.c.b16 %v2890, %v2890
      %v2896 = vpack.c.b16 %v2891, %v2891
      %2897 = vrot.lane.b32.xlu0 %v2892, 32
      %v2898 = vpop.permute.xlu0 %2897
      %2899 = vrot.lane.b32.xlu0 %v2893, 32
      %v2900 = vpop.permute.xlu0 %2899
      %2901 = vrot.lane.b32.xlu0 %v2894, 32
      %v2902 = vpop.permute.xlu0 %2901
      %2903 = vrot.lane.b32.xlu0 %v2895, 32
      %v2904 = vpop.permute.xlu0 %2903
      %2905 = vrot.lane.b32.xlu0 %v2896, 32
      %v2906 = vpop.permute.xlu0 %2905
      %2912 = vst.msk [vmem:[#allocation2 + $0x18] sm:$0xf] %vm788, %v2898
      %2913 = vst.msk [vmem:[#allocation2 + $0x44] sm:$0xf] %vm788, %v2900
      %2914 = vst.msk [vmem:[#allocation2 + $0x70] sm:$0xf] %vm788, %v2902
      %2915 = vst.msk [vmem:[#allocation2 + $0x9c] sm:$0xf] %vm788, %v2904
      %2916 = vst.msk [vmem:[#allocation2 + $0xc8] sm:$0x7] %vm793, %v2906
      %v2917 = vpack.c.bf16 %v2844, %v2842
      %v2918 = vpack.c.bf16 %v2848, %v2846
      %v2919 = vpack.c.bf16 %v2854, %v2854
      %v2923 = vunpack.c.l.b16 %v2917
      %v2924 = vunpack.c.h.b16 %v2917
      %v2925 = vunpack.c.l.b16 %v2918
      %v2926 = vunpack.c.h.b16 %v2918
      %v2927 = vunpack.c.l.b16 %v2919
      %v2928 = vpack.c.b16 %v2923, %v2923
      %v2929 = vpack.c.b16 %v2924, %v2924
      %v2930 = vpack.c.b16 %v2925, %v2925
      %v2931 = vpack.c.b16 %v2926, %v2926
      %v2932 = vpack.c.b16 %v2927, %v2927
      %2933 = vrot.lane.b32.xlu0 %v2928, 64
      %v2934 = vpop.permute.xlu0 %2933
      %2935 = vrot.lane.b32.xlu0 %v2929, 64
      %v2936 = vpop.permute.xlu0 %2935
      %2937 = vrot.lane.b32.xlu0 %v2930, 64
      %v2938 = vpop.permute.xlu0 %2937
      %2939 = vrot.lane.b32.xlu0 %v2931, 64
      %v2940 = vpop.permute.xlu0 %2939
      %2941 = vrot.lane.b32.xlu0 %v2932, 64
      %v2942 = vpop.permute.xlu0 %2941
      %2948 = vst.msk [vmem:[#allocation2 + $0x18] sm:$0xf] %vm826, %v2934
      %2949 = vst.msk [vmem:[#allocation2 + $0x44] sm:$0xf] %vm826, %v2936
      %2950 = vst.msk [vmem:[#allocation2 + $0x70] sm:$0xf] %vm826, %v2938
      %2951 = vst.msk [vmem:[#allocation2 + $0x9c] sm:$0xf] %vm826, %v2940
      %2952 = vst.msk [vmem:[#allocation2 + $0xc8] sm:$0x7] %vm831, %v2942
      %s2953 = scalar_lea.vmem %s1, 192
      %v2954 = vld [vmem:[%s2953] sm:$0xf]
      %v2955 = vld [vmem:[%s2953 + $0x4] sm:$0xf]
      %v2956 = vld [vmem:[%s2953 + $0x8] sm:$0xf]
      %v2957 = vld [vmem:[%s2953 + $0xc] sm:$0xf]
      %v2958 = vld [vmem:[%s2953 + $0x10] sm:$0xf]
      %v2959 = vld [vmem:[%s2953 + $0x14] sm:$0xf]
      %v2960 = vld [vmem:[%s2953 + $0x18] sm:$0xf]
      %v2961 = vld [vmem:[%s2953 + $0x1c] sm:$0x3]
      %v2970 = vunpack.c.l.b16 %v2954
      %v2971 = vunpack.c.l.b16 %v2955
      %v2972 = vunpack.c.l.b16 %v2956
      %v2973 = vunpack.c.l.b16 %v2957
      %v2974 = vunpack.c.l.b16 %v2958
      %v2975 = vunpack.c.l.b16 %v2959
      %v2976 = vunpack.c.l.b16 %v2960
      %v2977 = vunpack.c.l.b16 %v2961
      %v2978 = vpack.c.b16 %v2971, %v2970
      %v2979 = vpack.c.b16 %v2973, %v2972
      %v2980 = vpack.c.b16 %v2975, %v2974
      %v2981 = vpack.c.b16 %v2977, %v2976
      %v2986 = vsel %vm402, %v2981, 0
      %2988 = vmatprep.subr.bf16.mxu0 0
      %2989 = vmatpush1.bf16.msra.mxu0 %v2978
      %2990 = vmatprep.subr.bf16.mxu0 0
      %2991 = vmatpush1.bf16.msra.mxu0 %v2979
      %2992 = vmatprep.subr.bf16.mxu0 0
      %2993 = vmatpush1.bf16.msra.mxu0 %v2980
      %2994 = vmatprep.subr.bf16.mxu0 0
      %2995 = vmatpush1.bf16.msra.mxu0 %v2986
      %2996 = vmatprep.subr.bf16.mxu0 0
      %2997 = vmatpush1.bf16.msra.mxu0 0
      %2998 = vmatprep.subr.bf16.mxu0 0
      %2999 = vmatpush1.bf16.msra.mxu0 0
      %3000 = vmatprep.subr.bf16.mxu0 0
      %3001 = vmatpush1.bf16.msra.mxu0 0
      %3002 = vmatprep.subr.bf16.mxu0 0
      %3003 = vmatpush1.bf16.msra.mxu0 0
      %3004 = vmatprep.subr.bf16.mxu0 0
      %3005 = vmatpush1.bf16.msra.mxu0 0
      %3006 = vmatprep.subr.bf16.mxu0 0
      %3007 = vmatpush1.bf16.msra.mxu0 0
      %3008 = vmatprep.subr.bf16.mxu0 0
      %3009 = vmatpush1.bf16.msra.mxu0 0
      %3010 = vmatprep.subr.bf16.mxu0 0
      %3011 = vmatpush1.bf16.msra.mxu0 0
      %3012 = vmatprep.subr.bf16.mxu0 0
      %3013 = vmatpush1.bf16.msra.mxu0 0
      %3014 = vmatprep.subr.bf16.mxu0 0
      %3015 = vmatpush1.bf16.msra.mxu0 0
      %3016 = vmatprep.subr.bf16.mxu0 0
      %3017 = vmatpush1.bf16.msra.mxu0 0
      %3018 = vmatprep.subr.bf16.mxu0 0
      %3019 = vmatpush1.bf16.msra.mxu0 0
      %3020 = vmatprep.mubr.bf16.mxu0 0
      %3021 = vmatmul.mubr.bf16.gmra.mrb[0].mxu0 %v388
      %v3022 = vpop.f32.mrb[0].mxu0
      %v3023 = vadd.f32 0.0, %v3022
      %v3024 = vpop.f32.mrb[0].mxu0
      %v3025 = vpop.f32.mrb[0].mxu0
      %v3026 = vadd.f32 0.0, %v3025
      %v3027 = vpop.f32.mrb[0].mxu0
      %3028 = vmatprep.mubr.bf16.mxu0 0
      %3029 = vmatmul.mubr.bf16.gmra.mrb[0].mxu0 %v391
      %v3030 = vpop.f32.mrb[0].mxu0
      %v3031 = vadd.f32 0.0, %v3030
      %v3032 = vpop.f32.mrb[0].mxu0
      %v3033 = vpop.f32.mrb[0].mxu0
      %v3034 = vadd.f32 0.0, %v3033
      %v3035 = vpop.f32.mrb[0].mxu0
      %3036 = vmatprep.mubr.bf16.mxu0 0
      %3037 = vmatmul.mubr.bf16.gmra.mrb[0].mxu0 %v394
      %v3038 = vpop.f32.mrb[0].mxu0
      %v3039 = vadd.f32 0.0, %v3038
      %v3040 = vpop.f32.mrb[0].mxu0
      %v3041 = vpop.f32.mrb[0].mxu0
      %v3042 = vadd.f32 0.0, %v3041
      %v3043 = vpop.f32.mrb[0].mxu0
      %3044 = vmatprep.mubr.bf16.mxu0 0
      %3045 = vmatmul.mubr.bf16.gmra.mrb[0].mxu0 %v397
      %v3046 = vpop.f32.mrb[0].mxu0
      %v3047 = vadd.f32 0.0, %v3046
      %v3048 = vpop.f32.mrb[0].mxu0
      %v3049 = vpop.f32.mrb[0].mxu0
      %v3050 = vadd.f32 0.0, %v3049
      %v3051 = vpop.f32.mrb[0].mxu0
      %3052 = vmatprep.mubr.bf16.mxu0 0
      %3053 = vmatmul.mubr.bf16.gmra.mrb[0].mxu0 %v400
      %v3054 = vpop.f32.mrb[0].mxu0
      %v3055 = vadd.f32 0.0, %v3054
      %v3056 = vpop.f32.mrb[0].mxu0
      %v3057 = vpop.f32.mrb[0].mxu0
      %v3058 = vadd.f32 0.0, %v3057
      %v3059 = vpop.f32.mrb[0].mxu0
      %3060 = vdwg.mxu0
      %3071 = vrot.lane.b32.xlu0 %v3023, 96
      %v3072 = vpop.permute.xlu0 %3071
      %3073 = vrot.lane.b32.xlu0 %v3026, 96
      %v3074 = vpop.permute.xlu0 %3073
      %3075 = vrot.lane.b32.xlu0 %v3031, 96
      %v3076 = vpop.permute.xlu0 %3075
      %3077 = vrot.lane.b32.xlu0 %v3034, 96
      %v3078 = vpop.permute.xlu0 %3077
      %3079 = vrot.lane.b32.xlu0 %v3039, 96
      %v3080 = vpop.permute.xlu0 %3079
      %3081 = vrot.lane.b32.xlu0 %v3042, 96
      %v3082 = vpop.permute.xlu0 %3081
      %3083 = vrot.lane.b32.xlu0 %v3047, 96
      %v3084 = vpop.permute.xlu0 %3083
      %3085 = vrot.lane.b32.xlu0 %v3050, 96
      %v3086 = vpop.permute.xlu0 %3085
      %3087 = vrot.lane.b32.xlu0 %v3055, 96
      %v3088 = vpop.permute.xlu0 %3087
      %3089 = vrot.lane.b32.xlu0 %v3058, 96
      %v3090 = vpop.permute.xlu0 %3089
      %v3101 = vmax.f32 %v3023, %v3072
      %v3102 = vmax.f32 %v3026, %v3074
      %v3103 = vmax.f32 %v3031, %v3076
      %v3104 = vmax.f32 %v3034, %v3078
      %v3105 = vmax.f32 %v3039, %v3080
      %v3106 = vmax.f32 %v3042, %v3082
      %v3107 = vmax.f32 %v3047, %v3084
      %v3108 = vmax.f32 %v3050, %v3086
      %v3109 = vmax.f32 %v3055, %v3088
      %v3110 = vmax.f32 %v3058, %v3090
      %v3111 = vadd.f32 %v3101, %v533
      %v3112 = vadd.f32 %v3102, %v533
      %v3113 = vadd.f32 %v3103, %v533
      %v3114 = vadd.f32 %v3104, %v533
      %v3115 = vadd.f32 %v3105, %v533
      %v3116 = vadd.f32 %v3106, %v533
      %v3117 = vadd.f32 %v3107, %v533
      %v3118 = vadd.f32 %v3108, %v533
      %v3119 = vadd.f32 %v3109, %v533
      %v3120 = vadd.f32 %v3110, %v533
      %v3121 = vmax.f32 %v3111, 0.0
      %v3122 = vmax.f32 %v3112, 0.0
      %v3123 = vmax.f32 %v3113, 0.0
      %v3124 = vmax.f32 %v3114, 0.0
      %v3125 = vmax.f32 %v3115, 0.0
      %v3126 = vmax.f32 %v3116, 0.0
      %v3127 = vmax.f32 %v3117, 0.0
      %v3128 = vmax.f32 %v3118, 0.0
      %v3129 = vmax.f32 %v3119, 0.0
      %v3130 = vmax.f32 %v3120, 0.0
      %v3141 = vrot.slane %v3121, 1
      %v3142 = vrot.slane %v3122, 1
      %v3143 = vsel %vm565, %v3141, %v3142
      %v3144 = vrot.slane %v3123, 1
      %v3145 = vsel %vm565, %v3142, %v3144
      %v3146 = vrot.slane %v3124, 1
      %v3147 = vsel %vm565, %v3144, %v3146
      %v3148 = vrot.slane %v3125, 1
      %v3149 = vsel %vm565, %v3146, %v3148
      %v3150 = vrot.slane %v3126, 1
      %v3151 = vsel %vm565, %v3148, %v3150
      %v3152 = vrot.slane %v3127, 1
      %v3153 = vsel %vm565, %v3150, %v3152
      %v3154 = vrot.slane %v3128, 1
      %v3155 = vsel %vm565, %v3152, %v3154
      %v3156 = vrot.slane %v3129, 1
      %v3157 = vsel %vm565, %v3154, %v3156
      %v3158 = vrot.slane %v3130, 1
      %v3159 = vsel %vm565, %v3156, %v3158
      %v3170 = vmax.f32 %v3121, %v3143
      %v3171 = vmax.f32 %v3122, %v3145
      %v3172 = vmax.f32 %v3123, %v3147
      %v3173 = vmax.f32 %v3124, %v3149
      %v3174 = vmax.f32 %v3125, %v3151
      %v3175 = vmax.f32 %v3126, %v3153
      %v3176 = vmax.f32 %v3127, %v3155
      %v3177 = vmax.f32 %v3128, %v3157
      %v3178 = vmax.f32 %v3129, %v3159
      %v3179 = vmax.f32 %v3130, %v3158
      %v3180 = vpack.c.bf16 %v3171, %v3170
      %v3181 = vpack.c.bf16 %v3173, %v3172
      %v3182 = vpack.c.bf16 %v3175, %v3174
      %v3183 = vpack.c.bf16 %v3177, %v3176
      %v3184 = vpack.c.bf16 %v3179, %v3178
      %v3186 = vsel %vm402, %v3184, 0
      %3188 = vmatprep.subr.bf16.mxu0 0
      %3189 = vmatpush1.bf16.msra.mxu0 %v3180
      %3190 = vmatprep.subr.bf16.mxu0 0
      %3191 = vmatpush1.bf16.msra.mxu0 %v3181
      %3192 = vmatprep.subr.bf16.mxu0 0
      %3193 = vmatpush1.bf16.msra.mxu0 %v3182
      %3194 = vmatprep.subr.bf16.mxu0 0
      %3195 = vmatpush1.bf16.msra.mxu0 %v3183
      %3196 = vmatprep.subr.bf16.mxu0 0
      %3197 = vmatpush1.bf16.msra.mxu0 %v3186
      %3198 = vmatprep.subr.bf16.mxu0 0
      %3199 = vmatpush1.bf16.msra.mxu0 0
      %3200 = vmatprep.subr.bf16.mxu0 0
      %3201 = vmatpush1.bf16.msra.mxu0 0
      %3202 = vmatprep.subr.bf16.mxu0 0
      %3203 = vmatpush1.bf16.msra.mxu0 0
      %3204 = vmatprep.subr.bf16.mxu0 0
      %3205 = vmatpush1.bf16.msra.mxu0 0
      %3206 = vmatprep.subr.bf16.mxu0 0
      %3207 = vmatpush1.bf16.msra.mxu0 0
      %3208 = vmatprep.subr.bf16.mxu0 0
      %3209 = vmatpush1.bf16.msra.mxu0 0
      %3210 = vmatprep.subr.bf16.mxu0 0
      %3211 = vmatpush1.bf16.msra.mxu0 0
      %3212 = vmatprep.subr.bf16.mxu0 0
      %3213 = vmatpush1.bf16.msra.mxu0 0
      %3214 = vmatprep.subr.bf16.mxu0 0
      %3215 = vmatpush1.bf16.msra.mxu0 0
      %3216 = vmatprep.subr.bf16.mxu0 0
      %3217 = vmatpush1.bf16.msra.mxu0 0
      %3218 = vmatprep.subr.bf16.mxu0 0
      %3219 = vmatpush1.bf16.msra.mxu0 0
      %3220 = vmatprep.mubr.bf16.mxu0 0
      %3221 = vmatmul.mubr.bf16.gmra.mrb[0].mxu0 %v625
      %v3222 = vpop.f32.mrb[0].mxu0
      %v3223 = vadd.f32 0.0, %v3222
      %v3224 = vpop.f32.mrb[0].mxu0
      %v3225 = vpop.f32.mrb[0].mxu0
      %v3226 = vadd.f32 0.0, %v3225
      %v3227 = vpop.f32.mrb[0].mxu0
      %3228 = vmatprep.mubr.bf16.mxu0 0
      %3229 = vmatmul.mubr.bf16.gmra.mrb[0].mxu0 %v628
      %v3230 = vpop.f32.mrb[0].mxu0
      %v3231 = vadd.f32 0.0, %v3230
      %v3232 = vpop.f32.mrb[0].mxu0
      %v3233 = vpop.f32.mrb[0].mxu0
      %v3234 = vadd.f32 0.0, %v3233
      %v3235 = vpop.f32.mrb[0].mxu0
      %3236 = vmatprep.mubr.bf16.mxu0 0
      %3237 = vmatmul.mubr.bf16.gmra.mrb[0].mxu0 %v631
      %v3238 = vpop.f32.mrb[0].mxu0
      %v3239 = vadd.f32 0.0, %v3238
      %v3240 = vpop.f32.mrb[0].mxu0
      %v3241 = vpop.f32.mrb[0].mxu0
      %v3242 = vpop.f32.mrb[0].mxu0
      %3243 = vdwg.mxu0
      %v3249 = vrot.slane %v3223, 7
      %v3250 = vrot.slane %v3226, 7
      %v3251 = vsel %vm697, %v3249, %v3250
      %v3252 = vrot.slane %v3231, 7
      %v3253 = vsel %vm697, %v3250, %v3252
      %v3254 = vrot.slane %v3234, 7
      %v3255 = vsel %vm697, %v3252, %v3254
      %v3256 = vrot.slane %v3239, 7
      %v3257 = vsel %vm697, %v3254, %v3256
      %v3263 = vsel %vm697, 0.0, %v3249
      %v3264 = vrot.slane %v3223, 1
      %v3265 = vrot.slane %v3226, 1
      %v3266 = vsel %vm565, %v3264, %v3265
      %v3267 = vrot.slane %v3231, 1
      %v3268 = vsel %vm565, %v3265, %v3267
      %v3269 = vrot.slane %v3234, 1
      %v3270 = vsel %vm565, %v3267, %v3269
      %v3271 = vrot.slane %v3239, 1
      %v3272 = vsel %vm565, %v3269, %v3271
      %v3278 = vsel %vm727, %v3271, 0.0
      %v3279 = vpack.c.bf16 %v3251, %v3263
      %v3280 = vpack.c.bf16 %v3255, %v3253
      %v3281 = vpack.c.bf16 %v3257, %v3257
      %v3285 = vunpack.c.l.b16 %v3279
      %v3286 = vunpack.c.h.b16 %v3279
      %v3287 = vunpack.c.l.b16 %v3280
      %v3288 = vunpack.c.h.b16 %v3280
      %v3289 = vunpack.c.l.b16 %v3281
      %v3290 = vpack.c.b16 %v3285, %v3285
      %v3291 = vpack.c.b16 %v3286, %v3286
      %v3292 = vpack.c.b16 %v3287, %v3287
      %v3293 = vpack.c.b16 %v3288, %v3288
      %v3294 = vpack.c.b16 %v3289, %v3289
      %3300 = vst.msk [vmem:[#allocation2 + $0x1c] sm:$0xf] %vm750, %v3290
      %3301 = vst.msk [vmem:[#allocation2 + $0x48] sm:$0xf] %vm750, %v3291
      %3302 = vst.msk [vmem:[#allocation2 + $0x74] sm:$0xf] %vm750, %v3292
      %3303 = vst.msk [vmem:[#allocation2 + $0xa0] sm:$0xf] %vm750, %v3293
      %3304 = vst.msk [vmem:[#allocation2 + $0xcc] sm:$0x7] %vm755, %v3294
      %v3305 = vpack.c.bf16 %v3226, %v3223
      %v3306 = vpack.c.bf16 %v3234, %v3231
      %v3307 = vpack.c.bf16 %v3239, %v3239
      %v3311 = vunpack.c.l.b16 %v3305
      %v3312 = vunpack.c.h.b16 %v3305
      %v3313 = vunpack.c.l.b16 %v3306
      %v3314 = vunpack.c.h.b16 %v3306
      %v3315 = vunpack.c.l.b16 %v3307
      %v3316 = vpack.c.b16 %v3311, %v3311
      %v3317 = vpack.c.b16 %v3312, %v3312
      %v3318 = vpack.c.b16 %v3313, %v3313
      %v3319 = vpack.c.b16 %v3314, %v3314
      %v3320 = vpack.c.b16 %v3315, %v3315
      %3321 = vrot.lane.b32.xlu0 %v3316, 32
      %v3322 = vpop.permute.xlu0 %3321
      %3323 = vrot.lane.b32.xlu0 %v3317, 32
      %v3324 = vpop.permute.xlu0 %3323
      %3325 = vrot.lane.b32.xlu0 %v3318, 32
      %v3326 = vpop.permute.xlu0 %3325
      %3327 = vrot.lane.b32.xlu0 %v3319, 32
      %v3328 = vpop.permute.xlu0 %3327
      %3329 = vrot.lane.b32.xlu0 %v3320, 32
      %v3330 = vpop.permute.xlu0 %3329
      %3336 = vst.msk [vmem:[#allocation2 + $0x1c] sm:$0xf] %vm788, %v3322
      %3337 = vst.msk [vmem:[#allocation2 + $0x48] sm:$0xf] %vm788, %v3324
      %3338 = vst.msk [vmem:[#allocation2 + $0x74] sm:$0xf] %vm788, %v3326
      %3339 = vst.msk [vmem:[#allocation2 + $0xa0] sm:$0xf] %vm788, %v3328
      %3340 = vst.msk [vmem:[#allocation2 + $0xcc] sm:$0x7] %vm793, %v3330
      %v3341 = vpack.c.bf16 %v3268, %v3266
      %v3342 = vpack.c.bf16 %v3272, %v3270
      %v3343 = vpack.c.bf16 %v3278, %v3278
      %v3347 = vunpack.c.l.b16 %v3341
      %v3348 = vunpack.c.h.b16 %v3341
      %v3349 = vunpack.c.l.b16 %v3342
      %v3350 = vunpack.c.h.b16 %v3342
      %v3351 = vunpack.c.l.b16 %v3343
      %v3352 = vpack.c.b16 %v3347, %v3347
      %v3353 = vpack.c.b16 %v3348, %v3348
      %v3354 = vpack.c.b16 %v3349, %v3349
      %v3355 = vpack.c.b16 %v3350, %v3350
      %v3356 = vpack.c.b16 %v3351, %v3351
      %3357 = vrot.lane.b32.xlu0 %v3352, 64
      %v3358 = vpop.permute.xlu0 %3357
      %3359 = vrot.lane.b32.xlu0 %v3353, 64
      %v3360 = vpop.permute.xlu0 %3359
      %3361 = vrot.lane.b32.xlu0 %v3354, 64
      %v3362 = vpop.permute.xlu0 %3361
      %3363 = vrot.lane.b32.xlu0 %v3355, 64
      %v3364 = vpop.permute.xlu0 %3363
      %3365 = vrot.lane.b32.xlu0 %v3356, 64
      %v3366 = vpop.permute.xlu0 %3365
      %3372 = vst.msk [vmem:[#allocation2 + $0x1c] sm:$0xf] %vm826, %v3358
      %3373 = vst.msk [vmem:[#allocation2 + $0x48] sm:$0xf] %vm826, %v3360
      %3374 = vst.msk [vmem:[#allocation2 + $0x74] sm:$0xf] %vm826, %v3362
      %3375 = vst.msk [vmem:[#allocation2 + $0xa0] sm:$0xf] %vm826, %v3364
      %3376 = vst.msk [vmem:[#allocation2 + $0xcc] sm:$0x7] %vm831, %v3366
      %s3377 = scalar_lea.vmem %s1, 224
      %v3378 = vld [vmem:[%s3377] sm:$0xf]
      %v3379 = vld [vmem:[%s3377 + $0x4] sm:$0xf]
      %v3380 = vld [vmem:[%s3377 + $0x8] sm:$0xf]
      %v3381 = vld [vmem:[%s3377 + $0xc] sm:$0xf]
      %v3382 = vld [vmem:[%s3377 + $0x10] sm:$0xf]
      %v3383 = vld [vmem:[%s3377 + $0x14] sm:$0xf]
      %v3384 = vld [vmem:[%s3377 + $0x18] sm:$0xf]
      %v3385 = vld [vmem:[%s3377 + $0x1c] sm:$0x3]
      %v3394 = vunpack.c.l.b16 %v3378
      %v3395 = vunpack.c.l.b16 %v3379
      %v3396 = vunpack.c.l.b16 %v3380
      %v3397 = vunpack.c.l.b16 %v3381
      %v3398 = vunpack.c.l.b16 %v3382
      %v3399 = vunpack.c.l.b16 %v3383
      %v3400 = vunpack.c.l.b16 %v3384
      %v3401 = vunpack.c.l.b16 %v3385
      %v3402 = vpack.c.b16 %v3395, %v3394
      %v3403 = vpack.c.b16 %v3397, %v3396
      %v3404 = vpack.c.b16 %v3399, %v3398
      %v3405 = vpack.c.b16 %v3401, %v3400
      %v3410 = vsel %vm402, %v3405, 0
      %3412 = vmatprep.subr.bf16.mxu0 0
      %3413 = vmatpush1.bf16.msra.mxu0 %v3402
      %3414 = vmatprep.subr.bf16.mxu0 0
      %3415 = vmatpush1.bf16.msra.mxu0 %v3403
      %3416 = vmatprep.subr.bf16.mxu0 0
      %3417 = vmatpush1.bf16.msra.mxu0 %v3404
      %3418 = vmatprep.subr.bf16.mxu0 0
      %3419 = vmatpush1.bf16.msra.mxu0 %v3410
      %3420 = vmatprep.subr.bf16.mxu0 0
      %3421 = vmatpush1.bf16.msra.mxu0 0
      %3422 = vmatprep.subr.bf16.mxu0 0
      %3423 = vmatpush1.bf16.msra.mxu0 0
      %3424 = vmatprep.subr.bf16.mxu0 0
      %3425 = vmatpush1.bf16.msra.mxu0 0
      %3426 = vmatprep.subr.bf16.mxu0 0
      %3427 = vmatpush1.bf16.msra.mxu0 0
      %3428 = vmatprep.subr.bf16.mxu0 0
      %3429 = vmatpush1.bf16.msra.mxu0 0
      %3430 = vmatprep.subr.bf16.mxu0 0
      %3431 = vmatpush1.bf16.msra.mxu0 0
      %3432 = vmatprep.subr.bf16.mxu0 0
      %3433 = vmatpush1.bf16.msra.mxu0 0
      %3434 = vmatprep.subr.bf16.mxu0 0
      %3435 = vmatpush1.bf16.msra.mxu0 0
      %3436 = vmatprep.subr.bf16.mxu0 0
      %3437 = vmatpush1.bf16.msra.mxu0 0
      %3438 = vmatprep.subr.bf16.mxu0 0
      %3439 = vmatpush1.bf16.msra.mxu0 0
      %3440 = vmatprep.subr.bf16.mxu0 0
      %3441 = vmatpush1.bf16.msra.mxu0 0
      %3442 = vmatprep.subr.bf16.mxu0 0
      %3443 = vmatpush1.bf16.msra.mxu0 0
      %3444 = vmatprep.mubr.bf16.mxu0 0
      %3445 = vmatmul.mubr.bf16.gmra.mrb[0].mxu0 %v388
      %v3446 = vpop.f32.mrb[0].mxu0
      %v3447 = vadd.f32 0.0, %v3446
      %v3448 = vpop.f32.mrb[0].mxu0
      %v3449 = vpop.f32.mrb[0].mxu0
      %v3450 = vadd.f32 0.0, %v3449
      %v3451 = vpop.f32.mrb[0].mxu0
      %3452 = vmatprep.mubr.bf16.mxu0 0
      %3453 = vmatmul.mubr.bf16.gmra.mrb[0].mxu0 %v391
      %v3454 = vpop.f32.mrb[0].mxu0
      %v3455 = vadd.f32 0.0, %v3454
      %v3456 = vpop.f32.mrb[0].mxu0
      %v3457 = vpop.f32.mrb[0].mxu0
      %v3458 = vadd.f32 0.0, %v3457
      %v3459 = vpop.f32.mrb[0].mxu0
      %3460 = vmatprep.mubr.bf16.mxu0 0
      %3461 = vmatmul.mubr.bf16.gmra.mrb[0].mxu0 %v394
      %v3462 = vpop.f32.mrb[0].mxu0
      %v3463 = vadd.f32 0.0, %v3462
      %v3464 = vpop.f32.mrb[0].mxu0
      %v3465 = vpop.f32.mrb[0].mxu0
      %v3466 = vadd.f32 0.0, %v3465
      %v3467 = vpop.f32.mrb[0].mxu0
      %3468 = vmatprep.mubr.bf16.mxu0 0
      %3469 = vmatmul.mubr.bf16.gmra.mrb[0].mxu0 %v397
      %v3470 = vpop.f32.mrb[0].mxu0
      %v3471 = vadd.f32 0.0, %v3470
      %v3472 = vpop.f32.mrb[0].mxu0
      %v3473 = vpop.f32.mrb[0].mxu0
      %v3474 = vadd.f32 0.0, %v3473
      %v3475 = vpop.f32.mrb[0].mxu0
      %3476 = vmatprep.mubr.bf16.mxu0 0
      %3477 = vmatmul.mubr.bf16.gmra.mrb[0].mxu0 %v400
      %v3478 = vpop.f32.mrb[0].mxu0
      %v3479 = vadd.f32 0.0, %v3478
      %v3480 = vpop.f32.mrb[0].mxu0
      %v3481 = vpop.f32.mrb[0].mxu0
      %v3482 = vadd.f32 0.0, %v3481
      %v3483 = vpop.f32.mrb[0].mxu0
      %3484 = vdwg.mxu0
      %3495 = vrot.lane.b32.xlu0 %v3447, 96
      %v3496 = vpop.permute.xlu0 %3495
      %3497 = vrot.lane.b32.xlu0 %v3450, 96
      %v3498 = vpop.permute.xlu0 %3497
      %3499 = vrot.lane.b32.xlu0 %v3455, 96
      %v3500 = vpop.permute.xlu0 %3499
      %3501 = vrot.lane.b32.xlu0 %v3458, 96
      %v3502 = vpop.permute.xlu0 %3501
      %3503 = vrot.lane.b32.xlu0 %v3463, 96
      %v3504 = vpop.permute.xlu0 %3503
      %3505 = vrot.lane.b32.xlu0 %v3466, 96
      %v3506 = vpop.permute.xlu0 %3505
      %3507 = vrot.lane.b32.xlu0 %v3471, 96
      %v3508 = vpop.permute.xlu0 %3507
      %3509 = vrot.lane.b32.xlu0 %v3474, 96
      %v3510 = vpop.permute.xlu0 %3509
      %3511 = vrot.lane.b32.xlu0 %v3479, 96
      %v3512 = vpop.permute.xlu0 %3511
      %3513 = vrot.lane.b32.xlu0 %v3482, 96
      %v3514 = vpop.permute.xlu0 %3513
      %v3525 = vmax.f32 %v3447, %v3496
      %v3526 = vmax.f32 %v3450, %v3498
      %v3527 = vmax.f32 %v3455, %v3500
      %v3528 = vmax.f32 %v3458, %v3502
      %v3529 = vmax.f32 %v3463, %v3504
      %v3530 = vmax.f32 %v3466, %v3506
      %v3531 = vmax.f32 %v3471, %v3508
      %v3532 = vmax.f32 %v3474, %v3510
      %v3533 = vmax.f32 %v3479, %v3512
      %v3534 = vmax.f32 %v3482, %v3514
      %v3535 = vadd.f32 %v3525, %v533
      %v3536 = vadd.f32 %v3526, %v533
      %v3537 = vadd.f32 %v3527, %v533
      %v3538 = vadd.f32 %v3528, %v533
      %v3539 = vadd.f32 %v3529, %v533
      %v3540 = vadd.f32 %v3530, %v533
      %v3541 = vadd.f32 %v3531, %v533
      %v3542 = vadd.f32 %v3532, %v533
      %v3543 = vadd.f32 %v3533, %v533
      %v3544 = vadd.f32 %v3534, %v533
      %v3545 = vmax.f32 %v3535, 0.0
      %v3546 = vmax.f32 %v3536, 0.0
      %v3547 = vmax.f32 %v3537, 0.0
      %v3548 = vmax.f32 %v3538, 0.0
      %v3549 = vmax.f32 %v3539, 0.0
      %v3550 = vmax.f32 %v3540, 0.0
      %v3551 = vmax.f32 %v3541, 0.0
      %v3552 = vmax.f32 %v3542, 0.0
      %v3553 = vmax.f32 %v3543, 0.0
      %v3554 = vmax.f32 %v3544, 0.0
      %v3565 = vrot.slane %v3545, 1
      %v3566 = vrot.slane %v3546, 1
      %v3567 = vsel %vm565, %v3565, %v3566
      %v3568 = vrot.slane %v3547, 1
      %v3569 = vsel %vm565, %v3566, %v3568
      %v3570 = vrot.slane %v3548, 1
      %v3571 = vsel %vm565, %v3568, %v3570
      %v3572 = vrot.slane %v3549, 1
      %v3573 = vsel %vm565, %v3570, %v3572
      %v3574 = vrot.slane %v3550, 1
      %v3575 = vsel %vm565, %v3572, %v3574
      %v3576 = vrot.slane %v3551, 1
      %v3577 = vsel %vm565, %v3574, %v3576
      %v3578 = vrot.slane %v3552, 1
      %v3579 = vsel %vm565, %v3576, %v3578
      %v3580 = vrot.slane %v3553, 1
      %v3581 = vsel %vm565, %v3578, %v3580
      %v3582 = vrot.slane %v3554, 1
      %v3583 = vsel %vm565, %v3580, %v3582
      %v3594 = vmax.f32 %v3545, %v3567
      %v3595 = vmax.f32 %v3546, %v3569
      %v3596 = vmax.f32 %v3547, %v3571
      %v3597 = vmax.f32 %v3548, %v3573
      %v3598 = vmax.f32 %v3549, %v3575
      %v3599 = vmax.f32 %v3550, %v3577
      %v3600 = vmax.f32 %v3551, %v3579
      %v3601 = vmax.f32 %v3552, %v3581
      %v3602 = vmax.f32 %v3553, %v3583
      %v3603 = vmax.f32 %v3554, %v3582
      %v3604 = vpack.c.bf16 %v3595, %v3594
      %v3605 = vpack.c.bf16 %v3597, %v3596
      %v3606 = vpack.c.bf16 %v3599, %v3598
      %v3607 = vpack.c.bf16 %v3601, %v3600
      %v3608 = vpack.c.bf16 %v3603, %v3602
      %v3610 = vsel %vm402, %v3608, 0
      %3612 = vmatprep.subr.bf16.mxu0 0
      %3613 = vmatpush1.bf16.msra.mxu0 %v3604
      %3614 = vmatprep.subr.bf16.mxu0 0
      %3615 = vmatpush1.bf16.msra.mxu0 %v3605
      %3616 = vmatprep.subr.bf16.mxu0 0
      %3617 = vmatpush1.bf16.msra.mxu0 %v3606
      %3618 = vmatprep.subr.bf16.mxu0 0
      %3619 = vmatpush1.bf16.msra.mxu0 %v3607
      %3620 = vmatprep.subr.bf16.mxu0 0
      %3621 = vmatpush1.bf16.msra.mxu0 %v3610
      %3622 = vmatprep.subr.bf16.mxu0 0
      %3623 = vmatpush1.bf16.msra.mxu0 0
      %3624 = vmatprep.subr.bf16.mxu0 0
      %3625 = vmatpush1.bf16.msra.mxu0 0
      %3626 = vmatprep.subr.bf16.mxu0 0
      %3627 = vmatpush1.bf16.msra.mxu0 0
      %3628 = vmatprep.subr.bf16.mxu0 0
      %3629 = vmatpush1.bf16.msra.mxu0 0
      %3630 = vmatprep.subr.bf16.mxu0 0
      %3631 = vmatpush1.bf16.msra.mxu0 0
      %3632 = vmatprep.subr.bf16.mxu0 0
      %3633 = vmatpush1.bf16.msra.mxu0 0
      %3634 = vmatprep.subr.bf16.mxu0 0
      %3635 = vmatpush1.bf16.msra.mxu0 0
      %3636 = vmatprep.subr.bf16.mxu0 0
      %3637 = vmatpush1.bf16.msra.mxu0 0
      %3638 = vmatprep.subr.bf16.mxu0 0
      %3639 = vmatpush1.bf16.msra.mxu0 0
      %3640 = vmatprep.subr.bf16.mxu0 0
      %3641 = vmatpush1.bf16.msra.mxu0 0
      %3642 = vmatprep.subr.bf16.mxu0 0
      %3643 = vmatpush1.bf16.msra.mxu0 0
      %3644 = vmatprep.mubr.bf16.mxu0 0
      %3645 = vmatmul.mubr.bf16.gmra.mrb[0].mxu0 %v625
      %v3646 = vpop.f32.mrb[0].mxu0
      %v3647 = vadd.f32 0.0, %v3646
      %v3648 = vpop.f32.mrb[0].mxu0
      %v3649 = vpop.f32.mrb[0].mxu0
      %v3650 = vadd.f32 0.0, %v3649
      %v3651 = vpop.f32.mrb[0].mxu0
      %3652 = vmatprep.mubr.bf16.mxu0 0
      %3653 = vmatmul.mubr.bf16.gmra.mrb[0].mxu0 %v628
      %v3654 = vpop.f32.mrb[0].mxu0
      %v3655 = vadd.f32 0.0, %v3654
      %v3656 = vpop.f32.mrb[0].mxu0
      %v3657 = vpop.f32.mrb[0].mxu0
      %v3658 = vadd.f32 0.0, %v3657
      %v3659 = vpop.f32.mrb[0].mxu0
      %3660 = vmatprep.mubr.bf16.mxu0 0
      %3661 = vmatmul.mubr.bf16.gmra.mrb[0].mxu0 %v631
      %v3662 = vpop.f32.mrb[0].mxu0
      %v3663 = vadd.f32 0.0, %v3662
      %v3664 = vpop.f32.mrb[0].mxu0
      %v3665 = vpop.f32.mrb[0].mxu0
      %v3666 = vpop.f32.mrb[0].mxu0
      %3667 = vdwg.mxu0
      %v3673 = vrot.slane %v3647, 7
      %v3674 = vrot.slane %v3650, 7
      %v3675 = vsel %vm697, %v3673, %v3674
      %v3676 = vrot.slane %v3655, 7
      %v3677 = vsel %vm697, %v3674, %v3676
      %v3678 = vrot.slane %v3658, 7
      %v3679 = vsel %vm697, %v3676, %v3678
      %v3680 = vrot.slane %v3663, 7
      %v3681 = vsel %vm697, %v3678, %v3680
      %v3687 = vsel %vm697, 0.0, %v3673
      %v3688 = vrot.slane %v3647, 1
      %v3689 = vrot.slane %v3650, 1
      %v3690 = vsel %vm565, %v3688, %v3689
      %v3691 = vrot.slane %v3655, 1
      %v3692 = vsel %vm565, %v3689, %v3691
      %v3693 = vrot.slane %v3658, 1
      %v3694 = vsel %vm565, %v3691, %v3693
      %v3695 = vrot.slane %v3663, 1
      %v3696 = vsel %vm565, %v3693, %v3695
      %v3702 = vsel %vm727, %v3695, 0.0
      %v3703 = vpack.c.bf16 %v3675, %v3687
      %v3704 = vpack.c.bf16 %v3679, %v3677
      %v3705 = vpack.c.bf16 %v3681, %v3681
      %v3709 = vunpack.c.l.b16 %v3703
      %v3710 = vunpack.c.h.b16 %v3703
      %v3711 = vunpack.c.l.b16 %v3704
      %v3712 = vunpack.c.h.b16 %v3704
      %v3713 = vunpack.c.l.b16 %v3705
      %v3714 = vpack.c.b16 %v3709, %v3709
      %v3715 = vpack.c.b16 %v3710, %v3710
      %v3716 = vpack.c.b16 %v3711, %v3711
      %v3717 = vpack.c.b16 %v3712, %v3712
      %v3718 = vpack.c.b16 %v3713, %v3713
      %3724 = vst.msk [vmem:[#allocation2 + $0x20] sm:$0xf] %vm750, %v3714
      %3725 = vst.msk [vmem:[#allocation2 + $0x4c] sm:$0xf] %vm750, %v3715
      %3726 = vst.msk [vmem:[#allocation2 + $0x78] sm:$0xf] %vm750, %v3716
      %3727 = vst.msk [vmem:[#allocation2 + $0xa4] sm:$0xf] %vm750, %v3717
      %3728 = vst.msk [vmem:[#allocation2 + $0xd0] sm:$0x7] %vm755, %v3718
      %v3729 = vpack.c.bf16 %v3650, %v3647
      %v3730 = vpack.c.bf16 %v3658, %v3655
      %v3731 = vpack.c.bf16 %v3663, %v3663
      %v3735 = vunpack.c.l.b16 %v3729
      %v3736 = vunpack.c.h.b16 %v3729
      %v3737 = vunpack.c.l.b16 %v3730
      %v3738 = vunpack.c.h.b16 %v3730
      %v3739 = vunpack.c.l.b16 %v3731
      %v3740 = vpack.c.b16 %v3735, %v3735
      %v3741 = vpack.c.b16 %v3736, %v3736
      %v3742 = vpack.c.b16 %v3737, %v3737
      %v3743 = vpack.c.b16 %v3738, %v3738
      %v3744 = vpack.c.b16 %v3739, %v3739
      %3745 = vrot.lane.b32.xlu0 %v3740, 32
      %v3746 = vpop.permute.xlu0 %3745
      %3747 = vrot.lane.b32.xlu0 %v3741, 32
      %v3748 = vpop.permute.xlu0 %3747
      %3749 = vrot.lane.b32.xlu0 %v3742, 32
      %v3750 = vpop.permute.xlu0 %3749
      %3751 = vrot.lane.b32.xlu0 %v3743, 32
      %v3752 = vpop.permute.xlu0 %3751
      %3753 = vrot.lane.b32.xlu0 %v3744, 32
      %v3754 = vpop.permute.xlu0 %3753
      %3760 = vst.msk [vmem:[#allocation2 + $0x20] sm:$0xf] %vm788, %v3746
      %3761 = vst.msk [vmem:[#allocation2 + $0x4c] sm:$0xf] %vm788, %v3748
      %3762 = vst.msk [vmem:[#allocation2 + $0x78] sm:$0xf] %vm788, %v3750
      %3763 = vst.msk [vmem:[#allocation2 + $0xa4] sm:$0xf] %vm788, %v3752
      %3764 = vst.msk [vmem:[#allocation2 + $0xd0] sm:$0x7] %vm793, %v3754
      %v3765 = vpack.c.bf16 %v3692, %v3690
      %v3766 = vpack.c.bf16 %v3696, %v3694
      %v3767 = vpack.c.bf16 %v3702, %v3702
      %v3771 = vunpack.c.l.b16 %v3765
      %v3772 = vunpack.c.h.b16 %v3765
      %v3773 = vunpack.c.l.b16 %v3766
      %v3774 = vunpack.c.h.b16 %v3766
      %v3775 = vunpack.c.l.b16 %v3767
      %v3776 = vpack.c.b16 %v3771, %v3771
      %v3777 = vpack.c.b16 %v3772, %v3772
      %v3778 = vpack.c.b16 %v3773, %v3773
      %v3779 = vpack.c.b16 %v3774, %v3774
      %v3780 = vpack.c.b16 %v3775, %v3775
      %3781 = vrot.lane.b32.xlu0 %v3776, 64
      %v3782 = vpop.permute.xlu0 %3781
      %3783 = vrot.lane.b32.xlu0 %v3777, 64
      %v3784 = vpop.permute.xlu0 %3783
      %3785 = vrot.lane.b32.xlu0 %v3778, 64
      %v3786 = vpop.permute.xlu0 %3785
      %3787 = vrot.lane.b32.xlu0 %v3779, 64
      %v3788 = vpop.permute.xlu0 %3787
      %3789 = vrot.lane.b32.xlu0 %v3780, 64
      %v3790 = vpop.permute.xlu0 %3789
      %3796 = vst.msk [vmem:[#allocation2 + $0x20] sm:$0xf] %vm826, %v3782
      %3797 = vst.msk [vmem:[#allocation2 + $0x4c] sm:$0xf] %vm826, %v3784
      %3798 = vst.msk [vmem:[#allocation2 + $0x78] sm:$0xf] %vm826, %v3786
      %3799 = vst.msk [vmem:[#allocation2 + $0xa4] sm:$0xf] %vm826, %v3788
      %3800 = vst.msk [vmem:[#allocation2 + $0xd0] sm:$0x7] %vm831, %v3790
      %s3801 = scalar_lea.vmem %s1, 256
      %v3802 = vld [vmem:[%s3801] sm:$0xf]
      %v3803 = vld [vmem:[%s3801 + $0x4] sm:$0xf]
      %v3804 = vld [vmem:[%s3801 + $0x8] sm:$0xf]
      %v3805 = vld [vmem:[%s3801 + $0xc] sm:$0xf]
      %v3806 = vld [vmem:[%s3801 + $0x10] sm:$0xf]
      %v3807 = vld [vmem:[%s3801 + $0x14] sm:$0xf]
      %v3808 = vld [vmem:[%s3801 + $0x18] sm:$0xf]
      %v3809 = vld [vmem:[%s3801 + $0x1c] sm:$0x3]
      %v3818 = vunpack.c.l.b16 %v3802
      %v3819 = vunpack.c.l.b16 %v3803
      %v3820 = vunpack.c.l.b16 %v3804
      %v3821 = vunpack.c.l.b16 %v3805
      %v3822 = vunpack.c.l.b16 %v3806
      %v3823 = vunpack.c.l.b16 %v3807
      %v3824 = vunpack.c.l.b16 %v3808
      %v3825 = vunpack.c.l.b16 %v3809
      %v3826 = vpack.c.b16 %v3819, %v3818
      %v3827 = vpack.c.b16 %v3821, %v3820
      %v3828 = vpack.c.b16 %v3823, %v3822
      %v3829 = vpack.c.b16 %v3825, %v3824
      %v3834 = vsel %vm402, %v3829, 0
      %3836 = vmatprep.subr.bf16.mxu0 0
      %3837 = vmatpush1.bf16.msra.mxu0 %v3826
      %3838 = vmatprep.subr.bf16.mxu0 0
      %3839 = vmatpush1.bf16.msra.mxu0 %v3827
      %3840 = vmatprep.subr.bf16.mxu0 0
      %3841 = vmatpush1.bf16.msra.mxu0 %v3828
      %3842 = vmatprep.subr.bf16.mxu0 0
      %3843 = vmatpush1.bf16.msra.mxu0 %v3834
      %3844 = vmatprep.subr.bf16.mxu0 0
      %3845 = vmatpush1.bf16.msra.mxu0 0
      %3846 = vmatprep.subr.bf16.mxu0 0
      %3847 = vmatpush1.bf16.msra.mxu0 0
      %3848 = vmatprep.subr.bf16.mxu0 0
      %3849 = vmatpush1.bf16.msra.mxu0 0
      %3850 = vmatprep.subr.bf16.mxu0 0
      %3851 = vmatpush1.bf16.msra.mxu0 0
      %3852 = vmatprep.subr.bf16.mxu0 0
      %3853 = vmatpush1.bf16.msra.mxu0 0
      %3854 = vmatprep.subr.bf16.mxu0 0
      %3855 = vmatpush1.bf16.msra.mxu0 0
      %3856 = vmatprep.subr.bf16.mxu0 0
      %3857 = vmatpush1.bf16.msra.mxu0 0
      %3858 = vmatprep.subr.bf16.mxu0 0
      %3859 = vmatpush1.bf16.msra.mxu0 0
      %3860 = vmatprep.subr.bf16.mxu0 0
      %3861 = vmatpush1.bf16.msra.mxu0 0
      %3862 = vmatprep.subr.bf16.mxu0 0
      %3863 = vmatpush1.bf16.msra.mxu0 0
      %3864 = vmatprep.subr.bf16.mxu0 0
      %3865 = vmatpush1.bf16.msra.mxu0 0
      %3866 = vmatprep.subr.bf16.mxu0 0
      %3867 = vmatpush1.bf16.msra.mxu0 0
      %3868 = vmatprep.mubr.bf16.mxu0 0
      %3869 = vmatmul.mubr.bf16.gmra.mrb[0].mxu0 %v388
      %v3870 = vpop.f32.mrb[0].mxu0
      %v3871 = vadd.f32 0.0, %v3870
      %v3872 = vpop.f32.mrb[0].mxu0
      %v3873 = vpop.f32.mrb[0].mxu0
      %v3874 = vadd.f32 0.0, %v3873
      %v3875 = vpop.f32.mrb[0].mxu0
      %3876 = vmatprep.mubr.bf16.mxu0 0
      %3877 = vmatmul.mubr.bf16.gmra.mrb[0].mxu0 %v391
      %v3878 = vpop.f32.mrb[0].mxu0
      %v3879 = vadd.f32 0.0, %v3878
      %v3880 = vpop.f32.mrb[0].mxu0
      %v3881 = vpop.f32.mrb[0].mxu0
      %v3882 = vadd.f32 0.0, %v3881
      %v3883 = vpop.f32.mrb[0].mxu0
      %3884 = vmatprep.mubr.bf16.mxu0 0
      %3885 = vmatmul.mubr.bf16.gmra.mrb[0].mxu0 %v394
      %v3886 = vpop.f32.mrb[0].mxu0
      %v3887 = vadd.f32 0.0, %v3886
      %v3888 = vpop.f32.mrb[0].mxu0
      %v3889 = vpop.f32.mrb[0].mxu0
      %v3890 = vadd.f32 0.0, %v3889
      %v3891 = vpop.f32.mrb[0].mxu0
      %3892 = vmatprep.mubr.bf16.mxu0 0
      %3893 = vmatmul.mubr.bf16.gmra.mrb[0].mxu0 %v397
      %v3894 = vpop.f32.mrb[0].mxu0
      %v3895 = vadd.f32 0.0, %v3894
      %v3896 = vpop.f32.mrb[0].mxu0
      %v3897 = vpop.f32.mrb[0].mxu0
      %v3898 = vadd.f32 0.0, %v3897
      %v3899 = vpop.f32.mrb[0].mxu0
      %3900 = vmatprep.mubr.bf16.mxu0 0
      %3901 = vmatmul.mubr.bf16.gmra.mrb[0].mxu0 %v400
      %v3902 = vpop.f32.mrb[0].mxu0
      %v3903 = vadd.f32 0.0, %v3902
      %v3904 = vpop.f32.mrb[0].mxu0
      %v3905 = vpop.f32.mrb[0].mxu0
      %v3906 = vadd.f32 0.0, %v3905
      %v3907 = vpop.f32.mrb[0].mxu0
      %3908 = vdwg.mxu0
      %3919 = vrot.lane.b32.xlu0 %v3871, 96
      %v3920 = vpop.permute.xlu0 %3919
      %3921 = vrot.lane.b32.xlu0 %v3874, 96
      %v3922 = vpop.permute.xlu0 %3921
      %3923 = vrot.lane.b32.xlu0 %v3879, 96
      %v3924 = vpop.permute.xlu0 %3923
      %3925 = vrot.lane.b32.xlu0 %v3882, 96
      %v3926 = vpop.permute.xlu0 %3925
      %3927 = vrot.lane.b32.xlu0 %v3887, 96
      %v3928 = vpop.permute.xlu0 %3927
      %3929 = vrot.lane.b32.xlu0 %v3890, 96
      %v3930 = vpop.permute.xlu0 %3929
      %3931 = vrot.lane.b32.xlu0 %v3895, 96
      %v3932 = vpop.permute.xlu0 %3931
      %3933 = vrot.lane.b32.xlu0 %v3898, 96
      %v3934 = vpop.permute.xlu0 %3933
      %3935 = vrot.lane.b32.xlu0 %v3903, 96
      %v3936 = vpop.permute.xlu0 %3935
      %3937 = vrot.lane.b32.xlu0 %v3906, 96
      %v3938 = vpop.permute.xlu0 %3937
      %v3949 = vmax.f32 %v3871, %v3920
      %v3950 = vmax.f32 %v3874, %v3922
      %v3951 = vmax.f32 %v3879, %v3924
      %v3952 = vmax.f32 %v3882, %v3926
      %v3953 = vmax.f32 %v3887, %v3928
      %v3954 = vmax.f32 %v3890, %v3930
      %v3955 = vmax.f32 %v3895, %v3932
      %v3956 = vmax.f32 %v3898, %v3934
      %v3957 = vmax.f32 %v3903, %v3936
      %v3958 = vmax.f32 %v3906, %v3938
      %v3959 = vadd.f32 %v3949, %v533
      %v3960 = vadd.f32 %v3950, %v533
      %v3961 = vadd.f32 %v3951, %v533
      %v3962 = vadd.f32 %v3952, %v533
      %v3963 = vadd.f32 %v3953, %v533
      %v3964 = vadd.f32 %v3954, %v533
      %v3965 = vadd.f32 %v3955, %v533
      %v3966 = vadd.f32 %v3956, %v533
      %v3967 = vadd.f32 %v3957, %v533
      %v3968 = vadd.f32 %v3958, %v533
      %v3969 = vmax.f32 %v3959, 0.0
      %v3970 = vmax.f32 %v3960, 0.0
      %v3971 = vmax.f32 %v3961, 0.0
      %v3972 = vmax.f32 %v3962, 0.0
      %v3973 = vmax.f32 %v3963, 0.0
      %v3974 = vmax.f32 %v3964, 0.0
      %v3975 = vmax.f32 %v3965, 0.0
      %v3976 = vmax.f32 %v3966, 0.0
      %v3977 = vmax.f32 %v3967, 0.0
      %v3978 = vmax.f32 %v3968, 0.0
      %v3989 = vrot.slane %v3969, 1
      %v3990 = vrot.slane %v3970, 1
      %v3991 = vsel %vm565, %v3989, %v3990
      %v3992 = vrot.slane %v3971, 1
      %v3993 = vsel %vm565, %v3990, %v3992
      %v3994 = vrot.slane %v3972, 1
      %v3995 = vsel %vm565, %v3992, %v3994
      %v3996 = vrot.slane %v3973, 1
      %v3997 = vsel %vm565, %v3994, %v3996
      %v3998 = vrot.slane %v3974, 1
      %v3999 = vsel %vm565, %v3996, %v3998
      %v4000 = vrot.slane %v3975, 1
      %v4001 = vsel %vm565, %v3998, %v4000
      %v4002 = vrot.slane %v3976, 1
      %v4003 = vsel %vm565, %v4000, %v4002
      %v4004 = vrot.slane %v3977, 1
      %v4005 = vsel %vm565, %v4002, %v4004
      %v4006 = vrot.slane %v3978, 1
      %v4007 = vsel %vm565, %v4004, %v4006
      %v4018 = vmax.f32 %v3969, %v3991
      %v4019 = vmax.f32 %v3970, %v3993
      %v4020 = vmax.f32 %v3971, %v3995
      %v4021 = vmax.f32 %v3972, %v3997
      %v4022 = vmax.f32 %v3973, %v3999
      %v4023 = vmax.f32 %v3974, %v4001
      %v4024 = vmax.f32 %v3975, %v4003
      %v4025 = vmax.f32 %v3976, %v4005
      %v4026 = vmax.f32 %v3977, %v4007
      %v4027 = vmax.f32 %v3978, %v4006
      %v4028 = vpack.c.bf16 %v4019, %v4018
      %v4029 = vpack.c.bf16 %v4021, %v4020
      %v4030 = vpack.c.bf16 %v4023, %v4022
      %v4031 = vpack.c.bf16 %v4025, %v4024
      %v4032 = vpack.c.bf16 %v4027, %v4026
      %v4034 = vsel %vm402, %v4032, 0
      %4036 = vmatprep.subr.bf16.mxu0 0
      %4037 = vmatpush1.bf16.msra.mxu0 %v4028
      %4038 = vmatprep.subr.bf16.mxu0 0
      %4039 = vmatpush1.bf16.msra.mxu0 %v4029
      %4040 = vmatprep.subr.bf16.mxu0 0
      %4041 = vmatpush1.bf16.msra.mxu0 %v4030
      %4042 = vmatprep.subr.bf16.mxu0 0
      %4043 = vmatpush1.bf16.msra.mxu0 %v4031
      %4044 = vmatprep.subr.bf16.mxu0 0
      %4045 = vmatpush1.bf16.msra.mxu0 %v4034
      %4046 = vmatprep.subr.bf16.mxu0 0
      %4047 = vmatpush1.bf16.msra.mxu0 0
      %4048 = vmatprep.subr.bf16.mxu0 0
      %4049 = vmatpush1.bf16.msra.mxu0 0
      %4050 = vmatprep.subr.bf16.mxu0 0
      %4051 = vmatpush1.bf16.msra.mxu0 0
      %4052 = vmatprep.subr.bf16.mxu0 0
      %4053 = vmatpush1.bf16.msra.mxu0 0
      %4054 = vmatprep.subr.bf16.mxu0 0
      %4055 = vmatpush1.bf16.msra.mxu0 0
      %4056 = vmatprep.subr.bf16.mxu0 0
      %4057 = vmatpush1.bf16.msra.mxu0 0
      %4058 = vmatprep.subr.bf16.mxu0 0
      %4059 = vmatpush1.bf16.msra.mxu0 0
      %4060 = vmatprep.subr.bf16.mxu0 0
      %4061 = vmatpush1.bf16.msra.mxu0 0
      %4062 = vmatprep.subr.bf16.mxu0 0
      %4063 = vmatpush1.bf16.msra.mxu0 0
      %4064 = vmatprep.subr.bf16.mxu0 0
      %4065 = vmatpush1.bf16.msra.mxu0 0
      %4066 = vmatprep.subr.bf16.mxu0 0
      %4067 = vmatpush1.bf16.msra.mxu0 0
      %4068 = vmatprep.mubr.bf16.mxu0 0
      %4069 = vmatmul.mubr.bf16.gmra.mrb[0].mxu0 %v625
      %v4070 = vpop.f32.mrb[0].mxu0
      %v4071 = vadd.f32 0.0, %v4070
      %v4072 = vpop.f32.mrb[0].mxu0
      %v4073 = vpop.f32.mrb[0].mxu0
      %v4074 = vadd.f32 0.0, %v4073
      %v4075 = vpop.f32.mrb[0].mxu0
      %4076 = vmatprep.mubr.bf16.mxu0 0
      %4077 = vmatmul.mubr.bf16.gmra.mrb[0].mxu0 %v628
      %v4078 = vpop.f32.mrb[0].mxu0
      %v4079 = vadd.f32 0.0, %v4078
      %v4080 = vpop.f32.mrb[0].mxu0
      %v4081 = vpop.f32.mrb[0].mxu0
      %v4082 = vadd.f32 0.0, %v4081
      %v4083 = vpop.f32.mrb[0].mxu0
      %4084 = vmatprep.mubr.bf16.mxu0 0
      %4085 = vmatmul.mubr.bf16.gmra.mrb[0].mxu0 %v631
      %v4086 = vpop.f32.mrb[0].mxu0
      %v4087 = vadd.f32 0.0, %v4086
      %v4088 = vpop.f32.mrb[0].mxu0
      %v4089 = vpop.f32.mrb[0].mxu0
      %v4090 = vpop.f32.mrb[0].mxu0
      %4091 = vdwg.mxu0
      %v4097 = vrot.slane %v4071, 7
      %v4098 = vrot.slane %v4074, 7
      %v4099 = vsel %vm697, %v4097, %v4098
      %v4100 = vrot.slane %v4079, 7
      %v4101 = vsel %vm697, %v4098, %v4100
      %v4102 = vrot.slane %v4082, 7
      %v4103 = vsel %vm697, %v4100, %v4102
      %v4104 = vrot.slane %v4087, 7
      %v4105 = vsel %vm697, %v4102, %v4104
      %v4111 = vsel %vm697, 0.0, %v4097
      %v4112 = vrot.slane %v4071, 1
      %v4113 = vrot.slane %v4074, 1
      %v4114 = vsel %vm565, %v4112, %v4113
      %v4115 = vrot.slane %v4079, 1
      %v4116 = vsel %vm565, %v4113, %v4115
      %v4117 = vrot.slane %v4082, 1
      %v4118 = vsel %vm565, %v4115, %v4117
      %v4119 = vrot.slane %v4087, 1
      %v4120 = vsel %vm565, %v4117, %v4119
      %v4126 = vsel %vm727, %v4119, 0.0
      %v4127 = vpack.c.bf16 %v4099, %v4111
      %v4128 = vpack.c.bf16 %v4103, %v4101
      %v4129 = vpack.c.bf16 %v4105, %v4105
      %v4133 = vunpack.c.l.b16 %v4127
      %v4134 = vunpack.c.h.b16 %v4127
      %v4135 = vunpack.c.l.b16 %v4128
      %v4136 = vunpack.c.h.b16 %v4128
      %v4137 = vunpack.c.l.b16 %v4129
      %v4138 = vpack.c.b16 %v4133, %v4133
      %v4139 = vpack.c.b16 %v4134, %v4134
      %v4140 = vpack.c.b16 %v4135, %v4135
      %v4141 = vpack.c.b16 %v4136, %v4136
      %v4142 = vpack.c.b16 %v4137, %v4137
      %4148 = vst.msk [vmem:[#allocation2 + $0x24] sm:$0xf] %vm750, %v4138
      %4149 = vst.msk [vmem:[#allocation2 + $0x50] sm:$0xf] %vm750, %v4139
      %4150 = vst.msk [vmem:[#allocation2 + $0x7c] sm:$0xf] %vm750, %v4140
      %4151 = vst.msk [vmem:[#allocation2 + $0xa8] sm:$0xf] %vm750, %v4141
      %4152 = vst.msk [vmem:[#allocation2 + $0xd4] sm:$0x7] %vm755, %v4142
      %v4153 = vpack.c.bf16 %v4074, %v4071
      %v4154 = vpack.c.bf16 %v4082, %v4079
      %v4155 = vpack.c.bf16 %v4087, %v4087
      %v4159 = vunpack.c.l.b16 %v4153
      %v4160 = vunpack.c.h.b16 %v4153
      %v4161 = vunpack.c.l.b16 %v4154
      %v4162 = vunpack.c.h.b16 %v4154
      %v4163 = vunpack.c.l.b16 %v4155
      %v4164 = vpack.c.b16 %v4159, %v4159
      %v4165 = vpack.c.b16 %v4160, %v4160
      %v4166 = vpack.c.b16 %v4161, %v4161
      %v4167 = vpack.c.b16 %v4162, %v4162
      %v4168 = vpack.c.b16 %v4163, %v4163
      %4169 = vrot.lane.b32.xlu0 %v4164, 32
      %v4170 = vpop.permute.xlu0 %4169
      %4171 = vrot.lane.b32.xlu0 %v4165, 32
      %v4172 = vpop.permute.xlu0 %4171
      %4173 = vrot.lane.b32.xlu0 %v4166, 32
      %v4174 = vpop.permute.xlu0 %4173
      %4175 = vrot.lane.b32.xlu0 %v4167, 32
      %v4176 = vpop.permute.xlu0 %4175
      %4177 = vrot.lane.b32.xlu0 %v4168, 32
      %v4178 = vpop.permute.xlu0 %4177
      %4184 = vst.msk [vmem:[#allocation2 + $0x24] sm:$0xf] %vm788, %v4170
      %4185 = vst.msk [vmem:[#allocation2 + $0x50] sm:$0xf] %vm788, %v4172
      %4186 = vst.msk [vmem:[#allocation2 + $0x7c] sm:$0xf] %vm788, %v4174
      %4187 = vst.msk [vmem:[#allocation2 + $0xa8] sm:$0xf] %vm788, %v4176
      %4188 = vst.msk [vmem:[#allocation2 + $0xd4] sm:$0x7] %vm793, %v4178
      %v4189 = vpack.c.bf16 %v4116, %v4114
      %v4190 = vpack.c.bf16 %v4120, %v4118
      %v4191 = vpack.c.bf16 %v4126, %v4126
      %v4195 = vunpack.c.l.b16 %v4189
      %v4196 = vunpack.c.h.b16 %v4189
      %v4197 = vunpack.c.l.b16 %v4190
      %v4198 = vunpack.c.h.b16 %v4190
      %v4199 = vunpack.c.l.b16 %v4191
      %v4200 = vpack.c.b16 %v4195, %v4195
      %v4201 = vpack.c.b16 %v4196, %v4196
      %v4202 = vpack.c.b16 %v4197, %v4197
      %v4203 = vpack.c.b16 %v4198, %v4198
      %v4204 = vpack.c.b16 %v4199, %v4199
      %4205 = vrot.lane.b32.xlu0 %v4200, 64
      %v4206 = vpop.permute.xlu0 %4205
      %4207 = vrot.lane.b32.xlu0 %v4201, 64
      %v4208 = vpop.permute.xlu0 %4207
      %4209 = vrot.lane.b32.xlu0 %v4202, 64
      %v4210 = vpop.permute.xlu0 %4209
      %4211 = vrot.lane.b32.xlu0 %v4203, 64
      %v4212 = vpop.permute.xlu0 %4211
      %4213 = vrot.lane.b32.xlu0 %v4204, 64
      %v4214 = vpop.permute.xlu0 %4213
      %4220 = vst.msk [vmem:[#allocation2 + $0x24] sm:$0xf] %vm826, %v4206
      %4221 = vst.msk [vmem:[#allocation2 + $0x50] sm:$0xf] %vm826, %v4208
      %4222 = vst.msk [vmem:[#allocation2 + $0x7c] sm:$0xf] %vm826, %v4210
      %4223 = vst.msk [vmem:[#allocation2 + $0xa8] sm:$0xf] %vm826, %v4212
      %4224 = vst.msk [vmem:[#allocation2 + $0xd4] sm:$0x7] %vm831, %v4214
      %v4225 = vld [vmem:[#allocation2] sm:$0xff]
      %v4226 = vld [vmem:[#allocation2 + $0x8] sm:$0xff]
      %v4227 = vld [vmem:[#allocation2 + $0x2c] sm:$0xff]
      %v4228 = vld [vmem:[#allocation2 + $0x34] sm:$0xff]
      %v4229 = vld [vmem:[#allocation2 + $0x58] sm:$0xff]
      %v4230 = vld [vmem:[#allocation2 + $0x60] sm:$0xff]
      %v4231 = vld [vmem:[#allocation2 + $0x84] sm:$0xff]
      %v4232 = vld [vmem:[#allocation2 + $0x8c] sm:$0xff]
      %v4233 = vld [vmem:[#allocation2 + $0xb0] sm:$0x77]
      %v4234 = vld [vmem:[#allocation2 + $0xb8] sm:$0x77]
      %v4235 = vld [vmem:[%s3] sm:$0xf]
      %v4236 = vld [vmem:[%s3 + $0x4] sm:$0xf]
      %v4237 = vld [vmem:[%s3 + $0x8] sm:$0xf]
      %v4238 = vld [vmem:[%s3 + $0xc] sm:$0xf]
      %v4239 = vld [vmem:[%s3 + $0x10] sm:$0xf]
      %v4240 = vld [vmem:[%s3 + $0x14] sm:$0xf]
      %v4241 = vld [vmem:[%s3 + $0x18] sm:$0xf]
      %v4242 = vld [vmem:[%s3 + $0x1c] sm:$0xf]
      %v4243 = vld [vmem:[%s3 + $0x20] sm:$0xf]
      %v4244 = vld [vmem:[%s3 + $0x24] sm:$0xf]
      %v4245 = vld [vmem:[%s3 + $0x28] sm:$0xf]
      %v4246 = vld [vmem:[%s3 + $0x2c] sm:$0xf]
      %v4247 = vld [vmem:[%s3 + $0x30] sm:$0xf]
      %v4248 = vld [vmem:[%s3 + $0x34] sm:$0xf]
      %v4249 = vld [vmem:[%s3 + $0x38] sm:$0xf]
      %v4250 = vld [vmem:[%s3 + $0x3c] sm:$0xf]
      %v4251 = vld [vmem:[%s3 + $0x40] sm:$0xf]
      %v4252 = vld [vmem:[%s3 + $0x44] sm:$0xf]
      %v4253 = vld [vmem:[%s3 + $0x48] sm:$0xf]
      %v4254 = vld [vmem:[%s3 + $0x4c] sm:$0xf]
      %v4255 = vld [vmem:[%s3 + $0x50] sm:$0xf]
      %v4256 = vld [vmem:[%s3 + $0x54] sm:$0xf]
      %v4257 = vld [vmem:[%s3 + $0x58] sm:$0xf]
      %v4258 = vld [vmem:[%s3 + $0x5c] sm:$0xf]
      %v4259 = vld [vmem:[%s3 + $0x60] sm:$0xf]
      %v4260 = vld [vmem:[%s3 + $0x64] sm:$0xf]
      %v4261 = vld [vmem:[%s3 + $0x68] sm:$0xf]
      %v4262 = vld [vmem:[%s3 + $0x6c] sm:$0xf]
      %v4263 = vld [vmem:[%s3 + $0x70] sm:$0xf]
      %v4264 = vld [vmem:[%s3 + $0x74] sm:$0xf]
      %v4265 = vld [vmem:[%s3 + $0x78] sm:$0xf]
      %v4266 = vld [vmem:[%s3 + $0x7c] sm:$0xf]
      %v4267 = vld [vmem:[%s3 + $0x80] sm:$0xf]
      %v4268 = vld [vmem:[%s3 + $0x84] sm:$0xf]
      %v4269 = vld [vmem:[%s3 + $0x88] sm:$0xf]
      %v4270 = vld [vmem:[%s3 + $0x8c] sm:$0xf]
      %v4271 = vld [vmem:[%s3 + $0x90] sm:$0xf]
      %v4272 = vld [vmem:[%s3 + $0x94] sm:$0xf]
      %v4273 = vld [vmem:[%s3 + $0x98] sm:$0xf]
      %v4274 = vld [vmem:[%s3 + $0x9c] sm:$0xf]
      %v4275 = vld [vmem:[%s3 + $0xa0] sm:$0xf]
      %v4276 = vld [vmem:[%s3 + $0xa4] sm:$0xf]
      %v4277 = vld [vmem:[%s3 + $0xa8] sm:$0xf]
      %v4278 = vld [vmem:[%s3 + $0xac] sm:$0xf]
      %v4279 = vld [vmem:[%s3 + $0xb0] sm:$0xf]
      %v4280 = vld [vmem:[%s3 + $0xb4] sm:$0xf]
      %v4281 = vld [vmem:[%s3 + $0xb8] sm:$0xf]
      %v4282 = vld [vmem:[%s3 + $0xbc] sm:$0xf]
      %v4283 = vld [vmem:[%s3 + $0xc0] sm:$0xf]
      %v4284 = vld [vmem:[%s3 + $0xc4] sm:$0xf]
      %v4285 = vld [vmem:[%s3 + $0xc8] sm:$0xf]
      %v4286 = vld [vmem:[%s3 + $0xcc] sm:$0xf]
      %v4287 = vld [vmem:[%s3 + $0xd0] sm:$0xf]
      %v4288 = vld [vmem:[%s3 + $0xd4] sm:$0xf]
      %v4289 = vld [vmem:[%s3 + $0xd8] sm:$0xf]
      %v4290 = vld [vmem:[%s3 + $0xdc] sm:$0xf]
      %v4291 = vld [vmem:[%s3 + $0xe0] sm:$0xf]
      %v4292 = vld [vmem:[%s3 + $0xe4] sm:$0xf]
      %v4293 = vld [vmem:[%s3 + $0xe8] sm:$0xf]
      %v4294 = vld [vmem:[%s3 + $0xec] sm:$0xf]
      %v4295 = vld [vmem:[%s3 + $0xf0] sm:$0xf]
      %v4296 = vld [vmem:[%s3 + $0xf4] sm:$0xf]
      %v4297 = vld [vmem:[%s3 + $0xf8] sm:$0xf]
      %v4298 = vld [vmem:[%s3 + $0xfc] sm:$0xf]
      %v4309 = vunpack.c.l.b16 %v4225
      %v4310 = vunpack.c.h.b16 %v4225
      %v4311 = vunpack.c.l.b16 %v4226
      %v4312 = vunpack.c.h.b16 %v4226
      %v4313 = vunpack.c.l.b16 %v4227
      %v4314 = vunpack.c.h.b16 %v4227
      %v4315 = vunpack.c.l.b16 %v4228
      %v4316 = vunpack.c.h.b16 %v4228
      %v4317 = vunpack.c.l.b16 %v4229
      %v4318 = vunpack.c.h.b16 %v4229
      %v4319 = vunpack.c.l.b16 %v4230
      %v4320 = vunpack.c.h.b16 %v4230
      %v4321 = vunpack.c.l.b16 %v4231
      %v4322 = vunpack.c.h.b16 %v4231
      %v4323 = vunpack.c.l.b16 %v4232
      %v4324 = vunpack.c.h.b16 %v4232
      %v4325 = vunpack.c.l.b16 %v4233
      %v4326 = vunpack.c.h.b16 %v4233
      %v4327 = vunpack.c.l.b16 %v4234
      %v4328 = vunpack.c.h.b16 %v4234
      %v4329 = vpack.c.b16 %v4313, %v4309
      %v4330 = vpack.c.b16 %v4314, %v4310
      %v4331 = vpack.c.b16 %v4315, %v4311
      %v4332 = vpack.c.b16 %v4316, %v4312
      %v4333 = vpack.c.b16 %v4321, %v4317
      %v4334 = vpack.c.b16 %v4322, %v4318
      %v4335 = vpack.c.b16 %v4323, %v4319
      %v4336 = vpack.c.b16 %v4324, %v4320
      %v4337 = vpack.c.b16 %v4325, %v4325
      %v4338 = vpack.c.b16 %v4326, %v4326
      %v4339 = vpack.c.b16 %v4327, %v4327
      %v4340 = vpack.c.b16 %v4328, %v4328
      %v4417 = vunpack.c.l.b16 %v4235
      %v4418 = vunpack.c.l.b16 %v4236
      %v4419 = vunpack.c.l.b16 %v4237
      %v4420 = vunpack.c.l.b16 %v4238
      %v4421 = vunpack.c.l.b16 %v4239
      %v4422 = vunpack.c.l.b16 %v4240
      %v4423 = vunpack.c.l.b16 %v4241
      %v4424 = vunpack.c.l.b16 %v4242
      %v4425 = vunpack.c.l.b16 %v4243
      %v4426 = vunpack.c.l.b16 %v4244
      %v4427 = vunpack.c.l.b16 %v4245
      %v4428 = vunpack.c.l.b16 %v4246
      %v4429 = vunpack.c.l.b16 %v4247
      %v4430 = vunpack.c.l.b16 %v4248
      %v4431 = vunpack.c.l.b16 %v4249
      %v4432 = vunpack.c.l.b16 %v4250
      %v4433 = vunpack.c.l.b16 %v4251
      %v4434 = vunpack.c.l.b16 %v4252
      %v4435 = vunpack.c.l.b16 %v4253
      %v4436 = vunpack.c.l.b16 %v4254
      %v4437 = vunpack.c.l.b16 %v4255
      %v4438 = vunpack.c.l.b16 %v4256
      %v4439 = vunpack.c.l.b16 %v4257
      %v4440 = vunpack.c.l.b16 %v4258
      %v4441 = vunpack.c.l.b16 %v4259
      %v4442 = vunpack.c.l.b16 %v4260
      %v4443 = vunpack.c.l.b16 %v4261
      %v4444 = vunpack.c.l.b16 %v4262
      %v4445 = vunpack.c.l.b16 %v4263
      %v4446 = vunpack.c.l.b16 %v4264
      %v4447 = vunpack.c.l.b16 %v4265
      %v4448 = vunpack.c.l.b16 %v4266
      %v4449 = vunpack.c.l.b16 %v4267
      %v4450 = vunpack.c.l.b16 %v4268
      %v4451 = vunpack.c.l.b16 %v4269
      %v4452 = vunpack.c.l.b16 %v4270
      %v4453 = vunpack.c.l.b16 %v4271
      %v4454 = vunpack.c.l.b16 %v4272
      %v4455 = vunpack.c.l.b16 %v4273
      %v4456 = vunpack.c.l.b16 %v4274
      %v4457 = vunpack.c.l.b16 %v4275
      %v4458 = vunpack.c.l.b16 %v4276
      %v4459 = vunpack.c.l.b16 %v4277
      %v4460 = vunpack.c.l.b16 %v4278
      %v4461 = vunpack.c.l.b16 %v4279
      %v4462 = vunpack.c.l.b16 %v4280
      %v4463 = vunpack.c.l.b16 %v4281
      %v4464 = vunpack.c.l.b16 %v4282
      %v4465 = vunpack.c.l.b16 %v4283
      %v4466 = vunpack.c.l.b16 %v4284
      %v4467 = vunpack.c.l.b16 %v4285
      %v4468 = vunpack.c.l.b16 %v4286
      %v4469 = vunpack.c.l.b16 %v4287
      %v4470 = vunpack.c.l.b16 %v4288
      %v4471 = vunpack.c.l.b16 %v4289
      %v4472 = vunpack.c.l.b16 %v4290
      %v4473 = vunpack.c.l.b16 %v4291
      %v4474 = vunpack.c.l.b16 %v4292
      %v4475 = vunpack.c.l.b16 %v4293
      %v4476 = vunpack.c.l.b16 %v4294
      %v4477 = vunpack.c.l.b16 %v4295
      %v4478 = vunpack.c.l.b16 %v4296
      %v4479 = vunpack.c.l.b16 %v4297
      %v4480 = vunpack.c.l.b16 %v4298
      %v4481 = vpack.c.b16 %v4418, %v4417
      %v4482 = vpack.c.b16 %v4420, %v4419
      %v4483 = vpack.c.b16 %v4422, %v4421
      %v4484 = vpack.c.b16 %v4424, %v4423
      %v4485 = vpack.c.b16 %v4426, %v4425
      %v4486 = vpack.c.b16 %v4428, %v4427
      %v4487 = vpack.c.b16 %v4430, %v4429
      %v4488 = vpack.c.b16 %v4432, %v4431
      %v4489 = vpack.c.b16 %v4434, %v4433
      %v4490 = vpack.c.b16 %v4436, %v4435
      %v4491 = vpack.c.b16 %v4438, %v4437
      %v4492 = vpack.c.b16 %v4440, %v4439
      %v4493 = vpack.c.b16 %v4442, %v4441
      %v4494 = vpack.c.b16 %v4444, %v4443
      %v4495 = vpack.c.b16 %v4446, %v4445
      %v4496 = vpack.c.b16 %v4448, %v4447
      %v4497 = vpack.c.b16 %v4450, %v4449
      %v4498 = vpack.c.b16 %v4452, %v4451
      %v4499 = vpack.c.b16 %v4454, %v4453
      %v4500 = vpack.c.b16 %v4456, %v4455
      %v4501 = vpack.c.b16 %v4458, %v4457
      %v4502 = vpack.c.b16 %v4460, %v4459
      %v4503 = vpack.c.b16 %v4462, %v4461
      %v4504 = vpack.c.b16 %v4464, %v4463
      %v4505 = vpack.c.b16 %v4466, %v4465
      %v4506 = vpack.c.b16 %v4468, %v4467
      %v4507 = vpack.c.b16 %v4470, %v4469
      %v4508 = vpack.c.b16 %v4472, %v4471
      %v4509 = vpack.c.b16 %v4474, %v4473
      %v4510 = vpack.c.b16 %v4476, %v4475
      %v4511 = vpack.c.b16 %v4478, %v4477
      %v4512 = vpack.c.b16 %v4480, %v4479
      %4545 = vmatprep.subr.bf16.mxu0 0
      %4546 = vmatpush1.bf16.msra.mxu0 %v4481
      %4547 = vmatprep.subr.bf16.mxu0 0
      %4548 = vmatpush1.bf16.msra.mxu0 %v4482
      %4549 = vmatprep.subr.bf16.mxu0 0
      %4550 = vmatpush1.bf16.msra.mxu0 %v4483
      %4551 = vmatprep.subr.bf16.mxu0 0
      %4552 = vmatpush1.bf16.msra.mxu0 %v4484
      %4553 = vmatprep.subr.bf16.mxu0 0
      %4554 = vmatpush1.bf16.msra.mxu0 %v4485
      %4555 = vmatprep.subr.bf16.mxu0 0
      %4556 = vmatpush1.bf16.msra.mxu0 %v4486
      %4557 = vmatprep.subr.bf16.mxu0 0
      %4558 = vmatpush1.bf16.msra.mxu0 %v4487
      %4559 = vmatprep.subr.bf16.mxu0 0
      %4560 = vmatpush1.bf16.msra.mxu0 %v4488
      %4561 = vmatprep.subr.bf16.mxu0 0
      %4562 = vmatpush1.bf16.msra.mxu0 %v4489
      %4563 = vmatprep.subr.bf16.mxu0 0
      %4564 = vmatpush1.bf16.msra.mxu0 %v4490
      %4565 = vmatprep.subr.bf16.mxu0 0
      %4566 = vmatpush1.bf16.msra.mxu0 %v4491
      %4567 = vmatprep.subr.bf16.mxu0 0
      %4568 = vmatpush1.bf16.msra.mxu0 %v4492
      %4569 = vmatprep.subr.bf16.mxu0 0
      %4570 = vmatpush1.bf16.msra.mxu0 %v4493
      %4571 = vmatprep.subr.bf16.mxu0 0
      %4572 = vmatpush1.bf16.msra.mxu0 %v4494
      %4573 = vmatprep.subr.bf16.mxu0 0
      %4574 = vmatpush1.bf16.msra.mxu0 %v4495
      %4575 = vmatprep.subr.bf16.mxu0 0
      %4576 = vmatpush1.bf16.msra.mxu0 %v4496
      %4577 = vmatprep.mubr.bf16.mxu0 %v4330
      %4578 = vmatmul.mubr.bf16.gmra.mrb[0].mxu0 %v4329
      %v4579 = vpop.f32.mrb[0].mxu0
      %v4580 = vadd.f32 0.0, %v4579
      %v4581 = vpop.f32.mrb[0].mxu0
      %v4582 = vpop.f32.mrb[0].mxu0
      %v4583 = vadd.f32 0.0, %v4582
      %v4584 = vpop.f32.mrb[0].mxu0
      %4585 = vmatprep.mubr.bf16.mxu0 %v4334
      %4586 = vmatmul.mubr.bf16.gmra.mrb[0].mxu0 %v4333
      %v4587 = vpop.f32.mrb[0].mxu0
      %v4588 = vadd.f32 0.0, %v4587
      %v4589 = vpop.f32.mrb[0].mxu0
      %v4590 = vpop.f32.mrb[0].mxu0
      %v4591 = vadd.f32 0.0, %v4590
      %v4592 = vpop.f32.mrb[0].mxu0
      %4593 = vmatprep.mubr.bf16.mxu0 %v4338
      %4594 = vmatmul.mubr.bf16.gmra.mrb[0].mxu0 %v4337
      %v4595 = vpop.f32.mrb[0].mxu0
      %v4596 = vadd.f32 0.0, %v4595
      %v4597 = vpop.f32.mrb[0].mxu0
      %v4598 = vpop.f32.mrb[0].mxu0
      %v4599 = vpop.f32.mrb[0].mxu0
      %4600 = vdwg.mxu0
      %4601 = vmatprep.subr.bf16.mxu0 0
      %4602 = vmatpush1.bf16.msra.mxu0 %v4497
      %4603 = vmatprep.subr.bf16.mxu0 0
      %4604 = vmatpush1.bf16.msra.mxu0 %v4498
      %4605 = vmatprep.subr.bf16.mxu0 0
      %4606 = vmatpush1.bf16.msra.mxu0 %v4499
      %4607 = vmatprep.subr.bf16.mxu0 0
      %4608 = vmatpush1.bf16.msra.mxu0 %v4500
      %4609 = vmatprep.subr.bf16.mxu0 0
      %4610 = vmatpush1.bf16.msra.mxu0 %v4501
      %4611 = vmatprep.subr.bf16.mxu0 0
      %4612 = vmatpush1.bf16.msra.mxu0 %v4502
      %4613 = vmatprep.subr.bf16.mxu0 0
      %4614 = vmatpush1.bf16.msra.mxu0 %v4503
      %4615 = vmatprep.subr.bf16.mxu0 0
      %4616 = vmatpush1.bf16.msra.mxu0 %v4504
      %4617 = vmatprep.subr.bf16.mxu0 0
      %4618 = vmatpush1.bf16.msra.mxu0 %v4505
      %4619 = vmatprep.subr.bf16.mxu0 0
      %4620 = vmatpush1.bf16.msra.mxu0 %v4506
      %4621 = vmatprep.subr.bf16.mxu0 0
      %4622 = vmatpush1.bf16.msra.mxu0 %v4507
      %4623 = vmatprep.subr.bf16.mxu0 0
      %4624 = vmatpush1.bf16.msra.mxu0 %v4508
      %4625 = vmatprep.subr.bf16.mxu0 0
      %4626 = vmatpush1.bf16.msra.mxu0 %v4509
      %4627 = vmatprep.subr.bf16.mxu0 0
      %4628 = vmatpush1.bf16.msra.mxu0 %v4510
      %4629 = vmatprep.subr.bf16.mxu0 0
      %4630 = vmatpush1.bf16.msra.mxu0 %v4511
      %4631 = vmatprep.subr.bf16.mxu0 0
      %4632 = vmatpush1.bf16.msra.mxu0 %v4512
      %4633 = vmatprep.mubr.bf16.mxu0 %v4332
      %4634 = vmatmul.mubr.bf16.gmra.mrb[0].mxu0 %v4331
      %v4635 = vpop.f32.mrb[0].mxu0
      %v4636 = vadd.f32 %v4580, %v4635
      %v4637 = vpop.f32.mrb[0].mxu0
      %v4638 = vpop.f32.mrb[0].mxu0
      %v4639 = vadd.f32 %v4583, %v4638
      %v4640 = vpop.f32.mrb[0].mxu0
      %4641 = vmatprep.mubr.bf16.mxu0 %v4336
      %4642 = vmatmul.mubr.bf16.gmra.mrb[0].mxu0 %v4335
      %v4643 = vpop.f32.mrb[0].mxu0
      %v4644 = vadd.f32 %v4588, %v4643
      %v4645 = vpop.f32.mrb[0].mxu0
      %v4646 = vpop.f32.mrb[0].mxu0
      %v4647 = vadd.f32 %v4591, %v4646
      %v4648 = vpop.f32.mrb[0].mxu0
      %4649 = vmatprep.mubr.bf16.mxu0 %v4340
      %4650 = vmatmul.mubr.bf16.gmra.mrb[0].mxu0 %v4339
      %v4651 = vpop.f32.mrb[0].mxu0
      %v4652 = vadd.f32 %v4596, %v4651
      %v4653 = vpop.f32.mrb[0].mxu0
      %v4654 = vpop.f32.mrb[0].mxu0
      %v4655 = vpop.f32.mrb[0].mxu0
      %4656 = vdwg.mxu0
      %4662 = vrot.lane.b32.xlu0 %v4636, 96
      %v4663 = vpop.permute.xlu0 %4662
      %4664 = vrot.lane.b32.xlu0 %v4639, 96
      %v4665 = vpop.permute.xlu0 %4664
      %4666 = vrot.lane.b32.xlu0 %v4644, 96
      %v4667 = vpop.permute.xlu0 %4666
      %4668 = vrot.lane.b32.xlu0 %v4647, 96
      %v4669 = vpop.permute.xlu0 %4668
      %4670 = vrot.lane.b32.xlu0 %v4652, 96
      %v4671 = vpop.permute.xlu0 %4670
      %v4677 = vmax.f32 %v4636, %v4663
      %v4678 = vmax.f32 %v4639, %v4665
      %v4679 = vmax.f32 %v4644, %v4667
      %v4680 = vmax.f32 %v4647, %v4669
      %v4681 = vmax.f32 %v4652, %v4671
      %v4683 = vlaneseq
      %v4684 = vshrl.u32 %v4683, 7
      %v4685 = vsub.s32 0, %v4684
      %v4686 = vrot.slane %v281, %v4685
      %v4688 = vadd.f32 %v4677, %v4686
      %v4689 = vadd.f32 %v4678, %v4686
      %v4690 = vadd.f32 %v4679, %v4686
      %v4691 = vadd.f32 %v4680, %v4686
      %v4692 = vadd.f32 %v4681, %v4686
      %v4693 = vmax.f32 %v4688, 0.0
      %v4694 = vmax.f32 %v4689, 0.0
      %v4695 = vmax.f32 %v4690, 0.0
      %v4696 = vmax.f32 %v4691, 0.0
      %v4697 = vmax.f32 %v4692, 0.0
      %v4703 = vrot.slane %v4693, 1
      %v4704 = vrot.slane %v4694, 1
      %v4705 = vsel %vm565, %v4703, %v4704
      %v4706 = vrot.slane %v4695, 1
      %v4707 = vsel %vm565, %v4704, %v4706
      %v4708 = vrot.slane %v4696, 1
      %v4709 = vsel %vm565, %v4706, %v4708
      %v4710 = vrot.slane %v4697, 1
      %v4711 = vsel %vm565, %v4708, %v4710
      %v4717 = vmax.f32 %v4693, %v4705
      %v4718 = vmax.f32 %v4694, %v4707
      %v4719 = vmax.f32 %v4695, %v4709
      %v4720 = vmax.f32 %v4696, %v4711
      %v4721 = vmax.f32 %v4697, %v4710
      %v4722 = vpack.c.bf16 %v4718, %v4717
      %v4723 = vpack.c.bf16 %v4720, %v4719
      %v4724 = vpack.c.bf16 %v4721, %v4721
      %v4728 = vunpack.c.l.b16 %v287
      %v4729 = vunpack.c.l.b16 %v288
      %v4730 = vunpack.c.l.b16 %v289
      %v4731 = vpack.c.b16 %v4729, %v4728
      %v4732 = vpack.c.b16 %v4730, %v4730
      %vm4733 = vcmask 302080
      %v4735 = vsel %vm4733, %v4731, 0
      %v4738 = vsel %vm4733, %v4732, 0
      %vm4740 = vcmask 1041408
      %vm4741 = vcmask 1042432
      %v4742 = vsel %vm4740, 4294967295, 65535
      %v4743 = vsel %vm4741, %v4742, 0
      %v4745 = vand.u32 %v4724, %v4743
      %4747 = vmatprep.subr.bf16.mxu0 0
      %4748 = vmatpush1.bf16.msra.mxu0 %v4722
      %4749 = vmatprep.subr.bf16.mxu0 0
      %4750 = vmatpush1.bf16.msra.mxu0 %v4723
      %4751 = vmatprep.subr.bf16.mxu0 0
      %4752 = vmatpush1.bf16.msra.mxu0 %v4745
      %4753 = vmatprep.subr.bf16.mxu0 0
      %4754 = vmatpush1.bf16.msra.mxu0 0
      %4755 = vmatprep.subr.bf16.mxu0 0
      %4756 = vmatpush1.bf16.msra.mxu0 0
      %4757 = vmatprep.subr.bf16.mxu0 0
      %4758 = vmatpush1.bf16.msra.mxu0 0
      %4759 = vmatprep.subr.bf16.mxu0 0
      %4760 = vmatpush1.bf16.msra.mxu0 0
      %4761 = vmatprep.subr.bf16.mxu0 0
      %4762 = vmatpush1.bf16.msra.mxu0 0
      %4763 = vmatprep.subr.bf16.mxu0 0
      %4764 = vmatpush1.bf16.msra.mxu0 0
      %4765 = vmatprep.subr.bf16.mxu0 0
      %4766 = vmatpush1.bf16.msra.mxu0 0
      %4767 = vmatprep.subr.bf16.mxu0 0
      %4768 = vmatpush1.bf16.msra.mxu0 0
      %4769 = vmatprep.subr.bf16.mxu0 0
      %4770 = vmatpush1.bf16.msra.mxu0 0
      %4771 = vmatprep.subr.bf16.mxu0 0
      %4772 = vmatpush1.bf16.msra.mxu0 0
      %4773 = vmatprep.subr.bf16.mxu0 0
      %4774 = vmatpush1.bf16.msra.mxu0 0
      %4775 = vmatprep.subr.bf16.mxu0 0
      %4776 = vmatpush1.bf16.msra.mxu0 0
      %4777 = vmatprep.subr.bf16.mxu0 0
      %4778 = vmatpush1.bf16.msra.mxu0 0
      %4779 = vmatprep.mubr.bf16.mxu0 0
      %4780 = vmatmul.mubr.bf16.gmra.mrb[0].mxu0 %v4735
      %v4781 = vpop.f32.mrb[0].mxu0
      %v4782 = vadd.f32 0.0, %v4781
      %v4783 = vpop.f32.mrb[0].mxu0
      %v4784 = vpop.f32.mrb[0].mxu0
      %v4785 = vadd.f32 0.0, %v4784
      %v4786 = vpop.f32.mrb[0].mxu0
      %4787 = vmatprep.mubr.bf16.mxu0 0
      %4788 = vmatmul.mubr.bf16.gmra.mrb[0].mxu0 %v4738
      %v4789 = vpop.f32.mrb[0].mxu0
      %v4790 = vadd.f32 0.0, %v4789
      %v4791 = vpop.f32.mrb[0].mxu0
      %v4792 = vpop.f32.mrb[0].mxu0
      %v4793 = vpop.f32.mrb[0].mxu0
      %4794 = vdwg.mxu0
      %v4795 = vld [vmem:[#allocation2 + $0x8] sm:$0xff]
      %v4796 = vld [vmem:[#allocation2 + $0x10] sm:$0xff]
      %v4797 = vld [vmem:[#allocation2 + $0x34] sm:$0xff]
      %v4798 = vld [vmem:[#allocation2 + $0x3c] sm:$0xff]
      %v4799 = vld [vmem:[#allocation2 + $0x60] sm:$0xff]
      %v4800 = vld [vmem:[#allocation2 + $0x68] sm:$0xff]
      %v4801 = vld [vmem:[#allocation2 + $0x8c] sm:$0xff]
      %v4802 = vld [vmem:[#allocation2 + $0x94] sm:$0xff]
      %v4803 = vld [vmem:[#allocation2 + $0xb8] sm:$0x77]
      %v4804 = vld [vmem:[#allocation2 + $0xc0] sm:$0x77]
      %v4815 = vunpack.c.l.b16 %v4795
      %v4816 = vunpack.c.h.b16 %v4795
      %v4817 = vunpack.c.l.b16 %v4796
      %v4818 = vunpack.c.h.b16 %v4796
      %v4819 = vunpack.c.l.b16 %v4797
      %v4820 = vunpack.c.h.b16 %v4797
      %v4821 = vunpack.c.l.b16 %v4798
      %v4822 = vunpack.c.h.b16 %v4798
      %v4823 = vunpack.c.l.b16 %v4799
      %v4824 = vunpack.c.h.b16 %v4799
      %v4825 = vunpack.c.l.b16 %v4800
      %v4826 = vunpack.c.h.b16 %v4800
      %v4827 = vunpack.c.l.b16 %v4801
      %v4828 = vunpack.c.h.b16 %v4801
      %v4829 = vunpack.c.l.b16 %v4802
      %v4830 = vunpack.c.h.b16 %v4802
      %v4831 = vunpack.c.l.b16 %v4803
      %v4832 = vunpack.c.h.b16 %v4803
      %v4833 = vunpack.c.l.b16 %v4804
      %v4834 = vunpack.c.h.b16 %v4804
      %v4835 = vpack.c.b16 %v4819, %v4815
      %v4836 = vpack.c.b16 %v4820, %v4816
      %v4837 = vpack.c.b16 %v4821, %v4817
      %v4838 = vpack.c.b16 %v4822, %v4818
      %v4839 = vpack.c.b16 %v4827, %v4823
      %v4840 = vpack.c.b16 %v4828, %v4824
      %v4841 = vpack.c.b16 %v4829, %v4825
      %v4842 = vpack.c.b16 %v4830, %v4826
      %v4843 = vpack.c.b16 %v4831, %v4831
      %v4844 = vpack.c.b16 %v4832, %v4832
      %v4845 = vpack.c.b16 %v4833, %v4833
      %v4846 = vpack.c.b16 %v4834, %v4834
      %4859 = vmatprep.subr.bf16.mxu0 0
      %4860 = vmatpush1.bf16.msra.mxu0 %v4481
      %4861 = vmatprep.subr.bf16.mxu0 0
      %4862 = vmatpush1.bf16.msra.mxu0 %v4482
      %4863 = vmatprep.subr.bf16.mxu0 0
      %4864 = vmatpush1.bf16.msra.mxu0 %v4483
      %4865 = vmatprep.subr.bf16.mxu0 0
      %4866 = vmatpush1.bf16.msra.mxu0 %v4484
      %4867 = vmatprep.subr.bf16.mxu0 0
      %4868 = vmatpush1.bf16.msra.mxu0 %v4485
      %4869 = vmatprep.subr.bf16.mxu0 0
      %4870 = vmatpush1.bf16.msra.mxu0 %v4486
      %4871 = vmatprep.subr.bf16.mxu0 0
      %4872 = vmatpush1.bf16.msra.mxu0 %v4487
      %4873 = vmatprep.subr.bf16.mxu0 0
      %4874 = vmatpush1.bf16.msra.mxu0 %v4488
      %4875 = vmatprep.subr.bf16.mxu0 0
      %4876 = vmatpush1.bf16.msra.mxu0 %v4489
      %4877 = vmatprep.subr.bf16.mxu0 0
      %4878 = vmatpush1.bf16.msra.mxu0 %v4490
      %4879 = vmatprep.subr.bf16.mxu0 0
      %4880 = vmatpush1.bf16.msra.mxu0 %v4491
      %4881 = vmatprep.subr.bf16.mxu0 0
      %4882 = vmatpush1.bf16.msra.mxu0 %v4492
      %4883 = vmatprep.subr.bf16.mxu0 0
      %4884 = vmatpush1.bf16.msra.mxu0 %v4493
      %4885 = vmatprep.subr.bf16.mxu0 0
      %4886 = vmatpush1.bf16.msra.mxu0 %v4494
      %4887 = vmatprep.subr.bf16.mxu0 0
      %4888 = vmatpush1.bf16.msra.mxu0 %v4495
      %4889 = vmatprep.subr.bf16.mxu0 0
      %4890 = vmatpush1.bf16.msra.mxu0 %v4496
      %4891 = vmatprep.mubr.bf16.mxu0 %v4836
      %4892 = vmatmul.mubr.bf16.gmra.mrb[0].mxu0 %v4835
      %v4893 = vpop.f32.mrb[0].mxu0
      %v4894 = vadd.f32 0.0, %v4893
      %v4895 = vpop.f32.mrb[0].mxu0
      %v4896 = vpop.f32.mrb[0].mxu0
      %v4897 = vadd.f32 0.0, %v4896
      %v4898 = vpop.f32.mrb[0].mxu0
      %4899 = vmatprep.mubr.bf16.mxu0 %v4840
      %4900 = vmatmul.mubr.bf16.gmra.mrb[0].mxu0 %v4839
      %v4901 = vpop.f32.mrb[0].mxu0
      %v4902 = vadd.f32 0.0, %v4901
      %v4903 = vpop.f32.mrb[0].mxu0
      %v4904 = vpop.f32.mrb[0].mxu0
      %v4905 = vadd.f32 0.0, %v4904
      %v4906 = vpop.f32.mrb[0].mxu0
      %4907 = vmatprep.mubr.bf16.mxu0 %v4844
      %4908 = vmatmul.mubr.bf16.gmra.mrb[0].mxu0 %v4843
      %v4909 = vpop.f32.mrb[0].mxu0
      %v4910 = vadd.f32 0.0, %v4909
      %v4911 = vpop.f32.mrb[0].mxu0
      %v4912 = vpop.f32.mrb[0].mxu0
      %v4913 = vpop.f32.mrb[0].mxu0
      %4914 = vdwg.mxu0
      %4915 = vmatprep.subr.bf16.mxu0 0
      %4916 = vmatpush1.bf16.msra.mxu0 %v4497
      %4917 = vmatprep.subr.bf16.mxu0 0
      %4918 = vmatpush1.bf16.msra.mxu0 %v4498
      %4919 = vmatprep.subr.bf16.mxu0 0
      %4920 = vmatpush1.bf16.msra.mxu0 %v4499
      %4921 = vmatprep.subr.bf16.mxu0 0
      %4922 = vmatpush1.bf16.msra.mxu0 %v4500
      %4923 = vmatprep.subr.bf16.mxu0 0
      %4924 = vmatpush1.bf16.msra.mxu0 %v4501
      %4925 = vmatprep.subr.bf16.mxu0 0
      %4926 = vmatpush1.bf16.msra.mxu0 %v4502
      %4927 = vmatprep.subr.bf16.mxu0 0
      %4928 = vmatpush1.bf16.msra.mxu0 %v4503
      %4929 = vmatprep.subr.bf16.mxu0 0
      %4930 = vmatpush1.bf16.msra.mxu0 %v4504
      %4931 = vmatprep.subr.bf16.mxu0 0
      %4932 = vmatpush1.bf16.msra.mxu0 %v4505
      %4933 = vmatprep.subr.bf16.mxu0 0
      %4934 = vmatpush1.bf16.msra.mxu0 %v4506
      %4935 = vmatprep.subr.bf16.mxu0 0
      %4936 = vmatpush1.bf16.msra.mxu0 %v4507
      %4937 = vmatprep.subr.bf16.mxu0 0
      %4938 = vmatpush1.bf16.msra.mxu0 %v4508
      %4939 = vmatprep.subr.bf16.mxu0 0
      %4940 = vmatpush1.bf16.msra.mxu0 %v4509
      %4941 = vmatprep.subr.bf16.mxu0 0
      %4942 = vmatpush1.bf16.msra.mxu0 %v4510
      %4943 = vmatprep.subr.bf16.mxu0 0
      %4944 = vmatpush1.bf16.msra.mxu0 %v4511
      %4945 = vmatprep.subr.bf16.mxu0 0
      %4946 = vmatpush1.bf16.msra.mxu0 %v4512
      %4947 = vmatprep.mubr.bf16.mxu0 %v4838
      %4948 = vmatmul.mubr.bf16.gmra.mrb[0].mxu0 %v4837
      %v4949 = vpop.f32.mrb[0].mxu0
      %v4950 = vadd.f32 %v4894, %v4949
      %v4951 = vpop.f32.mrb[0].mxu0
      %v4952 = vpop.f32.mrb[0].mxu0
      %v4953 = vadd.f32 %v4897, %v4952
      %v4954 = vpop.f32.mrb[0].mxu0
      %4955 = vmatprep.mubr.bf16.mxu0 %v4842
      %4956 = vmatmul.mubr.bf16.gmra.mrb[0].mxu0 %v4841
      %v4957 = vpop.f32.mrb[0].mxu0
      %v4958 = vadd.f32 %v4902, %v4957
      %v4959 = vpop.f32.mrb[0].mxu0
      %v4960 = vpop.f32.mrb[0].mxu0
      %v4961 = vadd.f32 %v4905, %v4960
      %v4962 = vpop.f32.mrb[0].mxu0
      %4963 = vmatprep.mubr.bf16.mxu0 %v4846
      %4964 = vmatmul.mubr.bf16.gmra.mrb[0].mxu0 %v4845
      %v4965 = vpop.f32.mrb[0].mxu0
      %v4966 = vadd.f32 %v4910, %v4965
      %v4967 = vpop.f32.mrb[0].mxu0
      %v4968 = vpop.f32.mrb[0].mxu0
      %v4969 = vpop.f32.mrb[0].mxu0
      %4970 = vdwg.mxu0
      %4976 = vrot.lane.b32.xlu0 %v4950, 96
      %v4977 = vpop.permute.xlu0 %4976
      %4978 = vrot.lane.b32.xlu0 %v4953, 96
      %v4979 = vpop.permute.xlu0 %4978
      %4980 = vrot.lane.b32.xlu0 %v4958, 96
      %v4981 = vpop.permute.xlu0 %4980
      %4982 = vrot.lane.b32.xlu0 %v4961, 96
      %v4983 = vpop.permute.xlu0 %4982
      %4984 = vrot.lane.b32.xlu0 %v4966, 96
      %v4985 = vpop.permute.xlu0 %4984
      %v4991 = vmax.f32 %v4950, %v4977
      %v4992 = vmax.f32 %v4953, %v4979
      %v4993 = vmax.f32 %v4958, %v4981
      %v4994 = vmax.f32 %v4961, %v4983
      %v4995 = vmax.f32 %v4966, %v4985
      %v4996 = vadd.f32 %v4991, %v4686
      %v4997 = vadd.f32 %v4992, %v4686
      %v4998 = vadd.f32 %v4993, %v4686
      %v4999 = vadd.f32 %v4994, %v4686
      %v5000 = vadd.f32 %v4995, %v4686
      %v5001 = vmax.f32 %v4996, 0.0
      %v5002 = vmax.f32 %v4997, 0.0
      %v5003 = vmax.f32 %v4998, 0.0
      %v5004 = vmax.f32 %v4999, 0.0
      %v5005 = vmax.f32 %v5000, 0.0
      %v5011 = vrot.slane %v5001, 1
      %v5012 = vrot.slane %v5002, 1
      %v5013 = vsel %vm565, %v5011, %v5012
      %v5014 = vrot.slane %v5003, 1
      %v5015 = vsel %vm565, %v5012, %v5014
      %v5016 = vrot.slane %v5004, 1
      %v5017 = vsel %vm565, %v5014, %v5016
      %v5018 = vrot.slane %v5005, 1
      %v5019 = vsel %vm565, %v5016, %v5018
      %v5025 = vmax.f32 %v5001, %v5013
      %v5026 = vmax.f32 %v5002, %v5015
      %v5027 = vmax.f32 %v5003, %v5017
      %v5028 = vmax.f32 %v5004, %v5019
      %v5029 = vmax.f32 %v5005, %v5018
      %v5030 = vpack.c.bf16 %v5026, %v5025
      %v5031 = vpack.c.bf16 %v5028, %v5027
      %v5032 = vpack.c.bf16 %v5029, %v5029
      %v5034 = vand.u32 %v5032, %v4743
      %5036 = vmatprep.subr.bf16.mxu0 0
      %5037 = vmatpush1.bf16.msra.mxu0 %v5030
      %5038 = vmatprep.subr.bf16.mxu0 0
      %5039 = vmatpush1.bf16.msra.mxu0 %v5031
      %5040 = vmatprep.subr.bf16.mxu0 0
      %5041 = vmatpush1.bf16.msra.mxu0 %v5034
      %5042 = vmatprep.subr.bf16.mxu0 0
      %5043 = vmatpush1.bf16.msra.mxu0 0
      %5044 = vmatprep.subr.bf16.mxu0 0
      %5045 = vmatpush1.bf16.msra.mxu0 0
      %5046 = vmatprep.subr.bf16.mxu0 0
      %5047 = vmatpush1.bf16.msra.mxu0 0
      %5048 = vmatprep.subr.bf16.mxu0 0
      %5049 = vmatpush1.bf16.msra.mxu0 0
      %5050 = vmatprep.subr.bf16.mxu0 0
      %5051 = vmatpush1.bf16.msra.mxu0 0
      %5052 = vmatprep.subr.bf16.mxu0 0
      %5053 = vmatpush1.bf16.msra.mxu0 0
      %5054 = vmatprep.subr.bf16.mxu0 0
      %5055 = vmatpush1.bf16.msra.mxu0 0
      %5056 = vmatprep.subr.bf16.mxu0 0
      %5057 = vmatpush1.bf16.msra.mxu0 0
      %5058 = vmatprep.subr.bf16.mxu0 0
      %5059 = vmatpush1.bf16.msra.mxu0 0
      %5060 = vmatprep.subr.bf16.mxu0 0
      %5061 = vmatpush1.bf16.msra.mxu0 0
      %5062 = vmatprep.subr.bf16.mxu0 0
      %5063 = vmatpush1.bf16.msra.mxu0 0
      %5064 = vmatprep.subr.bf16.mxu0 0
      %5065 = vmatpush1.bf16.msra.mxu0 0
      %5066 = vmatprep.subr.bf16.mxu0 0
      %5067 = vmatpush1.bf16.msra.mxu0 0
      %5068 = vmatprep.mubr.bf16.mxu0 0
      %5069 = vmatmul.mubr.bf16.gmra.mrb[0].mxu0 %v4735
      %v5070 = vpop.f32.mrb[0].mxu0
      %v5071 = vadd.f32 0.0, %v5070
      %v5072 = vpop.f32.mrb[0].mxu0
      %v5073 = vpop.f32.mrb[0].mxu0
      %v5074 = vadd.f32 0.0, %v5073
      %v5075 = vpop.f32.mrb[0].mxu0
      %5076 = vmatprep.mubr.bf16.mxu0 0
      %5077 = vmatmul.mubr.bf16.gmra.mrb[0].mxu0 %v4738
      %v5078 = vpop.f32.mrb[0].mxu0
      %v5079 = vadd.f32 0.0, %v5078
      %v5080 = vpop.f32.mrb[0].mxu0
      %v5081 = vpop.f32.mrb[0].mxu0
      %v5082 = vpop.f32.mrb[0].mxu0
      %5083 = vdwg.mxu0
      %v5084 = vld [vmem:[#allocation2 + $0x10] sm:$0xff]
      %v5085 = vld [vmem:[#allocation2 + $0x18] sm:$0xff]
      %v5086 = vld [vmem:[#allocation2 + $0x3c] sm:$0xff]
      %v5087 = vld [vmem:[#allocation2 + $0x44] sm:$0xff]
      %v5088 = vld [vmem:[#allocation2 + $0x68] sm:$0xff]
      %v5089 = vld [vmem:[#allocation2 + $0x70] sm:$0xff]
      %v5090 = vld [vmem:[#allocation2 + $0x94] sm:$0xff]
      %v5091 = vld [vmem:[#allocation2 + $0x9c] sm:$0xff]
      %v5092 = vld [vmem:[#allocation2 + $0xc0] sm:$0x77]
      %v5093 = vld [vmem:[#allocation2 + $0xc8] sm:$0x77]
      %v5104 = vunpack.c.l.b16 %v5084
      %v5105 = vunpack.c.h.b16 %v5084
      %v5106 = vunpack.c.l.b16 %v5085
      %v5107 = vunpack.c.h.b16 %v5085
      %v5108 = vunpack.c.l.b16 %v5086
      %v5109 = vunpack.c.h.b16 %v5086
      %v5110 = vunpack.c.l.b16 %v5087
      %v5111 = vunpack.c.h.b16 %v5087
      %v5112 = vunpack.c.l.b16 %v5088
      %v5113 = vunpack.c.h.b16 %v5088
      %v5114 = vunpack.c.l.b16 %v5089
      %v5115 = vunpack.c.h.b16 %v5089
      %v5116 = vunpack.c.l.b16 %v5090
      %v5117 = vunpack.c.h.b16 %v5090
      %v5118 = vunpack.c.l.b16 %v5091
      %v5119 = vunpack.c.h.b16 %v5091
      %v5120 = vunpack.c.l.b16 %v5092
      %v5121 = vunpack.c.h.b16 %v5092
      %v5122 = vunpack.c.l.b16 %v5093
      %v5123 = vunpack.c.h.b16 %v5093
      %v5124 = vpack.c.b16 %v5108, %v5104
      %v5125 = vpack.c.b16 %v5109, %v5105
      %v5126 = vpack.c.b16 %v5110, %v5106
      %v5127 = vpack.c.b16 %v5111, %v5107
      %v5128 = vpack.c.b16 %v5116, %v5112
      %v5129 = vpack.c.b16 %v5117, %v5113
      %v5130 = vpack.c.b16 %v5118, %v5114
      %v5131 = vpack.c.b16 %v5119, %v5115
      %v5132 = vpack.c.b16 %v5120, %v5120
      %v5133 = vpack.c.b16 %v5121, %v5121
      %v5134 = vpack.c.b16 %v5122, %v5122
      %v5135 = vpack.c.b16 %v5123, %v5123
      %5148 = vmatprep.subr.bf16.mxu0 0
      %5149 = vmatpush1.bf16.msra.mxu0 %v4481
      %5150 = vmatprep.subr.bf16.mxu0 0
      %5151 = vmatpush1.bf16.msra.mxu0 %v4482
      %5152 = vmatprep.subr.bf16.mxu0 0
      %5153 = vmatpush1.bf16.msra.mxu0 %v4483
      %5154 = vmatprep.subr.bf16.mxu0 0
      %5155 = vmatpush1.bf16.msra.mxu0 %v4484
      %5156 = vmatprep.subr.bf16.mxu0 0
      %5157 = vmatpush1.bf16.msra.mxu0 %v4485
      %5158 = vmatprep.subr.bf16.mxu0 0
      %5159 = vmatpush1.bf16.msra.mxu0 %v4486
      %5160 = vmatprep.subr.bf16.mxu0 0
      %5161 = vmatpush1.bf16.msra.mxu0 %v4487
      %5162 = vmatprep.subr.bf16.mxu0 0
      %5163 = vmatpush1.bf16.msra.mxu0 %v4488
      %5164 = vmatprep.subr.bf16.mxu0 0
      %5165 = vmatpush1.bf16.msra.mxu0 %v4489
      %5166 = vmatprep.subr.bf16.mxu0 0
      %5167 = vmatpush1.bf16.msra.mxu0 %v4490
      %5168 = vmatprep.subr.bf16.mxu0 0
      %5169 = vmatpush1.bf16.msra.mxu0 %v4491
      %5170 = vmatprep.subr.bf16.mxu0 0
      %5171 = vmatpush1.bf16.msra.mxu0 %v4492
      %5172 = vmatprep.subr.bf16.mxu0 0
      %5173 = vmatpush1.bf16.msra.mxu0 %v4493
      %5174 = vmatprep.subr.bf16.mxu0 0
      %5175 = vmatpush1.bf16.msra.mxu0 %v4494
      %5176 = vmatprep.subr.bf16.mxu0 0
      %5177 = vmatpush1.bf16.msra.mxu0 %v4495
      %5178 = vmatprep.subr.bf16.mxu0 0
      %5179 = vmatpush1.bf16.msra.mxu0 %v4496
      %5180 = vmatprep.mubr.bf16.mxu0 %v5125
      %5181 = vmatmul.mubr.bf16.gmra.mrb[0].mxu0 %v5124
      %v5182 = vpop.f32.mrb[0].mxu0
      %v5183 = vadd.f32 0.0, %v5182
      %v5184 = vpop.f32.mrb[0].mxu0
      %v5185 = vpop.f32.mrb[0].mxu0
      %v5186 = vadd.f32 0.0, %v5185
      %v5187 = vpop.f32.mrb[0].mxu0
      %5188 = vmatprep.mubr.bf16.mxu0 %v5129
      %5189 = vmatmul.mubr.bf16.gmra.mrb[0].mxu0 %v5128
      %v5190 = vpop.f32.mrb[0].mxu0
      %v5191 = vadd.f32 0.0, %v5190
      %v5192 = vpop.f32.mrb[0].mxu0
      %v5193 = vpop.f32.mrb[0].mxu0
      %v5194 = vadd.f32 0.0, %v5193
      %v5195 = vpop.f32.mrb[0].mxu0
      %5196 = vmatprep.mubr.bf16.mxu0 %v5133
      %5197 = vmatmul.mubr.bf16.gmra.mrb[0].mxu0 %v5132
      %v5198 = vpop.f32.mrb[0].mxu0
      %v5199 = vadd.f32 0.0, %v5198
      %v5200 = vpop.f32.mrb[0].mxu0
      %v5201 = vpop.f32.mrb[0].mxu0
      %v5202 = vpop.f32.mrb[0].mxu0
      %5203 = vdwg.mxu0
      %5204 = vmatprep.subr.bf16.mxu0 0
      %5205 = vmatpush1.bf16.msra.mxu0 %v4497
      %5206 = vmatprep.subr.bf16.mxu0 0
      %5207 = vmatpush1.bf16.msra.mxu0 %v4498
      %5208 = vmatprep.subr.bf16.mxu0 0
      %5209 = vmatpush1.bf16.msra.mxu0 %v4499
      %5210 = vmatprep.subr.bf16.mxu0 0
      %5211 = vmatpush1.bf16.msra.mxu0 %v4500
      %5212 = vmatprep.subr.bf16.mxu0 0
      %5213 = vmatpush1.bf16.msra.mxu0 %v4501
      %5214 = vmatprep.subr.bf16.mxu0 0
      %5215 = vmatpush1.bf16.msra.mxu0 %v4502
      %5216 = vmatprep.subr.bf16.mxu0 0
      %5217 = vmatpush1.bf16.msra.mxu0 %v4503
      %5218 = vmatprep.subr.bf16.mxu0 0
      %5219 = vmatpush1.bf16.msra.mxu0 %v4504
      %5220 = vmatprep.subr.bf16.mxu0 0
      %5221 = vmatpush1.bf16.msra.mxu0 %v4505
      %5222 = vmatprep.subr.bf16.mxu0 0
      %5223 = vmatpush1.bf16.msra.mxu0 %v4506
      %5224 = vmatprep.subr.bf16.mxu0 0
      %5225 = vmatpush1.bf16.msra.mxu0 %v4507
      %5226 = vmatprep.subr.bf16.mxu0 0
      %5227 = vmatpush1.bf16.msra.mxu0 %v4508
      %5228 = vmatprep.subr.bf16.mxu0 0
      %5229 = vmatpush1.bf16.msra.mxu0 %v4509
      %5230 = vmatprep.subr.bf16.mxu0 0
      %5231 = vmatpush1.bf16.msra.mxu0 %v4510
      %5232 = vmatprep.subr.bf16.mxu0 0
      %5233 = vmatpush1.bf16.msra.mxu0 %v4511
      %5234 = vmatprep.subr.bf16.mxu0 0
      %5235 = vmatpush1.bf16.msra.mxu0 %v4512
      %5236 = vmatprep.mubr.bf16.mxu0 %v5127
      %5237 = vmatmul.mubr.bf16.gmra.mrb[0].mxu0 %v5126
      %v5238 = vpop.f32.mrb[0].mxu0
      %v5239 = vadd.f32 %v5183, %v5238
      %v5240 = vpop.f32.mrb[0].mxu0
      %v5241 = vpop.f32.mrb[0].mxu0
      %v5242 = vadd.f32 %v5186, %v5241
      %v5243 = vpop.f32.mrb[0].mxu0
      %5244 = vmatprep.mubr.bf16.mxu0 %v5131
      %5245 = vmatmul.mubr.bf16.gmra.mrb[0].mxu0 %v5130
      %v5246 = vpop.f32.mrb[0].mxu0
      %v5247 = vadd.f32 %v5191, %v5246
      %v5248 = vpop.f32.mrb[0].mxu0
      %v5249 = vpop.f32.mrb[0].mxu0
      %v5250 = vadd.f32 %v5194, %v5249
      %v5251 = vpop.f32.mrb[0].mxu0
      %5252 = vmatprep.mubr.bf16.mxu0 %v5135
      %5253 = vmatmul.mubr.bf16.gmra.mrb[0].mxu0 %v5134
      %v5254 = vpop.f32.mrb[0].mxu0
      %v5255 = vadd.f32 %v5199, %v5254
      %v5256 = vpop.f32.mrb[0].mxu0
      %v5257 = vpop.f32.mrb[0].mxu0
      %v5258 = vpop.f32.mrb[0].mxu0
      %5259 = vdwg.mxu0
      %5265 = vrot.lane.b32.xlu0 %v5239, 96
      %v5266 = vpop.permute.xlu0 %5265
      %5267 = vrot.lane.b32.xlu0 %v5242, 96
      %v5268 = vpop.permute.xlu0 %5267
      %5269 = vrot.lane.b32.xlu0 %v5247, 96
      %v5270 = vpop.permute.xlu0 %5269
      %5271 = vrot.lane.b32.xlu0 %v5250, 96
      %v5272 = vpop.permute.xlu0 %5271
      %5273 = vrot.lane.b32.xlu0 %v5255, 96
      %v5274 = vpop.permute.xlu0 %5273
      %v5280 = vmax.f32 %v5239, %v5266
      %v5281 = vmax.f32 %v5242, %v5268
      %v5282 = vmax.f32 %v5247, %v5270
      %v5283 = vmax.f32 %v5250, %v5272
      %v5284 = vmax.f32 %v5255, %v5274
      %v5285 = vadd.f32 %v5280, %v4686
      %v5286 = vadd.f32 %v5281, %v4686
      %v5287 = vadd.f32 %v5282, %v4686
      %v5288 = vadd.f32 %v5283, %v4686
      %v5289 = vadd.f32 %v5284, %v4686
      %v5290 = vmax.f32 %v5285, 0.0
      %v5291 = vmax.f32 %v5286, 0.0
      %v5292 = vmax.f32 %v5287, 0.0
      %v5293 = vmax.f32 %v5288, 0.0
      %v5294 = vmax.f32 %v5289, 0.0
      %v5300 = vrot.slane %v5290, 1
      %v5301 = vrot.slane %v5291, 1
      %v5302 = vsel %vm565, %v5300, %v5301
      %v5303 = vrot.slane %v5292, 1
      %v5304 = vsel %vm565, %v5301, %v5303
      %v5305 = vrot.slane %v5293, 1
      %v5306 = vsel %vm565, %v5303, %v5305
      %v5307 = vrot.slane %v5294, 1
      %v5308 = vsel %vm565, %v5305, %v5307
      %v5314 = vmax.f32 %v5290, %v5302
      %v5315 = vmax.f32 %v5291, %v5304
      %v5316 = vmax.f32 %v5292, %v5306
      %v5317 = vmax.f32 %v5293, %v5308
      %v5318 = vmax.f32 %v5294, %v5307
      %v5319 = vpack.c.bf16 %v5315, %v5314
      %v5320 = vpack.c.bf16 %v5317, %v5316
      %v5321 = vpack.c.bf16 %v5318, %v5318
      %v5323 = vand.u32 %v5321, %v4743
      %5325 = vmatprep.subr.bf16.mxu0 0
      %5326 = vmatpush1.bf16.msra.mxu0 %v5319
      %5327 = vmatprep.subr.bf16.mxu0 0
      %5328 = vmatpush1.bf16.msra.mxu0 %v5320
      %5329 = vmatprep.subr.bf16.mxu0 0
      %5330 = vmatpush1.bf16.msra.mxu0 %v5323
      %5331 = vmatprep.subr.bf16.mxu0 0
      %5332 = vmatpush1.bf16.msra.mxu0 0
      %5333 = vmatprep.subr.bf16.mxu0 0
      %5334 = vmatpush1.bf16.msra.mxu0 0
      %5335 = vmatprep.subr.bf16.mxu0 0
      %5336 = vmatpush1.bf16.msra.mxu0 0
      %5337 = vmatprep.subr.bf16.mxu0 0
      %5338 = vmatpush1.bf16.msra.mxu0 0
      %5339 = vmatprep.subr.bf16.mxu0 0
      %5340 = vmatpush1.bf16.msra.mxu0 0
      %5341 = vmatprep.subr.bf16.mxu0 0
      %5342 = vmatpush1.bf16.msra.mxu0 0
      %5343 = vmatprep.subr.bf16.mxu0 0
      %5344 = vmatpush1.bf16.msra.mxu0 0
      %5345 = vmatprep.subr.bf16.mxu0 0
      %5346 = vmatpush1.bf16.msra.mxu0 0
      %5347 = vmatprep.subr.bf16.mxu0 0
      %5348 = vmatpush1.bf16.msra.mxu0 0
      %5349 = vmatprep.subr.bf16.mxu0 0
      %5350 = vmatpush1.bf16.msra.mxu0 0
      %5351 = vmatprep.subr.bf16.mxu0 0
      %5352 = vmatpush1.bf16.msra.mxu0 0
      %5353 = vmatprep.subr.bf16.mxu0 0
      %5354 = vmatpush1.bf16.msra.mxu0 0
      %5355 = vmatprep.subr.bf16.mxu0 0
      %5356 = vmatpush1.bf16.msra.mxu0 0
      %5357 = vmatprep.mubr.bf16.mxu0 0
      %5358 = vmatmul.mubr.bf16.gmra.mrb[0].mxu0 %v4735
      %v5359 = vpop.f32.mrb[0].mxu0
      %v5360 = vadd.f32 0.0, %v5359
      %v5361 = vpop.f32.mrb[0].mxu0
      %v5362 = vpop.f32.mrb[0].mxu0
      %v5363 = vadd.f32 0.0, %v5362
      %v5364 = vpop.f32.mrb[0].mxu0
      %5365 = vmatprep.mubr.bf16.mxu0 0
      %5366 = vmatmul.mubr.bf16.gmra.mrb[0].mxu0 %v4738
      %v5367 = vpop.f32.mrb[0].mxu0
      %v5368 = vadd.f32 0.0, %v5367
      %v5369 = vpop.f32.mrb[0].mxu0
      %v5370 = vpop.f32.mrb[0].mxu0
      %v5371 = vpop.f32.mrb[0].mxu0
      %5372 = vdwg.mxu0
      %v5373 = vld [vmem:[#allocation2 + $0x18] sm:$0xff]
      %v5374 = vld [vmem:[#allocation2 + $0x20] sm:$0xff]
      %v5375 = vld [vmem:[#allocation2 + $0x44] sm:$0xff]
      %v5376 = vld [vmem:[#allocation2 + $0x4c] sm:$0xff]
      %v5377 = vld [vmem:[#allocation2 + $0x70] sm:$0xff]
      %v5378 = vld [vmem:[#allocation2 + $0x78] sm:$0xff]
      %v5379 = vld [vmem:[#allocation2 + $0x9c] sm:$0xff]
      %v5380 = vld [vmem:[#allocation2 + $0xa4] sm:$0xff]
      %v5381 = vld [vmem:[#allocation2 + $0xc8] sm:$0x77]
      %v5382 = vld [vmem:[#allocation2 + $0xd0] sm:$0x77]
      %v5393 = vunpack.c.l.b16 %v5373
      %v5394 = vunpack.c.h.b16 %v5373
      %v5395 = vunpack.c.l.b16 %v5374
      %v5396 = vunpack.c.h.b16 %v5374
      %v5397 = vunpack.c.l.b16 %v5375
      %v5398 = vunpack.c.h.b16 %v5375
      %v5399 = vunpack.c.l.b16 %v5376
      %v5400 = vunpack.c.h.b16 %v5376
      %v5401 = vunpack.c.l.b16 %v5377
      %v5402 = vunpack.c.h.b16 %v5377
      %v5403 = vunpack.c.l.b16 %v5378
      %v5404 = vunpack.c.h.b16 %v5378
      %v5405 = vunpack.c.l.b16 %v5379
      %v5406 = vunpack.c.h.b16 %v5379
      %v5407 = vunpack.c.l.b16 %v5380
      %v5408 = vunpack.c.h.b16 %v5380
      %v5409 = vunpack.c.l.b16 %v5381
      %v5410 = vunpack.c.h.b16 %v5381
      %v5411 = vunpack.c.l.b16 %v5382
      %v5412 = vunpack.c.h.b16 %v5382
      %v5413 = vpack.c.b16 %v5397, %v5393
      %v5414 = vpack.c.b16 %v5398, %v5394
      %v5415 = vpack.c.b16 %v5399, %v5395
      %v5416 = vpack.c.b16 %v5400, %v5396
      %v5417 = vpack.c.b16 %v5405, %v5401
      %v5418 = vpack.c.b16 %v5406, %v5402
      %v5419 = vpack.c.b16 %v5407, %v5403
      %v5420 = vpack.c.b16 %v5408, %v5404
      %v5421 = vpack.c.b16 %v5409, %v5409
      %v5422 = vpack.c.b16 %v5410, %v5410
      %v5423 = vpack.c.b16 %v5411, %v5411
      %v5424 = vpack.c.b16 %v5412, %v5412
      %5437 = vmatprep.subr.bf16.mxu0 0
      %5438 = vmatpush1.bf16.msra.mxu0 %v4481
      %5439 = vmatprep.subr.bf16.mxu0 0
      %5440 = vmatpush1.bf16.msra.mxu0 %v4482
      %5441 = vmatprep.subr.bf16.mxu0 0
      %5442 = vmatpush1.bf16.msra.mxu0 %v4483
      %5443 = vmatprep.subr.bf16.mxu0 0
      %5444 = vmatpush1.bf16.msra.mxu0 %v4484
      %5445 = vmatprep.subr.bf16.mxu0 0
      %5446 = vmatpush1.bf16.msra.mxu0 %v4485
      %5447 = vmatprep.subr.bf16.mxu0 0
      %5448 = vmatpush1.bf16.msra.mxu0 %v4486
      %5449 = vmatprep.subr.bf16.mxu0 0
      %5450 = vmatpush1.bf16.msra.mxu0 %v4487
      %5451 = vmatprep.subr.bf16.mxu0 0
      %5452 = vmatpush1.bf16.msra.mxu0 %v4488
      %5453 = vmatprep.subr.bf16.mxu0 0
      %5454 = vmatpush1.bf16.msra.mxu0 %v4489
      %5455 = vmatprep.subr.bf16.mxu0 0
      %5456 = vmatpush1.bf16.msra.mxu0 %v4490
      %5457 = vmatprep.subr.bf16.mxu0 0
      %5458 = vmatpush1.bf16.msra.mxu0 %v4491
      %5459 = vmatprep.subr.bf16.mxu0 0
      %5460 = vmatpush1.bf16.msra.mxu0 %v4492
      %5461 = vmatprep.subr.bf16.mxu0 0
      %5462 = vmatpush1.bf16.msra.mxu0 %v4493
      %5463 = vmatprep.subr.bf16.mxu0 0
      %5464 = vmatpush1.bf16.msra.mxu0 %v4494
      %5465 = vmatprep.subr.bf16.mxu0 0
      %5466 = vmatpush1.bf16.msra.mxu0 %v4495
      %5467 = vmatprep.subr.bf16.mxu0 0
      %5468 = vmatpush1.bf16.msra.mxu0 %v4496
      %5469 = vmatprep.mubr.bf16.mxu0 %v5414
      %5470 = vmatmul.mubr.bf16.gmra.mrb[0].mxu0 %v5413
      %v5471 = vpop.f32.mrb[0].mxu0
      %v5472 = vadd.f32 0.0, %v5471
      %v5473 = vpop.f32.mrb[0].mxu0
      %v5474 = vpop.f32.mrb[0].mxu0
      %v5475 = vadd.f32 0.0, %v5474
      %v5476 = vpop.f32.mrb[0].mxu0
      %5477 = vmatprep.mubr.bf16.mxu0 %v5418
      %5478 = vmatmul.mubr.bf16.gmra.mrb[0].mxu0 %v5417
      %v5479 = vpop.f32.mrb[0].mxu0
      %v5480 = vadd.f32 0.0, %v5479
      %v5481 = vpop.f32.mrb[0].mxu0
      %v5482 = vpop.f32.mrb[0].mxu0
      %v5483 = vadd.f32 0.0, %v5482
      %v5484 = vpop.f32.mrb[0].mxu0
      %5485 = vmatprep.mubr.bf16.mxu0 %v5422
      %5486 = vmatmul.mubr.bf16.gmra.mrb[0].mxu0 %v5421
      %v5487 = vpop.f32.mrb[0].mxu0
      %v5488 = vadd.f32 0.0, %v5487
      %v5489 = vpop.f32.mrb[0].mxu0
      %v5490 = vpop.f32.mrb[0].mxu0
      %v5491 = vpop.f32.mrb[0].mxu0
      %5492 = vdwg.mxu0
      %5493 = vmatprep.subr.bf16.mxu0 0
      %5494 = vmatpush1.bf16.msra.mxu0 %v4497
      %5495 = vmatprep.subr.bf16.mxu0 0
      %5496 = vmatpush1.bf16.msra.mxu0 %v4498
      %5497 = vmatprep.subr.bf16.mxu0 0
      %5498 = vmatpush1.bf16.msra.mxu0 %v4499
      %5499 = vmatprep.subr.bf16.mxu0 0
      %5500 = vmatpush1.bf16.msra.mxu0 %v4500
      %5501 = vmatprep.subr.bf16.mxu0 0
      %5502 = vmatpush1.bf16.msra.mxu0 %v4501
      %5503 = vmatprep.subr.bf16.mxu0 0
      %5504 = vmatpush1.bf16.msra.mxu0 %v4502
      %5505 = vmatprep.subr.bf16.mxu0 0
      %5506 = vmatpush1.bf16.msra.mxu0 %v4503
      %5507 = vmatprep.subr.bf16.mxu0 0
      %5508 = vmatpush1.bf16.msra.mxu0 %v4504
      %5509 = vmatprep.subr.bf16.mxu0 0
      %5510 = vmatpush1.bf16.msra.mxu0 %v4505
      %5511 = vmatprep.subr.bf16.mxu0 0
      %5512 = vmatpush1.bf16.msra.mxu0 %v4506
      %5513 = vmatprep.subr.bf16.mxu0 0
      %5514 = vmatpush1.bf16.msra.mxu0 %v4507
      %5515 = vmatprep.subr.bf16.mxu0 0
      %5516 = vmatpush1.bf16.msra.mxu0 %v4508
      %5517 = vmatprep.subr.bf16.mxu0 0
      %5518 = vmatpush1.bf16.msra.mxu0 %v4509
      %5519 = vmatprep.subr.bf16.mxu0 0
      %5520 = vmatpush1.bf16.msra.mxu0 %v4510
      %5521 = vmatprep.subr.bf16.mxu0 0
      %5522 = vmatpush1.bf16.msra.mxu0 %v4511
      %5523 = vmatprep.subr.bf16.mxu0 0
      %5524 = vmatpush1.bf16.msra.mxu0 %v4512
      %5525 = vmatprep.mubr.bf16.mxu0 %v5416
      %5526 = vmatmul.mubr.bf16.gmra.mrb[0].mxu0 %v5415
      %v5527 = vpop.f32.mrb[0].mxu0
      %v5528 = vadd.f32 %v5472, %v5527
      %v5529 = vpop.f32.mrb[0].mxu0
      %v5530 = vpop.f32.mrb[0].mxu0
      %v5531 = vadd.f32 %v5475, %v5530
      %v5532 = vpop.f32.mrb[0].mxu0
      %5533 = vmatprep.mubr.bf16.mxu0 %v5420
      %5534 = vmatmul.mubr.bf16.gmra.mrb[0].mxu0 %v5419
      %v5535 = vpop.f32.mrb[0].mxu0
      %v5536 = vadd.f32 %v5480, %v5535
      %v5537 = vpop.f32.mrb[0].mxu0
      %v5538 = vpop.f32.mrb[0].mxu0
      %v5539 = vadd.f32 %v5483, %v5538
      %v5540 = vpop.f32.mrb[0].mxu0
      %5541 = vmatprep.mubr.bf16.mxu0 %v5424
      %5542 = vmatmul.mubr.bf16.gmra.mrb[0].mxu0 %v5423
      %v5543 = vpop.f32.mrb[0].mxu0
      %v5544 = vadd.f32 %v5488, %v5543
      %v5545 = vpop.f32.mrb[0].mxu0
      %v5546 = vpop.f32.mrb[0].mxu0
      %v5547 = vpop.f32.mrb[0].mxu0
      %5548 = vdwg.mxu0
      %5554 = vrot.lane.b32.xlu0 %v5528, 96
      %v5555 = vpop.permute.xlu0 %5554
      %5556 = vrot.lane.b32.xlu0 %v5531, 96
      %v5557 = vpop.permute.xlu0 %5556
      %5558 = vrot.lane.b32.xlu0 %v5536, 96
      %v5559 = vpop.permute.xlu0 %5558
      %5560 = vrot.lane.b32.xlu0 %v5539, 96
      %v5561 = vpop.permute.xlu0 %5560
      %5562 = vrot.lane.b32.xlu0 %v5544, 96
      %v5563 = vpop.permute.xlu0 %5562
      %v5569 = vmax.f32 %v5528, %v5555
      %v5570 = vmax.f32 %v5531, %v5557
      %v5571 = vmax.f32 %v5536, %v5559
      %v5572 = vmax.f32 %v5539, %v5561
      %v5573 = vmax.f32 %v5544, %v5563
      %v5574 = vadd.f32 %v5569, %v4686
      %v5575 = vadd.f32 %v5570, %v4686
      %v5576 = vadd.f32 %v5571, %v4686
      %v5577 = vadd.f32 %v5572, %v4686
      %v5578 = vadd.f32 %v5573, %v4686
      %v5579 = vmax.f32 %v5574, 0.0
      %v5580 = vmax.f32 %v5575, 0.0
      %v5581 = vmax.f32 %v5576, 0.0
      %v5582 = vmax.f32 %v5577, 0.0
      %v5583 = vmax.f32 %v5578, 0.0
      %v5589 = vrot.slane %v5579, 1
      %v5590 = vrot.slane %v5580, 1
      %v5591 = vsel %vm565, %v5589, %v5590
      %v5592 = vrot.slane %v5581, 1
      %v5593 = vsel %vm565, %v5590, %v5592
      %v5594 = vrot.slane %v5582, 1
      %v5595 = vsel %vm565, %v5592, %v5594
      %v5596 = vrot.slane %v5583, 1
      %v5597 = vsel %vm565, %v5594, %v5596
      %v5603 = vmax.f32 %v5579, %v5591
      %v5604 = vmax.f32 %v5580, %v5593
      %v5605 = vmax.f32 %v5581, %v5595
      %v5606 = vmax.f32 %v5582, %v5597
      %v5607 = vmax.f32 %v5583, %v5596
      %v5608 = vpack.c.bf16 %v5604, %v5603
      %v5609 = vpack.c.bf16 %v5606, %v5605
      %v5610 = vpack.c.bf16 %v5607, %v5607
      %v5612 = vand.u32 %v5610, %v4743
      %5614 = vmatprep.subr.bf16.mxu0 0
      %5615 = vmatpush1.bf16.msra.mxu0 %v5608
      %5616 = vmatprep.subr.bf16.mxu0 0
      %5617 = vmatpush1.bf16.msra.mxu0 %v5609
      %5618 = vmatprep.subr.bf16.mxu0 0
      %5619 = vmatpush1.bf16.msra.mxu0 %v5612
      %5620 = vmatprep.subr.bf16.mxu0 0
      %5621 = vmatpush1.bf16.msra.mxu0 0
      %5622 = vmatprep.subr.bf16.mxu0 0
      %5623 = vmatpush1.bf16.msra.mxu0 0
      %5624 = vmatprep.subr.bf16.mxu0 0
      %5625 = vmatpush1.bf16.msra.mxu0 0
      %5626 = vmatprep.subr.bf16.mxu0 0
      %5627 = vmatpush1.bf16.msra.mxu0 0
      %5628 = vmatprep.subr.bf16.mxu0 0
      %5629 = vmatpush1.bf16.msra.mxu0 0
      %5630 = vmatprep.subr.bf16.mxu0 0
      %5631 = vmatpush1.bf16.msra.mxu0 0
      %5632 = vmatprep.subr.bf16.mxu0 0
      %5633 = vmatpush1.bf16.msra.mxu0 0
      %5634 = vmatprep.subr.bf16.mxu0 0
      %5635 = vmatpush1.bf16.msra.mxu0 0
      %5636 = vmatprep.subr.bf16.mxu0 0
      %5637 = vmatpush1.bf16.msra.mxu0 0
      %5638 = vmatprep.subr.bf16.mxu0 0
      %5639 = vmatpush1.bf16.msra.mxu0 0
      %5640 = vmatprep.subr.bf16.mxu0 0
      %5641 = vmatpush1.bf16.msra.mxu0 0
      %5642 = vmatprep.subr.bf16.mxu0 0
      %5643 = vmatpush1.bf16.msra.mxu0 0
      %5644 = vmatprep.subr.bf16.mxu0 0
      %5645 = vmatpush1.bf16.msra.mxu0 0
      %5646 = vmatprep.mubr.bf16.mxu0 0
      %5647 = vmatmul.mubr.bf16.gmra.mrb[0].mxu0 %v4735
      %v5648 = vpop.f32.mrb[0].mxu0
      %v5649 = vadd.f32 0.0, %v5648
      %v5650 = vpop.f32.mrb[0].mxu0
      %v5651 = vpop.f32.mrb[0].mxu0
      %v5652 = vadd.f32 0.0, %v5651
      %v5653 = vpop.f32.mrb[0].mxu0
      %5654 = vmatprep.mubr.bf16.mxu0 0
      %5655 = vmatmul.mubr.bf16.gmra.mrb[0].mxu0 %v4738
      %v5656 = vpop.f32.mrb[0].mxu0
      %v5657 = vadd.f32 0.0, %v5656
      %v5658 = vpop.f32.mrb[0].mxu0
      %v5659 = vpop.f32.mrb[0].mxu0
      %v5660 = vpop.f32.mrb[0].mxu0
      %5661 = vdwg.mxu0
      %5665 = vrot.lane.b32.xlu0 %v5071, 32
      %v5666 = vpop.permute.xlu0 %5665
      %5667 = vrot.lane.b32.xlu0 %v5074, 32
      %v5668 = vpop.permute.xlu0 %5667
      %5669 = vrot.lane.b32.xlu0 %v5079, 32
      %v5670 = vpop.permute.xlu0 %5669
      %5677 = vrot.lane.b32.xlu0 %v5360, 64
      %v5678 = vpop.permute.xlu0 %5677
      %5679 = vrot.lane.b32.xlu0 %v5363, 64
      %v5680 = vpop.permute.xlu0 %5679
      %5681 = vrot.lane.b32.xlu0 %v5368, 64
      %v5682 = vpop.permute.xlu0 %5681
      %5689 = vrot.lane.b32.xlu0 %v5649, 96
      %v5690 = vpop.permute.xlu0 %5689
      %5691 = vrot.lane.b32.xlu0 %v5652, 96
      %v5692 = vpop.permute.xlu0 %5691
      %5693 = vrot.lane.b32.xlu0 %v5657, 96
      %v5694 = vpop.permute.xlu0 %5693
      %vm5698 = vcmask 261120
      %v5699 = vsel %vm5698, %v4782, %v5666
      %v5700 = vsel %vm5698, %v4785, %v5668
      %v5701 = vsel %vm5698, %v4790, %v5670
      %vm5702 = vcmask 523264
      %v5703 = vsel %vm5702, %v5699, %v5678
      %v5704 = vsel %vm5702, %v5700, %v5680
      %v5705 = vsel %vm5702, %v5701, %v5682
      %vm5706 = vcmask 785408
      %v5707 = vsel %vm5706, %v5703, %v5690
      %v5708 = vsel %vm5706, %v5704, %v5692
      %v5709 = vsel %vm5706, %v5705, %v5694
      %v5710 = vpack.c.bf16 %v5708, %v5707
      %v5711 = vpack.c.bf16 %v5709, %v5709
      %v5714 = vunpack.c.l.b16 %v5710
      %v5715 = vunpack.c.h.b16 %v5710
      %v5716 = vunpack.c.l.b16 %v5711
      %v5717 = vpack.c.b16 %v5714, %v5714
      %v5718 = vpack.c.b16 %v5715, %v5715
      %v5719 = vpack.c.b16 %v5716, %v5716
      %5723 = vst [vmem:[%s278] sm:$0xf] %v5717
      %5724 = vst [vmem:[%s278 + $0x4] sm:$0xf] %v5718
      %vm5725 = vcmask 1041408
      %vm5726 = vsmask.f32 1280
      %vm5727 = vmand %vm5725, %vm5726
      %v5728 = vld [vmem:[%s278 + $0x8] sm:$0x3]
      %v5729 = vsel %vm5727, %v5719, %v5728
      %5730 = vst [vmem:[%s278 + $0x8] sm:$0x3] %v5729
      %p5731 = scmp.lt.s32.totalorder %s18, 1
      %s5732 = scalar_select %p5731, %s18, 1
      %s5733 = smul.addr %s5732, 3
      %s5734 = smul.addr %s5733, 4
      %s5735 = scalar_lea.vmem %s7, %s5734
      // Predicated region
      $region49: #{forward.2} parent=47 // pred_check
        %p5736 = pneg %p188
      $region50: #{forward.2} parent=47 // pred_check_branch
        %5738 = sbr.rel (%p5736) target = $region52
      $region51: #{forward.2} parent=47 // pred_region
        _
      $region52: #{forward.2} parent=47 // pred_fallthru
        _
    $region48: #{forward.2} parent=5 // pred_fallthru
      _
    %p5739 = scmp.le.s32.totalorder 2, %s13
    // Predicated region
    $region53: #{forward.2} parent=5 // pred_check
      %p5740 = pneg %p5739
    $region54: #{forward.2} parent=5 // pred_check_branch
      %5742 = sbr.rel (%p5740) target = $region56
    $region55: #{forward.2} parent=5 // pred_region
      %s5743 = ssub.s32 %s13, 2
      // Predicated region
      $region57: #{forward.2} parent=55 // pred_check
        %p5744 = pneg %p194
      $region58: #{forward.2} parent=55 // pred_check_branch
        %5746 = sbr.rel (%p5744) target = $region60
      $region59: #{forward.2} parent=55 // pred_region
        %p5747 = scmp.lt.s32.totalorder %s19, 1
        %s5748 = scalar_select %p5747, %s19, 1
        %s5749 = smul.addr %s5748, 3
        %s5750 = smul.addr %s5749, 4
        %s5751 = scalar_lea.vmem %s7, %s5750
      $region60: #{forward.2} parent=55 // pred_fallthru
        _
    $region56: #{forward.2} parent=5 // pred_fallthru
      _
  $region6: #{forward.2} parent=0 // loop_footer
    %s17 = sadd.s32 1, %s13
  $region7: #{forward.2} parent=0 // loop_footer_branch
    %12 = sbr.rel target = $region3
  $region8: #{forward.2} parent=0 // loop_exit
    _

// kernel: forward.3
$region0: #{forward.3}
  #allocation0 [shape = 'u32[]', space=smem, size = 0x4, offset = 0x4, fixed_abs, tag = 'smem constant byte address 0x4 - core index']
  #allocation1 [shape = 'u32[144,128]{1,0:T(1,128)}', space=vmem, size = 0x12000, scoped, tag = 'internal scratch']
  %s0 = inlined_call_operand.vmem [shape: bf16[16,2432], index: 0, kind: input, shape index: {}]
  %s1 = inlined_call_operand.vmem [shape: bf16[2432,192], index: 1, kind: input, shape index: {}]
  %s2 = inlined_call_operand.vmem [shape: f32[1,192], index: 2, kind: input, shape index: {}]
  %s3 = inlined_call_operand.vmem [shape: bf16[64,192], index: 3, kind: input, shape index: {}]
  %s4 = inlined_call_operand.vmem [shape: f32[1,192], index: 4, kind: input, shape index: {}]
  %s5 = inlined_call_operand.vmem [shape: f32[64,32], index: 5, kind: input, shape index: {}]
  %s6 = inlined_call_operand.vmem [shape: f32[1,32], index: 6, kind: input, shape index: {}]
  %s7 = inlined_call_operand.vmem [shape: f32[32,6], index: 7, kind: input, shape index: {}]
  %s8 = inlined_call_operand.vmem [shape: f32[1,6], index: 8, kind: input, shape index: {}]
  %s9 = inlined_call_operand.vmem [shape: f32[16,6], index: 9, kind: output, shape index: {}]
  %s10 = sld [smem:[#allocation0]]
  $region46: #{forward.3} parent=0
    _
  %s12 = ssub.s32 1, %s10
  %s13 = scalar_select 0, %s12, %s10
  // Predicated region
  $region2: #{forward.3} parent=0 // pred_check
    _
  $region3: #{forward.3} parent=0 // pred_check_branch
    %15 = sbr.rel (0) target = $region5
  $region4: #{forward.3} parent=0 // pred_region
    _
  $region5: #{forward.3} parent=0 // pred_fallthru
    _
  // Predicated region
  $region6: #{forward.3} parent=0 // pred_check
    _
  $region7: #{forward.3} parent=0 // pred_check_branch
    %17 = sbr.rel (0) target = $region9
  $region8: #{forward.3} parent=0 // pred_region
    _
  $region9: #{forward.3} parent=0 // pred_fallthru
    _
  // Predicated region
  $region10: #{forward.3} parent=0 // pred_check
    _
  $region11: #{forward.3} parent=0 // pred_check_branch
    %19 = sbr.rel (0) target = $region13
  $region12: #{forward.3} parent=0 // pred_region
    _
  $region13: #{forward.3} parent=0 // pred_fallthru
    _
  // Predicated region
  $region14: #{forward.3} parent=0 // pred_check
    _
  $region15: #{forward.3} parent=0 // pred_check_branch
    %21 = sbr.rel (0) target = $region17
  $region16: #{forward.3} parent=0 // pred_region
    _
  $region17: #{forward.3} parent=0 // pred_fallthru
    _
  // Predicated region
  $region18: #{forward.3} parent=0 // pred_check
    _
  $region19: #{forward.3} parent=0 // pred_check_branch
    %23 = sbr.rel (0) target = $region21
  $region20: #{forward.3} parent=0 // pred_region
    _
  $region21: #{forward.3} parent=0 // pred_fallthru
    _
  // Predicated region
  $region22: #{forward.3} parent=0 // pred_check
    _
  $region23: #{forward.3} parent=0 // pred_check_branch
    %25 = sbr.rel (0) target = $region25
  $region24: #{forward.3} parent=0 // pred_region
    _
  $region25: #{forward.3} parent=0 // pred_fallthru
    _
  // Predicated region
  $region26: #{forward.3} parent=0 // pred_check
    _
  $region27: #{forward.3} parent=0 // pred_check_branch
    %27 = sbr.rel (0) target = $region29
  $region28: #{forward.3} parent=0 // pred_region
    _
  $region29: #{forward.3} parent=0 // pred_fallthru
    _
  // Predicated region
  $region30: #{forward.3} parent=0 // pred_check
    _
  $region31: #{forward.3} parent=0 // pred_check_branch
    %29 = sbr.rel (0) target = $region33
  $region32: #{forward.3} parent=0 // pred_region
    _
  $region33: #{forward.3} parent=0 // pred_fallthru
    _
  // Predicated region
  $region34: #{forward.3} parent=0 // pred_check
    _
  $region35: #{forward.3} parent=0 // pred_check_branch
    %31 = sbr.rel (0) target = $region37
  $region36: #{forward.3} parent=0 // pred_region
    _
  $region37: #{forward.3} parent=0 // pred_fallthru
    _
  %v33 = vld [vmem:[%s0] sm:$0xff]
  %v34 = vld [vmem:[%s0 + $0x8] sm:$0xff]
  %v35 = vld [vmem:[%s0 + $0x10] sm:$0xff]
  %v36 = vld [vmem:[%s0 + $0x18] sm:$0xff]
  %v37 = vld [vmem:[%s0 + $0x20] sm:$0xff]
  %v38 = vld [vmem:[%s0 + $0x28] sm:$0xff]
  %v39 = vld [vmem:[%s0 + $0x30] sm:$0xff]
  %v40 = vld [vmem:[%s0 + $0x38] sm:$0xff]
  %v41 = vld [vmem:[%s0 + $0x40] sm:$0xff]
  %v42 = vld [vmem:[%s0 + $0x48] sm:$0xf]
  %v43 = vld [vmem:[%s0 + $0x4c] sm:$0xff]
  %v44 = vld [vmem:[%s0 + $0x54] sm:$0xff]
  %v45 = vld [vmem:[%s0 + $0x5c] sm:$0xff]
  %v46 = vld [vmem:[%s0 + $0x64] sm:$0xff]
  %v47 = vld [vmem:[%s0 + $0x6c] sm:$0xff]
  %v48 = vld [vmem:[%s0 + $0x74] sm:$0xff]
  %v49 = vld [vmem:[%s0 + $0x7c] sm:$0xff]
  %v50 = vld [vmem:[%s0 + $0x84] sm:$0xff]
  %v51 = vld [vmem:[%s0 + $0x8c] sm:$0xff]
  %v52 = vld [vmem:[%s0 + $0x94] sm:$0xf]
  %v53 = vld [vmem:[%s1] sm:$0xff]
  %v54 = vld [vmem:[%s1 + $0x8] sm:$0xff]
  %v55 = vld [vmem:[%s1 + $0x10] sm:$0xff]
  %v56 = vld [vmem:[%s1 + $0x18] sm:$0xff]
  %v57 = vld [vmem:[%s1 + $0x20] sm:$0xff]
  %v58 = vld [vmem:[%s1 + $0x28] sm:$0xff]
  %v59 = vld [vmem:[%s1 + $0x30] sm:$0xff]
  %v60 = vld [vmem:[%s1 + $0x38] sm:$0xff]
  %v61 = vld [vmem:[%s1 + $0x40] sm:$0xff]
  %v62 = vld [vmem:[%s1 + $0x48] sm:$0xff]
  %v63 = vld [vmem:[%s1 + $0x50] sm:$0xff]
  %v64 = vld [vmem:[%s1 + $0x58] sm:$0xff]
  %v65 = vld [vmem:[%s1 + $0x60] sm:$0xff]
  %v66 = vld [vmem:[%s1 + $0x68] sm:$0xff]
  %v67 = vld [vmem:[%s1 + $0x70] sm:$0xff]
  %v68 = vld [vmem:[%s1 + $0x78] sm:$0xff]
  %v69 = vld [vmem:[%s1 + $0x80] sm:$0xff]
  %v70 = vld [vmem:[%s1 + $0x88] sm:$0xff]
  %v71 = vld [vmem:[%s1 + $0x90] sm:$0xff]
  %v72 = vld [vmem:[%s1 + $0x98] sm:$0xff]
  %v73 = vld [vmem:[%s1 + $0xa0] sm:$0xff]
  %v74 = vld [vmem:[%s1 + $0xa8] sm:$0xff]
  %v75 = vld [vmem:[%s1 + $0xb0] sm:$0xff]
  %v76 = vld [vmem:[%s1 + $0xb8] sm:$0xff]
  %v77 = vld [vmem:[%s1 + $0xc0] sm:$0xff]
  %v78 = vld [vmem:[%s1 + $0xc8] sm:$0xff]
  %v79 = vld [vmem:[%s1 + $0xd0] sm:$0xff]
  %v80 = vld [vmem:[%s1 + $0xd8] sm:$0xff]
  %v81 = vld [vmem:[%s1 + $0xe0] sm:$0xff]
  %v82 = vld [vmem:[%s1 + $0xe8] sm:$0xff]
  %v83 = vld [vmem:[%s1 + $0xf0] sm:$0xff]
  %v84 = vld [vmem:[%s1 + $0xf8] sm:$0xff]
  %v85 = vld [vmem:[%s1 + $0x100] sm:$0xff]
  %v86 = vld [vmem:[%s1 + $0x108] sm:$0xff]
  %v87 = vld [vmem:[%s1 + $0x110] sm:$0xff]
  %v88 = vld [vmem:[%s1 + $0x118] sm:$0xff]
  %v89 = vld [vmem:[%s1 + $0x120] sm:$0xff]
  %v90 = vld [vmem:[%s1 + $0x128] sm:$0xff]
  %v91 = vld [vmem:[%s1 + $0x130] sm:$0xff]
  %v92 = vld [vmem:[%s1 + $0x138] sm:$0xff]
  %v93 = vld [vmem:[%s1 + $0x140] sm:$0xff]
  %v94 = vld [vmem:[%s1 + $0x148] sm:$0xff]
  %v95 = vld [vmem:[%s1 + $0x150] sm:$0xff]
  %v96 = vld [vmem:[%s1 + $0x158] sm:$0xff]
  %v97 = vld [vmem:[%s1 + $0x160] sm:$0xff]
  %v98 = vld [vmem:[%s1 + $0x168] sm:$0xff]
  %v99 = vld [vmem:[%s1 + $0x170] sm:$0xff]
  %v100 = vld [vmem:[%s1 + $0x178] sm:$0xff]
  %v101 = vld [vmem:[%s1 + $0x180] sm:$0xff]
  %v102 = vld [vmem:[%s1 + $0x188] sm:$0xff]
  %v103 = vld [vmem:[%s1 + $0x190] sm:$0xff]
  %v104 = vld [vmem:[%s1 + $0x198] sm:$0xff]
  %v105 = vld [vmem:[%s1 + $0x1a0] sm:$0xff]
  %v106 = vld [vmem:[%s1 + $0x1a8] sm:$0xff]
  %v107 = vld [vmem:[%s1 + $0x1b0] sm:$0xff]
  %v108 = vld [vmem:[%s1 + $0x1b8] sm:$0xff]
  %v109 = vld [vmem:[%s1 + $0x1c0] sm:$0xff]
  %v110 = vld [vmem:[%s1 + $0x1c8] sm:$0xff]
  %v111 = vld [vmem:[%s1 + $0x1d0] sm:$0xff]
  %v112 = vld [vmem:[%s1 + $0x1d8] sm:$0xff]
  %v113 = vld [vmem:[%s1 + $0x1e0] sm:$0xff]
  %v114 = vld [vmem:[%s1 + $0x1e8] sm:$0xff]
  %v115 = vld [vmem:[%s1 + $0x1f0] sm:$0xff]
  %v116 = vld [vmem:[%s1 + $0x1f8] sm:$0xff]
  %v117 = vld [vmem:[%s1 + $0x200] sm:$0xff]
  %v118 = vld [vmem:[%s1 + $0x208] sm:$0xff]
  %v119 = vld [vmem:[%s1 + $0x210] sm:$0xff]
  %v120 = vld [vmem:[%s1 + $0x218] sm:$0xff]
  %v121 = vld [vmem:[%s1 + $0x220] sm:$0xff]
  %v122 = vld [vmem:[%s1 + $0x228] sm:$0xff]
  %v123 = vld [vmem:[%s1 + $0x230] sm:$0xff]
  %v124 = vld [vmem:[%s1 + $0x238] sm:$0xff]
  %v125 = vld [vmem:[%s1 + $0x240] sm:$0xff]
  %v126 = vld [vmem:[%s1 + $0x248] sm:$0xff]
  %v127 = vld [vmem:[%s1 + $0x250] sm:$0xff]
  %v128 = vld [vmem:[%s1 + $0x258] sm:$0xff]
  %v129 = vld [vmem:[%s1 + $0x260] sm:$0xff]
  %v130 = vld [vmem:[%s1 + $0x268] sm:$0xff]
  %v131 = vld [vmem:[%s1 + $0x270] sm:$0xff]
  %v132 = vld [vmem:[%s1 + $0x278] sm:$0xff]
  %v133 = vld [vmem:[%s1 + $0x280] sm:$0xff]
  %v134 = vld [vmem:[%s1 + $0x288] sm:$0xff]
  %v135 = vld [vmem:[%s1 + $0x290] sm:$0xff]
  %v136 = vld [vmem:[%s1 + $0x298] sm:$0xff]
  %v137 = vld [vmem:[%s1 + $0x2a0] sm:$0xff]
  %v138 = vld [vmem:[%s1 + $0x2a8] sm:$0xff]
  %v139 = vld [vmem:[%s1 + $0x2b0] sm:$0xff]
  %v140 = vld [vmem:[%s1 + $0x2b8] sm:$0xff]
  %v141 = vld [vmem:[%s1 + $0x2c0] sm:$0xff]
  %v142 = vld [vmem:[%s1 + $0x2c8] sm:$0xff]
  %v143 = vld [vmem:[%s1 + $0x2d0] sm:$0xff]
  %v144 = vld [vmem:[%s1 + $0x2d8] sm:$0xff]
  %v145 = vld [vmem:[%s1 + $0x2e0] sm:$0xff]
  %v146 = vld [vmem:[%s1 + $0x2e8] sm:$0xff]
  %v147 = vld [vmem:[%s1 + $0x2f0] sm:$0xff]
  %v148 = vld [vmem:[%s1 + $0x2f8] sm:$0xff]
  %v149 = vld [vmem:[%s1 + $0x300] sm:$0xff]
  %v150 = vld [vmem:[%s1 + $0x308] sm:$0xff]
  %v151 = vld [vmem:[%s1 + $0x310] sm:$0xff]
  %v152 = vld [vmem:[%s1 + $0x318] sm:$0xff]
  %v153 = vld [vmem:[%s1 + $0x320] sm:$0xff]
  %v154 = vld [vmem:[%s1 + $0x328] sm:$0xff]
  %v155 = vld [vmem:[%s1 + $0x330] sm:$0xff]
  %v156 = vld [vmem:[%s1 + $0x338] sm:$0xff]
  %v157 = vld [vmem:[%s1 + $0x340] sm:$0xff]
  %v158 = vld [vmem:[%s1 + $0x348] sm:$0xff]
  %v159 = vld [vmem:[%s1 + $0x350] sm:$0xff]
  %v160 = vld [vmem:[%s1 + $0x358] sm:$0xff]
  %v161 = vld [vmem:[%s1 + $0x360] sm:$0xff]
  %v162 = vld [vmem:[%s1 + $0x368] sm:$0xff]
  %v163 = vld [vmem:[%s1 + $0x370] sm:$0xff]
  %v164 = vld [vmem:[%s1 + $0x378] sm:$0xff]
  %v165 = vld [vmem:[%s1 + $0x380] sm:$0xff]
  %v166 = vld [vmem:[%s1 + $0x388] sm:$0xff]
  %v167 = vld [vmem:[%s1 + $0x390] sm:$0xff]
  %v168 = vld [vmem:[%s1 + $0x398] sm:$0xff]
  %v169 = vld [vmem:[%s1 + $0x3a0] sm:$0xff]
  %v170 = vld [vmem:[%s1 + $0x3a8] sm:$0xff]
  %v171 = vld [vmem:[%s1 + $0x3b0] sm:$0xff]
  %v172 = vld [vmem:[%s1 + $0x3b8] sm:$0xff]
  %v173 = vld [vmem:[%s1 + $0x3c0] sm:$0xff]
  %v174 = vld [vmem:[%s1 + $0x3c8] sm:$0xff]
  %v175 = vld [vmem:[%s1 + $0x3d0] sm:$0xff]
  %v176 = vld [vmem:[%s1 + $0x3d8] sm:$0xff]
  %v177 = vld [vmem:[%s1 + $0x3e0] sm:$0xff]
  %v178 = vld [vmem:[%s1 + $0x3e8] sm:$0xff]
  %v179 = vld [vmem:[%s1 + $0x3f0] sm:$0xff]
  %v180 = vld [vmem:[%s1 + $0x3f8] sm:$0xff]
  %v181 = vld [vmem:[%s1 + $0x400] sm:$0xff]
  %v182 = vld [vmem:[%s1 + $0x408] sm:$0xff]
  %v183 = vld [vmem:[%s1 + $0x410] sm:$0xff]
  %v184 = vld [vmem:[%s1 + $0x418] sm:$0xff]
  %v185 = vld [vmem:[%s1 + $0x420] sm:$0xff]
  %v186 = vld [vmem:[%s1 + $0x428] sm:$0xff]
  %v187 = vld [vmem:[%s1 + $0x430] sm:$0xff]
  %v188 = vld [vmem:[%s1 + $0x438] sm:$0xff]
  %v189 = vld [vmem:[%s1 + $0x440] sm:$0xff]
  %v190 = vld [vmem:[%s1 + $0x448] sm:$0xff]
  %v191 = vld [vmem:[%s1 + $0x450] sm:$0xff]
  %v192 = vld [vmem:[%s1 + $0x458] sm:$0xff]
  %v193 = vld [vmem:[%s1 + $0x460] sm:$0xff]
  %v194 = vld [vmem:[%s1 + $0x468] sm:$0xff]
  %v195 = vld [vmem:[%s1 + $0x470] sm:$0xff]
  %v196 = vld [vmem:[%s1 + $0x478] sm:$0xff]
  %v197 = vld [vmem:[%s1 + $0x480] sm:$0xff]
  %v198 = vld [vmem:[%s1 + $0x488] sm:$0xff]
  %v199 = vld [vmem:[%s1 + $0x490] sm:$0xff]
  %v200 = vld [vmem:[%s1 + $0x498] sm:$0xff]
  %v201 = vld [vmem:[%s1 + $0x4a0] sm:$0xff]
  %v202 = vld [vmem:[%s1 + $0x4a8] sm:$0xff]
  %v203 = vld [vmem:[%s1 + $0x4b0] sm:$0xff]
  %v204 = vld [vmem:[%s1 + $0x4b8] sm:$0xff]
  %v205 = vld [vmem:[%s1 + $0x4c0] sm:$0xff]
  %v206 = vld [vmem:[%s1 + $0x4c8] sm:$0xff]
  %v207 = vld [vmem:[%s1 + $0x4d0] sm:$0xff]
  %v208 = vld [vmem:[%s1 + $0x4d8] sm:$0xff]
  %v209 = vld [vmem:[%s1 + $0x4e0] sm:$0xff]
  %v210 = vld [vmem:[%s1 + $0x4e8] sm:$0xff]
  %v211 = vld [vmem:[%s1 + $0x4f0] sm:$0xff]
  %v212 = vld [vmem:[%s1 + $0x4f8] sm:$0xff]
  %v213 = vld [vmem:[%s1 + $0x500] sm:$0xff]
  %v214 = vld [vmem:[%s1 + $0x508] sm:$0xff]
  %v215 = vld [vmem:[%s1 + $0x510] sm:$0xff]
  %v216 = vld [vmem:[%s1 + $0x518] sm:$0xff]
  %v217 = vld [vmem:[%s1 + $0x520] sm:$0xff]
  %v218 = vld [vmem:[%s1 + $0x528] sm:$0xff]
  %v219 = vld [vmem:[%s1 + $0x530] sm:$0xff]
  %v220 = vld [vmem:[%s1 + $0x538] sm:$0xff]
  %v221 = vld [vmem:[%s1 + $0x540] sm:$0xff]
  %v222 = vld [vmem:[%s1 + $0x548] sm:$0xff]
  %v223 = vld [vmem:[%s1 + $0x550] sm:$0xff]
  %v224 = vld [vmem:[%s1 + $0x558] sm:$0xff]
  %v225 = vld [vmem:[%s1 + $0x560] sm:$0xff]
  %v226 = vld [vmem:[%s1 + $0x568] sm:$0xff]
  %v227 = vld [vmem:[%s1 + $0x570] sm:$0xff]
  %v228 = vld [vmem:[%s1 + $0x578] sm:$0xff]
  %v229 = vld [vmem:[%s1 + $0x580] sm:$0xff]
  %v230 = vld [vmem:[%s1 + $0x588] sm:$0xff]
  %v231 = vld [vmem:[%s1 + $0x590] sm:$0xff]
  %v232 = vld [vmem:[%s1 + $0x598] sm:$0xff]
  %v233 = vld [vmem:[%s1 + $0x5a0] sm:$0xff]
  %v234 = vld [vmem:[%s1 + $0x5a8] sm:$0xff]
  %v235 = vld [vmem:[%s1 + $0x5b0] sm:$0xff]
  %v236 = vld [vmem:[%s1 + $0x5b8] sm:$0xff]
  %v237 = vld [vmem:[%s1 + $0x5c0] sm:$0xff]
  %v238 = vld [vmem:[%s1 + $0x5c8] sm:$0xff]
  %v239 = vld [vmem:[%s1 + $0x5d0] sm:$0xff]
  %v240 = vld [vmem:[%s1 + $0x5d8] sm:$0xff]
  %v241 = vld [vmem:[%s1 + $0x5e0] sm:$0xff]
  %v242 = vld [vmem:[%s1 + $0x5e8] sm:$0xff]
  %v243 = vld [vmem:[%s1 + $0x5f0] sm:$0xff]
  %v244 = vld [vmem:[%s1 + $0x5f8] sm:$0xff]
  %v245 = vld [vmem:[%s1 + $0x600] sm:$0xff]
  %v246 = vld [vmem:[%s1 + $0x608] sm:$0xff]
  %v247 = vld [vmem:[%s1 + $0x610] sm:$0xff]
  %v248 = vld [vmem:[%s1 + $0x618] sm:$0xff]
  %v249 = vld [vmem:[%s1 + $0x620] sm:$0xff]
  %v250 = vld [vmem:[%s1 + $0x628] sm:$0xff]
  %v251 = vld [vmem:[%s1 + $0x630] sm:$0xff]
  %v252 = vld [vmem:[%s1 + $0x638] sm:$0xff]
  %v253 = vld [vmem:[%s1 + $0x640] sm:$0xff]
  %v254 = vld [vmem:[%s1 + $0x648] sm:$0xff]
  %v255 = vld [vmem:[%s1 + $0x650] sm:$0xff]
  %v256 = vld [vmem:[%s1 + $0x658] sm:$0xff]
  %v257 = vld [vmem:[%s1 + $0x660] sm:$0xff]
  %v258 = vld [vmem:[%s1 + $0x668] sm:$0xff]
  %v259 = vld [vmem:[%s1 + $0x670] sm:$0xff]
  %v260 = vld [vmem:[%s1 + $0x678] sm:$0xff]
  %v261 = vld [vmem:[%s1 + $0x680] sm:$0xff]
  %v262 = vld [vmem:[%s1 + $0x688] sm:$0xff]
  %v263 = vld [vmem:[%s1 + $0x690] sm:$0xff]
  %v264 = vld [vmem:[%s1 + $0x698] sm:$0xff]
  %v265 = vld [vmem:[%s1 + $0x6a0] sm:$0xff]
  %v266 = vld [vmem:[%s1 + $0x6a8] sm:$0xff]
  %v267 = vld [vmem:[%s1 + $0x6b0] sm:$0xff]
  %v268 = vld [vmem:[%s1 + $0x6b8] sm:$0xff]
  %v269 = vld [vmem:[%s1 + $0x6c0] sm:$0xff]
  %v270 = vld [vmem:[%s1 + $0x6c8] sm:$0xff]
  %v271 = vld [vmem:[%s1 + $0x6d0] sm:$0xff]
  %v272 = vld [vmem:[%s1 + $0x6d8] sm:$0xff]
  %v273 = vld [vmem:[%s1 + $0x6e0] sm:$0xff]
  %v274 = vld [vmem:[%s1 + $0x6e8] sm:$0xff]
  %v275 = vld [vmem:[%s1 + $0x6f0] sm:$0xff]
  %v276 = vld [vmem:[%s1 + $0x6f8] sm:$0xff]
  %v277 = vld [vmem:[%s1 + $0x700] sm:$0xff]
  %v278 = vld [vmem:[%s1 + $0x708] sm:$0xff]
  %v279 = vld [vmem:[%s1 + $0x710] sm:$0xff]
  %v280 = vld [vmem:[%s1 + $0x718] sm:$0xff]
  %v281 = vld [vmem:[%s1 + $0x720] sm:$0xff]
  %v282 = vld [vmem:[%s1 + $0x728] sm:$0xff]
  %v283 = vld [vmem:[%s1 + $0x730] sm:$0xff]
  %v284 = vld [vmem:[%s1 + $0x738] sm:$0xff]
  %v285 = vld [vmem:[%s1 + $0x740] sm:$0xff]
  %v286 = vld [vmem:[%s1 + $0x748] sm:$0xff]
  %v287 = vld [vmem:[%s1 + $0x750] sm:$0xff]
  %v288 = vld [vmem:[%s1 + $0x758] sm:$0xff]
  %v289 = vld [vmem:[%s1 + $0x760] sm:$0xff]
  %v290 = vld [vmem:[%s1 + $0x768] sm:$0xff]
  %v291 = vld [vmem:[%s1 + $0x770] sm:$0xff]
  %v292 = vld [vmem:[%s1 + $0x778] sm:$0xff]
  %v293 = vld [vmem:[%s1 + $0x780] sm:$0xff]
  %v294 = vld [vmem:[%s1 + $0x788] sm:$0xff]
  %v295 = vld [vmem:[%s1 + $0x790] sm:$0xff]
  %v296 = vld [vmem:[%s1 + $0x798] sm:$0xff]
  %v297 = vld [vmem:[%s1 + $0x7a0] sm:$0xff]
  %v298 = vld [vmem:[%s1 + $0x7a8] sm:$0xff]
  %v299 = vld [vmem:[%s1 + $0x7b0] sm:$0xff]
  %v300 = vld [vmem:[%s1 + $0x7b8] sm:$0xff]
  %v301 = vld [vmem:[%s1 + $0x7c0] sm:$0xff]
  %v302 = vld [vmem:[%s1 + $0x7c8] sm:$0xff]
  %v303 = vld [vmem:[%s1 + $0x7d0] sm:$0xff]
  %v304 = vld [vmem:[%s1 + $0x7d8] sm:$0xff]
  %v305 = vld [vmem:[%s1 + $0x7e0] sm:$0xff]
  %v306 = vld [vmem:[%s1 + $0x7e8] sm:$0xff]
  %v307 = vld [vmem:[%s1 + $0x7f0] sm:$0xff]
  %v308 = vld [vmem:[%s1 + $0x7f8] sm:$0xff]
  %v309 = vld [vmem:[%s1 + $0x800] sm:$0xff]
  %v310 = vld [vmem:[%s1 + $0x808] sm:$0xff]
  %v311 = vld [vmem:[%s1 + $0x810] sm:$0xff]
  %v312 = vld [vmem:[%s1 + $0x818] sm:$0xff]
  %v313 = vld [vmem:[%s1 + $0x820] sm:$0xff]
  %v314 = vld [vmem:[%s1 + $0x828] sm:$0xff]
  %v315 = vld [vmem:[%s1 + $0x830] sm:$0xff]
  %v316 = vld [vmem:[%s1 + $0x838] sm:$0xff]
  %v317 = vld [vmem:[%s1 + $0x840] sm:$0xff]
  %v318 = vld [vmem:[%s1 + $0x848] sm:$0xff]
  %v319 = vld [vmem:[%s1 + $0x850] sm:$0xff]
  %v320 = vld [vmem:[%s1 + $0x858] sm:$0xff]
  %v321 = vld [vmem:[%s1 + $0x860] sm:$0xff]
  %v322 = vld [vmem:[%s1 + $0x868] sm:$0xff]
  %v323 = vld [vmem:[%s1 + $0x870] sm:$0xff]
  %v324 = vld [vmem:[%s1 + $0x878] sm:$0xff]
  %v325 = vld [vmem:[%s1 + $0x880] sm:$0xff]
  %v326 = vld [vmem:[%s1 + $0x888] sm:$0xff]
  %v327 = vld [vmem:[%s1 + $0x890] sm:$0xff]
  %v328 = vld [vmem:[%s1 + $0x898] sm:$0xff]
  %v329 = vld [vmem:[%s1 + $0x8a0] sm:$0xff]
  %v330 = vld [vmem:[%s1 + $0x8a8] sm:$0xff]
  %v331 = vld [vmem:[%s1 + $0x8b0] sm:$0xff]
  %v332 = vld [vmem:[%s1 + $0x8b8] sm:$0xff]
  %v333 = vld [vmem:[%s1 + $0x8c0] sm:$0xff]
  %v334 = vld [vmem:[%s1 + $0x8c8] sm:$0xff]
  %v335 = vld [vmem:[%s1 + $0x8d0] sm:$0xff]
  %v336 = vld [vmem:[%s1 + $0x8d8] sm:$0xff]
  %v337 = vld [vmem:[%s1 + $0x8e0] sm:$0xff]
  %v338 = vld [vmem:[%s1 + $0x8e8] sm:$0xff]
  %v339 = vld [vmem:[%s1 + $0x8f0] sm:$0xff]
  %v340 = vld [vmem:[%s1 + $0x8f8] sm:$0xff]
  %v341 = vld [vmem:[%s1 + $0x900] sm:$0xff]
  %v342 = vld [vmem:[%s1 + $0x908] sm:$0xff]
  %v343 = vld [vmem:[%s1 + $0x910] sm:$0xff]
  %v344 = vld [vmem:[%s1 + $0x918] sm:$0xff]
  %v345 = vld [vmem:[%s1 + $0x920] sm:$0xff]
  %v346 = vld [vmem:[%s1 + $0x928] sm:$0xff]
  %v347 = vld [vmem:[%s1 + $0x930] sm:$0xff]
  %v348 = vld [vmem:[%s1 + $0x938] sm:$0xff]
  %v349 = vld [vmem:[%s1 + $0x940] sm:$0xff]
  %v350 = vld [vmem:[%s1 + $0x948] sm:$0xff]
  %v351 = vld [vmem:[%s1 + $0x950] sm:$0xff]
  %v352 = vld [vmem:[%s1 + $0x958] sm:$0xff]
  %v353 = vld [vmem:[%s1 + $0x960] sm:$0xff]
  %v354 = vld [vmem:[%s1 + $0x968] sm:$0xff]
  %v355 = vld [vmem:[%s1 + $0x970] sm:$0xff]
  %v356 = vld [vmem:[%s1 + $0x978] sm:$0xff]
  %v357 = vld [vmem:[%s2] sm:$0x3]
  %v359 = vlaneseq
  %v360 = vshrl.u32 %v359, 7
  %v361 = vsub.s32 0, %v360
  %v362 = vrot.slane %v357, %v361
  %v363 = vlaneseq
  %v364 = vshrl.u32 %v363, 7
  %v365 = vsub.s32 1, %v364
  %v366 = vrot.slane %v357, %v365
  %v389 = vunpack.c.l.b16 %v33
  %v390 = vunpack.c.h.b16 %v33
  %v391 = vunpack.c.l.b16 %v34
  %v392 = vunpack.c.h.b16 %v34
  %v393 = vunpack.c.l.b16 %v35
  %v394 = vunpack.c.h.b16 %v35
  %v395 = vunpack.c.l.b16 %v36
  %v396 = vunpack.c.h.b16 %v36
  %v397 = vunpack.c.l.b16 %v37
  %v398 = vunpack.c.h.b16 %v37
  %v399 = vunpack.c.l.b16 %v38
  %v400 = vunpack.c.h.b16 %v38
  %v401 = vunpack.c.l.b16 %v39
  %v402 = vunpack.c.h.b16 %v39
  %v403 = vunpack.c.l.b16 %v40
  %v404 = vunpack.c.h.b16 %v40
  %v405 = vunpack.c.l.b16 %v41
  %v406 = vunpack.c.h.b16 %v41
  %v407 = vunpack.c.l.b16 %v42
  %v408 = vunpack.c.l.b16 %v43
  %v409 = vunpack.c.h.b16 %v43
  %v410 = vunpack.c.l.b16 %v44
  %v411 = vunpack.c.h.b16 %v44
  %v412 = vunpack.c.l.b16 %v45
  %v413 = vunpack.c.h.b16 %v45
  %v414 = vunpack.c.l.b16 %v46
  %v415 = vunpack.c.h.b16 %v46
  %v416 = vunpack.c.l.b16 %v47
  %v417 = vunpack.c.h.b16 %v47
  %v418 = vunpack.c.l.b16 %v48
  %v419 = vunpack.c.h.b16 %v48
  %v420 = vunpack.c.l.b16 %v49
  %v421 = vunpack.c.h.b16 %v49
  %v422 = vunpack.c.l.b16 %v50
  %v423 = vunpack.c.h.b16 %v50
  %v424 = vunpack.c.l.b16 %v51
  %v425 = vunpack.c.h.b16 %v51
  %v426 = vunpack.c.l.b16 %v52
  %v427 = vpack.c.b16 %v408, %v389
  %v428 = vpack.c.b16 %v409, %v390
  %v429 = vpack.c.b16 %v410, %v391
  %v430 = vpack.c.b16 %v411, %v392
  %v431 = vpack.c.b16 %v412, %v393
  %v432 = vpack.c.b16 %v413, %v394
  %v433 = vpack.c.b16 %v414, %v395
  %v434 = vpack.c.b16 %v415, %v396
  %v435 = vpack.c.b16 %v416, %v397
  %v436 = vpack.c.b16 %v417, %v398
  %v437 = vpack.c.b16 %v418, %v399
  %v438 = vpack.c.b16 %v419, %v400
  %v439 = vpack.c.b16 %v420, %v401
  %v440 = vpack.c.b16 %v421, %v402
  %v441 = vpack.c.b16 %v422, %v403
  %v442 = vpack.c.b16 %v423, %v404
  %v443 = vpack.c.b16 %v424, %v405
  %v444 = vpack.c.b16 %v425, %v406
  %v445 = vpack.c.b16 %v426, %v407
  %v769 = vunpack.c.l.b16 %v53
  %v770 = vunpack.c.h.b16 %v53
  %v771 = vunpack.c.l.b16 %v54
  %v772 = vunpack.c.h.b16 %v54
  %v773 = vunpack.c.l.b16 %v55
  %v774 = vunpack.c.h.b16 %v55
  %v775 = vunpack.c.l.b16 %v56
  %v776 = vunpack.c.h.b16 %v56
  %v777 = vunpack.c.l.b16 %v57
  %v778 = vunpack.c.h.b16 %v57
  %v779 = vunpack.c.l.b16 %v58
  %v780 = vunpack.c.h.b16 %v58
  %v781 = vunpack.c.l.b16 %v59
  %v782 = vunpack.c.h.b16 %v59
  %v783 = vunpack.c.l.b16 %v60
  %v784 = vunpack.c.h.b16 %v60
  %v785 = vunpack.c.l.b16 %v61
  %v786 = vunpack.c.h.b16 %v61
  %v787 = vunpack.c.l.b16 %v62
  %v788 = vunpack.c.h.b16 %v62
  %v789 = vunpack.c.l.b16 %v63
  %v790 = vunpack.c.h.b16 %v63
  %v791 = vunpack.c.l.b16 %v64
  %v792 = vunpack.c.h.b16 %v64
  %v793 = vunpack.c.l.b16 %v65
  %v794 = vunpack.c.h.b16 %v65
  %v795 = vunpack.c.l.b16 %v66
  %v796 = vunpack.c.h.b16 %v66
  %v797 = vunpack.c.l.b16 %v67
  %v798 = vunpack.c.h.b16 %v67
  %v799 = vunpack.c.l.b16 %v68
  %v800 = vunpack.c.h.b16 %v68
  %v801 = vunpack.c.l.b16 %v69
  %v802 = vunpack.c.h.b16 %v69
  %v803 = vunpack.c.l.b16 %v70
  %v804 = vunpack.c.h.b16 %v70
  %v805 = vunpack.c.l.b16 %v71
  %v806 = vunpack.c.h.b16 %v71
  %v807 = vunpack.c.l.b16 %v72
  %v808 = vunpack.c.h.b16 %v72
  %v809 = vunpack.c.l.b16 %v73
  %v810 = vunpack.c.h.b16 %v73
  %v811 = vunpack.c.l.b16 %v74
  %v812 = vunpack.c.h.b16 %v74
  %v813 = vunpack.c.l.b16 %v75
  %v814 = vunpack.c.h.b16 %v75
  %v815 = vunpack.c.l.b16 %v76
  %v816 = vunpack.c.h.b16 %v76
  %v817 = vunpack.c.l.b16 %v77
  %v818 = vunpack.c.h.b16 %v77
  %v819 = vunpack.c.l.b16 %v78
  %v820 = vunpack.c.h.b16 %v78
  %v821 = vunpack.c.l.b16 %v79
  %v822 = vunpack.c.h.b16 %v79
  %v823 = vunpack.c.l.b16 %v80
  %v824 = vunpack.c.h.b16 %v80
  %v825 = vunpack.c.l.b16 %v81
  %v826 = vunpack.c.h.b16 %v81
  %v827 = vunpack.c.l.b16 %v82
  %v828 = vunpack.c.h.b16 %v82
  %v829 = vunpack.c.l.b16 %v83
  %v830 = vunpack.c.h.b16 %v83
  %v831 = vunpack.c.l.b16 %v84
  %v832 = vunpack.c.h.b16 %v84
  %v833 = vunpack.c.l.b16 %v85
  %v834 = vunpack.c.h.b16 %v85
  %v835 = vunpack.c.l.b16 %v86
  %v836 = vunpack.c.h.b16 %v86
  %v837 = vunpack.c.l.b16 %v87
  %v838 = vunpack.c.h.b16 %v87
  %v839 = vunpack.c.l.b16 %v88
  %v840 = vunpack.c.h.b16 %v88
  %v841 = vunpack.c.l.b16 %v89
  %v842 = vunpack.c.h.b16 %v89
  %v843 = vunpack.c.l.b16 %v90
  %v844 = vunpack.c.h.b16 %v90
  %v845 = vunpack.c.l.b16 %v91
  %v846 = vunpack.c.h.b16 %v91
  %v847 = vunpack.c.l.b16 %v92
  %v848 = vunpack.c.h.b16 %v92
  %v849 = vunpack.c.l.b16 %v93
  %v850 = vunpack.c.h.b16 %v93
  %v851 = vunpack.c.l.b16 %v94
  %v852 = vunpack.c.h.b16 %v94
  %v853 = vunpack.c.l.b16 %v95
  %v854 = vunpack.c.h.b16 %v95
  %v855 = vunpack.c.l.b16 %v96
  %v856 = vunpack.c.h.b16 %v96
  %v857 = vunpack.c.l.b16 %v97
  %v858 = vunpack.c.h.b16 %v97
  %v859 = vunpack.c.l.b16 %v98
  %v860 = vunpack.c.h.b16 %v98
  %v861 = vunpack.c.l.b16 %v99
  %v862 = vunpack.c.h.b16 %v99
  %v863 = vunpack.c.l.b16 %v100
  %v864 = vunpack.c.h.b16 %v100
  %v865 = vunpack.c.l.b16 %v101
  %v866 = vunpack.c.h.b16 %v101
  %v867 = vunpack.c.l.b16 %v102
  %v868 = vunpack.c.h.b16 %v102
  %v869 = vunpack.c.l.b16 %v103
  %v870 = vunpack.c.h.b16 %v103
  %v871 = vunpack.c.l.b16 %v104
  %v872 = vunpack.c.h.b16 %v104
  %v873 = vunpack.c.l.b16 %v105
  %v874 = vunpack.c.h.b16 %v105
  %v875 = vunpack.c.l.b16 %v106
  %v876 = vunpack.c.h.b16 %v106
  %v877 = vunpack.c.l.b16 %v107
  %v878 = vunpack.c.h.b16 %v107
  %v879 = vunpack.c.l.b16 %v108
  %v880 = vunpack.c.h.b16 %v108
  %v881 = vunpack.c.l.b16 %v109
  %v882 = vunpack.c.h.b16 %v109
  %v883 = vunpack.c.l.b16 %v110
  %v884 = vunpack.c.h.b16 %v110
  %v885 = vunpack.c.l.b16 %v111
  %v886 = vunpack.c.h.b16 %v111
  %v887 = vunpack.c.l.b16 %v112
  %v888 = vunpack.c.h.b16 %v112
  %v889 = vunpack.c.l.b16 %v113
  %v890 = vunpack.c.h.b16 %v113
  %v891 = vunpack.c.l.b16 %v114
  %v892 = vunpack.c.h.b16 %v114
  %v893 = vunpack.c.l.b16 %v115
  %v894 = vunpack.c.h.b16 %v115
  %v895 = vunpack.c.l.b16 %v116
  %v896 = vunpack.c.h.b16 %v116
  %v897 = vunpack.c.l.b16 %v117
  %v898 = vunpack.c.h.b16 %v117
  %v899 = vunpack.c.l.b16 %v118
  %v900 = vunpack.c.h.b16 %v118
  %v901 = vunpack.c.l.b16 %v119
  %v902 = vunpack.c.h.b16 %v119
  %v903 = vunpack.c.l.b16 %v120
  %v904 = vunpack.c.h.b16 %v120
  %v905 = vunpack.c.l.b16 %v121
  %v906 = vunpack.c.h.b16 %v121
  %v907 = vunpack.c.l.b16 %v122
  %v908 = vunpack.c.h.b16 %v122
  %v909 = vunpack.c.l.b16 %v123
  %v910 = vunpack.c.h.b16 %v123
  %v911 = vunpack.c.l.b16 %v124
  %v912 = vunpack.c.h.b16 %v124
  %v913 = vunpack.c.l.b16 %v125
  %v914 = vunpack.c.h.b16 %v125
  %v915 = vunpack.c.l.b16 %v126
  %v916 = vunpack.c.h.b16 %v126
  %v917 = vunpack.c.l.b16 %v127
  %v918 = vunpack.c.h.b16 %v127
  %v919 = vunpack.c.l.b16 %v128
  %v920 = vunpack.c.h.b16 %v128
  %v921 = vunpack.c.l.b16 %v129
  %v922 = vunpack.c.h.b16 %v129
  %v923 = vunpack.c.l.b16 %v130
  %v924 = vunpack.c.h.b16 %v130
  %v925 = vunpack.c.l.b16 %v131
  %v926 = vunpack.c.h.b16 %v131
  %v927 = vunpack.c.l.b16 %v132
  %v928 = vunpack.c.h.b16 %v132
  %v929 = vunpack.c.l.b16 %v133
  %v930 = vunpack.c.h.b16 %v133
  %v931 = vunpack.c.l.b16 %v134
  %v932 = vunpack.c.h.b16 %v134
  %v933 = vunpack.c.l.b16 %v135
  %v934 = vunpack.c.h.b16 %v135
  %v935 = vunpack.c.l.b16 %v136
  %v936 = vunpack.c.h.b16 %v136
  %v937 = vunpack.c.l.b16 %v137
  %v938 = vunpack.c.h.b16 %v137
  %v939 = vunpack.c.l.b16 %v138
  %v940 = vunpack.c.h.b16 %v138
  %v941 = vunpack.c.l.b16 %v139
  %v942 = vunpack.c.h.b16 %v139
  %v943 = vunpack.c.l.b16 %v140
  %v944 = vunpack.c.h.b16 %v140
  %v945 = vunpack.c.l.b16 %v141
  %v946 = vunpack.c.h.b16 %v141
  %v947 = vunpack.c.l.b16 %v142
  %v948 = vunpack.c.h.b16 %v142
  %v949 = vunpack.c.l.b16 %v143
  %v950 = vunpack.c.h.b16 %v143
  %v951 = vunpack.c.l.b16 %v144
  %v952 = vunpack.c.h.b16 %v144
  %v953 = vunpack.c.l.b16 %v145
  %v954 = vunpack.c.h.b16 %v145
  %v955 = vunpack.c.l.b16 %v146
  %v956 = vunpack.c.h.b16 %v146
  %v957 = vunpack.c.l.b16 %v147
  %v958 = vunpack.c.h.b16 %v147
  %v959 = vunpack.c.l.b16 %v148
  %v960 = vunpack.c.h.b16 %v148
  %v961 = vunpack.c.l.b16 %v149
  %v962 = vunpack.c.h.b16 %v149
  %v963 = vunpack.c.l.b16 %v150
  %v964 = vunpack.c.h.b16 %v150
  %v965 = vunpack.c.l.b16 %v151
  %v966 = vunpack.c.h.b16 %v151
  %v967 = vunpack.c.l.b16 %v152
  %v968 = vunpack.c.h.b16 %v152
  %v969 = vunpack.c.l.b16 %v153
  %v970 = vunpack.c.h.b16 %v153
  %v971 = vunpack.c.l.b16 %v154
  %v972 = vunpack.c.h.b16 %v154
  %v973 = vunpack.c.l.b16 %v155
  %v974 = vunpack.c.h.b16 %v155
  %v975 = vunpack.c.l.b16 %v156
  %v976 = vunpack.c.h.b16 %v156
  %v977 = vunpack.c.l.b16 %v157
  %v978 = vunpack.c.h.b16 %v157
  %v979 = vunpack.c.l.b16 %v158
  %v980 = vunpack.c.h.b16 %v158
  %v981 = vunpack.c.l.b16 %v159
  %v982 = vunpack.c.h.b16 %v159
  %v983 = vunpack.c.l.b16 %v160
  %v984 = vunpack.c.h.b16 %v160
  %v985 = vunpack.c.l.b16 %v161
  %v986 = vunpack.c.h.b16 %v161
  %v987 = vunpack.c.l.b16 %v162
  %v988 = vunpack.c.h.b16 %v162
  %v989 = vunpack.c.l.b16 %v163
  %v990 = vunpack.c.h.b16 %v163
  %v991 = vunpack.c.l.b16 %v164
  %v992 = vunpack.c.h.b16 %v164
  %v993 = vunpack.c.l.b16 %v165
  %v994 = vunpack.c.h.b16 %v165
  %v995 = vunpack.c.l.b16 %v166
  %v996 = vunpack.c.h.b16 %v166
  %v997 = vunpack.c.l.b16 %v167
  %v998 = vunpack.c.h.b16 %v167
  %v999 = vunpack.c.l.b16 %v168
  %v1000 = vunpack.c.h.b16 %v168
  %v1001 = vunpack.c.l.b16 %v169
  %v1002 = vunpack.c.h.b16 %v169
  %v1003 = vunpack.c.l.b16 %v170
  %v1004 = vunpack.c.h.b16 %v170
  %v1005 = vunpack.c.l.b16 %v171
  %v1006 = vunpack.c.h.b16 %v171
  %v1007 = vunpack.c.l.b16 %v172
  %v1008 = vunpack.c.h.b16 %v172
  %v1009 = vunpack.c.l.b16 %v173
  %v1010 = vunpack.c.h.b16 %v173
  %v1011 = vunpack.c.l.b16 %v174
  %v1012 = vunpack.c.h.b16 %v174
  %v1013 = vunpack.c.l.b16 %v175
  %v1014 = vunpack.c.h.b16 %v175
  %v1015 = vunpack.c.l.b16 %v176
  %v1016 = vunpack.c.h.b16 %v176
  %v1017 = vunpack.c.l.b16 %v177
  %v1018 = vunpack.c.h.b16 %v177
  %v1019 = vunpack.c.l.b16 %v178
  %v1020 = vunpack.c.h.b16 %v178
  %v1021 = vunpack.c.l.b16 %v179
  %v1022 = vunpack.c.h.b16 %v179
  %v1023 = vunpack.c.l.b16 %v180
  %v1024 = vunpack.c.h.b16 %v180
  %v1025 = vunpack.c.l.b16 %v181
  %v1026 = vunpack.c.h.b16 %v181
  %v1027 = vunpack.c.l.b16 %v182
  %v1028 = vunpack.c.h.b16 %v182
  %v1029 = vunpack.c.l.b16 %v183
  %v1030 = vunpack.c.h.b16 %v183
  %v1031 = vunpack.c.l.b16 %v184
  %v1032 = vunpack.c.h.b16 %v184
  %v1033 = vunpack.c.l.b16 %v185
  %v1034 = vunpack.c.h.b16 %v185
  %v1035 = vunpack.c.l.b16 %v186
  %v1036 = vunpack.c.h.b16 %v186
  %v1037 = vunpack.c.l.b16 %v187
  %v1038 = vunpack.c.h.b16 %v187
  %v1039 = vunpack.c.l.b16 %v188
  %v1040 = vunpack.c.h.b16 %v188
  %v1041 = vunpack.c.l.b16 %v189
  %v1042 = vunpack.c.h.b16 %v189
  %v1043 = vunpack.c.l.b16 %v190
  %v1044 = vunpack.c.h.b16 %v190
  %v1045 = vunpack.c.l.b16 %v191
  %v1046 = vunpack.c.h.b16 %v191
  %v1047 = vunpack.c.l.b16 %v192
  %v1048 = vunpack.c.h.b16 %v192
  %v1049 = vunpack.c.l.b16 %v193
  %v1050 = vunpack.c.h.b16 %v193
  %v1051 = vunpack.c.l.b16 %v194
  %v1052 = vunpack.c.h.b16 %v194
  %v1053 = vunpack.c.l.b16 %v195
  %v1054 = vunpack.c.h.b16 %v195
  %v1055 = vunpack.c.l.b16 %v196
  %v1056 = vunpack.c.h.b16 %v196
  %v1057 = vunpack.c.l.b16 %v197
  %v1058 = vunpack.c.h.b16 %v197
  %v1059 = vunpack.c.l.b16 %v198
  %v1060 = vunpack.c.h.b16 %v198
  %v1061 = vunpack.c.l.b16 %v199
  %v1062 = vunpack.c.h.b16 %v199
  %v1063 = vunpack.c.l.b16 %v200
  %v1064 = vunpack.c.h.b16 %v200
  %v1065 = vunpack.c.l.b16 %v201
  %v1066 = vunpack.c.h.b16 %v201
  %v1067 = vunpack.c.l.b16 %v202
  %v1068 = vunpack.c.h.b16 %v202
  %v1069 = vunpack.c.l.b16 %v203
  %v1070 = vunpack.c.h.b16 %v203
  %v1071 = vunpack.c.l.b16 %v204
  %v1072 = vunpack.c.h.b16 %v204
  %v1073 = vunpack.c.l.b16 %v205
  %v1074 = vunpack.c.h.b16 %v205
  %v1075 = vunpack.c.l.b16 %v206
  %v1076 = vunpack.c.h.b16 %v206
  %v1077 = vunpack.c.l.b16 %v207
  %v1078 = vunpack.c.h.b16 %v207
  %v1079 = vunpack.c.l.b16 %v208
  %v1080 = vunpack.c.h.b16 %v208
  %v1081 = vunpack.c.l.b16 %v209
  %v1082 = vunpack.c.h.b16 %v209
  %v1083 = vunpack.c.l.b16 %v210
  %v1084 = vunpack.c.h.b16 %v210
  %v1085 = vunpack.c.l.b16 %v211
  %v1086 = vunpack.c.h.b16 %v211
  %v1087 = vunpack.c.l.b16 %v212
  %v1088 = vunpack.c.h.b16 %v212
  %v1089 = vunpack.c.l.b16 %v213
  %v1090 = vunpack.c.h.b16 %v213
  %v1091 = vunpack.c.l.b16 %v214
  %v1092 = vunpack.c.h.b16 %v214
  %v1093 = vunpack.c.l.b16 %v215
  %v1094 = vunpack.c.h.b16 %v215
  %v1095 = vunpack.c.l.b16 %v216
  %v1096 = vunpack.c.h.b16 %v216
  %v1097 = vunpack.c.l.b16 %v217
  %v1098 = vunpack.c.h.b16 %v217
  %v1099 = vunpack.c.l.b16 %v218
  %v1100 = vunpack.c.h.b16 %v218
  %v1101 = vunpack.c.l.b16 %v219
  %v1102 = vunpack.c.h.b16 %v219
  %v1103 = vunpack.c.l.b16 %v220
  %v1104 = vunpack.c.h.b16 %v220
  %v1105 = vunpack.c.l.b16 %v221
  %v1106 = vunpack.c.h.b16 %v221
  %v1107 = vunpack.c.l.b16 %v222
  %v1108 = vunpack.c.h.b16 %v222
  %v1109 = vunpack.c.l.b16 %v223
  %v1110 = vunpack.c.h.b16 %v223
  %v1111 = vunpack.c.l.b16 %v224
  %v1112 = vunpack.c.h.b16 %v224
  %v1113 = vunpack.c.l.b16 %v225
  %v1114 = vunpack.c.h.b16 %v225
  %v1115 = vunpack.c.l.b16 %v226
  %v1116 = vunpack.c.h.b16 %v226
  %v1117 = vunpack.c.l.b16 %v227
  %v1118 = vunpack.c.h.b16 %v227
  %v1119 = vunpack.c.l.b16 %v228
  %v1120 = vunpack.c.h.b16 %v228
  %v1121 = vunpack.c.l.b16 %v229
  %v1122 = vunpack.c.h.b16 %v229
  %v1123 = vunpack.c.l.b16 %v230
  %v1124 = vunpack.c.h.b16 %v230
  %v1125 = vunpack.c.l.b16 %v231
  %v1126 = vunpack.c.h.b16 %v231
  %v1127 = vunpack.c.l.b16 %v232
  %v1128 = vunpack.c.h.b16 %v232
  %v1129 = vunpack.c.l.b16 %v233
  %v1130 = vunpack.c.h.b16 %v233
  %v1131 = vunpack.c.l.b16 %v234
  %v1132 = vunpack.c.h.b16 %v234
  %v1133 = vunpack.c.l.b16 %v235
  %v1134 = vunpack.c.h.b16 %v235
  %v1135 = vunpack.c.l.b16 %v236
  %v1136 = vunpack.c.h.b16 %v236
  %v1137 = vunpack.c.l.b16 %v237
  %v1138 = vunpack.c.h.b16 %v237
  %v1139 = vunpack.c.l.b16 %v238
  %v1140 = vunpack.c.h.b16 %v238
  %v1141 = vunpack.c.l.b16 %v239
  %v1142 = vunpack.c.h.b16 %v239
  %v1143 = vunpack.c.l.b16 %v240
  %v1144 = vunpack.c.h.b16 %v240
  %v1145 = vunpack.c.l.b16 %v241
  %v1146 = vunpack.c.h.b16 %v241
  %v1147 = vunpack.c.l.b16 %v242
  %v1148 = vunpack.c.h.b16 %v242
  %v1149 = vunpack.c.l.b16 %v243
  %v1150 = vunpack.c.h.b16 %v243
  %v1151 = vunpack.c.l.b16 %v244
  %v1152 = vunpack.c.h.b16 %v244
  %v1153 = vunpack.c.l.b16 %v245
  %v1154 = vunpack.c.h.b16 %v245
  %v1155 = vunpack.c.l.b16 %v246
  %v1156 = vunpack.c.h.b16 %v246
  %v1157 = vunpack.c.l.b16 %v247
  %v1158 = vunpack.c.h.b16 %v247
  %v1159 = vunpack.c.l.b16 %v248
  %v1160 = vunpack.c.h.b16 %v248
  %v1161 = vunpack.c.l.b16 %v249
  %v1162 = vunpack.c.h.b16 %v249
  %v1163 = vunpack.c.l.b16 %v250
  %v1164 = vunpack.c.h.b16 %v250
  %v1165 = vunpack.c.l.b16 %v251
  %v1166 = vunpack.c.h.b16 %v251
  %v1167 = vunpack.c.l.b16 %v252
  %v1168 = vunpack.c.h.b16 %v252
  %v1169 = vunpack.c.l.b16 %v253
  %v1170 = vunpack.c.h.b16 %v253
  %v1171 = vunpack.c.l.b16 %v254
  %v1172 = vunpack.c.h.b16 %v254
  %v1173 = vunpack.c.l.b16 %v255
  %v1174 = vunpack.c.h.b16 %v255
  %v1175 = vunpack.c.l.b16 %v256
  %v1176 = vunpack.c.h.b16 %v256
  %v1177 = vunpack.c.l.b16 %v257
  %v1178 = vunpack.c.h.b16 %v257
  %v1179 = vunpack.c.l.b16 %v258
  %v1180 = vunpack.c.h.b16 %v258
  %v1181 = vunpack.c.l.b16 %v259
  %v1182 = vunpack.c.h.b16 %v259
  %v1183 = vunpack.c.l.b16 %v260
  %v1184 = vunpack.c.h.b16 %v260
  %v1185 = vunpack.c.l.b16 %v261
  %v1186 = vunpack.c.h.b16 %v261
  %v1187 = vunpack.c.l.b16 %v262
  %v1188 = vunpack.c.h.b16 %v262
  %v1189 = vunpack.c.l.b16 %v263
  %v1190 = vunpack.c.h.b16 %v263
  %v1191 = vunpack.c.l.b16 %v264
  %v1192 = vunpack.c.h.b16 %v264
  %v1193 = vunpack.c.l.b16 %v265
  %v1194 = vunpack.c.h.b16 %v265
  %v1195 = vunpack.c.l.b16 %v266
  %v1196 = vunpack.c.h.b16 %v266
  %v1197 = vunpack.c.l.b16 %v267
  %v1198 = vunpack.c.h.b16 %v267
  %v1199 = vunpack.c.l.b16 %v268
  %v1200 = vunpack.c.h.b16 %v268
  %v1201 = vunpack.c.l.b16 %v269
  %v1202 = vunpack.c.h.b16 %v269
  %v1203 = vunpack.c.l.b16 %v270
  %v1204 = vunpack.c.h.b16 %v270
  %v1205 = vunpack.c.l.b16 %v271
  %v1206 = vunpack.c.h.b16 %v271
  %v1207 = vunpack.c.l.b16 %v272
  %v1208 = vunpack.c.h.b16 %v272
  %v1209 = vunpack.c.l.b16 %v273
  %v1210 = vunpack.c.h.b16 %v273
  %v1211 = vunpack.c.l.b16 %v274
  %v1212 = vunpack.c.h.b16 %v274
  %v1213 = vunpack.c.l.b16 %v275
  %v1214 = vunpack.c.h.b16 %v275
  %v1215 = vunpack.c.l.b16 %v276
  %v1216 = vunpack.c.h.b16 %v276
  %v1217 = vunpack.c.l.b16 %v277
  %v1218 = vunpack.c.h.b16 %v277
  %v1219 = vunpack.c.l.b16 %v278
  %v1220 = vunpack.c.h.b16 %v278
  %v1221 = vunpack.c.l.b16 %v279
  %v1222 = vunpack.c.h.b16 %v279
  %v1223 = vunpack.c.l.b16 %v280
  %v1224 = vunpack.c.h.b16 %v280
  %v1225 = vunpack.c.l.b16 %v281
  %v1226 = vunpack.c.h.b16 %v281
  %v1227 = vunpack.c.l.b16 %v282
  %v1228 = vunpack.c.h.b16 %v282
  %v1229 = vunpack.c.l.b16 %v283
  %v1230 = vunpack.c.h.b16 %v283
  %v1231 = vunpack.c.l.b16 %v284
  %v1232 = vunpack.c.h.b16 %v284
  %v1233 = vunpack.c.l.b16 %v285
  %v1234 = vunpack.c.h.b16 %v285
  %v1235 = vunpack.c.l.b16 %v286
  %v1236 = vunpack.c.h.b16 %v286
  %v1237 = vunpack.c.l.b16 %v287
  %v1238 = vunpack.c.h.b16 %v287
  %v1239 = vunpack.c.l.b16 %v288
  %v1240 = vunpack.c.h.b16 %v288
  %v1241 = vunpack.c.l.b16 %v289
  %v1242 = vunpack.c.h.b16 %v289
  %v1243 = vunpack.c.l.b16 %v290
  %v1244 = vunpack.c.h.b16 %v290
  %v1245 = vunpack.c.l.b16 %v291
  %v1246 = vunpack.c.h.b16 %v291
  %v1247 = vunpack.c.l.b16 %v292
  %v1248 = vunpack.c.h.b16 %v292
  %v1249 = vunpack.c.l.b16 %v293
  %v1250 = vunpack.c.h.b16 %v293
  %v1251 = vunpack.c.l.b16 %v294
  %v1252 = vunpack.c.h.b16 %v294
  %v1253 = vunpack.c.l.b16 %v295
  %v1254 = vunpack.c.h.b16 %v295
  %v1255 = vunpack.c.l.b16 %v296
  %v1256 = vunpack.c.h.b16 %v296
  %v1257 = vunpack.c.l.b16 %v297
  %v1258 = vunpack.c.h.b16 %v297
  %v1259 = vunpack.c.l.b16 %v298
  %v1260 = vunpack.c.h.b16 %v298
  %v1261 = vunpack.c.l.b16 %v299
  %v1262 = vunpack.c.h.b16 %v299
  %v1263 = vunpack.c.l.b16 %v300
  %v1264 = vunpack.c.h.b16 %v300
  %v1265 = vunpack.c.l.b16 %v301
  %v1266 = vunpack.c.h.b16 %v301
  %v1267 = vunpack.c.l.b16 %v302
  %v1268 = vunpack.c.h.b16 %v302
  %v1269 = vunpack.c.l.b16 %v303
  %v1270 = vunpack.c.h.b16 %v303
  %v1271 = vunpack.c.l.b16 %v304
  %v1272 = vunpack.c.h.b16 %v304
  %v1273 = vunpack.c.l.b16 %v305
  %v1274 = vunpack.c.h.b16 %v305
  %v1275 = vunpack.c.l.b16 %v306
  %v1276 = vunpack.c.h.b16 %v306
  %v1277 = vunpack.c.l.b16 %v307
  %v1278 = vunpack.c.h.b16 %v307
  %v1279 = vunpack.c.l.b16 %v308
  %v1280 = vunpack.c.h.b16 %v308
  %v1281 = vunpack.c.l.b16 %v309
  %v1282 = vunpack.c.h.b16 %v309
  %v1283 = vunpack.c.l.b16 %v310
  %v1284 = vunpack.c.h.b16 %v310
  %v1285 = vunpack.c.l.b16 %v311
  %v1286 = vunpack.c.h.b16 %v311
  %v1287 = vunpack.c.l.b16 %v312
  %v1288 = vunpack.c.h.b16 %v312
  %v1289 = vunpack.c.l.b16 %v313
  %v1290 = vunpack.c.h.b16 %v313
  %v1291 = vunpack.c.l.b16 %v314
  %v1292 = vunpack.c.h.b16 %v314
  %v1293 = vunpack.c.l.b16 %v315
  %v1294 = vunpack.c.h.b16 %v315
  %v1295 = vunpack.c.l.b16 %v316
  %v1296 = vunpack.c.h.b16 %v316
  %v1297 = vunpack.c.l.b16 %v317
  %v1298 = vunpack.c.h.b16 %v317
  %v1299 = vunpack.c.l.b16 %v318
  %v1300 = vunpack.c.h.b16 %v318
  %v1301 = vunpack.c.l.b16 %v319
  %v1302 = vunpack.c.h.b16 %v319
  %v1303 = vunpack.c.l.b16 %v320
  %v1304 = vunpack.c.h.b16 %v320
  %v1305 = vunpack.c.l.b16 %v321
  %v1306 = vunpack.c.h.b16 %v321
  %v1307 = vunpack.c.l.b16 %v322
  %v1308 = vunpack.c.h.b16 %v322
  %v1309 = vunpack.c.l.b16 %v323
  %v1310 = vunpack.c.h.b16 %v323
  %v1311 = vunpack.c.l.b16 %v324
  %v1312 = vunpack.c.h.b16 %v324
  %v1313 = vunpack.c.l.b16 %v325
  %v1314 = vunpack.c.h.b16 %v325
  %v1315 = vunpack.c.l.b16 %v326
  %v1316 = vunpack.c.h.b16 %v326
  %v1317 = vunpack.c.l.b16 %v327
  %v1318 = vunpack.c.h.b16 %v327
  %v1319 = vunpack.c.l.b16 %v328
  %v1320 = vunpack.c.h.b16 %v328
  %v1321 = vunpack.c.l.b16 %v329
  %v1322 = vunpack.c.h.b16 %v329
  %v1323 = vunpack.c.l.b16 %v330
  %v1324 = vunpack.c.h.b16 %v330
  %v1325 = vunpack.c.l.b16 %v331
  %v1326 = vunpack.c.h.b16 %v331
  %v1327 = vunpack.c.l.b16 %v332
  %v1328 = vunpack.c.h.b16 %v332
  %v1329 = vunpack.c.l.b16 %v333
  %v1330 = vunpack.c.h.b16 %v333
  %v1331 = vunpack.c.l.b16 %v334
  %v1332 = vunpack.c.h.b16 %v334
  %v1333 = vunpack.c.l.b16 %v335
  %v1334 = vunpack.c.h.b16 %v335
  %v1335 = vunpack.c.l.b16 %v336
  %v1336 = vunpack.c.h.b16 %v336
  %v1337 = vunpack.c.l.b16 %v337
  %v1338 = vunpack.c.h.b16 %v337
  %v1339 = vunpack.c.l.b16 %v338
  %v1340 = vunpack.c.h.b16 %v338
  %v1341 = vunpack.c.l.b16 %v339
  %v1342 = vunpack.c.h.b16 %v339
  %v1343 = vunpack.c.l.b16 %v340
  %v1344 = vunpack.c.h.b16 %v340
  %v1345 = vunpack.c.l.b16 %v341
  %v1346 = vunpack.c.h.b16 %v341
  %v1347 = vunpack.c.l.b16 %v342
  %v1348 = vunpack.c.h.b16 %v342
  %v1349 = vunpack.c.l.b16 %v343
  %v1350 = vunpack.c.h.b16 %v343
  %v1351 = vunpack.c.l.b16 %v344
  %v1352 = vunpack.c.h.b16 %v344
  %v1353 = vunpack.c.l.b16 %v345
  %v1354 = vunpack.c.h.b16 %v345
  %v1355 = vunpack.c.l.b16 %v346
  %v1356 = vunpack.c.h.b16 %v346
  %v1357 = vunpack.c.l.b16 %v347
  %v1358 = vunpack.c.h.b16 %v347
  %v1359 = vunpack.c.l.b16 %v348
  %v1360 = vunpack.c.h.b16 %v348
  %v1361 = vunpack.c.l.b16 %v349
  %v1362 = vunpack.c.h.b16 %v349
  %v1363 = vunpack.c.l.b16 %v350
  %v1364 = vunpack.c.h.b16 %v350
  %v1365 = vunpack.c.l.b16 %v351
  %v1366 = vunpack.c.h.b16 %v351
  %v1367 = vunpack.c.l.b16 %v352
  %v1368 = vunpack.c.h.b16 %v352
  %v1369 = vunpack.c.l.b16 %v353
  %v1370 = vunpack.c.h.b16 %v353
  %v1371 = vunpack.c.l.b16 %v354
  %v1372 = vunpack.c.h.b16 %v354
  %v1373 = vunpack.c.l.b16 %v355
  %v1374 = vunpack.c.h.b16 %v355
  %v1375 = vunpack.c.l.b16 %v356
  %v1376 = vunpack.c.h.b16 %v356
  %v1377 = vpack.c.b16 %v771, %v769
  %v1378 = vpack.c.b16 %v772, %v770
  %v1379 = vpack.c.b16 %v775, %v773
  %v1380 = vpack.c.b16 %v776, %v774
  %v1381 = vpack.c.b16 %v779, %v777
  %v1382 = vpack.c.b16 %v780, %v778
  %v1383 = vpack.c.b16 %v783, %v781
  %v1384 = vpack.c.b16 %v784, %v782
  %v1385 = vpack.c.b16 %v787, %v785
  %v1386 = vpack.c.b16 %v788, %v786
  %v1387 = vpack.c.b16 %v791, %v789
  %v1388 = vpack.c.b16 %v792, %v790
  %v1389 = vpack.c.b16 %v795, %v793
  %v1390 = vpack.c.b16 %v796, %v794
  %v1391 = vpack.c.b16 %v799, %v797
  %v1392 = vpack.c.b16 %v800, %v798
  %v1393 = vpack.c.b16 %v803, %v801
  %v1394 = vpack.c.b16 %v804, %v802
  %v1395 = vpack.c.b16 %v807, %v805
  %v1396 = vpack.c.b16 %v808, %v806
  %v1397 = vpack.c.b16 %v811, %v809
  %v1398 = vpack.c.b16 %v812, %v810
  %v1399 = vpack.c.b16 %v815, %v813
  %v1400 = vpack.c.b16 %v816, %v814
  %v1401 = vpack.c.b16 %v819, %v817
  %v1402 = vpack.c.b16 %v820, %v818
  %v1403 = vpack.c.b16 %v823, %v821
  %v1404 = vpack.c.b16 %v824, %v822
  %v1405 = vpack.c.b16 %v827, %v825
  %v1406 = vpack.c.b16 %v828, %v826
  %v1407 = vpack.c.b16 %v831, %v829
  %v1408 = vpack.c.b16 %v832, %v830
  %v1409 = vpack.c.b16 %v835, %v833
  %v1410 = vpack.c.b16 %v836, %v834
  %v1411 = vpack.c.b16 %v839, %v837
  %v1412 = vpack.c.b16 %v840, %v838
  %v1413 = vpack.c.b16 %v843, %v841
  %v1414 = vpack.c.b16 %v844, %v842
  %v1415 = vpack.c.b16 %v847, %v845
  %v1416 = vpack.c.b16 %v848, %v846
  %v1417 = vpack.c.b16 %v851, %v849
  %v1418 = vpack.c.b16 %v852, %v850
  %v1419 = vpack.c.b16 %v855, %v853
  %v1420 = vpack.c.b16 %v856, %v854
  %v1421 = vpack.c.b16 %v859, %v857
  %v1422 = vpack.c.b16 %v860, %v858
  %v1423 = vpack.c.b16 %v863, %v861
  %v1424 = vpack.c.b16 %v864, %v862
  %v1425 = vpack.c.b16 %v867, %v865
  %v1426 = vpack.c.b16 %v868, %v866
  %v1427 = vpack.c.b16 %v871, %v869
  %v1428 = vpack.c.b16 %v872, %v870
  %v1429 = vpack.c.b16 %v875, %v873
  %v1430 = vpack.c.b16 %v876, %v874
  %v1431 = vpack.c.b16 %v879, %v877
  %v1432 = vpack.c.b16 %v880, %v878
  %v1433 = vpack.c.b16 %v883, %v881
  %v1434 = vpack.c.b16 %v884, %v882
  %v1435 = vpack.c.b16 %v887, %v885
  %v1436 = vpack.c.b16 %v888, %v886
  %v1437 = vpack.c.b16 %v891, %v889
  %v1438 = vpack.c.b16 %v892, %v890
  %v1439 = vpack.c.b16 %v895, %v893
  %v1440 = vpack.c.b16 %v896, %v894
  %v1441 = vpack.c.b16 %v899, %v897
  %v1442 = vpack.c.b16 %v900, %v898
  %v1443 = vpack.c.b16 %v903, %v901
  %v1444 = vpack.c.b16 %v904, %v902
  %v1445 = vpack.c.b16 %v907, %v905
  %v1446 = vpack.c.b16 %v908, %v906
  %v1447 = vpack.c.b16 %v911, %v909
  %v1448 = vpack.c.b16 %v912, %v910
  %v1449 = vpack.c.b16 %v915, %v913
  %v1450 = vpack.c.b16 %v916, %v914
  %v1451 = vpack.c.b16 %v919, %v917
  %v1452 = vpack.c.b16 %v920, %v918
  %v1453 = vpack.c.b16 %v923, %v921
  %v1454 = vpack.c.b16 %v924, %v922
  %v1455 = vpack.c.b16 %v927, %v925
  %v1456 = vpack.c.b16 %v928, %v926
  %v1457 = vpack.c.b16 %v931, %v929
  %v1458 = vpack.c.b16 %v932, %v930
  %v1459 = vpack.c.b16 %v935, %v933
  %v1460 = vpack.c.b16 %v936, %v934
  %v1461 = vpack.c.b16 %v939, %v937
  %v1462 = vpack.c.b16 %v940, %v938
  %v1463 = vpack.c.b16 %v943, %v941
  %v1464 = vpack.c.b16 %v944, %v942
  %v1465 = vpack.c.b16 %v947, %v945
  %v1466 = vpack.c.b16 %v948, %v946
  %v1467 = vpack.c.b16 %v951, %v949
  %v1468 = vpack.c.b16 %v952, %v950
  %v1469 = vpack.c.b16 %v955, %v953
  %v1470 = vpack.c.b16 %v956, %v954
  %v1471 = vpack.c.b16 %v959, %v957
  %v1472 = vpack.c.b16 %v960, %v958
  %v1473 = vpack.c.b16 %v963, %v961
  %v1474 = vpack.c.b16 %v964, %v962
  %v1475 = vpack.c.b16 %v967, %v965
  %v1476 = vpack.c.b16 %v968, %v966
  %v1477 = vpack.c.b16 %v971, %v969
  %v1478 = vpack.c.b16 %v972, %v970
  %v1479 = vpack.c.b16 %v975, %v973
  %v1480 = vpack.c.b16 %v976, %v974
  %v1481 = vpack.c.b16 %v979, %v977
  %v1482 = vpack.c.b16 %v980, %v978
  %v1483 = vpack.c.b16 %v983, %v981
  %v1484 = vpack.c.b16 %v984, %v982
  %v1485 = vpack.c.b16 %v987, %v985
  %v1486 = vpack.c.b16 %v988, %v986
  %v1487 = vpack.c.b16 %v991, %v989
  %v1488 = vpack.c.b16 %v992, %v990
  %v1489 = vpack.c.b16 %v995, %v993
  %v1490 = vpack.c.b16 %v996, %v994
  %v1491 = vpack.c.b16 %v999, %v997
  %v1492 = vpack.c.b16 %v1000, %v998
  %v1493 = vpack.c.b16 %v1003, %v1001
  %v1494 = vpack.c.b16 %v1004, %v1002
  %v1495 = vpack.c.b16 %v1007, %v1005
  %v1496 = vpack.c.b16 %v1008, %v1006
  %v1497 = vpack.c.b16 %v1011, %v1009
  %v1498 = vpack.c.b16 %v1012, %v1010
  %v1499 = vpack.c.b16 %v1015, %v1013
  %v1500 = vpack.c.b16 %v1016, %v1014
  %v1501 = vpack.c.b16 %v1019, %v1017
  %v1502 = vpack.c.b16 %v1020, %v1018
  %v1503 = vpack.c.b16 %v1023, %v1021
  %v1504 = vpack.c.b16 %v1024, %v1022
  %v1505 = vpack.c.b16 %v1027, %v1025
  %v1506 = vpack.c.b16 %v1028, %v1026
  %v1507 = vpack.c.b16 %v1031, %v1029
  %v1508 = vpack.c.b16 %v1032, %v1030
  %v1509 = vpack.c.b16 %v1035, %v1033
  %v1510 = vpack.c.b16 %v1036, %v1034
  %v1511 = vpack.c.b16 %v1039, %v1037
  %v1512 = vpack.c.b16 %v1040, %v1038
  %v1513 = vpack.c.b16 %v1043, %v1041
  %v1514 = vpack.c.b16 %v1044, %v1042
  %v1515 = vpack.c.b16 %v1047, %v1045
  %v1516 = vpack.c.b16 %v1048, %v1046
  %v1517 = vpack.c.b16 %v1051, %v1049
  %v1518 = vpack.c.b16 %v1052, %v1050
  %v1519 = vpack.c.b16 %v1055, %v1053
  %v1520 = vpack.c.b16 %v1056, %v1054
  %v1521 = vpack.c.b16 %v1059, %v1057
  %v1522 = vpack.c.b16 %v1060, %v1058
  %v1523 = vpack.c.b16 %v1063, %v1061
  %v1524 = vpack.c.b16 %v1064, %v1062
  %v1525 = vpack.c.b16 %v1067, %v1065
  %v1526 = vpack.c.b16 %v1068, %v1066
  %v1527 = vpack.c.b16 %v1071, %v1069
  %v1528 = vpack.c.b16 %v1072, %v1070
  %v1529 = vpack.c.b16 %v1075, %v1073
  %v1530 = vpack.c.b16 %v1076, %v1074
  %v1531 = vpack.c.b16 %v1079, %v1077
  %v1532 = vpack.c.b16 %v1080, %v1078
  %v1533 = vpack.c.b16 %v1083, %v1081
  %v1534 = vpack.c.b16 %v1084, %v1082
  %v1535 = vpack.c.b16 %v1087, %v1085
  %v1536 = vpack.c.b16 %v1088, %v1086
  %v1537 = vpack.c.b16 %v1091, %v1089
  %v1538 = vpack.c.b16 %v1092, %v1090
  %v1539 = vpack.c.b16 %v1095, %v1093
  %v1540 = vpack.c.b16 %v1096, %v1094
  %v1541 = vpack.c.b16 %v1099, %v1097
  %v1542 = vpack.c.b16 %v1100, %v1098
  %v1543 = vpack.c.b16 %v1103, %v1101
  %v1544 = vpack.c.b16 %v1104, %v1102
  %v1545 = vpack.c.b16 %v1107, %v1105
  %v1546 = vpack.c.b16 %v1108, %v1106
  %v1547 = vpack.c.b16 %v1111, %v1109
  %v1548 = vpack.c.b16 %v1112, %v1110
  %v1549 = vpack.c.b16 %v1115, %v1113
  %v1550 = vpack.c.b16 %v1116, %v1114
  %v1551 = vpack.c.b16 %v1119, %v1117
  %v1552 = vpack.c.b16 %v1120, %v1118
  %v1553 = vpack.c.b16 %v1123, %v1121
  %v1554 = vpack.c.b16 %v1124, %v1122
  %v1555 = vpack.c.b16 %v1127, %v1125
  %v1556 = vpack.c.b16 %v1128, %v1126
  %v1557 = vpack.c.b16 %v1131, %v1129
  %v1558 = vpack.c.b16 %v1132, %v1130
  %v1559 = vpack.c.b16 %v1135, %v1133
  %v1560 = vpack.c.b16 %v1136, %v1134
  %v1561 = vpack.c.b16 %v1139, %v1137
  %v1562 = vpack.c.b16 %v1140, %v1138
  %v1563 = vpack.c.b16 %v1143, %v1141
  %v1564 = vpack.c.b16 %v1144, %v1142
  %v1565 = vpack.c.b16 %v1147, %v1145
  %v1566 = vpack.c.b16 %v1148, %v1146
  %v1567 = vpack.c.b16 %v1151, %v1149
  %v1568 = vpack.c.b16 %v1152, %v1150
  %v1569 = vpack.c.b16 %v1155, %v1153
  %v1570 = vpack.c.b16 %v1156, %v1154
  %v1571 = vpack.c.b16 %v1159, %v1157
  %v1572 = vpack.c.b16 %v1160, %v1158
  %v1573 = vpack.c.b16 %v1163, %v1161
  %v1574 = vpack.c.b16 %v1164, %v1162
  %v1575 = vpack.c.b16 %v1167, %v1165
  %v1576 = vpack.c.b16 %v1168, %v1166
  %v1577 = vpack.c.b16 %v1171, %v1169
  %v1578 = vpack.c.b16 %v1172, %v1170
  %v1579 = vpack.c.b16 %v1175, %v1173
  %v1580 = vpack.c.b16 %v1176, %v1174
  %v1581 = vpack.c.b16 %v1179, %v1177
  %v1582 = vpack.c.b16 %v1180, %v1178
  %v1583 = vpack.c.b16 %v1183, %v1181
  %v1584 = vpack.c.b16 %v1184, %v1182
  %v1585 = vpack.c.b16 %v1187, %v1185
  %v1586 = vpack.c.b16 %v1188, %v1186
  %v1587 = vpack.c.b16 %v1191, %v1189
  %v1588 = vpack.c.b16 %v1192, %v1190
  %v1589 = vpack.c.b16 %v1195, %v1193
  %v1590 = vpack.c.b16 %v1196, %v1194
  %v1591 = vpack.c.b16 %v1199, %v1197
  %v1592 = vpack.c.b16 %v1200, %v1198
  %v1593 = vpack.c.b16 %v1203, %v1201
  %v1594 = vpack.c.b16 %v1204, %v1202
  %v1595 = vpack.c.b16 %v1207, %v1205
  %v1596 = vpack.c.b16 %v1208, %v1206
  %v1597 = vpack.c.b16 %v1211, %v1209
  %v1598 = vpack.c.b16 %v1212, %v1210
  %v1599 = vpack.c.b16 %v1215, %v1213
  %v1600 = vpack.c.b16 %v1216, %v1214
  %v1601 = vpack.c.b16 %v1219, %v1217
  %v1602 = vpack.c.b16 %v1220, %v1218
  %v1603 = vpack.c.b16 %v1223, %v1221
  %v1604 = vpack.c.b16 %v1224, %v1222
  %v1605 = vpack.c.b16 %v1227, %v1225
  %v1606 = vpack.c.b16 %v1228, %v1226
  %v1607 = vpack.c.b16 %v1231, %v1229
  %v1608 = vpack.c.b16 %v1232, %v1230
  %v1609 = vpack.c.b16 %v1235, %v1233
  %v1610 = vpack.c.b16 %v1236, %v1234
  %v1611 = vpack.c.b16 %v1239, %v1237
  %v1612 = vpack.c.b16 %v1240, %v1238
  %v1613 = vpack.c.b16 %v1243, %v1241
  %v1614 = vpack.c.b16 %v1244, %v1242
  %v1615 = vpack.c.b16 %v1247, %v1245
  %v1616 = vpack.c.b16 %v1248, %v1246
  %v1617 = vpack.c.b16 %v1251, %v1249
  %v1618 = vpack.c.b16 %v1252, %v1250
  %v1619 = vpack.c.b16 %v1255, %v1253
  %v1620 = vpack.c.b16 %v1256, %v1254
  %v1621 = vpack.c.b16 %v1259, %v1257
  %v1622 = vpack.c.b16 %v1260, %v1258
  %v1623 = vpack.c.b16 %v1263, %v1261
  %v1624 = vpack.c.b16 %v1264, %v1262
  %v1625 = vpack.c.b16 %v1267, %v1265
  %v1626 = vpack.c.b16 %v1268, %v1266
  %v1627 = vpack.c.b16 %v1271, %v1269
  %v1628 = vpack.c.b16 %v1272, %v1270
  %v1629 = vpack.c.b16 %v1275, %v1273
  %v1630 = vpack.c.b16 %v1276, %v1274
  %v1631 = vpack.c.b16 %v1279, %v1277
  %v1632 = vpack.c.b16 %v1280, %v1278
  %v1633 = vpack.c.b16 %v1283, %v1281
  %v1634 = vpack.c.b16 %v1284, %v1282
  %v1635 = vpack.c.b16 %v1287, %v1285
  %v1636 = vpack.c.b16 %v1288, %v1286
  %v1637 = vpack.c.b16 %v1291, %v1289
  %v1638 = vpack.c.b16 %v1292, %v1290
  %v1639 = vpack.c.b16 %v1295, %v1293
  %v1640 = vpack.c.b16 %v1296, %v1294
  %v1641 = vpack.c.b16 %v1299, %v1297
  %v1642 = vpack.c.b16 %v1300, %v1298
  %v1643 = vpack.c.b16 %v1303, %v1301
  %v1644 = vpack.c.b16 %v1304, %v1302
  %v1645 = vpack.c.b16 %v1307, %v1305
  %v1646 = vpack.c.b16 %v1308, %v1306
  %v1647 = vpack.c.b16 %v1311, %v1309
  %v1648 = vpack.c.b16 %v1312, %v1310
  %v1649 = vpack.c.b16 %v1315, %v1313
  %v1650 = vpack.c.b16 %v1316, %v1314
  %v1651 = vpack.c.b16 %v1319, %v1317
  %v1652 = vpack.c.b16 %v1320, %v1318
  %v1653 = vpack.c.b16 %v1323, %v1321
  %v1654 = vpack.c.b16 %v1324, %v1322
  %v1655 = vpack.c.b16 %v1327, %v1325
  %v1656 = vpack.c.b16 %v1328, %v1326
  %v1657 = vpack.c.b16 %v1331, %v1329
  %v1658 = vpack.c.b16 %v1332, %v1330
  %v1659 = vpack.c.b16 %v1335, %v1333
  %v1660 = vpack.c.b16 %v1336, %v1334
  %v1661 = vpack.c.b16 %v1339, %v1337
  %v1662 = vpack.c.b16 %v1340, %v1338
  %v1663 = vpack.c.b16 %v1343, %v1341
  %v1664 = vpack.c.b16 %v1344, %v1342
  %v1665 = vpack.c.b16 %v1347, %v1345
  %v1666 = vpack.c.b16 %v1348, %v1346
  %v1667 = vpack.c.b16 %v1351, %v1349
  %v1668 = vpack.c.b16 %v1352, %v1350
  %v1669 = vpack.c.b16 %v1355, %v1353
  %v1670 = vpack.c.b16 %v1356, %v1354
  %v1671 = vpack.c.b16 %v1359, %v1357
  %v1672 = vpack.c.b16 %v1360, %v1358
  %v1673 = vpack.c.b16 %v1363, %v1361
  %v1674 = vpack.c.b16 %v1364, %v1362
  %v1675 = vpack.c.b16 %v1367, %v1365
  %v1676 = vpack.c.b16 %v1368, %v1366
  %v1677 = vpack.c.b16 %v1371, %v1369
  %v1678 = vpack.c.b16 %v1372, %v1370
  %v1679 = vpack.c.b16 %v1375, %v1373
  %v1680 = vpack.c.b16 %v1376, %v1374
  %1985 = vmatprep.subr.bf16.mxu0 %v1378
  %1986 = vmatpush1.bf16.msra.mxu0 %v1377
  %1987 = vmatprep.subr.bf16.mxu0 %v1380
  %1988 = vmatpush1.bf16.msra.mxu0 %v1379
  %1989 = vmatprep.subr.bf16.mxu0 %v1382
  %1990 = vmatpush1.bf16.msra.mxu0 %v1381
  %1991 = vmatprep.subr.bf16.mxu0 %v1384
  %1992 = vmatpush1.bf16.msra.mxu0 %v1383
  %1993 = vmatprep.subr.bf16.mxu0 %v1386
  %1994 = vmatpush1.bf16.msra.mxu0 %v1385
  %1995 = vmatprep.subr.bf16.mxu0 %v1388
  %1996 = vmatpush1.bf16.msra.mxu0 %v1387
  %1997 = vmatprep.subr.bf16.mxu0 %v1390
  %1998 = vmatpush1.bf16.msra.mxu0 %v1389
  %1999 = vmatprep.subr.bf16.mxu0 %v1392
  %2000 = vmatpush1.bf16.msra.mxu0 %v1391
  %2001 = vmatprep.subr.bf16.mxu0 %v1394
  %2002 = vmatpush1.bf16.msra.mxu0 %v1393
  %2003 = vmatprep.subr.bf16.mxu0 %v1396
  %2004 = vmatpush1.bf16.msra.mxu0 %v1395
  %2005 = vmatprep.subr.bf16.mxu0 %v1398
  %2006 = vmatpush1.bf16.msra.mxu0 %v1397
  %2007 = vmatprep.subr.bf16.mxu0 %v1400
  %2008 = vmatpush1.bf16.msra.mxu0 %v1399
  %2009 = vmatprep.subr.bf16.mxu0 %v1402
  %2010 = vmatpush1.bf16.msra.mxu0 %v1401
  %2011 = vmatprep.subr.bf16.mxu0 %v1404
  %2012 = vmatpush1.bf16.msra.mxu0 %v1403
  %2013 = vmatprep.subr.bf16.mxu0 %v1406
  %2014 = vmatpush1.bf16.msra.mxu0 %v1405
  %2015 = vmatprep.subr.bf16.mxu0 %v1408
  %2016 = vmatpush1.bf16.msra.mxu0 %v1407
  %2017 = vmatprep.mubr.bf16.mxu0 %v428
  %2018 = vmatmul.mubr.bf16.gmra.mrb[0].mxu0 %v427
  %v2019 = vpop.f32.mrb[0].mxu0
  %v2020 = vadd.f32 %v362, %v2019
  %v2021 = vpop.f32.mrb[0].mxu0
  %v2022 = vadd.f32 %v366, %v2021
  %v2023 = vpop.f32.mrb[0].mxu0
  %v2024 = vadd.f32 %v362, %v2023
  %v2025 = vpop.f32.mrb[0].mxu0
  %v2026 = vadd.f32 %v366, %v2025
  %2027 = vdwg.mxu0
  %2028 = vmatprep.subr.bf16.mxu0 %v1410
  %2029 = vmatpush1.bf16.msra.mxu0 %v1409
  %2030 = vmatprep.subr.bf16.mxu0 %v1412
  %2031 = vmatpush1.bf16.msra.mxu0 %v1411
  %2032 = vmatprep.subr.bf16.mxu0 %v1414
  %2033 = vmatpush1.bf16.msra.mxu0 %v1413
  %2034 = vmatprep.subr.bf16.mxu0 %v1416
  %2035 = vmatpush1.bf16.msra.mxu0 %v1415
  %2036 = vmatprep.subr.bf16.mxu0 %v1418
  %2037 = vmatpush1.bf16.msra.mxu0 %v1417
  %2038 = vmatprep.subr.bf16.mxu0 %v1420
  %2039 = vmatpush1.bf16.msra.mxu0 %v1419
  %2040 = vmatprep.subr.bf16.mxu0 %v1422
  %2041 = vmatpush1.bf16.msra.mxu0 %v1421
  %2042 = vmatprep.subr.bf16.mxu0 %v1424
  %2043 = vmatpush1.bf16.msra.mxu0 %v1423
  %2044 = vmatprep.subr.bf16.mxu0 %v1426
  %2045 = vmatpush1.bf16.msra.mxu0 %v1425
  %2046 = vmatprep.subr.bf16.mxu0 %v1428
  %2047 = vmatpush1.bf16.msra.mxu0 %v1427
  %2048 = vmatprep.subr.bf16.mxu0 %v1430
  %2049 = vmatpush1.bf16.msra.mxu0 %v1429
  %2050 = vmatprep.subr.bf16.mxu0 %v1432
  %2051 = vmatpush1.bf16.msra.mxu0 %v1431
  %2052 = vmatprep.subr.bf16.mxu0 %v1434
  %2053 = vmatpush1.bf16.msra.mxu0 %v1433
  %2054 = vmatprep.subr.bf16.mxu0 %v1436
  %2055 = vmatpush1.bf16.msra.mxu0 %v1435
  %2056 = vmatprep.subr.bf16.mxu0 %v1438
  %2057 = vmatpush1.bf16.msra.mxu0 %v1437
  %2058 = vmatprep.subr.bf16.mxu0 %v1440
  %2059 = vmatpush1.bf16.msra.mxu0 %v1439
  %2060 = vmatprep.mubr.bf16.mxu0 %v430
  %2061 = vmatmul.mubr.bf16.gmra.mrb[0].mxu0 %v429
  %v2062 = vpop.f32.mrb[0].mxu0
  %v2063 = vadd.f32 %v2020, %v2062
  %v2064 = vpop.f32.mrb[0].mxu0
  %v2065 = vadd.f32 %v2022, %v2064
  %v2066 = vpop.f32.mrb[0].mxu0
  %v2067 = vadd.f32 %v2024, %v2066
  %v2068 = vpop.f32.mrb[0].mxu0
  %v2069 = vadd.f32 %v2026, %v2068
  %2070 = vdwg.mxu0
  %2071 = vmatprep.subr.bf16.mxu0 %v1442
  %2072 = vmatpush1.bf16.msra.mxu0 %v1441
  %2073 = vmatprep.subr.bf16.mxu0 %v1444
  %2074 = vmatpush1.bf16.msra.mxu0 %v1443
  %2075 = vmatprep.subr.bf16.mxu0 %v1446
  %2076 = vmatpush1.bf16.msra.mxu0 %v1445
  %2077 = vmatprep.subr.bf16.mxu0 %v1448
  %2078 = vmatpush1.bf16.msra.mxu0 %v1447
  %2079 = vmatprep.subr.bf16.mxu0 %v1450
  %2080 = vmatpush1.bf16.msra.mxu0 %v1449
  %2081 = vmatprep.subr.bf16.mxu0 %v1452
  %2082 = vmatpush1.bf16.msra.mxu0 %v1451
  %2083 = vmatprep.subr.bf16.mxu0 %v1454
  %2084 = vmatpush1.bf16.msra.mxu0 %v1453
  %2085 = vmatprep.subr.bf16.mxu0 %v1456
  %2086 = vmatpush1.bf16.msra.mxu0 %v1455
  %2087 = vmatprep.subr.bf16.mxu0 %v1458
  %2088 = vmatpush1.bf16.msra.mxu0 %v1457
  %2089 = vmatprep.subr.bf16.mxu0 %v1460
  %2090 = vmatpush1.bf16.msra.mxu0 %v1459
  %2091 = vmatprep.subr.bf16.mxu0 %v1462
  %2092 = vmatpush1.bf16.msra.mxu0 %v1461
  %2093 = vmatprep.subr.bf16.mxu0 %v1464
  %2094 = vmatpush1.bf16.msra.mxu0 %v1463
  %2095 = vmatprep.subr.bf16.mxu0 %v1466
  %2096 = vmatpush1.bf16.msra.mxu0 %v1465
  %2097 = vmatprep.subr.bf16.mxu0 %v1468
  %2098 = vmatpush1.bf16.msra.mxu0 %v1467
  %2099 = vmatprep.subr.bf16.mxu0 %v1470
  %2100 = vmatpush1.bf16.msra.mxu0 %v1469
  %2101 = vmatprep.subr.bf16.mxu0 %v1472
  %2102 = vmatpush1.bf16.msra.mxu0 %v1471
  %2103 = vmatprep.mubr.bf16.mxu0 %v432
  %2104 = vmatmul.mubr.bf16.gmra.mrb[0].mxu0 %v431
  %v2105 = vpop.f32.mrb[0].mxu0
  %v2106 = vadd.f32 %v2063, %v2105
  %v2107 = vpop.f32.mrb[0].mxu0
  %v2108 = vadd.f32 %v2065, %v2107
  %v2109 = vpop.f32.mrb[0].mxu0
  %v2110 = vadd.f32 %v2067, %v2109
  %v2111 = vpop.f32.mrb[0].mxu0
  %v2112 = vadd.f32 %v2069, %v2111
  %2113 = vdwg.mxu0
  %2114 = vmatprep.subr.bf16.mxu0 %v1474
  %2115 = vmatpush1.bf16.msra.mxu0 %v1473
  %2116 = vmatprep.subr.bf16.mxu0 %v1476
  %2117 = vmatpush1.bf16.msra.mxu0 %v1475
  %2118 = vmatprep.subr.bf16.mxu0 %v1478
  %2119 = vmatpush1.bf16.msra.mxu0 %v1477
  %2120 = vmatprep.subr.bf16.mxu0 %v1480
  %2121 = vmatpush1.bf16.msra.mxu0 %v1479
  %2122 = vmatprep.subr.bf16.mxu0 %v1482
  %2123 = vmatpush1.bf16.msra.mxu0 %v1481
  %2124 = vmatprep.subr.bf16.mxu0 %v1484
  %2125 = vmatpush1.bf16.msra.mxu0 %v1483
  %2126 = vmatprep.subr.bf16.mxu0 %v1486
  %2127 = vmatpush1.bf16.msra.mxu0 %v1485
  %2128 = vmatprep.subr.bf16.mxu0 %v1488
  %2129 = vmatpush1.bf16.msra.mxu0 %v1487
  %2130 = vmatprep.subr.bf16.mxu0 %v1490
  %2131 = vmatpush1.bf16.msra.mxu0 %v1489
  %2132 = vmatprep.subr.bf16.mxu0 %v1492
  %2133 = vmatpush1.bf16.msra.mxu0 %v1491
  %2134 = vmatprep.subr.bf16.mxu0 %v1494
  %2135 = vmatpush1.bf16.msra.mxu0 %v1493
  %2136 = vmatprep.subr.bf16.mxu0 %v1496
  %2137 = vmatpush1.bf16.msra.mxu0 %v1495
  %2138 = vmatprep.subr.bf16.mxu0 %v1498
  %2139 = vmatpush1.bf16.msra.mxu0 %v1497
  %2140 = vmatprep.subr.bf16.mxu0 %v1500
  %2141 = vmatpush1.bf16.msra.mxu0 %v1499
  %2142 = vmatprep.subr.bf16.mxu0 %v1502
  %2143 = vmatpush1.bf16.msra.mxu0 %v1501
  %2144 = vmatprep.subr.bf16.mxu0 %v1504
  %2145 = vmatpush1.bf16.msra.mxu0 %v1503
  %2146 = vmatprep.mubr.bf16.mxu0 %v434
  %2147 = vmatmul.mubr.bf16.gmra.mrb[0].mxu0 %v433
  %v2148 = vpop.f32.mrb[0].mxu0
  %v2149 = vadd.f32 %v2106, %v2148
  %v2150 = vpop.f32.mrb[0].mxu0
  %v2151 = vadd.f32 %v2108, %v2150
  %v2152 = vpop.f32.mrb[0].mxu0
  %v2153 = vadd.f32 %v2110, %v2152
  %v2154 = vpop.f32.mrb[0].mxu0
  %v2155 = vadd.f32 %v2112, %v2154
  %2156 = vdwg.mxu0
  %2157 = vmatprep.subr.bf16.mxu0 %v1506
  %2158 = vmatpush1.bf16.msra.mxu0 %v1505
  %2159 = vmatprep.subr.bf16.mxu0 %v1508
  %2160 = vmatpush1.bf16.msra.mxu0 %v1507
  %2161 = vmatprep.subr.bf16.mxu0 %v1510
  %2162 = vmatpush1.bf16.msra.mxu0 %v1509
  %2163 = vmatprep.subr.bf16.mxu0 %v1512
  %2164 = vmatpush1.bf16.msra.mxu0 %v1511
  %2165 = vmatprep.subr.bf16.mxu0 %v1514
  %2166 = vmatpush1.bf16.msra.mxu0 %v1513
  %2167 = vmatprep.subr.bf16.mxu0 %v1516
  %2168 = vmatpush1.bf16.msra.mxu0 %v1515
  %2169 = vmatprep.subr.bf16.mxu0 %v1518
  %2170 = vmatpush1.bf16.msra.mxu0 %v1517
  %2171 = vmatprep.subr.bf16.mxu0 %v1520
  %2172 = vmatpush1.bf16.msra.mxu0 %v1519
  %2173 = vmatprep.subr.bf16.mxu0 %v1522
  %2174 = vmatpush1.bf16.msra.mxu0 %v1521
  %2175 = vmatprep.subr.bf16.mxu0 %v1524
  %2176 = vmatpush1.bf16.msra.mxu0 %v1523
  %2177 = vmatprep.subr.bf16.mxu0 %v1526
  %2178 = vmatpush1.bf16.msra.mxu0 %v1525
  %2179 = vmatprep.subr.bf16.mxu0 %v1528
  %2180 = vmatpush1.bf16.msra.mxu0 %v1527
  %2181 = vmatprep.subr.bf16.mxu0 %v1530
  %2182 = vmatpush1.bf16.msra.mxu0 %v1529
  %2183 = vmatprep.subr.bf16.mxu0 %v1532
  %2184 = vmatpush1.bf16.msra.mxu0 %v1531
  %2185 = vmatprep.subr.bf16.mxu0 %v1534
  %2186 = vmatpush1.bf16.msra.mxu0 %v1533
  %2187 = vmatprep.subr.bf16.mxu0 %v1536
  %2188 = vmatpush1.bf16.msra.mxu0 %v1535
  %2189 = vmatprep.mubr.bf16.mxu0 %v436
  %2190 = vmatmul.mubr.bf16.gmra.mrb[0].mxu0 %v435
  %v2191 = vpop.f32.mrb[0].mxu0
  %v2192 = vadd.f32 %v2149, %v2191
  %v2193 = vpop.f32.mrb[0].mxu0
  %v2194 = vadd.f32 %v2151, %v2193
  %v2195 = vpop.f32.mrb[0].mxu0
  %v2196 = vadd.f32 %v2153, %v2195
  %v2197 = vpop.f32.mrb[0].mxu0
  %v2198 = vadd.f32 %v2155, %v2197
  %2199 = vdwg.mxu0
  %2200 = vmatprep.subr.bf16.mxu0 %v1538
  %2201 = vmatpush1.bf16.msra.mxu0 %v1537
  %2202 = vmatprep.subr.bf16.mxu0 %v1540
  %2203 = vmatpush1.bf16.msra.mxu0 %v1539
  %2204 = vmatprep.subr.bf16.mxu0 %v1542
  %2205 = vmatpush1.bf16.msra.mxu0 %v1541
  %2206 = vmatprep.subr.bf16.mxu0 %v1544
  %2207 = vmatpush1.bf16.msra.mxu0 %v1543
  %2208 = vmatprep.subr.bf16.mxu0 %v1546
  %2209 = vmatpush1.bf16.msra.mxu0 %v1545
  %2210 = vmatprep.subr.bf16.mxu0 %v1548
  %2211 = vmatpush1.bf16.msra.mxu0 %v1547
  %2212 = vmatprep.subr.bf16.mxu0 %v1550
  %2213 = vmatpush1.bf16.msra.mxu0 %v1549
  %2214 = vmatprep.subr.bf16.mxu0 %v1552
  %2215 = vmatpush1.bf16.msra.mxu0 %v1551
  %2216 = vmatprep.subr.bf16.mxu0 %v1554
  %2217 = vmatpush1.bf16.msra.mxu0 %v1553
  %2218 = vmatprep.subr.bf16.mxu0 %v1556
  %2219 = vmatpush1.bf16.msra.mxu0 %v1555
  %2220 = vmatprep.subr.bf16.mxu0 %v1558
  %2221 = vmatpush1.bf16.msra.mxu0 %v1557
  %2222 = vmatprep.subr.bf16.mxu0 %v1560
  %2223 = vmatpush1.bf16.msra.mxu0 %v1559
  %2224 = vmatprep.subr.bf16.mxu0 %v1562
  %2225 = vmatpush1.bf16.msra.mxu0 %v1561
  %2226 = vmatprep.subr.bf16.mxu0 %v1564
  %2227 = vmatpush1.bf16.msra.mxu0 %v1563
  %2228 = vmatprep.subr.bf16.mxu0 %v1566
  %2229 = vmatpush1.bf16.msra.mxu0 %v1565
  %2230 = vmatprep.subr.bf16.mxu0 %v1568
  %2231 = vmatpush1.bf16.msra.mxu0 %v1567
  %2232 = vmatprep.mubr.bf16.mxu0 %v438
  %2233 = vmatmul.mubr.bf16.gmra.mrb[0].mxu0 %v437
  %v2234 = vpop.f32.mrb[0].mxu0
  %v2235 = vadd.f32 %v2192, %v2234
  %v2236 = vpop.f32.mrb[0].mxu0
  %v2237 = vadd.f32 %v2194, %v2236
  %v2238 = vpop.f32.mrb[0].mxu0
  %v2239 = vadd.f32 %v2196, %v2238
  %v2240 = vpop.f32.mrb[0].mxu0
  %v2241 = vadd.f32 %v2198, %v2240
  %2242 = vdwg.mxu0
  %2243 = vmatprep.subr.bf16.mxu0 %v1570
  %2244 = vmatpush1.bf16.msra.mxu0 %v1569
  %2245 = vmatprep.subr.bf16.mxu0 %v1572
  %2246 = vmatpush1.bf16.msra.mxu0 %v1571
  %2247 = vmatprep.subr.bf16.mxu0 %v1574
  %2248 = vmatpush1.bf16.msra.mxu0 %v1573
  %2249 = vmatprep.subr.bf16.mxu0 %v1576
  %2250 = vmatpush1.bf16.msra.mxu0 %v1575
  %2251 = vmatprep.subr.bf16.mxu0 %v1578
  %2252 = vmatpush1.bf16.msra.mxu0 %v1577
  %2253 = vmatprep.subr.bf16.mxu0 %v1580
  %2254 = vmatpush1.bf16.msra.mxu0 %v1579
  %2255 = vmatprep.subr.bf16.mxu0 %v1582
  %2256 = vmatpush1.bf16.msra.mxu0 %v1581
  %2257 = vmatprep.subr.bf16.mxu0 %v1584
  %2258 = vmatpush1.bf16.msra.mxu0 %v1583
  %2259 = vmatprep.subr.bf16.mxu0 %v1586
  %2260 = vmatpush1.bf16.msra.mxu0 %v1585
  %2261 = vmatprep.subr.bf16.mxu0 %v1588
  %2262 = vmatpush1.bf16.msra.mxu0 %v1587
  %2263 = vmatprep.subr.bf16.mxu0 %v1590
  %2264 = vmatpush1.bf16.msra.mxu0 %v1589
  %2265 = vmatprep.subr.bf16.mxu0 %v1592
  %2266 = vmatpush1.bf16.msra.mxu0 %v1591
  %2267 = vmatprep.subr.bf16.mxu0 %v1594
  %2268 = vmatpush1.bf16.msra.mxu0 %v1593
  %2269 = vmatprep.subr.bf16.mxu0 %v1596
  %2270 = vmatpush1.bf16.msra.mxu0 %v1595
  %2271 = vmatprep.subr.bf16.mxu0 %v1598
  %2272 = vmatpush1.bf16.msra.mxu0 %v1597
  %2273 = vmatprep.subr.bf16.mxu0 %v1600
  %2274 = vmatpush1.bf16.msra.mxu0 %v1599
  %2275 = vmatprep.mubr.bf16.mxu0 %v440
  %2276 = vmatmul.mubr.bf16.gmra.mrb[0].mxu0 %v439
  %v2277 = vpop.f32.mrb[0].mxu0
  %v2278 = vadd.f32 %v2235, %v2277
  %v2279 = vpop.f32.mrb[0].mxu0
  %v2280 = vadd.f32 %v2237, %v2279
  %v2281 = vpop.f32.mrb[0].mxu0
  %v2282 = vadd.f32 %v2239, %v2281
  %v2283 = vpop.f32.mrb[0].mxu0
  %v2284 = vadd.f32 %v2241, %v2283
  %2285 = vdwg.mxu0
  %2286 = vmatprep.subr.bf16.mxu0 %v1602
  %2287 = vmatpush1.bf16.msra.mxu0 %v1601
  %2288 = vmatprep.subr.bf16.mxu0 %v1604
  %2289 = vmatpush1.bf16.msra.mxu0 %v1603
  %2290 = vmatprep.subr.bf16.mxu0 %v1606
  %2291 = vmatpush1.bf16.msra.mxu0 %v1605
  %2292 = vmatprep.subr.bf16.mxu0 %v1608
  %2293 = vmatpush1.bf16.msra.mxu0 %v1607
  %2294 = vmatprep.subr.bf16.mxu0 %v1610
  %2295 = vmatpush1.bf16.msra.mxu0 %v1609
  %2296 = vmatprep.subr.bf16.mxu0 %v1612
  %2297 = vmatpush1.bf16.msra.mxu0 %v1611
  %2298 = vmatprep.subr.bf16.mxu0 %v1614
  %2299 = vmatpush1.bf16.msra.mxu0 %v1613
  %2300 = vmatprep.subr.bf16.mxu0 %v1616
  %2301 = vmatpush1.bf16.msra.mxu0 %v1615
  %2302 = vmatprep.subr.bf16.mxu0 %v1618
  %2303 = vmatpush1.bf16.msra.mxu0 %v1617
  %2304 = vmatprep.subr.bf16.mxu0 %v1620
  %2305 = vmatpush1.bf16.msra.mxu0 %v1619
  %2306 = vmatprep.subr.bf16.mxu0 %v1622
  %2307 = vmatpush1.bf16.msra.mxu0 %v1621
  %2308 = vmatprep.subr.bf16.mxu0 %v1624
  %2309 = vmatpush1.bf16.msra.mxu0 %v1623
  %2310 = vmatprep.subr.bf16.mxu0 %v1626
  %2311 = vmatpush1.bf16.msra.mxu0 %v1625
  %2312 = vmatprep.subr.bf16.mxu0 %v1628
  %2313 = vmatpush1.bf16.msra.mxu0 %v1627
  %2314 = vmatprep.subr.bf16.mxu0 %v1630
  %2315 = vmatpush1.bf16.msra.mxu0 %v1629
  %2316 = vmatprep.subr.bf16.mxu0 %v1632
  %2317 = vmatpush1.bf16.msra.mxu0 %v1631
  %2318 = vmatprep.mubr.bf16.mxu0 %v442
  %2319 = vmatmul.mubr.bf16.gmra.mrb[0].mxu0 %v441
  %v2320 = vpop.f32.mrb[0].mxu0
  %v2321 = vadd.f32 %v2278, %v2320
  %v2322 = vpop.f32.mrb[0].mxu0
  %v2323 = vadd.f32 %v2280, %v2322
  %v2324 = vpop.f32.mrb[0].mxu0
  %v2325 = vadd.f32 %v2282, %v2324
  %v2326 = vpop.f32.mrb[0].mxu0
  %v2327 = vadd.f32 %v2284, %v2326
  %2328 = vdwg.mxu0
  %2329 = vmatprep.subr.bf16.mxu0 %v1634
  %2330 = vmatpush1.bf16.msra.mxu0 %v1633
  %2331 = vmatprep.subr.bf16.mxu0 %v1636
  %2332 = vmatpush1.bf16.msra.mxu0 %v1635
  %2333 = vmatprep.subr.bf16.mxu0 %v1638
  %2334 = vmatpush1.bf16.msra.mxu0 %v1637
  %2335 = vmatprep.subr.bf16.mxu0 %v1640
  %2336 = vmatpush1.bf16.msra.mxu0 %v1639
  %2337 = vmatprep.subr.bf16.mxu0 %v1642
  %2338 = vmatpush1.bf16.msra.mxu0 %v1641
  %2339 = vmatprep.subr.bf16.mxu0 %v1644
  %2340 = vmatpush1.bf16.msra.mxu0 %v1643
  %2341 = vmatprep.subr.bf16.mxu0 %v1646
  %2342 = vmatpush1.bf16.msra.mxu0 %v1645
  %2343 = vmatprep.subr.bf16.mxu0 %v1648
  %2344 = vmatpush1.bf16.msra.mxu0 %v1647
  %2345 = vmatprep.subr.bf16.mxu0 %v1650
  %2346 = vmatpush1.bf16.msra.mxu0 %v1649
  %2347 = vmatprep.subr.bf16.mxu0 %v1652
  %2348 = vmatpush1.bf16.msra.mxu0 %v1651
  %2349 = vmatprep.subr.bf16.mxu0 %v1654
  %2350 = vmatpush1.bf16.msra.mxu0 %v1653
  %2351 = vmatprep.subr.bf16.mxu0 %v1656
  %2352 = vmatpush1.bf16.msra.mxu0 %v1655
  %2353 = vmatprep.subr.bf16.mxu0 %v1658
  %2354 = vmatpush1.bf16.msra.mxu0 %v1657
  %2355 = vmatprep.subr.bf16.mxu0 %v1660
  %2356 = vmatpush1.bf16.msra.mxu0 %v1659
  %2357 = vmatprep.subr.bf16.mxu0 %v1662
  %2358 = vmatpush1.bf16.msra.mxu0 %v1661
  %2359 = vmatprep.subr.bf16.mxu0 %v1664
  %2360 = vmatpush1.bf16.msra.mxu0 %v1663
  %2361 = vmatprep.mubr.bf16.mxu0 %v444
  %2362 = vmatmul.mubr.bf16.gmra.mrb[0].mxu0 %v443
  %v2363 = vpop.f32.mrb[0].mxu0
  %v2364 = vadd.f32 %v2321, %v2363
  %v2365 = vpop.f32.mrb[0].mxu0
  %v2366 = vadd.f32 %v2323, %v2365
  %v2367 = vpop.f32.mrb[0].mxu0
  %v2368 = vadd.f32 %v2325, %v2367
  %v2369 = vpop.f32.mrb[0].mxu0
  %v2370 = vadd.f32 %v2327, %v2369
  %2371 = vdwg.mxu0
  %2372 = vmatprep.subr.bf16.mxu0 %v1666
  %2373 = vmatpush1.bf16.msra.mxu0 %v1665
  %2374 = vmatprep.subr.bf16.mxu0 %v1668
  %2375 = vmatpush1.bf16.msra.mxu0 %v1667
  %2376 = vmatprep.subr.bf16.mxu0 %v1670
  %2377 = vmatpush1.bf16.msra.mxu0 %v1669
  %2378 = vmatprep.subr.bf16.mxu0 %v1672
  %2379 = vmatpush1.bf16.msra.mxu0 %v1671
  %2380 = vmatprep.subr.bf16.mxu0 %v1674
  %2381 = vmatpush1.bf16.msra.mxu0 %v1673
  %2382 = vmatprep.subr.bf16.mxu0 %v1676
  %2383 = vmatpush1.bf16.msra.mxu0 %v1675
  %2384 = vmatprep.subr.bf16.mxu0 %v1678
  %2385 = vmatpush1.bf16.msra.mxu0 %v1677
  %2386 = vmatprep.subr.bf16.mxu0 %v1680
  %2387 = vmatpush1.bf16.msra.mxu0 %v1679
  %2388 = vmatprep.subr.bf16.mxu0 0
  %2389 = vmatpush1.bf16.msra.mxu0 0
  %2390 = vmatprep.subr.bf16.mxu0 0
  %2391 = vmatpush1.bf16.msra.mxu0 0
  %2392 = vmatprep.subr.bf16.mxu0 0
  %2393 = vmatpush1.bf16.msra.mxu0 0
  %2394 = vmatprep.subr.bf16.mxu0 0
  %2395 = vmatpush1.bf16.msra.mxu0 0
  %2396 = vmatprep.subr.bf16.mxu0 0
  %2397 = vmatpush1.bf16.msra.mxu0 0
  %2398 = vmatprep.subr.bf16.mxu0 0
  %2399 = vmatpush1.bf16.msra.mxu0 0
  %2400 = vmatprep.subr.bf16.mxu0 0
  %2401 = vmatpush1.bf16.msra.mxu0 0
  %2402 = vmatprep.subr.bf16.mxu0 0
  %2403 = vmatpush1.bf16.msra.mxu0 0
  %2404 = vmatprep.mubr.bf16.mxu0 0
  %2405 = vmatmul.mubr.bf16.gmra.mrb[0].mxu0 %v445
  %v2406 = vpop.f32.mrb[0].mxu0
  %v2407 = vadd.f32 %v2364, %v2406
  %v2408 = vpop.f32.mrb[0].mxu0
  %v2409 = vadd.f32 %v2366, %v2408
  %v2410 = vpop.f32.mrb[0].mxu0
  %v2411 = vadd.f32 %v2368, %v2410
  %v2412 = vpop.f32.mrb[0].mxu0
  %v2413 = vadd.f32 %v2370, %v2412
  %2414 = vdwg.mxu0
  %v2415 = vsub.f32 0.0, %v2407
  %v2416 = vsub.f32 0.0, %v2411
  %v2417 = vmul.f32 %v2415, 1.442695
  %v2418 = vpow.pop %v2417
  %v2419 = vmul.f32 %v2416, 1.442695
  %v2420 = vpow.pop %v2419
  %v2421 = vadd.f32 %v2418, 1.0
  %v2422 = vadd.f32 %v2420, 1.0
  %v2423 = vrcp.pop %v2421
  %v2424 = vmul.f32 1.0, %v2423
  %v2425 = vrcp.pop %v2422
  %v2426 = vmul.f32 1.0, %v2425
  %v2427 = vtanh.pop %v2409
  %v2428 = vtanh.pop %v2413
  %v2429 = vmul.f32 %v2424, %v2427
  %v2430 = vmul.f32 %v2426, %v2428
  %v2431 = vtanh.pop %v2429
  %v2432 = vtanh.pop %v2430
  %2435 = vrot.lane.b32.xlu0 %v2431, 64
  %v2436 = vpop.permute.xlu0 %2435
  %2437 = vrot.lane.b32.xlu0 %v2432, 64
  %v2438 = vpop.permute.xlu0 %2437
  %v2441 = vmul.f32 %v2424, %v2436
  %v2442 = vmul.f32 %v2426, %v2438
  %v2443 = vpack.c.bf16 %v2442, %v2441
  %v2444 = vld [vmem:[%s3] sm:$0xff]
  %v2445 = vld [vmem:[%s3 + $0x8] sm:$0xff]
  %v2446 = vld [vmem:[%s3 + $0x10] sm:$0xff]
  %v2447 = vld [vmem:[%s3 + $0x18] sm:$0xff]
  %v2448 = vld [vmem:[%s3 + $0x20] sm:$0xff]
  %v2449 = vld [vmem:[%s3 + $0x28] sm:$0xff]
  %v2450 = vld [vmem:[%s3 + $0x30] sm:$0xff]
  %v2451 = vld [vmem:[%s3 + $0x38] sm:$0xff]
  %v2452 = vld [vmem:[%s4] sm:$0x3]
  %v2454 = vlaneseq
  %v2455 = vshrl.u32 %v2454, 7
  %v2456 = vsub.s32 0, %v2455
  %v2457 = vrot.slane %v2452, %v2456
  %v2458 = vlaneseq
  %v2459 = vshrl.u32 %v2458, 7
  %v2460 = vsub.s32 1, %v2459
  %v2461 = vrot.slane %v2452, %v2460
  %2465 = vrot.lane.b32.xlu0 %v2443, 64
  %v2466 = vpop.permute.xlu0 %2465
  %v2475 = vunpack.c.l.b16 %v2444
  %v2476 = vunpack.c.h.b16 %v2444
  %v2477 = vunpack.c.l.b16 %v2445
  %v2478 = vunpack.c.h.b16 %v2445
  %v2479 = vunpack.c.l.b16 %v2446
  %v2480 = vunpack.c.h.b16 %v2446
  %v2481 = vunpack.c.l.b16 %v2447
  %v2482 = vunpack.c.h.b16 %v2447
  %v2483 = vunpack.c.l.b16 %v2448
  %v2484 = vunpack.c.h.b16 %v2448
  %v2485 = vunpack.c.l.b16 %v2449
  %v2486 = vunpack.c.h.b16 %v2449
  %v2487 = vunpack.c.l.b16 %v2450
  %v2488 = vunpack.c.h.b16 %v2450
  %v2489 = vunpack.c.l.b16 %v2451
  %v2490 = vunpack.c.h.b16 %v2451
  %v2491 = vpack.c.b16 %v2477, %v2475
  %v2492 = vpack.c.b16 %v2478, %v2476
  %v2493 = vpack.c.b16 %v2481, %v2479
  %v2494 = vpack.c.b16 %v2482, %v2480
  %v2495 = vpack.c.b16 %v2485, %v2483
  %v2496 = vpack.c.b16 %v2486, %v2484
  %v2497 = vpack.c.b16 %v2489, %v2487
  %v2498 = vpack.c.b16 %v2490, %v2488
  %vm2507 = vcmask 523264
  %v2509 = vsel %vm2507, %v2466, 0
  %2511 = vmatprep.subr.bf16.mxu0 %v2492
  %2512 = vmatpush1.bf16.msra.mxu0 %v2491
  %2513 = vmatprep.subr.bf16.mxu0 %v2494
  %2514 = vmatpush1.bf16.msra.mxu0 %v2493
  %2515 = vmatprep.subr.bf16.mxu0 %v2496
  %2516 = vmatpush1.bf16.msra.mxu0 %v2495
  %2517 = vmatprep.subr.bf16.mxu0 %v2498
  %2518 = vmatpush1.bf16.msra.mxu0 %v2497
  %2519 = vmatprep.subr.bf16.mxu0 0
  %2520 = vmatpush1.bf16.msra.mxu0 0
  %2521 = vmatprep.subr.bf16.mxu0 0
  %2522 = vmatpush1.bf16.msra.mxu0 0
  %2523 = vmatprep.subr.bf16.mxu0 0
  %2524 = vmatpush1.bf16.msra.mxu0 0
  %2525 = vmatprep.subr.bf16.mxu0 0
  %2526 = vmatpush1.bf16.msra.mxu0 0
  %2527 = vmatprep.subr.bf16.mxu0 0
  %2528 = vmatpush1.bf16.msra.mxu0 0
  %2529 = vmatprep.subr.bf16.mxu0 0
  %2530 = vmatpush1.bf16.msra.mxu0 0
  %2531 = vmatprep.subr.bf16.mxu0 0
  %2532 = vmatpush1.bf16.msra.mxu0 0
  %2533 = vmatprep.subr.bf16.mxu0 0
  %2534 = vmatpush1.bf16.msra.mxu0 0
  %2535 = vmatprep.subr.bf16.mxu0 0
  %2536 = vmatpush1.bf16.msra.mxu0 0
  %2537 = vmatprep.subr.bf16.mxu0 0
  %2538 = vmatpush1.bf16.msra.mxu0 0
  %2539 = vmatprep.subr.bf16.mxu0 0
  %2540 = vmatpush1.bf16.msra.mxu0 0
  %2541 = vmatprep.subr.bf16.mxu0 0
  %2542 = vmatpush1.bf16.msra.mxu0 0
  %2543 = vmatprep.mubr.bf16.mxu0 0
  %2544 = vmatmul.mubr.bf16.gmra.mrb[0].mxu0 %v2509
  %v2545 = vpop.f32.mrb[0].mxu0
  %v2546 = vadd.f32 %v2457, %v2545
  %v2547 = vpop.f32.mrb[0].mxu0
  %v2548 = vadd.f32 %v2461, %v2547
  %v2549 = vpop.f32.mrb[0].mxu0
  %v2550 = vadd.f32 %v2457, %v2549
  %v2551 = vpop.f32.mrb[0].mxu0
  %v2552 = vadd.f32 %v2461, %v2551
  %2553 = vdwg.mxu0
  %v2554 = vsub.f32 0.0, %v2546
  %v2555 = vsub.f32 0.0, %v2550
  %v2556 = vmul.f32 %v2554, 1.442695
  %v2557 = vpow.pop %v2556
  %v2558 = vmul.f32 %v2555, 1.442695
  %v2559 = vpow.pop %v2558
  %v2560 = vadd.f32 %v2557, 1.0
  %v2561 = vadd.f32 %v2559, 1.0
  %v2562 = vrcp.pop %v2560
  %v2563 = vmul.f32 1.0, %v2562
  %v2564 = vrcp.pop %v2561
  %v2565 = vmul.f32 1.0, %v2564
  %v2566 = vtanh.pop %v2548
  %v2567 = vtanh.pop %v2552
  %v2568 = vmul.f32 %v2563, %v2566
  %v2569 = vmul.f32 %v2565, %v2567
  %v2570 = vtanh.pop %v2568
  %v2571 = vtanh.pop %v2569
  %2574 = vrot.lane.b32.xlu0 %v2570, 64
  %v2575 = vpop.permute.xlu0 %2574
  %2576 = vrot.lane.b32.xlu0 %v2571, 64
  %v2577 = vpop.permute.xlu0 %2576
  %v2580 = vmul.f32 %v2563, %v2575
  %v2581 = vmul.f32 %v2565, %v2577
  %v2582 = vld [vmem:[%s5] sm:$0xff]
  %v2583 = vld [vmem:[%s5 + $0x8] sm:$0xff]
  %v2584 = vld [vmem:[%s5 + $0x10] sm:$0xff]
  %v2585 = vld [vmem:[%s5 + $0x18] sm:$0xff]
  %v2586 = vld [vmem:[%s5 + $0x20] sm:$0xff]
  %v2587 = vld [vmem:[%s5 + $0x28] sm:$0xff]
  %v2588 = vld [vmem:[%s5 + $0x30] sm:$0xff]
  %v2589 = vld [vmem:[%s5 + $0x38] sm:$0xff]
  %v2590 = vld [vmem:[%s6] sm:$0x1]
  %v2592 = vlaneseq
  %v2593 = vshrl.u32 %v2592, 7
  %v2594 = vsub.s32 0, %v2593
  %v2595 = vrot.slane %v2590, %v2594
  %2599 = vrot.lane.b32.xlu0 %v2580, 64
  %v2600 = vpop.permute.xlu0 %2599
  %2601 = vrot.lane.b32.xlu0 %v2581, 64
  %v2602 = vpop.permute.xlu0 %2601
  %v2603 = vsel %vm2507, %v2600, 0
  %v2605 = vsel %vm2507, %v2602, 0
  %2607 = vmatprep.subr.mxu0 0.0
  %2608 = vmatpush1.msra.mxu0 %v2582
  %2609 = vmatprep.subr.mxu0 0.0
  %2610 = vmatpush1.msra.mxu0 %v2583
  %2611 = vmatprep.subr.mxu0 0.0
  %2612 = vmatpush1.msra.mxu0 %v2584
  %2613 = vmatprep.subr.mxu0 0.0
  %2614 = vmatpush1.msra.mxu0 %v2585
  %2615 = vmatprep.subr.mxu0 0.0
  %2616 = vmatpush1.msra.mxu0 %v2586
  %2617 = vmatprep.subr.mxu0 0.0
  %2618 = vmatpush1.msra.mxu0 %v2587
  %2619 = vmatprep.subr.mxu0 0.0
  %2620 = vmatpush1.msra.mxu0 %v2588
  %2621 = vmatprep.subr.mxu0 0.0
  %2622 = vmatpush1.msra.mxu0 %v2589
  %2623 = vmatprep.subr.mxu0 0.0
  %2624 = vmatpush1.msra.mxu0 0.0
  %2625 = vmatprep.subr.mxu0 0.0
  %2626 = vmatpush1.msra.mxu0 0.0
  %2627 = vmatprep.subr.mxu0 0.0
  %2628 = vmatpush1.msra.mxu0 0.0
  %2629 = vmatprep.subr.mxu0 0.0
  %2630 = vmatpush1.msra.mxu0 0.0
  %2631 = vmatprep.subr.mxu0 0.0
  %2632 = vmatpush1.msra.mxu0 0.0
  %2633 = vmatprep.subr.mxu0 0.0
  %2634 = vmatpush1.msra.mxu0 0.0
  %2635 = vmatprep.subr.mxu0 0.0
  %2636 = vmatpush1.msra.mxu0 0.0
  %2637 = vmatprep.subr.mxu0 0.0
  %2638 = vmatpush1.msra.mxu0 0.0
  %2639 = vmatprep.subr.mxu0 0.0
  %2640 = vmatpush1.msra.mxu0 0.0
  %2641 = vmatprep.subr.mxu0 0.0
  %2642 = vmatpush1.msra.mxu0 0.0
  %2643 = vmatprep.subr.mxu0 0.0
  %2644 = vmatpush1.msra.mxu0 0.0
  %2645 = vmatprep.subr.mxu0 0.0
  %2646 = vmatpush1.msra.mxu0 0.0
  %2647 = vmatprep.subr.mxu0 0.0
  %2648 = vmatpush1.msra.mxu0 0.0
  %2649 = vmatprep.subr.mxu0 0.0
  %2650 = vmatpush1.msra.mxu0 0.0
  %2651 = vmatprep.subr.mxu0 0.0
  %2652 = vmatpush1.msra.mxu0 0.0
  %2653 = vmatprep.subr.mxu0 0.0
  %2654 = vmatpush1.msra.mxu0 0.0
  %2655 = vmatprep.subr.mxu0 0.0
  %2656 = vmatpush1.msra.mxu0 0.0
  %2657 = vmatprep.subr.mxu0 0.0
  %2658 = vmatpush1.msra.mxu0 0.0
  %2659 = vmatprep.subr.mxu0 0.0
  %2660 = vmatpush1.msra.mxu0 0.0
  %2661 = vmatprep.subr.mxu0 0.0
  %2662 = vmatpush1.msra.mxu0 0.0
  %2663 = vmatprep.subr.mxu0 0.0
  %2664 = vmatpush1.msra.mxu0 0.0
  %2665 = vmatprep.subr.mxu0 0.0
  %2666 = vmatpush1.msra.mxu0 0.0
  %2667 = vmatprep.subr.mxu0 0.0
  %2668 = vmatpush1.msra.mxu0 0.0
  %2669 = vmatprep.subr.mxu0 0.0
  %2670 = vmatpush1.msra.mxu0 0.0
  %2671 = vmatprep.mubr.f32.mxu0 0.0
  %2672 = vmatmul.mubr.f32.gmra.mrb[0].mxu0 %v2603
  %v2673 = vpop.f32.mrb[0].mxu0
  %v2674 = vadd.f32 %v2595, %v2673
  %v2675 = vpop.f32.mrb[0].mxu0
  %2676 = vmatprep.mubr.f32.mxu0 0.0
  %2677 = vmatmul.mubr.f32.gmra.mrb[0].mxu0 %v2605
  %v2678 = vpop.f32.mrb[0].mxu0
  %v2679 = vadd.f32 %v2595, %v2678
  %v2680 = vpop.f32.mrb[0].mxu0
  %2681 = vdwg.mxu0
  %v2682 = vmax.f32 %v2674, 0.0
  %v2683 = vmax.f32 %v2679, 0.0
  %v2684 = vld [vmem:[%s7] sm:$0xff]
  %v2685 = vld [vmem:[%s7 + $0x8] sm:$0xff]
  %v2686 = vld [vmem:[%s7 + $0x10] sm:$0xff]
  %v2687 = vld [vmem:[%s7 + $0x18] sm:$0xff]
  %v2688 = vld [vmem:[%s8] sm:$0x1]
  %v2690 = vlaneseq
  %v2691 = vshrl.u32 %v2690, 7
  %v2692 = vsub.s32 0, %v2691
  %v2693 = vrot.slane %v2688, %v2692
  %vm2695 = vcmask 261120
  %v2697 = vsel %vm2695, %v2682, 0
  %v2700 = vsel %vm2695, %v2683, 0
  %2702 = vmatprep.subr.mxu0 0.0
  %2703 = vmatpush1.msra.mxu0 %v2684
  %2704 = vmatprep.subr.mxu0 0.0
  %2705 = vmatpush1.msra.mxu0 %v2685
  %2706 = vmatprep.subr.mxu0 0.0
  %2707 = vmatpush1.msra.mxu0 %v2686
  %2708 = vmatprep.subr.mxu0 0.0
  %2709 = vmatpush1.msra.mxu0 %v2687
  %2710 = vmatprep.subr.mxu0 0.0
  %2711 = vmatpush1.msra.mxu0 0.0
  %2712 = vmatprep.subr.mxu0 0.0
  %2713 = vmatpush1.msra.mxu0 0.0
  %2714 = vmatprep.subr.mxu0 0.0
  %2715 = vmatpush1.msra.mxu0 0.0
  %2716 = vmatprep.subr.mxu0 0.0
  %2717 = vmatpush1.msra.mxu0 0.0
  %2718 = vmatprep.subr.mxu0 0.0
  %2719 = vmatpush1.msra.mxu0 0.0
  %2720 = vmatprep.subr.mxu0 0.0
  %2721 = vmatpush1.msra.mxu0 0.0
  %2722 = vmatprep.subr.mxu0 0.0
  %2723 = vmatpush1.msra.mxu0 0.0
  %2724 = vmatprep.subr.mxu0 0.0
  %2725 = vmatpush1.msra.mxu0 0.0
  %2726 = vmatprep.subr.mxu0 0.0
  %2727 = vmatpush1.msra.mxu0 0.0
  %2728 = vmatprep.subr.mxu0 0.0
  %2729 = vmatpush1.msra.mxu0 0.0
  %2730 = vmatprep.subr.mxu0 0.0
  %2731 = vmatpush1.msra.mxu0 0.0
  %2732 = vmatprep.subr.mxu0 0.0
  %2733 = vmatpush1.msra.mxu0 0.0
  %2734 = vmatprep.subr.mxu0 0.0
  %2735 = vmatpush1.msra.mxu0 0.0
  %2736 = vmatprep.subr.mxu0 0.0
  %2737 = vmatpush1.msra.mxu0 0.0
  %2738 = vmatprep.subr.mxu0 0.0
  %2739 = vmatpush1.msra.mxu0 0.0
  %2740 = vmatprep.subr.mxu0 0.0
  %2741 = vmatpush1.msra.mxu0 0.0
  %2742 = vmatprep.subr.mxu0 0.0
  %2743 = vmatpush1.msra.mxu0 0.0
  %2744 = vmatprep.subr.mxu0 0.0
  %2745 = vmatpush1.msra.mxu0 0.0
  %2746 = vmatprep.subr.mxu0 0.0
  %2747 = vmatpush1.msra.mxu0 0.0
  %2748 = vmatprep.subr.mxu0 0.0
  %2749 = vmatpush1.msra.mxu0 0.0
  %2750 = vmatprep.subr.mxu0 0.0
  %2751 = vmatpush1.msra.mxu0 0.0
  %2752 = vmatprep.subr.mxu0 0.0
  %2753 = vmatpush1.msra.mxu0 0.0
  %2754 = vmatprep.subr.mxu0 0.0
  %2755 = vmatpush1.msra.mxu0 0.0
  %2756 = vmatprep.subr.mxu0 0.0
  %2757 = vmatpush1.msra.mxu0 0.0
  %2758 = vmatprep.subr.mxu0 0.0
  %2759 = vmatpush1.msra.mxu0 0.0
  %2760 = vmatprep.subr.mxu0 0.0
  %2761 = vmatpush1.msra.mxu0 0.0
  %2762 = vmatprep.subr.mxu0 0.0
  %2763 = vmatpush1.msra.mxu0 0.0
  %2764 = vmatprep.subr.mxu0 0.0
  %2765 = vmatpush1.msra.mxu0 0.0
  %2766 = vmatprep.mubr.f32.mxu0 0.0
  %2767 = vmatmul.mubr.f32.gmra.mrb[0].mxu0 %v2697
  %v2768 = vpop.f32.mrb[0].mxu0
  %v2769 = vadd.f32 %v2693, %v2768
  %v2770 = vpop.f32.mrb[0].mxu0
  %2771 = vmatprep.mubr.f32.mxu0 0.0
  %2772 = vmatmul.mubr.f32.gmra.mrb[0].mxu0 %v2700
  %v2773 = vpop.f32.mrb[0].mxu0
  %v2774 = vadd.f32 %v2693, %v2773
  %v2775 = vpop.f32.mrb[0].mxu0
  %2776 = vdwg.mxu0
  %vm2777 = vcmask 48128
  %2778 = vst.msk [vmem:[%s9] sm:$0xff] %vm2777, %v2769
  %2779 = vst.msk [vmem:[%s9 + $0x8] sm:$0xff] %vm2777, %v2774
  // Predicated region
  $region38: #{forward.3} parent=0 // pred_check
    _
  $region39: #{forward.3} parent=0 // pred_check_branch
    %2781 = sbr.rel (0) target = $region41
  $region40: #{forward.3} parent=0 // pred_region
    _
  $region41: #{forward.3} parent=0 // pred_fallthru
    _
  // Predicated region
  $region42: #{forward.3} parent=0 // pred_check
    _
  $region43: #{forward.3} parent=0 // pred_check_branch
    %2783 = sbr.rel (0) target = $region45
  $region44: #{forward.3} parent=0 // pred_region
    _
  $region45: #{forward.3} parent=0 // pred_fallthru
    _

</llo_original>
